<compile_context>
chip_gen: v7x
topology: tpu7x:2x2x1
jax: 0.10.0
libtpu: 0.0.40
codegen_flags: <defaults>
</compile_context>

<pallas_src>
import functools

import jax
import jax.numpy as jnp
from jax.experimental import pallas as pl
from jax.experimental.pallas import tpu as pltpu


def _round_up(x, m):
    return (x + m - 1) // m * m


# --------------------------------------------------------------------------- fused tiled matmul
def _fused_matmul_kernel(*refs, pro, pro_relu, epi, epi_relu):
    idx = 0
    a_ref = refs[idx]; idx += 1
    b_ref = refs[idx]; idx += 1
    if pro:
        ksc_ref, ksh_ref = refs[idx], refs[idx + 1]; idx += 2
    if epi:
        nsc_ref, nsh_ref = refs[idx], refs[idx + 1]; idx += 2
    o_ref, acc_ref = refs[idx], refs[idx + 1]

    k = pl.program_id(2)

    @pl.when(k == 0)
    def _init():
        acc_ref[...] = jnp.zeros_like(acc_ref)

    a = a_ref[...]
    if pro:
        # fused pre-BN (+ReLU) on the A tile, per-K column scale/shift.
        # TODO(synk): on v6e/v7x this could run in bf16 (bf16 VALU) to halve VALU ops
        #             if a bundle dump ever shows the prologue binding before the MXU.
        af = a.astype(jnp.float32) * ksc_ref[...] + ksh_ref[...]
        if pro_relu:
            af = jnp.maximum(af, 0.0)
        a = af.astype(jnp.bfloat16)

    acc_ref[...] += jnp.dot(a, b_ref[...], preferred_element_type=jnp.float32)

    @pl.when(k == pl.num_programs(2) - 1)
    def _fin():
        y = acc_ref[...]
        if epi:
            # fused post-BN (+ReLU), per-N column scale/shift
            y = y * nsc_ref[...] + nsh_ref[...]
            if epi_relu:
                y = jnp.maximum(y, 0.0)
        o_ref[...] = y.astype(o_ref.dtype)


def _row_vec(v, n, n_pad):
    return jnp.pad(v.astype(jnp.float32), (0, n_pad - n)).reshape(1, n_pad)


def fused_matmul(a, b, k_scale=None, k_shift=None, pro_relu=False,
                 n_scale=None, n_shift=None, epi_relu=False,
                 out_dtype=jnp.bfloat16):
    """(M,K)@(K,N) tiled bf16 MXU matmul with f32 VMEM accumulation.

    Optional fused prologue relu(a*k_scale+k_shift) (per-K column) and epilogue
    relu(acc*n_scale+n_shift) (per-N column).  Operands / BlockSpecs for inactive
    fusions are dropped entirely (no dummy scale/shift DMAs).  Tiles grow up to 512
    when the padded shapes allow; even 512x512x512 double-buffered bf16 tiles plus
    the f32 accumulator stay ~4 MiB, safely under v5e/v6e/v7x scoped-VMEM defaults.
    Zero padding to tile multiples never changes valid outputs (padded rows are
    sliced off; padded K columns have zero weights).
    """
    M, K = a.shape
    K2, N = b.shape
    assert K == K2
    pro = k_scale is not None
    epi = n_scale is not None

    Mp, Kp, Np = _round_up(M, 128), _round_up(K, 128), _round_up(N, 128)

    def _pick(d):
        for c in (512, 256, 128):
            if d % c == 0:
                return c
        return 128

    tm, tk, tn = _pick(Mp), _pick(Kp), _pick(Np)
    # v7x has 2 TensorCores sharded across "parallel" grid axes: try to expose >=2
    # parallel tiles when the tile choice allows it.
    if Mp // tm == 1 and Np // tn == 1:
        if tn > 128:
            tn //= 2
        elif tm > 128:
            tm //= 2
        # TODO(synk): at (Mp,Np)=(128,128) only one parallel tile exists; fold more
        #             batch/spatial rows into M upstream to feed the second v7x core.

    a_p = jnp.pad(a.astype(jnp.bfloat16), ((0, Mp - M), (0, Kp - K)))
    b_p = jnp.pad(b.astype(jnp.bfloat16), ((0, Kp - K), (0, Np - N)))

    operands = [a_p, b_p]
    in_specs = [pl.BlockSpec((tm, tk), lambda i, j, k: (i, k)),
                pl.BlockSpec((tk, tn), lambda i, j, k: (k, j))]
    if pro:
        operands += [_row_vec(k_scale, K, Kp), _row_vec(k_shift, K, Kp)]
        in_specs += [pl.BlockSpec((1, tk), lambda i, j, k: (0, k))] * 2
    if epi:
        operands += [_row_vec(n_scale, N, Np), _row_vec(n_shift, N, Np)]
        in_specs += [pl.BlockSpec((1, tn), lambda i, j, k: (0, j))] * 2

    kern = functools.partial(_fused_matmul_kernel, pro=pro, pro_relu=pro_relu,
                             epi=epi, epi_relu=epi_relu)
    out = pl.pallas_call(
        kern,
        out_shape=jax.ShapeDtypeStruct((Mp, Np), out_dtype),
        grid=(Mp // tm, Np // tn, Kp // tk),
        in_specs=in_specs,
        out_specs=pl.BlockSpec((tm, tn), lambda i, j, k: (i, j)),
        scratch_shapes=[pltpu.VMEM((tm, tn), jnp.float32)],
        compiler_params=pltpu.CompilerParams(
            dimension_semantics=("parallel", "parallel", "arbitrary")),
    )(*operands)
    if Mp != M or Np != N:
        out = out[:M, :N]
    return out


# --------------------------------------------------- fused 3x3 conv + DenseNet channel concat
def _dense_conv_concat_kernel(y1_ref, prev_ref, w_ref, o_ref, xpad_ref, acc_ref,
                              *, H, W, off, growth):
    # y1_ref  : (1, H, W, Cin)  bf16, bottleneck output (BN2+ReLU already applied)
    # prev_ref: (1, H, W, Cp)   bf16, current block activation slab (Cp multiple of 128)
    # w_ref   : (9, Cin, growth) bf16 conv2 weights, tap-major
    # o_ref   : (1, H, W, Cp)   = prev with channels [off, off+growth) replaced by conv
    Wp = W + 2
    mo = H * Wp

    # Build the spatially padded activation rows in VMEM (no HBM jnp.pad round trip).
    xpad_ref[...] = jnp.zeros_like(xpad_ref)
    for h in range(H):                                     # static loop, H is tiny
        r0 = (h + 1) * Wp + 1
        xpad_ref[r0:r0 + W, :] = y1_ref[0, h, :, :]

    # 9-tap accumulation: each tap is a contiguous row window -> one MXU dot.
    # TODO(synk): on v6e/v7x taps could be paired along K (K=256 dots) to halve
    #             vmatmul pushes; no benefit on v5e's 128-wide MXU.
    acc_ref[...] = jnp.zeros_like(acc_ref)
    for i in range(3):
        for j in range(3):
            t = i * 3 + j
            win = xpad_ref[i * Wp + j:i * Wp + j + mo, :]
            acc_ref[...] += jnp.dot(win, w_ref[t], preferred_element_type=jnp.float32)

    # Fused DenseNet concat: pass every previous channel through and drop the new
    # `growth` channels at their slab offset; the HBM store of the whole block is a
    # single lane-dense (128-multiple wide) write.  The Wp->W crop happens here.
    o_ref[...] = prev_ref[...]
    for h in range(H):
        o_ref[0, h, :, off:off + growth] = (
            acc_ref[h * Wp:h * Wp + W, :].astype(o_ref.dtype))


def dense_layer_conv_concat(y1, prev, w, off):
    """3x3 stride-1 'same' conv of y1 fused with the DenseNet concat into `prev`.

    Returns a new (N,H,W,Cp) slab equal to `prev` with channels [off, off+growth)
    replaced by conv3x3(y1).  No im2col, no separate concat, no crop copies in HBM.
    """
    N, H, W, Cin = y1.shape
    _, _, _, Cp = prev.shape
    growth, Cin2, kh, kw = w.shape
    assert Cin == Cin2 and (kh, kw) == (3, 3) and off + growth <= Cp
    Wp = W + 2
    wt = jnp.transpose(w, (2, 3, 1, 0)).reshape(9, Cin, growth).astype(jnp.bfloat16)
    kern = functools.partial(_dense_conv_concat_kernel,
                             H=H, W=W, off=off, growth=growth)
    # TODO(synk): at real DenseNet resolutions tile the spatial rows (2*Wp halo) and
    #             the Cp channel groups so per-step VMEM stays inside v7x's 64 MiB.
    return pl.pallas_call(
        kern,
        out_shape=jax.ShapeDtypeStruct((N, H, W, Cp), jnp.bfloat16),
        grid=(N,),
        in_specs=[
            pl.BlockSpec((1, H, W, Cin), lambda n: (n, 0, 0, 0)),
            pl.BlockSpec((1, H, W, Cp), lambda n: (n, 0, 0, 0)),
            pl.BlockSpec((9, Cin, growth), lambda n: (0, 0, 0)),
        ],
        out_specs=pl.BlockSpec((1, H, W, Cp), lambda n: (n, 0, 0, 0)),
        scratch_shapes=[pltpu.VMEM(((H + 3) * Wp, Cin), jnp.bfloat16),
                        pltpu.VMEM((H * Wp, growth), jnp.float32)],
        compiler_params=pltpu.CompilerParams(dimension_semantics=("parallel",)),
    )(y1, prev, wt)


# --------------------------------------------------------------------------- pooling kernels
def _maxpool_kernel(p00_ref, p01_ref, p10_ref, p11_ref, o_ref, *, ho, wo):
    # 3x3 / stride-2 / pad-1 max over the 4 even/odd spatial phases.
    phases = ((p00_ref, p01_ref), (p10_ref, p11_ref))
    r = None
    for i in range(3):
        for j in range(3):
            t = phases[i % 2][j % 2][0, i // 2:i // 2 + ho, j // 2:j // 2 + wo, :]
            r = t if r is None else jnp.maximum(r, t)
    o_ref[0] = r.astype(o_ref.dtype)


def maxpool_3x3_s2_p1(x):
    N, H, W, C = x.shape
    assert H % 2 == 0 and W % 2 == 0  # TODO(synk): odd spatial sizes unused for this config
    ho, wo = H // 2, W // 2
    neg = float(jnp.finfo(x.dtype).min)            # finite pad value (bf16-representable)
    xp = jnp.pad(x, ((0, 0), (1, 1), (1, 1), (0, 0)), constant_values=neg)
    # TODO(synk): the XLA phase extraction costs ~1x extra HBM traffic; it could move
    #             to in-kernel strided pl.ds reads if a profile shows it matters.
    phases = [xp[:, a::2, b::2, :] for a in (0, 1) for b in (0, 1)]
    hh, wh = ho + 1, wo + 1
    kern = functools.partial(_maxpool_kernel, ho=ho, wo=wo)
    return pl.pallas_call(
        kern,
        out_shape=jax.ShapeDtypeStruct((N, ho, wo, C), x.dtype),
        grid=(N,),
        in_specs=[pl.BlockSpec((1, hh, wh, C), lambda n: (n, 0, 0, 0)) for _ in range(4)],
        out_specs=pl.BlockSpec((1, ho, wo, C), lambda n: (n, 0, 0, 0)),
        compiler_params=pltpu.CompilerParams(dimension_semantics=("parallel",)),
    )(*phases)


def _avgpool_bnrelu_kernel(p00_ref, p01_ref, p10_ref, p11_ref, sc_ref, sh_ref, o_ref):
    # 2x2 stride-2 average of relu(x*scale+shift); BN+ReLU fused per phase (VPU epilogue).
    s = None
    for p_ref in (p00_ref, p01_ref, p10_ref, p11_ref):
        v = p_ref[...].astype(jnp.float32) * sc_ref[...] + sh_ref[...]
        v = jnp.maximum(v, 0.0)
        s = v if s is None else s + v
    o_ref[...] = (s * 0.25).astype(o_ref.dtype)


def avgpool_bnrelu_2x2(x, scale, shift):
    N, H, W, C = x.shape
    assert H % 2 == 0 and W % 2 == 0
    ho, wo = H // 2, W // 2
    phases = [x[:, a::2, b::2, :] for a in (0, 1) for b in (0, 1)]
    sc = scale.astype(jnp.float32).reshape(1, 1, 1, C)
    sh = shift.astype(jnp.float32).reshape(1, 1, 1, C)
    return pl.pallas_call(
        _avgpool_bnrelu_kernel,
        out_shape=jax.ShapeDtypeStruct((N, ho, wo, C), x.dtype),
        grid=(N,),
        in_specs=[pl.BlockSpec((1, ho, wo, C), lambda n: (n, 0, 0, 0)) for _ in range(4)]
                + [pl.BlockSpec((1, 1, 1, C), lambda n: (0, 0, 0, 0))] * 2,
        out_specs=pl.BlockSpec((1, ho, wo, C), lambda n: (n, 0, 0, 0)),
        compiler_params=pltpu.CompilerParams(dimension_semantics=("parallel",)),
    )(*phases, sc, sh)


# --------------------------------------------------------------------------- glue helpers
def _im2col(x, kh, kw, stride, pad):
    """Only used for conv0 (stride 2); bounded blow-up since Cin = raw input channels."""
    N, H, W, C = x.shape
    xp = jnp.pad(x, ((0, 0), (pad, pad), (pad, pad), (0, 0)))
    Ho = (H + 2 * pad - kh) // stride + 1
    Wo = (W + 2 * pad - kw) // stride + 1
    taps = [xp[:, i:i + stride * Ho:stride, j:j + stride * Wo:stride, :]
            for i in range(kh) for j in range(kw)]
    # tap axis adjacent to C -> the reshape to (M, K) is layout-free (no transpose pass)
    pat = jnp.stack(taps, axis=3)
    return pat.reshape(N * Ho * Wo, kh * kw * C), Ho, Wo


def _bn_scale_shift(p, eps=1e-5):
    scale = p["gamma"] * jax.lax.rsqrt(p["var"] + eps)
    shift = p["beta"] - p["mean"] * scale
    return scale, shift


# --------------------------------------------------------------------------- params
def _conv_init(key, cout, cin, kh, kw):
    fan_in = cin * kh * kw
    std = (2.0 / fan_in) ** 0.5  # kaiming_normal_, as in torchvision DenseNet init
    return std * jax.random.normal(key, (cout, cin, kh, kw), dtype=jnp.float32)


def _bn_init(c):
    return dict(
        gamma=jnp.ones((c,), jnp.float32),
        beta=jnp.zeros((c,), jnp.float32),
        mean=jnp.zeros((c,), jnp.float32),
        var=jnp.ones((c,), jnp.float32),
    )


def make_densenet_params(key, channels, height, width, nr_classes,
                         growth_rate=32, block_config=(2, 2),
                         num_init_features=64, bn_size=4):
    keys = iter(jax.random.split(key, 256))
    params = {}
    params["conv0"] = _conv_init(next(keys), num_init_features, channels, 7, 7)
    params["norm0"] = _bn_init(num_init_features)

    c = num_init_features
    blocks, transitions = [], []
    for bi, n_layers in enumerate(block_config):
        layers = []
        for _ in range(n_layers):
            layers.append(dict(
                norm1=_bn_init(c),
                conv1=_conv_init(next(keys), bn_size * growth_rate, c, 1, 1),
                norm2=_bn_init(bn_size * growth_rate),
                conv2=_conv_init(next(keys), growth_rate, bn_size * growth_rate, 3, 3),
            ))
            c += growth_rate
        blocks.append(layers)
        if bi != len(block_config) - 1:
            transitions.append(dict(
                norm=_bn_init(c),
                conv=_conv_init(next(keys), c // 2, c, 1, 1),
            ))
            c = c // 2
    params["blocks"] = blocks
    params["transitions"] = transitions
    params["norm5"] = _bn_init(c)

    # Feature-map spatial size: conv0 s2 p3 k7, maxpool s2, one avgpool s2 per transition.
    h = (height + 2 * 3 - 7) // 2 + 1
    w = (width + 2 * 3 - 7) // 2 + 1
    h = (h + 2 * 1 - 3) // 2 + 1
    w = (w + 2 * 1 - 3) // 2 + 1
    for _ in transitions:
        h, w = h // 2, w // 2
    in_features = c * h * w
    bound = 1.0 / (in_features ** 0.5)  # nn.Linear default init, bias=False
    params["classifier"] = jax.random.uniform(
        next(keys), (nr_classes, in_features), jnp.float32, -bound, bound)
    return params


# --------------------------------------------------------------------------- forward
def densenet_forward(params, x_nchw):
    n = x_nchw.shape[0]
    blocks = params["blocks"]
    growth = blocks[0][0]["conv2"].shape[0]
    x = jnp.transpose(x_nchw, (0, 2, 3, 1)).astype(jnp.bfloat16)   # NHWC, bf16 activations

    # conv0 (7x7 s2 p3) with norm0+relu0 in the matmul epilogue.  The output is emitted
    # already zero-padded to block-1's 128-multiple channel width so the activation slab
    # is lane-dense from the start and the maxpool output doubles as block-1's buffer.
    w0 = params["conv0"]
    cout0, cin0, kh, kw = w0.shape
    cp = _round_up(cout0 + len(blocks[0]) * growth, 128)
    pat, ho, wo = _im2col(x, kh, kw, stride=2, pad=3)
    w0m = jnp.transpose(w0, (2, 3, 1, 0)).reshape(kh * kw * cin0, cout0)
    w0m = jnp.pad(w0m, ((0, 0), (0, cp - cout0)))
    s0, b0 = _bn_scale_shift(params["norm0"])
    s0 = jnp.pad(s0, (0, cp - cout0))
    b0 = jnp.pad(b0, (0, cp - cout0))
    y = fused_matmul(pat, w0m, n_scale=s0, n_shift=b0, epi_relu=True)
    x = y.reshape(n, ho, wo, cp)
    x = maxpool_3x3_s2_p1(x)            # (n, h, w, cp); channels >= cout0 stay exactly zero

    c = cout0
    for bi, block in enumerate(blocks):
        nb, h, w_, cp = x.shape
        off = c
        for layer in block:
            s1, h1 = _bn_scale_shift(layer["norm1"])       # (off,)
            s2, h2 = _bn_scale_shift(layer["norm2"])       # (bn_size*growth,)
            w1 = layer["conv1"][:, :, 0, 0].T              # (off, bn_size*growth)
            # Zero-extend the K side up to cp: padded activation channels are exact
            # zeros and padded weights/scales are zero, so reading the full lane-dense
            # slab (no prefix-slice copy) is identical to reading the first `off` chans.
            w1p = jnp.pad(w1, ((0, cp - off), (0, 0)))
            s1p = jnp.pad(s1, (0, cp - off))
            h1p = jnp.pad(h1, (0, cp - off))
            # _DenseLayer: BN1-ReLU-Conv1x1-BN2-ReLU fused into ONE MXU matmul.
            y1 = fused_matmul(x.reshape(nb * h * w_, cp), w1p,
                              k_scale=s1p, k_shift=h1p, pro_relu=True,
                              n_scale=s2, n_shift=h2, epi_relu=True)
            y1 = y1.reshape(nb, h, w_, -1)
            # 3x3 conv + DenseNet concat fused in one kernel (writes directly into slab).
            x = dense_layer_conv_concat(y1, x, layer["conv2"], off)
            off += growth
        c = off
        if bi != len(blocks) - 1:
            t = params["transitions"][bi]
            st, ht = _bn_scale_shift(t["norm"])            # (c,)
            st = jnp.pad(st, (0, cp - c))
            ht = jnp.pad(ht, (0, cp - c))
            # _Transition reordered: BN+ReLU fused into the 2x2 avgpool, then the 1x1
            # conv runs on 4x fewer rows (pool and 1x1 conv are both linear -> exact).
            xp = avgpool_bnrelu_2x2(x, st, ht)
            nb, h2_, w2_, _ = xp.shape
            c_next = c // 2
            cp_next = _round_up(c_next + len(blocks[bi + 1]) * growth, 128)
            wt = t["conv"][:, :, 0, 0].T                   # (c, c_next)
            wtp = jnp.pad(wt, ((0, cp - c), (0, cp_next - c_next)))
            y = fused_matmul(xp.reshape(nb * h2_ * w2_, cp), wtp)
            x = y.reshape(nb, h2_, w2_, cp_next)           # zero-padded slab for next block
            c = c_next

    # norm5 + NCHW flatten + bias-free Linear head, folded into one tiny XLA matmul
    # (per perf review: a (2 x nr_classes) Pallas matmul is pure launch overhead).
    nb, h, w_, cp = x.shape
    s5, b5 = _bn_scale_shift(params["norm5"])              # (c,)
    s5 = jnp.pad(s5, (0, cp - c))
    b5 = jnp.pad(b5, (0, cp - c))
    feats = x.reshape(nb, h * w_ * cp).astype(jnp.float32)  # NHWC flatten: no transpose pass
    wc = params["classifier"]                               # columns in NCHW-flat order
    wc_perm = wc.reshape(-1, c, h, w_).transpose(0, 2, 3, 1)
    wc_perm = jnp.pad(wc_perm, ((0, 0), (0, 0), (0, 0), (0, cp - c)))
    wc_perm = wc_perm.reshape(-1, h * w_ * cp)
    scale_flat = jnp.tile(s5, h * w_)
    shift_flat = jnp.tile(b5, h * w_)
    w_eff = wc_perm * scale_flat[None, :]
    b_eff = wc_perm @ shift_flat
    logits = feats @ w_eff.T + b_eff[None, :]
    return logits


# --------------------------------------------------------------------------- main
if __name__ == "__main__":
    batch, channels, height, width, nr_classes = 2, 4, 16, 16, 10

    key = jax.random.PRNGKey(0)
    pkey, xkey = jax.random.split(key)
    params = make_densenet_params(pkey, channels, height, width, nr_classes)
    x = jax.random.normal(xkey, (batch, channels, height, width), dtype=jnp.float32)

    fwd = jax.jit(functools.partial(densenet_forward, params))
    out = jax.block_until_ready(fwd(x))
    assert out.shape == (batch, nr_classes), out.shape
    print("KERNEL_OK")
</pallas_src>

<mosaic_0001>
module attributes {stable_mosaic.version = 11 : i64} {
  func.func @_fused_matmul_kernel(%arg0: i32, %arg1: i32, %arg2: i32, %arg3: memref<128x256xbf16, #tpu.memory_space<vmem>>, %arg4: memref<256x128xbf16, #tpu.memory_space<vmem>>, %arg5: memref<1x128xf32, #tpu.memory_space<vmem>>, %arg6: memref<1x128xf32, #tpu.memory_space<vmem>>, %arg7: memref<128x128xbf16, #tpu.memory_space<vmem>>, %arg8: memref<128x128xf32, #tpu.memory_space<vmem>>) attributes {dimension_semantics = [#tpu.dimension_semantics<parallel>, #tpu.dimension_semantics<parallel>, #tpu.dimension_semantics<arbitrary>], iteration_bounds = array<i64: 1, 1, 1>, scalar_prefetch = 0 : i64, scratch_operands = 1 : i64, tpu.core_type = #tpu.core_type<tc>, window_params = [{transform_indices = @transform_0, window_bounds = array<i64: 128, 256>}, {transform_indices = @transform_1, window_bounds = array<i64: 256, 128>}, {transform_indices = @transform_2, window_bounds = array<i64: 1, 128>}, {transform_indices = @transform_3, window_bounds = array<i64: 1, 128>}, {transform_indices = @transform_4, window_bounds = array<i64: 128, 128>}]} {
    %c0_i32 = arith.constant 0 : i32
    %0 = arith.cmpi eq, %arg2, %c0_i32 : i32
    %1 = arith.extui %0 : i1 to i32
    %c0_i32_0 = arith.constant 0 : i32
    %2 = arith.cmpi ne, %1, %c0_i32_0 : i32
    scf.if %2 {
      %cst_10 = arith.constant 0.000000e+00 : f32
      %12 = vector.broadcast %cst_10 : f32 to vector<128x128xf32>
      %c0_11 = arith.constant 0 : index
      %c0_12 = arith.constant 0 : index
      %13 = vector.load %arg8[%c0_11, %c0_12] : memref<128x128xf32, #tpu.memory_space<vmem>>, vector<128x128xf32>
      tpu.vector_store %arg8[%c0_11, %c0_12], %12 {strides = array<i32>} : memref<128x128xf32, #tpu.memory_space<vmem>>, vector<128x128xf32>,
    } else {
    }
    %c0 = arith.constant 0 : index
    %c0_1 = arith.constant 0 : index
    %3 = vector.load %arg3[%c0, %c0_1] : memref<128x256xbf16, #tpu.memory_space<vmem>>, vector<128x256xbf16>
    %c0_2 = arith.constant 0 : index
    %c0_3 = arith.constant 0 : index
    %4 = vector.load %arg8[%c0_2, %c0_3] : memref<128x128xf32, #tpu.memory_space<vmem>>, vector<128x128xf32>
    %c0_4 = arith.constant 0 : index
    %c0_5 = arith.constant 0 : index
    %5 = vector.load %arg4[%c0_4, %c0_5] : memref<256x128xbf16, #tpu.memory_space<vmem>>, vector<256x128xbf16>
    %cst = arith.constant dense<0.000000e+00> : vector<128x128xf32>
    %6 = tpu.matmul %3, %5, %cst {dimension_numbers = #tpu.dot_dimension_numbers<[1], [0], [0], [1], [0, 0, 1, 1], [], []>} : vector<128x256xbf16>, vector<256x128xbf16>, vector<128x128xf32> -> vector<128x128xf32>
    %7 = arith.addf %4, %6 : vector<128x128xf32>
    %c0_6 = arith.constant 0 : index
    %c0_7 = arith.constant 0 : index
    %8 = vector.load %arg8[%c0_6, %c0_7] : memref<128x128xf32, #tpu.memory_space<vmem>>, vector<128x128xf32>
    tpu.vector_store %arg8[%c0_6, %c0_7], %7 {strides = array<i32>} : memref<128x128xf32, #tpu.memory_space<vmem>>, vector<128x128xf32>,
    %c0_i32_8 = arith.constant 0 : i32
    %9 = arith.cmpi eq, %arg2, %c0_i32_8 : i32
    %10 = arith.extui %9 : i1 to i32
    %c0_i32_9 = arith.constant 0 : i32
    %11 = arith.cmpi ne, %10, %c0_i32_9 : i32
    scf.if %11 {
      %c0_10 = arith.constant 0 : index
      %c0_11 = arith.constant 0 : index
      %12 = vector.load %arg8[%c0_10, %c0_11] : memref<128x128xf32, #tpu.memory_space<vmem>>, vector<128x128xf32>
      %c0_12 = arith.constant 0 : index
      %c0_13 = arith.constant 0 : index
      %13 = vector.load %arg5[%c0_12, %c0_13] : memref<1x128xf32, #tpu.memory_space<vmem>>, vector<1x128xf32>
      %14 = vector.broadcast %13 : vector<1x128xf32> to vector<128x128xf32>
      %15 = arith.mulf %12, %14 : vector<128x128xf32>
      %c0_14 = arith.constant 0 : index
      %c0_15 = arith.constant 0 : index
      %16 = vector.load %arg6[%c0_14, %c0_15] : memref<1x128xf32, #tpu.memory_space<vmem>>, vector<1x128xf32>
      %17 = vector.broadcast %16 : vector<1x128xf32> to vector<128x128xf32>
      %18 = arith.addf %15, %17 : vector<128x128xf32>
      %cst_16 = arith.constant 0.000000e+00 : f32
      %19 = vector.broadcast %cst_16 : f32 to vector<128x128xf32>
      %20 = arith.maximumf %18, %19 : vector<128x128xf32>
      %21 = arith.truncf %20 : vector<128x128xf32> to vector<128x128xbf16>
      %c0_17 = arith.constant 0 : index
      %c0_18 = arith.constant 0 : index
      %22 = vector.load %arg7[%c0_17, %c0_18] : memref<128x128xbf16, #tpu.memory_space<vmem>>, vector<128x128xbf16>
      tpu.vector_store %arg7[%c0_17, %c0_18], %21 {strides = array<i32>} : memref<128x128xbf16, #tpu.memory_space<vmem>>, vector<128x128xbf16>,
    } else {
    }
    return
  }
  func.func @transform_0(%arg0: i32, %arg1: i32, %arg2: i32) -> (i32, i32) {
    %c0_i32 = arith.constant 0 : i32
    return %arg0, %arg2 : i32, i32
  }
  func.func @transform_1(%arg0: i32, %arg1: i32, %arg2: i32) -> (i32, i32) {
    %c0_i32 = arith.constant 0 : i32
    return %arg2, %arg1 : i32, i32
  }
  func.func @transform_2(%arg0: i32, %arg1: i32, %arg2: i32) -> (i32, i32) {
    %c0_i32 = arith.constant 0 : i32
    %c0_i32_0 = arith.constant 0 : i32
    return %c0_i32, %arg1 : i32, i32
  }
  func.func @transform_3(%arg0: i32, %arg1: i32, %arg2: i32) -> (i32, i32) {
    %c0_i32 = arith.constant 0 : i32
    %c0_i32_0 = arith.constant 0 : i32
    return %c0_i32, %arg1 : i32, i32
  }
  func.func @transform_4(%arg0: i32, %arg1: i32, %arg2: i32) -> (i32, i32) {
    %c0_i32 = arith.constant 0 : i32
    return %arg0, %arg1 : i32, i32
  }
}

module attributes {stable_mosaic.version = 11 : i64} {
  func.func @_maxpool_kernel(%arg0: i32, %arg1: memref<1x5x5x128xbf16, #tpu.memory_space<vmem>>, %arg2: memref<1x5x5x128xbf16, #tpu.memory_space<vmem>>, %arg3: memref<1x5x5x128xbf16, #tpu.memory_space<vmem>>, %arg4: memref<1x5x5x128xbf16, #tpu.memory_space<vmem>>, %arg5: memref<1x4x4x128xbf16, #tpu.memory_space<vmem>>) attributes {dimension_semantics = [#tpu.dimension_semantics<parallel>], iteration_bounds = array<i64: 2>, scalar_prefetch = 0 : i64, scratch_operands = 0 : i64, tpu.core_type = #tpu.core_type<tc>, window_params = [{transform_indices = @transform_0, window_bounds = array<i64: 1, 5, 5, 128>}, {transform_indices = @transform_1, window_bounds = array<i64: 1, 5, 5, 128>}, {transform_indices = @transform_2, window_bounds = array<i64: 1, 5, 5, 128>}, {transform_indices = @transform_3, window_bounds = array<i64: 1, 5, 5, 128>}, {transform_indices = @transform_4, window_bounds = array<i64: 1, 4, 4, 128>}]} {
    %c0 = arith.constant 0 : index
    %c0_0 = arith.constant 0 : index
    %c0_1 = arith.constant 0 : index
    %c0_2 = arith.constant 0 : index
    %0 = vector.load %arg1[%c0, %c0_0, %c0_1, %c0_2] : memref<1x5x5x128xbf16, #tpu.memory_space<vmem>>, vector<1x4x4x128xbf16>
    %1 = vector.shape_cast %0 : vector<1x4x4x128xbf16> to vector<4x4x128xbf16>
    %c0_3 = arith.constant 0 : index
    %c0_4 = arith.constant 0 : index
    %c0_5 = arith.constant 0 : index
    %c0_6 = arith.constant 0 : index
    %2 = vector.load %arg2[%c0_3, %c0_4, %c0_5, %c0_6] : memref<1x5x5x128xbf16, #tpu.memory_space<vmem>>, vector<1x4x4x128xbf16>
    %3 = vector.shape_cast %2 : vector<1x4x4x128xbf16> to vector<4x4x128xbf16>
    %4 = arith.maximumf %1, %3 : vector<4x4x128xbf16>
    %c0_7 = arith.constant 0 : index
    %c0_8 = arith.constant 0 : index
    %c1 = arith.constant 1 : index
    %c0_9 = arith.constant 0 : index
    %5 = vector.load %arg1[%c0_7, %c0_8, %c1, %c0_9] : memref<1x5x5x128xbf16, #tpu.memory_space<vmem>>, vector<1x4x4x128xbf16>
    %6 = vector.shape_cast %5 : vector<1x4x4x128xbf16> to vector<4x4x128xbf16>
    %7 = arith.maximumf %4, %6 : vector<4x4x128xbf16>
    %c0_10 = arith.constant 0 : index
    %c0_11 = arith.constant 0 : index
    %c0_12 = arith.constant 0 : index
    %c0_13 = arith.constant 0 : index
    %8 = vector.load %arg3[%c0_10, %c0_11, %c0_12, %c0_13] : memref<1x5x5x128xbf16, #tpu.memory_space<vmem>>, vector<1x4x4x128xbf16>
    %9 = vector.shape_cast %8 : vector<1x4x4x128xbf16> to vector<4x4x128xbf16>
    %10 = arith.maximumf %7, %9 : vector<4x4x128xbf16>
    %c0_14 = arith.constant 0 : index
    %c0_15 = arith.constant 0 : index
    %c0_16 = arith.constant 0 : index
    %c0_17 = arith.constant 0 : index
    %11 = vector.load %arg4[%c0_14, %c0_15, %c0_16, %c0_17] : memref<1x5x5x128xbf16, #tpu.memory_space<vmem>>, vector<1x4x4x128xbf16>
    %12 = vector.shape_cast %11 : vector<1x4x4x128xbf16> to vector<4x4x128xbf16>
    %13 = arith.maximumf %10, %12 : vector<4x4x128xbf16>
    %c0_18 = arith.constant 0 : index
    %c0_19 = arith.constant 0 : index
    %c1_20 = arith.constant 1 : index
    %c0_21 = arith.constant 0 : index
    %14 = vector.load %arg3[%c0_18, %c0_19, %c1_20, %c0_21] : memref<1x5x5x128xbf16, #tpu.memory_space<vmem>>, vector<1x4x4x128xbf16>
    %15 = vector.shape_cast %14 : vector<1x4x4x128xbf16> to vector<4x4x128xbf16>
    %16 = arith.maximumf %13, %15 : vector<4x4x128xbf16>
    %c0_22 = arith.constant 0 : index
    %c1_23 = arith.constant 1 : index
    %c0_24 = arith.constant 0 : index
    %c0_25 = arith.constant 0 : index
    %17 = vector.load %arg1[%c0_22, %c1_23, %c0_24, %c0_25] : memref<1x5x5x128xbf16, #tpu.memory_space<vmem>>, vector<1x4x4x128xbf16>
    %18 = vector.shape_cast %17 : vector<1x4x4x128xbf16> to vector<4x4x128xbf16>
    %19 = arith.maximumf %16, %18 : vector<4x4x128xbf16>
    %c0_26 = arith.constant 0 : index
    %c1_27 = arith.constant 1 : index
    %c0_28 = arith.constant 0 : index
    %c0_29 = arith.constant 0 : index
    %20 = vector.load %arg2[%c0_26, %c1_27, %c0_28, %c0_29] : memref<1x5x5x128xbf16, #tpu.memory_space<vmem>>, vector<1x4x4x128xbf16>
    %21 = vector.shape_cast %20 : vector<1x4x4x128xbf16> to vector<4x4x128xbf16>
    %22 = arith.maximumf %19, %21 : vector<4x4x128xbf16>
    %c0_30 = arith.constant 0 : index
    %c1_31 = arith.constant 1 : index
    %c1_32 = arith.constant 1 : index
    %c0_33 = arith.constant 0 : index
    %23 = vector.load %arg1[%c0_30, %c1_31, %c1_32, %c0_33] : memref<1x5x5x128xbf16, #tpu.memory_space<vmem>>, vector<1x4x4x128xbf16>
    %24 = vector.shape_cast %23 : vector<1x4x4x128xbf16> to vector<4x4x128xbf16>
    %25 = arith.maximumf %22, %24 : vector<4x4x128xbf16>
    %c0_34 = arith.constant 0 : index
    %c0_35 = arith.constant 0 : index
    %c0_36 = arith.constant 0 : index
    %c0_37 = arith.constant 0 : index
    %26 = vector.load %arg5[%c0_34, %c0_35, %c0_36, %c0_37] : memref<1x4x4x128xbf16, #tpu.memory_space<vmem>>, vector<1x4x4x128xbf16>
    %27 = vector.shape_cast %26 : vector<1x4x4x128xbf16> to vector<4x4x128xbf16>
    %28 = vector.shape_cast %25 : vector<4x4x128xbf16> to vector<1x4x4x128xbf16>
    tpu.vector_store %arg5[%c0_34, %c0_35, %c0_36, %c0_37], %28 {strides = array<i32>} : memref<1x4x4x128xbf16, #tpu.memory_space<vmem>>, vector<1x4x4x128xbf16>,
    return
  }
  func.func @transform_0(%arg0: i32) -> (i32, i32, i32, i32) {
    %c0_i32 = arith.constant 0 : i32
    %c0_i32_0 = arith.constant 0 : i32
    %c0_i32_1 = arith.constant 0 : i32
    %c0_i32_2 = arith.constant 0 : i32
    return %arg0, %c0_i32, %c0_i32_0, %c0_i32_1 : i32, i32, i32, i32
  }
  func.func @transform_1(%arg0: i32) -> (i32, i32, i32, i32) {
    %c0_i32 = arith.constant 0 : i32
    %c0_i32_0 = arith.constant 0 : i32
    %c0_i32_1 = arith.constant 0 : i32
    %c0_i32_2 = arith.constant 0 : i32
    return %arg0, %c0_i32, %c0_i32_0, %c0_i32_1 : i32, i32, i32, i32
  }
  func.func @transform_2(%arg0: i32) -> (i32, i32, i32, i32) {
    %c0_i32 = arith.constant 0 : i32
    %c0_i32_0 = arith.constant 0 : i32
    %c0_i32_1 = arith.constant 0 : i32
    %c0_i32_2 = arith.constant 0 : i32
    return %arg0, %c0_i32, %c0_i32_0, %c0_i32_1 : i32, i32, i32, i32
  }
  func.func @transform_3(%arg0: i32) -> (i32, i32, i32, i32) {
    %c0_i32 = arith.constant 0 : i32
    %c0_i32_0 = arith.constant 0 : i32
    %c0_i32_1 = arith.constant 0 : i32
    %c0_i32_2 = arith.constant 0 : i32
    return %arg0, %c0_i32, %c0_i32_0, %c0_i32_1 : i32, i32, i32, i32
  }
  func.func @transform_4(%arg0: i32) -> (i32, i32, i32, i32) {
    %c0_i32 = arith.constant 0 : i32
    %c0_i32_0 = arith.constant 0 : i32
    %c0_i32_1 = arith.constant 0 : i32
    %c0_i32_2 = arith.constant 0 : i32
    return %arg0, %c0_i32, %c0_i32_0, %c0_i32_1 : i32, i32, i32, i32
  }
}

module attributes {stable_mosaic.version = 11 : i64} {
  func.func @_fused_matmul_kernel(%arg0: i32, %arg1: i32, %arg2: i32, %arg3: memref<128x128xbf16, #tpu.memory_space<vmem>>, %arg4: memref<128x128xbf16, #tpu.memory_space<vmem>>, %arg5: memref<1x128xf32, #tpu.memory_space<vmem>>, %arg6: memref<1x128xf32, #tpu.memory_space<vmem>>, %arg7: memref<1x128xf32, #tpu.memory_space<vmem>>, %arg8: memref<1x128xf32, #tpu.memory_space<vmem>>, %arg9: memref<128x128xbf16, #tpu.memory_space<vmem>>, %arg10: memref<128x128xf32, #tpu.memory_space<vmem>>) attributes {dimension_semantics = [#tpu.dimension_semantics<parallel>, #tpu.dimension_semantics<parallel>, #tpu.dimension_semantics<arbitrary>], iteration_bounds = array<i64: 1, 1, 1>, scalar_prefetch = 0 : i64, scratch_operands = 1 : i64, tpu.core_type = #tpu.core_type<tc>, window_params = [{transform_indices = @transform_0, window_bounds = array<i64: 128, 128>}, {transform_indices = @transform_1, window_bounds = array<i64: 128, 128>}, {transform_indices = @transform_2, window_bounds = array<i64: 1, 128>}, {transform_indices = @transform_3, window_bounds = array<i64: 1, 128>}, {transform_indices = @transform_4, window_bounds = array<i64: 1, 128>}, {transform_indices = @transform_5, window_bounds = array<i64: 1, 128>}, {transform_indices = @transform_6, window_bounds = array<i64: 128, 128>}]} {
    %c0_i32 = arith.constant 0 : i32
    %0 = arith.cmpi eq, %arg2, %c0_i32 : i32
    %1 = arith.extui %0 : i1 to i32
    %c0_i32_0 = arith.constant 0 : i32
    %2 = arith.cmpi ne, %1, %c0_i32_0 : i32
    scf.if %2 {
      %cst_15 = arith.constant 0.000000e+00 : f32
      %22 = vector.broadcast %cst_15 : f32 to vector<128x128xf32>
      %c0_16 = arith.constant 0 : index
      %c0_17 = arith.constant 0 : index
      %23 = vector.load %arg10[%c0_16, %c0_17] : memref<128x128xf32, #tpu.memory_space<vmem>>, vector<128x128xf32>
      tpu.vector_store %arg10[%c0_16, %c0_17], %22 {strides = array<i32>} : memref<128x128xf32, #tpu.memory_space<vmem>>, vector<128x128xf32>,
    } else {
    }
    %c0 = arith.constant 0 : index
    %c0_1 = arith.constant 0 : index
    %3 = vector.load %arg3[%c0, %c0_1] : memref<128x128xbf16, #tpu.memory_space<vmem>>, vector<128x128xbf16>
    %4 = arith.extf %3 : vector<128x128xbf16> to vector<128x128xf32>
    %c0_2 = arith.constant 0 : index
    %c0_3 = arith.constant 0 : index
    %5 = vector.load %arg5[%c0_2, %c0_3] : memref<1x128xf32, #tpu.memory_space<vmem>>, vector<1x128xf32>
    %6 = vector.broadcast %5 : vector<1x128xf32> to vector<128x128xf32>
    %7 = arith.mulf %4, %6 : vector<128x128xf32>
    %c0_4 = arith.constant 0 : index
    %c0_5 = arith.constant 0 : index
    %8 = vector.load %arg6[%c0_4, %c0_5] : memref<1x128xf32, #tpu.memory_space<vmem>>, vector<1x128xf32>
    %9 = vector.broadcast %8 : vector<1x128xf32> to vector<128x128xf32>
    %10 = arith.addf %7, %9 : vector<128x128xf32>
    %cst = arith.constant 0.000000e+00 : f32
    %11 = vector.broadcast %cst : f32 to vector<128x128xf32>
    %12 = arith.maximumf %10, %11 : vector<128x128xf32>
    %13 = arith.truncf %12 : vector<128x128xf32> to vector<128x128xbf16>
    %c0_6 = arith.constant 0 : index
    %c0_7 = arith.constant 0 : index
    %14 = vector.load %arg10[%c0_6, %c0_7] : memref<128x128xf32, #tpu.memory_space<vmem>>, vector<128x128xf32>
    %c0_8 = arith.constant 0 : index
    %c0_9 = arith.constant 0 : index
    %15 = vector.load %arg4[%c0_8, %c0_9] : memref<128x128xbf16, #tpu.memory_space<vmem>>, vector<128x128xbf16>
    %cst_10 = arith.constant dense<0.000000e+00> : vector<128x128xf32>
    %16 = tpu.matmul %13, %15, %cst_10 {dimension_numbers = #tpu.dot_dimension_numbers<[1], [0], [0], [1], [0, 0, 1, 1], [], []>} : vector<128x128xbf16>, vector<128x128xbf16>, vector<128x128xf32> -> vector<128x128xf32>
    %17 = arith.addf %14, %16 : vector<128x128xf32>
    %c0_11 = arith.constant 0 : index
    %c0_12 = arith.constant 0 : index
    %18 = vector.load %arg10[%c0_11, %c0_12] : memref<128x128xf32, #tpu.memory_space<vmem>>, vector<128x128xf32>
    tpu.vector_store %arg10[%c0_11, %c0_12], %17 {strides = array<i32>} : memref<128x128xf32, #tpu.memory_space<vmem>>, vector<128x128xf32>,
    %c0_i32_13 = arith.constant 0 : i32
    %19 = arith.cmpi eq, %arg2, %c0_i32_13 : i32
    %20 = arith.extui %19 : i1 to i32
    %c0_i32_14 = arith.constant 0 : i32
    %21 = arith.cmpi ne, %20, %c0_i32_14 : i32
    scf.if %21 {
      %c0_15 = arith.constant 0 : index
      %c0_16 = arith.constant 0 : index
      %22 = vector.load %arg10[%c0_15, %c0_16] : memref<128x128xf32, #tpu.memory_space<vmem>>, vector<128x128xf32>
      %c0_17 = arith.constant 0 : index
      %c0_18 = arith.constant 0 : index
      %23 = vector.load %arg7[%c0_17, %c0_18] : memref<1x128xf32, #tpu.memory_space<vmem>>, vector<1x128xf32>
      %24 = vector.broadcast %23 : vector<1x128xf32> to vector<128x128xf32>
      %25 = arith.mulf %22, %24 : vector<128x128xf32>
      %c0_19 = arith.constant 0 : index
      %c0_20 = arith.constant 0 : index
      %26 = vector.load %arg8[%c0_19, %c0_20] : memref<1x128xf32, #tpu.memory_space<vmem>>, vector<1x128xf32>
      %27 = vector.broadcast %26 : vector<1x128xf32> to vector<128x128xf32>
      %28 = arith.addf %25, %27 : vector<128x128xf32>
      %cst_21 = arith.constant 0.000000e+00 : f32
      %29 = vector.broadcast %cst_21 : f32 to vector<128x128xf32>
      %30 = arith.maximumf %28, %29 : vector<128x128xf32>
      %31 = arith.truncf %30 : vector<128x128xf32> to vector<128x128xbf16>
      %c0_22 = arith.constant 0 : index
      %c0_23 = arith.constant 0 : index
      %32 = vector.load %arg9[%c0_22, %c0_23] : memref<128x128xbf16, #tpu.memory_space<vmem>>, vector<128x128xbf16>
      tpu.vector_store %arg9[%c0_22, %c0_23], %31 {strides = array<i32>} : memref<128x128xbf16, #tpu.memory_space<vmem>>, vector<128x128xbf16>,
    } else {
    }
    return
  }
  func.func @transform_0(%arg0: i32, %arg1: i32, %arg2: i32) -> (i32, i32) {
    %c0_i32 = arith.constant 0 : i32
    return %arg0, %arg2 : i32, i32
  }
  func.func @transform_1(%arg0: i32, %arg1: i32, %arg2: i32) -> (i32, i32) {
    %c0_i32 = arith.constant 0 : i32
    return %arg2, %arg1 : i32, i32
  }
  func.func @transform_2(%arg0: i32, %arg1: i32, %arg2: i32) -> (i32, i32) {
    %c0_i32 = arith.constant 0 : i32
    %c0_i32_0 = arith.constant 0 : i32
    return %c0_i32, %arg2 : i32, i32
  }
  func.func @transform_3(%arg0: i32, %arg1: i32, %arg2: i32) -> (i32, i32) {
    %c0_i32 = arith.constant 0 : i32
    %c0_i32_0 = arith.constant 0 : i32
    return %c0_i32, %arg2 : i32, i32
  }
  func.func @transform_4(%arg0: i32, %arg1: i32, %arg2: i32) -> (i32, i32) {
    %c0_i32 = arith.constant 0 : i32
    %c0_i32_0 = arith.constant 0 : i32
    return %c0_i32, %arg1 : i32, i32
  }
  func.func @transform_5(%arg0: i32, %arg1: i32, %arg2: i32) -> (i32, i32) {
    %c0_i32 = arith.constant 0 : i32
    %c0_i32_0 = arith.constant 0 : i32
    return %c0_i32, %arg1 : i32, i32
  }
  func.func @transform_6(%arg0: i32, %arg1: i32, %arg2: i32) -> (i32, i32) {
    %c0_i32 = arith.constant 0 : i32
    return %arg0, %arg1 : i32, i32
  }
}

module attributes {stable_mosaic.version = 11 : i64} {
  func.func @_dense_conv_concat_kernel(%arg0: i32, %arg1: memref<1x4x4x128xbf16, #tpu.memory_space<vmem>>, %arg2: memref<1x4x4x128xbf16, #tpu.memory_space<vmem>>, %arg3: memref<9x128x32xbf16, #tpu.memory_space<vmem>>, %arg4: memref<1x4x4x128xbf16, #tpu.memory_space<vmem>>, %arg5: memref<42x128xbf16, #tpu.memory_space<vmem>>, %arg6: memref<24x32xf32, #tpu.memory_space<vmem>>) attributes {dimension_semantics = [#tpu.dimension_semantics<parallel>], iteration_bounds = array<i64: 2>, scalar_prefetch = 0 : i64, scratch_operands = 2 : i64, tpu.core_type = #tpu.core_type<tc>, window_params = [{transform_indices = @transform_0, window_bounds = array<i64: 1, 4, 4, 128>}, {transform_indices = @transform_1, window_bounds = array<i64: 1, 4, 4, 128>}, {pipeline_mode = #tpu.pipeline_mode<synchronous>, transform_indices = @transform_2, window_bounds = array<i64: 9, 128, 32>}, {transform_indices = @transform_3, window_bounds = array<i64: 1, 4, 4, 128>}]} {
    %cst = arith.constant 0.000000e+00 : bf16
    %0 = vector.broadcast %cst : bf16 to vector<42x128xbf16>
    %c0 = arith.constant 0 : index
    %c0_0 = arith.constant 0 : index
    %1 = vector.load %arg5[%c0, %c0_0] : memref<42x128xbf16, #tpu.memory_space<vmem>>, vector<42x128xbf16>
    tpu.vector_store %arg5[%c0, %c0_0], %0 {strides = array<i32>} : memref<42x128xbf16, #tpu.memory_space<vmem>>, vector<42x128xbf16>,
    %c0_1 = arith.constant 0 : index
    %c0_2 = arith.constant 0 : index
    %c0_3 = arith.constant 0 : index
    %c0_4 = arith.constant 0 : index
    %2 = vector.load %arg1[%c0_1, %c0_2, %c0_3, %c0_4] : memref<1x4x4x128xbf16, #tpu.memory_space<vmem>>, vector<1x1x4x128xbf16>
    %3 = vector.shape_cast %2 : vector<1x1x4x128xbf16> to vector<4x128xbf16>
    %c7 = arith.constant 7 : index
    %c0_5 = arith.constant 0 : index
    %4 = vector.load %arg5[%c7, %c0_5] : memref<42x128xbf16, #tpu.memory_space<vmem>>, vector<4x128xbf16>
    tpu.vector_store %arg5[%c7, %c0_5], %3 {strides = array<i32>} : memref<42x128xbf16, #tpu.memory_space<vmem>>, vector<4x128xbf16>,
    %c0_6 = arith.constant 0 : index
    %c1 = arith.constant 1 : index
    %c0_7 = arith.constant 0 : index
    %c0_8 = arith.constant 0 : index
    %5 = vector.load %arg1[%c0_6, %c1, %c0_7, %c0_8] : memref<1x4x4x128xbf16, #tpu.memory_space<vmem>>, vector<1x1x4x128xbf16>
    %6 = vector.shape_cast %5 : vector<1x1x4x128xbf16> to vector<4x128xbf16>
    %c13 = arith.constant 13 : index
    %c0_9 = arith.constant 0 : index
    %7 = vector.load %arg5[%c13, %c0_9] : memref<42x128xbf16, #tpu.memory_space<vmem>>, vector<4x128xbf16>
    tpu.vector_store %arg5[%c13, %c0_9], %6 {strides = array<i32>} : memref<42x128xbf16, #tpu.memory_space<vmem>>, vector<4x128xbf16>,
    %c0_10 = arith.constant 0 : index
    %c2 = arith.constant 2 : index
    %c0_11 = arith.constant 0 : index
    %c0_12 = arith.constant 0 : index
    %8 = vector.load %arg1[%c0_10, %c2, %c0_11, %c0_12] : memref<1x4x4x128xbf16, #tpu.memory_space<vmem>>, vector<1x1x4x128xbf16>
    %9 = vector.shape_cast %8 : vector<1x1x4x128xbf16> to vector<4x128xbf16>
    %c19 = arith.constant 19 : index
    %c0_13 = arith.constant 0 : index
    %10 = vector.load %arg5[%c19, %c0_13] : memref<42x128xbf16, #tpu.memory_space<vmem>>, vector<4x128xbf16>
    tpu.vector_store %arg5[%c19, %c0_13], %9 {strides = array<i32>} : memref<42x128xbf16, #tpu.memory_space<vmem>>, vector<4x128xbf16>,
    %c0_14 = arith.constant 0 : index
    %c3 = arith.constant 3 : index
    %c0_15 = arith.constant 0 : index
    %c0_16 = arith.constant 0 : index
    %11 = vector.load %arg1[%c0_14, %c3, %c0_15, %c0_16] : memref<1x4x4x128xbf16, #tpu.memory_space<vmem>>, vector<1x1x4x128xbf16>
    %12 = vector.shape_cast %11 : vector<1x1x4x128xbf16> to vector<4x128xbf16>
    %c25 = arith.constant 25 : index
    %c0_17 = arith.constant 0 : index
    %13 = vector.load %arg5[%c25, %c0_17] : memref<42x128xbf16, #tpu.memory_space<vmem>>, vector<4x128xbf16>
    tpu.vector_store %arg5[%c25, %c0_17], %12 {strides = array<i32>} : memref<42x128xbf16, #tpu.memory_space<vmem>>, vector<4x128xbf16>,
    %cst_18 = arith.constant 0.000000e+00 : f32
    %14 = vector.broadcast %cst_18 : f32 to vector<24x32xf32>
    %c0_19 = arith.constant 0 : index
    %c0_20 = arith.constant 0 : index
    %15 = vector.load %arg6[%c0_19, %c0_20] : memref<24x32xf32, #tpu.memory_space<vmem>>, vector<24x32xf32>
    tpu.vector_store %arg6[%c0_19, %c0_20], %14 {strides = array<i32>} : memref<24x32xf32, #tpu.memory_space<vmem>>, vector<24x32xf32>,
    %c0_21 = arith.constant 0 : index
    %c0_22 = arith.constant 0 : index
    %16 = vector.load %arg5[%c0_21, %c0_22] : memref<42x128xbf16, #tpu.memory_space<vmem>>, vector<24x128xbf16>
    %c0_23 = arith.constant 0 : index
    %c0_24 = arith.constant 0 : index
    %17 = vector.load %arg6[%c0_23, %c0_24] : memref<24x32xf32, #tpu.memory_space<vmem>>, vector<24x32xf32>
    %c0_25 = arith.constant 0 : index
    %c0_26 = arith.constant 0 : index
    %c0_27 = arith.constant 0 : index
    %18 = vector.load %arg3[%c0_25, %c0_26, %c0_27] : memref<9x128x32xbf16, #tpu.memory_space<vmem>>, vector<1x128x32xbf16>
    %19 = vector.shape_cast %18 : vector<1x128x32xbf16> to vector<128x32xbf16>
    %cst_28 = arith.constant dense<0.000000e+00> : vector<24x32xf32>
    %20 = tpu.matmul %16, %19, %cst_28 {dimension_numbers = #tpu.dot_dimension_numbers<[1], [0], [0], [1], [0, 0, 1, 1], [], []>} : vector<24x128xbf16>, vector<128x32xbf16>, vector<24x32xf32> -> vector<24x32xf32>
    %21 = arith.addf %17, %20 : vector<24x32xf32>
    %c0_29 = arith.constant 0 : index
    %c0_30 = arith.constant 0 : index
    %22 = vector.load %arg6[%c0_29, %c0_30] : memref<24x32xf32, #tpu.memory_space<vmem>>, vector<24x32xf32>
    tpu.vector_store %arg6[%c0_29, %c0_30], %21 {strides = array<i32>} : memref<24x32xf32, #tpu.memory_space<vmem>>, vector<24x32xf32>,
    %c1_31 = arith.constant 1 : index
    %c0_32 = arith.constant 0 : index
    %23 = vector.load %arg5[%c1_31, %c0_32] : memref<42x128xbf16, #tpu.memory_space<vmem>>, vector<24x128xbf16>
    %c0_33 = arith.constant 0 : index
    %c0_34 = arith.constant 0 : index
    %24 = vector.load %arg6[%c0_33, %c0_34] : memref<24x32xf32, #tpu.memory_space<vmem>>, vector<24x32xf32>
    %c1_35 = arith.constant 1 : index
    %c0_36 = arith.constant 0 : index
    %c0_37 = arith.constant 0 : index
    %25 = vector.load %arg3[%c1_35, %c0_36, %c0_37] : memref<9x128x32xbf16, #tpu.memory_space<vmem>>, vector<1x128x32xbf16>
    %26 = vector.shape_cast %25 : vector<1x128x32xbf16> to vector<128x32xbf16>
    %cst_38 = arith.constant dense<0.000000e+00> : vector<24x32xf32>
    %27 = tpu.matmul %23, %26, %cst_38 {dimension_numbers = #tpu.dot_dimension_numbers<[1], [0], [0], [1], [0, 0, 1, 1], [], []>} : vector<24x128xbf16>, vector<128x32xbf16>, vector<24x32xf32> -> vector<24x32xf32>
    %28 = arith.addf %24, %27 : vector<24x32xf32>
    %c0_39 = arith.constant 0 : index
    %c0_40 = arith.constant 0 : index
    %29 = vector.load %arg6[%c0_39, %c0_40] : memref<24x32xf32, #tpu.memory_space<vmem>>, vector<24x32xf32>
    tpu.vector_store %arg6[%c0_39, %c0_40], %28 {strides = array<i32>} : memref<24x32xf32, #tpu.memory_space<vmem>>, vector<24x32xf32>,
    %c2_41 = arith.constant 2 : index
    %c0_42 = arith.constant 0 : index
    %30 = vector.load %arg5[%c2_41, %c0_42] : memref<42x128xbf16, #tpu.memory_space<vmem>>, vector<24x128xbf16>
    %c0_43 = arith.constant 0 : index
    %c0_44 = arith.constant 0 : index
    %31 = vector.load %arg6[%c0_43, %c0_44] : memref<24x32xf32, #tpu.memory_space<vmem>>, vector<24x32xf32>
    %c2_45 = arith.constant 2 : index
    %c0_46 = arith.constant 0 : index
    %c0_47 = arith.constant 0 : index
    %32 = vector.load %arg3[%c2_45, %c0_46, %c0_47] : memref<9x128x32xbf16, #tpu.memory_space<vmem>>, vector<1x128x32xbf16>
    %33 = vector.shape_cast %32 : vector<1x128x32xbf16> to vector<128x32xbf16>
    %cst_48 = arith.constant dense<0.000000e+00> : vector<24x32xf32>
    %34 = tpu.matmul %30, %33, %cst_48 {dimension_numbers = #tpu.dot_dimension_numbers<[1], [0], [0], [1], [0, 0, 1, 1], [], []>} : vector<24x128xbf16>, vector<128x32xbf16>, vector<24x32xf32> -> vector<24x32xf32>
    %35 = arith.addf %31, %34 : vector<24x32xf32>
    %c0_49 = arith.constant 0 : index
    %c0_50 = arith.constant 0 : index
    %36 = vector.load %arg6[%c0_49, %c0_50] : memref<24x32xf32, #tpu.memory_space<vmem>>, vector<24x32xf32>
    tpu.vector_store %arg6[%c0_49, %c0_50], %35 {strides = array<i32>} : memref<24x32xf32, #tpu.memory_space<vmem>>, vector<24x32xf32>,
    %c6 = arith.constant 6 : index
    %c0_51 = arith.constant 0 : index
    %37 = vector.load %arg5[%c6, %c0_51] : memref<42x128xbf16, #tpu.memory_space<vmem>>, vector<24x128xbf16>
    %c0_52 = arith.constant 0 : index
    %c0_53 = arith.constant 0 : index
    %38 = vector.load %arg6[%c0_52, %c0_53] : memref<24x32xf32, #tpu.memory_space<vmem>>, vector<24x32xf32>
    %c3_54 = arith.constant 3 : index
    %c0_55 = arith.constant 0 : index
    %c0_56 = arith.constant 0 : index
    %39 = vector.load %arg3[%c3_54, %c0_55, %c0_56] : memref<9x128x32xbf16, #tpu.memory_space<vmem>>, vector<1x128x32xbf16>
    %40 = vector.shape_cast %39 : vector<1x128x32xbf16> to vector<128x32xbf16>
    %cst_57 = arith.constant dense<0.000000e+00> : vector<24x32xf32>
    %41 = tpu.matmul %37, %40, %cst_57 {dimension_numbers = #tpu.dot_dimension_numbers<[1], [0], [0], [1], [0, 0, 1, 1], [], []>} : vector<24x128xbf16>, vector<128x32xbf16>, vector<24x32xf32> -> vector<24x32xf32>
    %42 = arith.addf %38, %41 : vector<24x32xf32>
    %c0_58 = arith.constant 0 : index
    %c0_59 = arith.constant 0 : index
    %43 = vector.load %arg6[%c0_58, %c0_59] : memref<24x32xf32, #tpu.memory_space<vmem>>, vector<24x32xf32>
    tpu.vector_store %arg6[%c0_58, %c0_59], %42 {strides = array<i32>} : memref<24x32xf32, #tpu.memory_space<vmem>>, vector<24x32xf32>,
    %c7_60 = arith.constant 7 : index
    %c0_61 = arith.constant 0 : index
    %44 = vector.load %arg5[%c7_60, %c0_61] : memref<42x128xbf16, #tpu.memory_space<vmem>>, vector<24x128xbf16>
    %c0_62 = arith.constant 0 : index
    %c0_63 = arith.constant 0 : index
    %45 = vector.load %arg6[%c0_62, %c0_63] : memref<24x32xf32, #tpu.memory_space<vmem>>, vector<24x32xf32>
    %c4 = arith.constant 4 : index
    %c0_64 = arith.constant 0 : index
    %c0_65 = arith.constant 0 : index
    %46 = vector.load %arg3[%c4, %c0_64, %c0_65] : memref<9x128x32xbf16, #tpu.memory_space<vmem>>, vector<1x128x32xbf16>
    %47 = vector.shape_cast %46 : vector<1x128x32xbf16> to vector<128x32xbf16>
    %cst_66 = arith.constant dense<0.000000e+00> : vector<24x32xf32>
    %48 = tpu.matmul %44, %47, %cst_66 {dimension_numbers = #tpu.dot_dimension_numbers<[1], [0], [0], [1], [0, 0, 1, 1], [], []>} : vector<24x128xbf16>, vector<128x32xbf16>, vector<24x32xf32> -> vector<24x32xf32>
    %49 = arith.addf %45, %48 : vector<24x32xf32>
    %c0_67 = arith.constant 0 : index
    %c0_68 = arith.constant 0 : index
    %50 = vector.load %arg6[%c0_67, %c0_68] : memref<24x32xf32, #tpu.memory_space<vmem>>, vector<24x32xf32>
    tpu.vector_store %arg6[%c0_67, %c0_68], %49 {strides = array<i32>} : memref<24x32xf32, #tpu.memory_space<vmem>>, vector<24x32xf32>,
    %c8 = arith.constant 8 : index
    %c0_69 = arith.constant 0 : index
    %51 = vector.load %arg5[%c8, %c0_69] : memref<42x128xbf16, #tpu.memory_space<vmem>>, vector<24x128xbf16>
    %c0_70 = arith.constant 0 : index
    %c0_71 = arith.constant 0 : index
    %52 = vector.load %arg6[%c0_70, %c0_71] : memref<24x32xf32, #tpu.memory_space<vmem>>, vector<24x32xf32>
    %c5 = arith.constant 5 : index
    %c0_72 = arith.constant 0 : index
    %c0_73 = arith.constant 0 : index
    %53 = vector.load %arg3[%c5, %c0_72, %c0_73] : memref<9x128x32xbf16, #tpu.memory_space<vmem>>, vector<1x128x32xbf16>
    %54 = vector.shape_cast %53 : vector<1x128x32xbf16> to vector<128x32xbf16>
    %cst_74 = arith.constant dense<0.000000e+00> : vector<24x32xf32>
    %55 = tpu.matmul %51, %54, %cst_74 {dimension_numbers = #tpu.dot_dimension_numbers<[1], [0], [0], [1], [0, 0, 1, 1], [], []>} : vector<24x128xbf16>, vector<128x32xbf16>, vector<24x32xf32> -> vector<24x32xf32>
    %56 = arith.addf %52, %55 : vector<24x32xf32>
    %c0_75 = arith.constant 0 : index
    %c0_76 = arith.constant 0 : index
    %57 = vector.load %arg6[%c0_75, %c0_76] : memref<24x32xf32, #tpu.memory_space<vmem>>, vector<24x32xf32>
    tpu.vector_store %arg6[%c0_75, %c0_76], %56 {strides = array<i32>} : memref<24x32xf32, #tpu.memory_space<vmem>>, vector<24x32xf32>,
    %c12 = arith.constant 12 : index
    %c0_77 = arith.constant 0 : index
    %58 = vector.load %arg5[%c12, %c0_77] : memref<42x128xbf16, #tpu.memory_space<vmem>>, vector<24x128xbf16>
    %c0_78 = arith.constant 0 : index
    %c0_79 = arith.constant 0 : index
    %59 = vector.load %arg6[%c0_78, %c0_79] : memref<24x32xf32, #tpu.memory_space<vmem>>, vector<24x32xf32>
    %c6_80 = arith.constant 6 : index
    %c0_81 = arith.constant 0 : index
    %c0_82 = arith.constant 0 : index
    %60 = vector.load %arg3[%c6_80, %c0_81, %c0_82] : memref<9x128x32xbf16, #tpu.memory_space<vmem>>, vector<1x128x32xbf16>
    %61 = vector.shape_cast %60 : vector<1x128x32xbf16> to vector<128x32xbf16>
    %cst_83 = arith.constant dense<0.000000e+00> : vector<24x32xf32>
    %62 = tpu.matmul %58, %61, %cst_83 {dimension_numbers = #tpu.dot_dimension_numbers<[1], [0], [0], [1], [0, 0, 1, 1], [], []>} : vector<24x128xbf16>, vector<128x32xbf16>, vector<24x32xf32> -> vector<24x32xf32>
    %63 = arith.addf %59, %62 : vector<24x32xf32>
    %c0_84 = arith.constant 0 : index
    %c0_85 = arith.constant 0 : index
    %64 = vector.load %arg6[%c0_84, %c0_85] : memref<24x32xf32, #tpu.memory_space<vmem>>, vector<24x32xf32>
    tpu.vector_store %arg6[%c0_84, %c0_85], %63 {strides = array<i32>} : memref<24x32xf32, #tpu.memory_space<vmem>>, vector<24x32xf32>,
    %c13_86 = arith.constant 13 : index
    %c0_87 = arith.constant 0 : index
    %65 = vector.load %arg5[%c13_86, %c0_87] : memref<42x128xbf16, #tpu.memory_space<vmem>>, vector<24x128xbf16>
    %c0_88 = arith.constant 0 : index
    %c0_89 = arith.constant 0 : index
    %66 = vector.load %arg6[%c0_88, %c0_89] : memref<24x32xf32, #tpu.memory_space<vmem>>, vector<24x32xf32>
    %c7_90 = arith.constant 7 : index
    %c0_91 = arith.constant 0 : index
    %c0_92 = arith.constant 0 : index
    %67 = vector.load %arg3[%c7_90, %c0_91, %c0_92] : memref<9x128x32xbf16, #tpu.memory_space<vmem>>, vector<1x128x32xbf16>
    %68 = vector.shape_cast %67 : vector<1x128x32xbf16> to vector<128x32xbf16>
    %cst_93 = arith.constant dense<0.000000e+00> : vector<24x32xf32>
    %69 = tpu.matmul %65, %68, %cst_93 {dimension_numbers = #tpu.dot_dimension_numbers<[1], [0], [0], [1], [0, 0, 1, 1], [], []>} : vector<24x128xbf16>, vector<128x32xbf16>, vector<24x32xf32> -> vector<24x32xf32>
    %70 = arith.addf %66, %69 : vector<24x32xf32>
    %c0_94 = arith.constant 0 : index
    %c0_95 = arith.constant 0 : index
    %71 = vector.load %arg6[%c0_94, %c0_95] : memref<24x32xf32, #tpu.memory_space<vmem>>, vector<24x32xf32>
    tpu.vector_store %arg6[%c0_94, %c0_95], %70 {strides = array<i32>} : memref<24x32xf32, #tpu.memory_space<vmem>>, vector<24x32xf32>,
    %c14 = arith.constant 14 : index
    %c0_96 = arith.constant 0 : index
    %72 = vector.load %arg5[%c14, %c0_96] : memref<42x128xbf16, #tpu.memory_space<vmem>>, vector<24x128xbf16>
    %c0_97 = arith.constant 0 : index
    %c0_98 = arith.constant 0 : index
    %73 = vector.load %arg6[%c0_97, %c0_98] : memref<24x32xf32, #tpu.memory_space<vmem>>, vector<24x32xf32>
    %c8_99 = arith.constant 8 : index
    %c0_100 = arith.constant 0 : index
    %c0_101 = arith.constant 0 : index
    %74 = vector.load %arg3[%c8_99, %c0_100, %c0_101] : memref<9x128x32xbf16, #tpu.memory_space<vmem>>, vector<1x128x32xbf16>
    %75 = vector.shape_cast %74 : vector<1x128x32xbf16> to vector<128x32xbf16>
    %cst_102 = arith.constant dense<0.000000e+00> : vector<24x32xf32>
    %76 = tpu.matmul %72, %75, %cst_102 {dimension_numbers = #tpu.dot_dimension_numbers<[1], [0], [0], [1], [0, 0, 1, 1], [], []>} : vector<24x128xbf16>, vector<128x32xbf16>, vector<24x32xf32> -> vector<24x32xf32>
    %77 = arith.addf %73, %76 : vector<24x32xf32>
    %c0_103 = arith.constant 0 : index
    %c0_104 = arith.constant 0 : index
    %78 = vector.load %arg6[%c0_103, %c0_104] : memref<24x32xf32, #tpu.memory_space<vmem>>, vector<24x32xf32>
    tpu.vector_store %arg6[%c0_103, %c0_104], %77 {strides = array<i32>} : memref<24x32xf32, #tpu.memory_space<vmem>>, vector<24x32xf32>,
    %c0_105 = arith.constant 0 : index
    %c0_106 = arith.constant 0 : index
    %c0_107 = arith.constant 0 : index
    %c0_108 = arith.constant 0 : index
    %79 = vector.load %arg2[%c0_105, %c0_106, %c0_107, %c0_108] : memref<1x4x4x128xbf16, #tpu.memory_space<vmem>>, vector<1x4x4x128xbf16>
    %c0_109 = arith.constant 0 : index
    %c0_110 = arith.constant 0 : index
    %c0_111 = arith.constant 0 : index
    %c0_112 = arith.constant 0 : index
    %80 = vector.load %arg4[%c0_109, %c0_110, %c0_111, %c0_112] : memref<1x4x4x128xbf16, #tpu.memory_space<vmem>>, vector<1x4x4x128xbf16>
    tpu.vector_store %arg4[%c0_109, %c0_110, %c0_111, %c0_112], %79 {strides = array<i32>} : memref<1x4x4x128xbf16, #tpu.memory_space<vmem>>, vector<1x4x4x128xbf16>,
    %c0_113 = arith.constant 0 : index
    %c0_114 = arith.constant 0 : index
    %81 = vector.load %arg6[%c0_113, %c0_114] : memref<24x32xf32, #tpu.memory_space<vmem>>, vector<4x32xf32>
    %82 = arith.truncf %81 : vector<4x32xf32> to vector<4x32xbf16>
    %c0_115 = arith.constant 0 : index
    %c0_116 = arith.constant 0 : index
    %c0_117 = arith.constant 0 : index
    %c64 = arith.constant 64 : index
    %83 = vector.load %arg4[%c0_115, %c0_116, %c0_117, %c64] : memref<1x4x4x128xbf16, #tpu.memory_space<vmem>>, vector<1x1x4x32xbf16>
    %84 = vector.shape_cast %83 : vector<1x1x4x32xbf16> to vector<4x32xbf16>
    %85 = vector.shape_cast %82 : vector<4x32xbf16> to vector<1x1x4x32xbf16>
    tpu.vector_store %arg4[%c0_115, %c0_116, %c0_117, %c64], %85 {strides = array<i32>} : memref<1x4x4x128xbf16, #tpu.memory_space<vmem>>, vector<1x1x4x32xbf16>,
    %c6_118 = arith.constant 6 : index
    %c0_119 = arith.constant 0 : index
    %86 = vector.load %arg6[%c6_118, %c0_119] : memref<24x32xf32, #tpu.memory_space<vmem>>, vector<4x32xf32>
    %87 = arith.truncf %86 : vector<4x32xf32> to vector<4x32xbf16>
    %c0_120 = arith.constant 0 : index
    %c1_121 = arith.constant 1 : index
    %c0_122 = arith.constant 0 : index
    %c64_123 = arith.constant 64 : index
    %88 = vector.load %arg4[%c0_120, %c1_121, %c0_122, %c64_123] : memref<1x4x4x128xbf16, #tpu.memory_space<vmem>>, vector<1x1x4x32xbf16>
    %89 = vector.shape_cast %88 : vector<1x1x4x32xbf16> to vector<4x32xbf16>
    %90 = vector.shape_cast %87 : vector<4x32xbf16> to vector<1x1x4x32xbf16>
    tpu.vector_store %arg4[%c0_120, %c1_121, %c0_122, %c64_123], %90 {strides = array<i32>} : memref<1x4x4x128xbf16, #tpu.memory_space<vmem>>, vector<1x1x4x32xbf16>,
    %c12_124 = arith.constant 12 : index
    %c0_125 = arith.constant 0 : index
    %91 = vector.load %arg6[%c12_124, %c0_125] : memref<24x32xf32, #tpu.memory_space<vmem>>, vector<4x32xf32>
    %92 = arith.truncf %91 : vector<4x32xf32> to vector<4x32xbf16>
    %c0_126 = arith.constant 0 : index
    %c2_127 = arith.constant 2 : index
    %c0_128 = arith.constant 0 : index
    %c64_129 = arith.constant 64 : index
    %93 = vector.load %arg4[%c0_126, %c2_127, %c0_128, %c64_129] : memref<1x4x4x128xbf16, #tpu.memory_space<vmem>>, vector<1x1x4x32xbf16>
    %94 = vector.shape_cast %93 : vector<1x1x4x32xbf16> to vector<4x32xbf16>
    %95 = vector.shape_cast %92 : vector<4x32xbf16> to vector<1x1x4x32xbf16>
    tpu.vector_store %arg4[%c0_126, %c2_127, %c0_128, %c64_129], %95 {strides = array<i32>} : memref<1x4x4x128xbf16, #tpu.memory_space<vmem>>, vector<1x1x4x32xbf16>,
    %c18 = arith.constant 18 : index
    %c0_130 = arith.constant 0 : index
    %96 = vector.load %arg6[%c18, %c0_130] : memref<24x32xf32, #tpu.memory_space<vmem>>, vector<4x32xf32>
    %97 = arith.truncf %96 : vector<4x32xf32> to vector<4x32xbf16>
    %c0_131 = arith.constant 0 : index
    %c3_132 = arith.constant 3 : index
    %c0_133 = arith.constant 0 : index
    %c64_134 = arith.constant 64 : index
    %98 = vector.load %arg4[%c0_131, %c3_132, %c0_133, %c64_134] : memref<1x4x4x128xbf16, #tpu.memory_space<vmem>>, vector<1x1x4x32xbf16>
    %99 = vector.shape_cast %98 : vector<1x1x4x32xbf16> to vector<4x32xbf16>
    %100 = vector.shape_cast %97 : vector<4x32xbf16> to vector<1x1x4x32xbf16>
    tpu.vector_store %arg4[%c0_131, %c3_132, %c0_133, %c64_134], %100 {strides = array<i32>} : memref<1x4x4x128xbf16, #tpu.memory_space<vmem>>, vector<1x1x4x32xbf16>,
    return
  }
  func.func @transform_0(%arg0: i32) -> (i32, i32, i32, i32) {
    %c0_i32 = arith.constant 0 : i32
    %c0_i32_0 = arith.constant 0 : i32
    %c0_i32_1 = arith.constant 0 : i32
    %c0_i32_2 = arith.constant 0 : i32
    return %arg0, %c0_i32, %c0_i32_0, %c0_i32_1 : i32, i32, i32, i32
  }
  func.func @transform_1(%arg0: i32) -> (i32, i32, i32, i32) {
    %c0_i32 = arith.constant 0 : i32
    %c0_i32_0 = arith.constant 0 : i32
    %c0_i32_1 = arith.constant 0 : i32
    %c0_i32_2 = arith.constant 0 : i32
    return %arg0, %c0_i32, %c0_i32_0, %c0_i32_1 : i32, i32, i32, i32
  }
  func.func @transform_2(%arg0: i32) -> (i32, i32, i32) {
    %c0_i32 = arith.constant 0 : i32
    %c0_i32_0 = arith.constant 0 : i32
    %c0_i32_1 = arith.constant 0 : i32
    %c0_i32_2 = arith.constant 0 : i32
    return %c0_i32, %c0_i32_0, %c0_i32_1 : i32, i32, i32
  }
  func.func @transform_3(%arg0: i32) -> (i32, i32, i32, i32) {
    %c0_i32 = arith.constant 0 : i32
    %c0_i32_0 = arith.constant 0 : i32
    %c0_i32_1 = arith.constant 0 : i32
    %c0_i32_2 = arith.constant 0 : i32
    return %arg0, %c0_i32, %c0_i32_0, %c0_i32_1 : i32, i32, i32, i32
  }
}

module attributes {stable_mosaic.version = 11 : i64} {
  func.func @_dense_conv_concat_kernel(%arg0: i32, %arg1: memref<1x4x4x128xbf16, #tpu.memory_space<vmem>>, %arg2: memref<1x4x4x128xbf16, #tpu.memory_space<vmem>>, %arg3: memref<9x128x32xbf16, #tpu.memory_space<vmem>>, %arg4: memref<1x4x4x128xbf16, #tpu.memory_space<vmem>>, %arg5: memref<42x128xbf16, #tpu.memory_space<vmem>>, %arg6: memref<24x32xf32, #tpu.memory_space<vmem>>) attributes {dimension_semantics = [#tpu.dimension_semantics<parallel>], iteration_bounds = array<i64: 2>, scalar_prefetch = 0 : i64, scratch_operands = 2 : i64, tpu.core_type = #tpu.core_type<tc>, window_params = [{transform_indices = @transform_0, window_bounds = array<i64: 1, 4, 4, 128>}, {transform_indices = @transform_1, window_bounds = array<i64: 1, 4, 4, 128>}, {pipeline_mode = #tpu.pipeline_mode<synchronous>, transform_indices = @transform_2, window_bounds = array<i64: 9, 128, 32>}, {transform_indices = @transform_3, window_bounds = array<i64: 1, 4, 4, 128>}]} {
    %cst = arith.constant 0.000000e+00 : bf16
    %0 = vector.broadcast %cst : bf16 to vector<42x128xbf16>
    %c0 = arith.constant 0 : index
    %c0_0 = arith.constant 0 : index
    %1 = vector.load %arg5[%c0, %c0_0] : memref<42x128xbf16, #tpu.memory_space<vmem>>, vector<42x128xbf16>
    tpu.vector_store %arg5[%c0, %c0_0], %0 {strides = array<i32>} : memref<42x128xbf16, #tpu.memory_space<vmem>>, vector<42x128xbf16>,
    %c0_1 = arith.constant 0 : index
    %c0_2 = arith.constant 0 : index
    %c0_3 = arith.constant 0 : index
    %c0_4 = arith.constant 0 : index
    %2 = vector.load %arg1[%c0_1, %c0_2, %c0_3, %c0_4] : memref<1x4x4x128xbf16, #tpu.memory_space<vmem>>, vector<1x1x4x128xbf16>
    %3 = vector.shape_cast %2 : vector<1x1x4x128xbf16> to vector<4x128xbf16>
    %c7 = arith.constant 7 : index
    %c0_5 = arith.constant 0 : index
    %4 = vector.load %arg5[%c7, %c0_5] : memref<42x128xbf16, #tpu.memory_space<vmem>>, vector<4x128xbf16>
    tpu.vector_store %arg5[%c7, %c0_5], %3 {strides = array<i32>} : memref<42x128xbf16, #tpu.memory_space<vmem>>, vector<4x128xbf16>,
    %c0_6 = arith.constant 0 : index
    %c1 = arith.constant 1 : index
    %c0_7 = arith.constant 0 : index
    %c0_8 = arith.constant 0 : index
    %5 = vector.load %arg1[%c0_6, %c1, %c0_7, %c0_8] : memref<1x4x4x128xbf16, #tpu.memory_space<vmem>>, vector<1x1x4x128xbf16>
    %6 = vector.shape_cast %5 : vector<1x1x4x128xbf16> to vector<4x128xbf16>
    %c13 = arith.constant 13 : index
    %c0_9 = arith.constant 0 : index
    %7 = vector.load %arg5[%c13, %c0_9] : memref<42x128xbf16, #tpu.memory_space<vmem>>, vector<4x128xbf16>
    tpu.vector_store %arg5[%c13, %c0_9], %6 {strides = array<i32>} : memref<42x128xbf16, #tpu.memory_space<vmem>>, vector<4x128xbf16>,
    %c0_10 = arith.constant 0 : index
    %c2 = arith.constant 2 : index
    %c0_11 = arith.constant 0 : index
    %c0_12 = arith.constant 0 : index
    %8 = vector.load %arg1[%c0_10, %c2, %c0_11, %c0_12] : memref<1x4x4x128xbf16, #tpu.memory_space<vmem>>, vector<1x1x4x128xbf16>
    %9 = vector.shape_cast %8 : vector<1x1x4x128xbf16> to vector<4x128xbf16>
    %c19 = arith.constant 19 : index
    %c0_13 = arith.constant 0 : index
    %10 = vector.load %arg5[%c19, %c0_13] : memref<42x128xbf16, #tpu.memory_space<vmem>>, vector<4x128xbf16>
    tpu.vector_store %arg5[%c19, %c0_13], %9 {strides = array<i32>} : memref<42x128xbf16, #tpu.memory_space<vmem>>, vector<4x128xbf16>,
    %c0_14 = arith.constant 0 : index
    %c3 = arith.constant 3 : index
    %c0_15 = arith.constant 0 : index
    %c0_16 = arith.constant 0 : index
    %11 = vector.load %arg1[%c0_14, %c3, %c0_15, %c0_16] : memref<1x4x4x128xbf16, #tpu.memory_space<vmem>>, vector<1x1x4x128xbf16>
    %12 = vector.shape_cast %11 : vector<1x1x4x128xbf16> to vector<4x128xbf16>
    %c25 = arith.constant 25 : index
    %c0_17 = arith.constant 0 : index
    %13 = vector.load %arg5[%c25, %c0_17] : memref<42x128xbf16, #tpu.memory_space<vmem>>, vector<4x128xbf16>
    tpu.vector_store %arg5[%c25, %c0_17], %12 {strides = array<i32>} : memref<42x128xbf16, #tpu.memory_space<vmem>>, vector<4x128xbf16>,
    %cst_18 = arith.constant 0.000000e+00 : f32
    %14 = vector.broadcast %cst_18 : f32 to vector<24x32xf32>
    %c0_19 = arith.constant 0 : index
    %c0_20 = arith.constant 0 : index
    %15 = vector.load %arg6[%c0_19, %c0_20] : memref<24x32xf32, #tpu.memory_space<vmem>>, vector<24x32xf32>
    tpu.vector_store %arg6[%c0_19, %c0_20], %14 {strides = array<i32>} : memref<24x32xf32, #tpu.memory_space<vmem>>, vector<24x32xf32>,
    %c0_21 = arith.constant 0 : index
    %c0_22 = arith.constant 0 : index
    %16 = vector.load %arg5[%c0_21, %c0_22] : memref<42x128xbf16, #tpu.memory_space<vmem>>, vector<24x128xbf16>
    %c0_23 = arith.constant 0 : index
    %c0_24 = arith.constant 0 : index
    %17 = vector.load %arg6[%c0_23, %c0_24] : memref<24x32xf32, #tpu.memory_space<vmem>>, vector<24x32xf32>
    %c0_25 = arith.constant 0 : index
    %c0_26 = arith.constant 0 : index
    %c0_27 = arith.constant 0 : index
    %18 = vector.load %arg3[%c0_25, %c0_26, %c0_27] : memref<9x128x32xbf16, #tpu.memory_space<vmem>>, vector<1x128x32xbf16>
    %19 = vector.shape_cast %18 : vector<1x128x32xbf16> to vector<128x32xbf16>
    %cst_28 = arith.constant dense<0.000000e+00> : vector<24x32xf32>
    %20 = tpu.matmul %16, %19, %cst_28 {dimension_numbers = #tpu.dot_dimension_numbers<[1], [0], [0], [1], [0, 0, 1, 1], [], []>} : vector<24x128xbf16>, vector<128x32xbf16>, vector<24x32xf32> -> vector<24x32xf32>
    %21 = arith.addf %17, %20 : vector<24x32xf32>
    %c0_29 = arith.constant 0 : index
    %c0_30 = arith.constant 0 : index
    %22 = vector.load %arg6[%c0_29, %c0_30] : memref<24x32xf32, #tpu.memory_space<vmem>>, vector<24x32xf32>
    tpu.vector_store %arg6[%c0_29, %c0_30], %21 {strides = array<i32>} : memref<24x32xf32, #tpu.memory_space<vmem>>, vector<24x32xf32>,
    %c1_31 = arith.constant 1 : index
    %c0_32 = arith.constant 0 : index
    %23 = vector.load %arg5[%c1_31, %c0_32] : memref<42x128xbf16, #tpu.memory_space<vmem>>, vector<24x128xbf16>
    %c0_33 = arith.constant 0 : index
    %c0_34 = arith.constant 0 : index
    %24 = vector.load %arg6[%c0_33, %c0_34] : memref<24x32xf32, #tpu.memory_space<vmem>>, vector<24x32xf32>
    %c1_35 = arith.constant 1 : index
    %c0_36 = arith.constant 0 : index
    %c0_37 = arith.constant 0 : index
    %25 = vector.load %arg3[%c1_35, %c0_36, %c0_37] : memref<9x128x32xbf16, #tpu.memory_space<vmem>>, vector<1x128x32xbf16>
    %26 = vector.shape_cast %25 : vector<1x128x32xbf16> to vector<128x32xbf16>
    %cst_38 = arith.constant dense<0.000000e+00> : vector<24x32xf32>
    %27 = tpu.matmul %23, %26, %cst_38 {dimension_numbers = #tpu.dot_dimension_numbers<[1], [0], [0], [1], [0, 0, 1, 1], [], []>} : vector<24x128xbf16>, vector<128x32xbf16>, vector<24x32xf32> -> vector<24x32xf32>
    %28 = arith.addf %24, %27 : vector<24x32xf32>
    %c0_39 = arith.constant 0 : index
    %c0_40 = arith.constant 0 : index
    %29 = vector.load %arg6[%c0_39, %c0_40] : memref<24x32xf32, #tpu.memory_space<vmem>>, vector<24x32xf32>
    tpu.vector_store %arg6[%c0_39, %c0_40], %28 {strides = array<i32>} : memref<24x32xf32, #tpu.memory_space<vmem>>, vector<24x32xf32>,
    %c2_41 = arith.constant 2 : index
    %c0_42 = arith.constant 0 : index
    %30 = vector.load %arg5[%c2_41, %c0_42] : memref<42x128xbf16, #tpu.memory_space<vmem>>, vector<24x128xbf16>
    %c0_43 = arith.constant 0 : index
    %c0_44 = arith.constant 0 : index
    %31 = vector.load %arg6[%c0_43, %c0_44] : memref<24x32xf32, #tpu.memory_space<vmem>>, vector<24x32xf32>
    %c2_45 = arith.constant 2 : index
    %c0_46 = arith.constant 0 : index
    %c0_47 = arith.constant 0 : index
    %32 = vector.load %arg3[%c2_45, %c0_46, %c0_47] : memref<9x128x32xbf16, #tpu.memory_space<vmem>>, vector<1x128x32xbf16>
    %33 = vector.shape_cast %32 : vector<1x128x32xbf16> to vector<128x32xbf16>
    %cst_48 = arith.constant dense<0.000000e+00> : vector<24x32xf32>
    %34 = tpu.matmul %30, %33, %cst_48 {dimension_numbers = #tpu.dot_dimension_numbers<[1], [0], [0], [1], [0, 0, 1, 1], [], []>} : vector<24x128xbf16>, vector<128x32xbf16>, vector<24x32xf32> -> vector<24x32xf32>
    %35 = arith.addf %31, %34 : vector<24x32xf32>
    %c0_49 = arith.constant 0 : index
    %c0_50 = arith.constant 0 : index
    %36 = vector.load %arg6[%c0_49, %c0_50] : memref<24x32xf32, #tpu.memory_space<vmem>>, vector<24x32xf32>
    tpu.vector_store %arg6[%c0_49, %c0_50], %35 {strides = array<i32>} : memref<24x32xf32, #tpu.memory_space<vmem>>, vector<24x32xf32>,
    %c6 = arith.constant 6 : index
    %c0_51 = arith.constant 0 : index
    %37 = vector.load %arg5[%c6, %c0_51] : memref<42x128xbf16, #tpu.memory_space<vmem>>, vector<24x128xbf16>
    %c0_52 = arith.constant 0 : index
    %c0_53 = arith.constant 0 : index
    %38 = vector.load %arg6[%c0_52, %c0_53] : memref<24x32xf32, #tpu.memory_space<vmem>>, vector<24x32xf32>
    %c3_54 = arith.constant 3 : index
    %c0_55 = arith.constant 0 : index
    %c0_56 = arith.constant 0 : index
    %39 = vector.load %arg3[%c3_54, %c0_55, %c0_56] : memref<9x128x32xbf16, #tpu.memory_space<vmem>>, vector<1x128x32xbf16>
    %40 = vector.shape_cast %39 : vector<1x128x32xbf16> to vector<128x32xbf16>
    %cst_57 = arith.constant dense<0.000000e+00> : vector<24x32xf32>
    %41 = tpu.matmul %37, %40, %cst_57 {dimension_numbers = #tpu.dot_dimension_numbers<[1], [0], [0], [1], [0, 0, 1, 1], [], []>} : vector<24x128xbf16>, vector<128x32xbf16>, vector<24x32xf32> -> vector<24x32xf32>
    %42 = arith.addf %38, %41 : vector<24x32xf32>
    %c0_58 = arith.constant 0 : index
    %c0_59 = arith.constant 0 : index
    %43 = vector.load %arg6[%c0_58, %c0_59] : memref<24x32xf32, #tpu.memory_space<vmem>>, vector<24x32xf32>
    tpu.vector_store %arg6[%c0_58, %c0_59], %42 {strides = array<i32>} : memref<24x32xf32, #tpu.memory_space<vmem>>, vector<24x32xf32>,
    %c7_60 = arith.constant 7 : index
    %c0_61 = arith.constant 0 : index
    %44 = vector.load %arg5[%c7_60, %c0_61] : memref<42x128xbf16, #tpu.memory_space<vmem>>, vector<24x128xbf16>
    %c0_62 = arith.constant 0 : index
    %c0_63 = arith.constant 0 : index
    %45 = vector.load %arg6[%c0_62, %c0_63] : memref<24x32xf32, #tpu.memory_space<vmem>>, vector<24x32xf32>
    %c4 = arith.constant 4 : index
    %c0_64 = arith.constant 0 : index
    %c0_65 = arith.constant 0 : index
    %46 = vector.load %arg3[%c4, %c0_64, %c0_65] : memref<9x128x32xbf16, #tpu.memory_space<vmem>>, vector<1x128x32xbf16>
    %47 = vector.shape_cast %46 : vector<1x128x32xbf16> to vector<128x32xbf16>
    %cst_66 = arith.constant dense<0.000000e+00> : vector<24x32xf32>
    %48 = tpu.matmul %44, %47, %cst_66 {dimension_numbers = #tpu.dot_dimension_numbers<[1], [0], [0], [1], [0, 0, 1, 1], [], []>} : vector<24x128xbf16>, vector<128x32xbf16>, vector<24x32xf32> -> vector<24x32xf32>
    %49 = arith.addf %45, %48 : vector<24x32xf32>
    %c0_67 = arith.constant 0 : index
    %c0_68 = arith.constant 0 : index
    %50 = vector.load %arg6[%c0_67, %c0_68] : memref<24x32xf32, #tpu.memory_space<vmem>>, vector<24x32xf32>
    tpu.vector_store %arg6[%c0_67, %c0_68], %49 {strides = array<i32>} : memref<24x32xf32, #tpu.memory_space<vmem>>, vector<24x32xf32>,
    %c8 = arith.constant 8 : index
    %c0_69 = arith.constant 0 : index
    %51 = vector.load %arg5[%c8, %c0_69] : memref<42x128xbf16, #tpu.memory_space<vmem>>, vector<24x128xbf16>
    %c0_70 = arith.constant 0 : index
    %c0_71 = arith.constant 0 : index
    %52 = vector.load %arg6[%c0_70, %c0_71] : memref<24x32xf32, #tpu.memory_space<vmem>>, vector<24x32xf32>
    %c5 = arith.constant 5 : index
    %c0_72 = arith.constant 0 : index
    %c0_73 = arith.constant 0 : index
    %53 = vector.load %arg3[%c5, %c0_72, %c0_73] : memref<9x128x32xbf16, #tpu.memory_space<vmem>>, vector<1x128x32xbf16>
    %54 = vector.shape_cast %53 : vector<1x128x32xbf16> to vector<128x32xbf16>
    %cst_74 = arith.constant dense<0.000000e+00> : vector<24x32xf32>
    %55 = tpu.matmul %51, %54, %cst_74 {dimension_numbers = #tpu.dot_dimension_numbers<[1], [0], [0], [1], [0, 0, 1, 1], [], []>} : vector<24x128xbf16>, vector<128x32xbf16>, vector<24x32xf32> -> vector<24x32xf32>
    %56 = arith.addf %52, %55 : vector<24x32xf32>
    %c0_75 = arith.constant 0 : index
    %c0_76 = arith.constant 0 : index
    %57 = vector.load %arg6[%c0_75, %c0_76] : memref<24x32xf32, #tpu.memory_space<vmem>>, vector<24x32xf32>
    tpu.vector_store %arg6[%c0_75, %c0_76], %56 {strides = array<i32>} : memref<24x32xf32, #tpu.memory_space<vmem>>, vector<24x32xf32>,
    %c12 = arith.constant 12 : index
    %c0_77 = arith.constant 0 : index
    %58 = vector.load %arg5[%c12, %c0_77] : memref<42x128xbf16, #tpu.memory_space<vmem>>, vector<24x128xbf16>
    %c0_78 = arith.constant 0 : index
    %c0_79 = arith.constant 0 : index
    %59 = vector.load %arg6[%c0_78, %c0_79] : memref<24x32xf32, #tpu.memory_space<vmem>>, vector<24x32xf32>
    %c6_80 = arith.constant 6 : index
    %c0_81 = arith.constant 0 : index
    %c0_82 = arith.constant 0 : index
    %60 = vector.load %arg3[%c6_80, %c0_81, %c0_82] : memref<9x128x32xbf16, #tpu.memory_space<vmem>>, vector<1x128x32xbf16>
    %61 = vector.shape_cast %60 : vector<1x128x32xbf16> to vector<128x32xbf16>
    %cst_83 = arith.constant dense<0.000000e+00> : vector<24x32xf32>
    %62 = tpu.matmul %58, %61, %cst_83 {dimension_numbers = #tpu.dot_dimension_numbers<[1], [0], [0], [1], [0, 0, 1, 1], [], []>} : vector<24x128xbf16>, vector<128x32xbf16>, vector<24x32xf32> -> vector<24x32xf32>
    %63 = arith.addf %59, %62 : vector<24x32xf32>
    %c0_84 = arith.constant 0 : index
    %c0_85 = arith.constant 0 : index
    %64 = vector.load %arg6[%c0_84, %c0_85] : memref<24x32xf32, #tpu.memory_space<vmem>>, vector<24x32xf32>
    tpu.vector_store %arg6[%c0_84, %c0_85], %63 {strides = array<i32>} : memref<24x32xf32, #tpu.memory_space<vmem>>, vector<24x32xf32>,
    %c13_86 = arith.constant 13 : index
    %c0_87 = arith.constant 0 : index
    %65 = vector.load %arg5[%c13_86, %c0_87] : memref<42x128xbf16, #tpu.memory_space<vmem>>, vector<24x128xbf16>
    %c0_88 = arith.constant 0 : index
    %c0_89 = arith.constant 0 : index
    %66 = vector.load %arg6[%c0_88, %c0_89] : memref<24x32xf32, #tpu.memory_space<vmem>>, vector<24x32xf32>
    %c7_90 = arith.constant 7 : index
    %c0_91 = arith.constant 0 : index
    %c0_92 = arith.constant 0 : index
    %67 = vector.load %arg3[%c7_90, %c0_91, %c0_92] : memref<9x128x32xbf16, #tpu.memory_space<vmem>>, vector<1x128x32xbf16>
    %68 = vector.shape_cast %67 : vector<1x128x32xbf16> to vector<128x32xbf16>
    %cst_93 = arith.constant dense<0.000000e+00> : vector<24x32xf32>
    %69 = tpu.matmul %65, %68, %cst_93 {dimension_numbers = #tpu.dot_dimension_numbers<[1], [0], [0], [1], [0, 0, 1, 1], [], []>} : vector<24x128xbf16>, vector<128x32xbf16>, vector<24x32xf32> -> vector<24x32xf32>
    %70 = arith.addf %66, %69 : vector<24x32xf32>
    %c0_94 = arith.constant 0 : index
    %c0_95 = arith.constant 0 : index
    %71 = vector.load %arg6[%c0_94, %c0_95] : memref<24x32xf32, #tpu.memory_space<vmem>>, vector<24x32xf32>
    tpu.vector_store %arg6[%c0_94, %c0_95], %70 {strides = array<i32>} : memref<24x32xf32, #tpu.memory_space<vmem>>, vector<24x32xf32>,
    %c14 = arith.constant 14 : index
    %c0_96 = arith.constant 0 : index
    %72 = vector.load %arg5[%c14, %c0_96] : memref<42x128xbf16, #tpu.memory_space<vmem>>, vector<24x128xbf16>
    %c0_97 = arith.constant 0 : index
    %c0_98 = arith.constant 0 : index
    %73 = vector.load %arg6[%c0_97, %c0_98] : memref<24x32xf32, #tpu.memory_space<vmem>>, vector<24x32xf32>
    %c8_99 = arith.constant 8 : index
    %c0_100 = arith.constant 0 : index
    %c0_101 = arith.constant 0 : index
    %74 = vector.load %arg3[%c8_99, %c0_100, %c0_101] : memref<9x128x32xbf16, #tpu.memory_space<vmem>>, vector<1x128x32xbf16>
    %75 = vector.shape_cast %74 : vector<1x128x32xbf16> to vector<128x32xbf16>
    %cst_102 = arith.constant dense<0.000000e+00> : vector<24x32xf32>
    %76 = tpu.matmul %72, %75, %cst_102 {dimension_numbers = #tpu.dot_dimension_numbers<[1], [0], [0], [1], [0, 0, 1, 1], [], []>} : vector<24x128xbf16>, vector<128x32xbf16>, vector<24x32xf32> -> vector<24x32xf32>
    %77 = arith.addf %73, %76 : vector<24x32xf32>
    %c0_103 = arith.constant 0 : index
    %c0_104 = arith.constant 0 : index
    %78 = vector.load %arg6[%c0_103, %c0_104] : memref<24x32xf32, #tpu.memory_space<vmem>>, vector<24x32xf32>
    tpu.vector_store %arg6[%c0_103, %c0_104], %77 {strides = array<i32>} : memref<24x32xf32, #tpu.memory_space<vmem>>, vector<24x32xf32>,
    %c0_105 = arith.constant 0 : index
    %c0_106 = arith.constant 0 : index
    %c0_107 = arith.constant 0 : index
    %c0_108 = arith.constant 0 : index
    %79 = vector.load %arg2[%c0_105, %c0_106, %c0_107, %c0_108] : memref<1x4x4x128xbf16, #tpu.memory_space<vmem>>, vector<1x4x4x128xbf16>
    %c0_109 = arith.constant 0 : index
    %c0_110 = arith.constant 0 : index
    %c0_111 = arith.constant 0 : index
    %c0_112 = arith.constant 0 : index
    %80 = vector.load %arg4[%c0_109, %c0_110, %c0_111, %c0_112] : memref<1x4x4x128xbf16, #tpu.memory_space<vmem>>, vector<1x4x4x128xbf16>
    tpu.vector_store %arg4[%c0_109, %c0_110, %c0_111, %c0_112], %79 {strides = array<i32>} : memref<1x4x4x128xbf16, #tpu.memory_space<vmem>>, vector<1x4x4x128xbf16>,
    %c0_113 = arith.constant 0 : index
    %c0_114 = arith.constant 0 : index
    %81 = vector.load %arg6[%c0_113, %c0_114] : memref<24x32xf32, #tpu.memory_space<vmem>>, vector<4x32xf32>
    %82 = arith.truncf %81 : vector<4x32xf32> to vector<4x32xbf16>
    %c0_115 = arith.constant 0 : index
    %c0_116 = arith.constant 0 : index
    %c0_117 = arith.constant 0 : index
    %c96 = arith.constant 96 : index
    %83 = vector.load %arg4[%c0_115, %c0_116, %c0_117, %c96] : memref<1x4x4x128xbf16, #tpu.memory_space<vmem>>, vector<1x1x4x32xbf16>
    %84 = vector.shape_cast %83 : vector<1x1x4x32xbf16> to vector<4x32xbf16>
    %85 = vector.shape_cast %82 : vector<4x32xbf16> to vector<1x1x4x32xbf16>
    tpu.vector_store %arg4[%c0_115, %c0_116, %c0_117, %c96], %85 {strides = array<i32>} : memref<1x4x4x128xbf16, #tpu.memory_space<vmem>>, vector<1x1x4x32xbf16>,
    %c6_118 = arith.constant 6 : index
    %c0_119 = arith.constant 0 : index
    %86 = vector.load %arg6[%c6_118, %c0_119] : memref<24x32xf32, #tpu.memory_space<vmem>>, vector<4x32xf32>
    %87 = arith.truncf %86 : vector<4x32xf32> to vector<4x32xbf16>
    %c0_120 = arith.constant 0 : index
    %c1_121 = arith.constant 1 : index
    %c0_122 = arith.constant 0 : index
    %c96_123 = arith.constant 96 : index
    %88 = vector.load %arg4[%c0_120, %c1_121, %c0_122, %c96_123] : memref<1x4x4x128xbf16, #tpu.memory_space<vmem>>, vector<1x1x4x32xbf16>
    %89 = vector.shape_cast %88 : vector<1x1x4x32xbf16> to vector<4x32xbf16>
    %90 = vector.shape_cast %87 : vector<4x32xbf16> to vector<1x1x4x32xbf16>
    tpu.vector_store %arg4[%c0_120, %c1_121, %c0_122, %c96_123], %90 {strides = array<i32>} : memref<1x4x4x128xbf16, #tpu.memory_space<vmem>>, vector<1x1x4x32xbf16>,
    %c12_124 = arith.constant 12 : index
    %c0_125 = arith.constant 0 : index
    %91 = vector.load %arg6[%c12_124, %c0_125] : memref<24x32xf32, #tpu.memory_space<vmem>>, vector<4x32xf32>
    %92 = arith.truncf %91 : vector<4x32xf32> to vector<4x32xbf16>
    %c0_126 = arith.constant 0 : index
    %c2_127 = arith.constant 2 : index
    %c0_128 = arith.constant 0 : index
    %c96_129 = arith.constant 96 : index
    %93 = vector.load %arg4[%c0_126, %c2_127, %c0_128, %c96_129] : memref<1x4x4x128xbf16, #tpu.memory_space<vmem>>, vector<1x1x4x32xbf16>
    %94 = vector.shape_cast %93 : vector<1x1x4x32xbf16> to vector<4x32xbf16>
    %95 = vector.shape_cast %92 : vector<4x32xbf16> to vector<1x1x4x32xbf16>
    tpu.vector_store %arg4[%c0_126, %c2_127, %c0_128, %c96_129], %95 {strides = array<i32>} : memref<1x4x4x128xbf16, #tpu.memory_space<vmem>>, vector<1x1x4x32xbf16>,
    %c18 = arith.constant 18 : index
    %c0_130 = arith.constant 0 : index
    %96 = vector.load %arg6[%c18, %c0_130] : memref<24x32xf32, #tpu.memory_space<vmem>>, vector<4x32xf32>
    %97 = arith.truncf %96 : vector<4x32xf32> to vector<4x32xbf16>
    %c0_131 = arith.constant 0 : index
    %c3_132 = arith.constant 3 : index
    %c0_133 = arith.constant 0 : index
    %c96_134 = arith.constant 96 : index
    %98 = vector.load %arg4[%c0_131, %c3_132, %c0_133, %c96_134] : memref<1x4x4x128xbf16, #tpu.memory_space<vmem>>, vector<1x1x4x32xbf16>
    %99 = vector.shape_cast %98 : vector<1x1x4x32xbf16> to vector<4x32xbf16>
    %100 = vector.shape_cast %97 : vector<4x32xbf16> to vector<1x1x4x32xbf16>
    tpu.vector_store %arg4[%c0_131, %c3_132, %c0_133, %c96_134], %100 {strides = array<i32>} : memref<1x4x4x128xbf16, #tpu.memory_space<vmem>>, vector<1x1x4x32xbf16>,
    return
  }
  func.func @transform_0(%arg0: i32) -> (i32, i32, i32, i32) {
    %c0_i32 = arith.constant 0 : i32
    %c0_i32_0 = arith.constant 0 : i32
    %c0_i32_1 = arith.constant 0 : i32
    %c0_i32_2 = arith.constant 0 : i32
    return %arg0, %c0_i32, %c0_i32_0, %c0_i32_1 : i32, i32, i32, i32
  }
  func.func @transform_1(%arg0: i32) -> (i32, i32, i32, i32) {
    %c0_i32 = arith.constant 0 : i32
    %c0_i32_0 = arith.constant 0 : i32
    %c0_i32_1 = arith.constant 0 : i32
    %c0_i32_2 = arith.constant 0 : i32
    return %arg0, %c0_i32, %c0_i32_0, %c0_i32_1 : i32, i32, i32, i32
  }
  func.func @transform_2(%arg0: i32) -> (i32, i32, i32) {
    %c0_i32 = arith.constant 0 : i32
    %c0_i32_0 = arith.constant 0 : i32
    %c0_i32_1 = arith.constant 0 : i32
    %c0_i32_2 = arith.constant 0 : i32
    return %c0_i32, %c0_i32_0, %c0_i32_1 : i32, i32, i32
  }
  func.func @transform_3(%arg0: i32) -> (i32, i32, i32, i32) {
    %c0_i32 = arith.constant 0 : i32
    %c0_i32_0 = arith.constant 0 : i32
    %c0_i32_1 = arith.constant 0 : i32
    %c0_i32_2 = arith.constant 0 : i32
    return %arg0, %c0_i32, %c0_i32_0, %c0_i32_1 : i32, i32, i32, i32
  }
}

module attributes {stable_mosaic.version = 11 : i64} {
  func.func @_avgpool_bnrelu_kernel(%arg0: i32, %arg1: memref<1x2x2x128xbf16, #tpu.memory_space<vmem>>, %arg2: memref<1x2x2x128xbf16, #tpu.memory_space<vmem>>, %arg3: memref<1x2x2x128xbf16, #tpu.memory_space<vmem>>, %arg4: memref<1x2x2x128xbf16, #tpu.memory_space<vmem>>, %arg5: memref<1x1x1x128xf32, #tpu.memory_space<vmem>>, %arg6: memref<1x1x1x128xf32, #tpu.memory_space<vmem>>, %arg7: memref<1x2x2x128xbf16, #tpu.memory_space<vmem>>) attributes {dimension_semantics = [#tpu.dimension_semantics<parallel>], iteration_bounds = array<i64: 2>, scalar_prefetch = 0 : i64, scratch_operands = 0 : i64, tpu.core_type = #tpu.core_type<tc>, window_params = [{transform_indices = @transform_0, window_bounds = array<i64: 1, 2, 2, 128>}, {transform_indices = @transform_1, window_bounds = array<i64: 1, 2, 2, 128>}, {transform_indices = @transform_2, window_bounds = array<i64: 1, 2, 2, 128>}, {transform_indices = @transform_3, window_bounds = array<i64: 1, 2, 2, 128>}, {pipeline_mode = #tpu.pipeline_mode<synchronous>, transform_indices = @transform_4, window_bounds = array<i64: 1, 1, 1, 128>}, {pipeline_mode = #tpu.pipeline_mode<synchronous>, transform_indices = @transform_5, window_bounds = array<i64: 1, 1, 1, 128>}, {transform_indices = @transform_6, window_bounds = array<i64: 1, 2, 2, 128>}]} {
    %c0 = arith.constant 0 : index
    %c0_0 = arith.constant 0 : index
    %c0_1 = arith.constant 0 : index
    %c0_2 = arith.constant 0 : index
    %0 = vector.load %arg1[%c0, %c0_0, %c0_1, %c0_2] : memref<1x2x2x128xbf16, #tpu.memory_space<vmem>>, vector<1x2x2x128xbf16>
    %1 = arith.extf %0 : vector<1x2x2x128xbf16> to vector<1x2x2x128xf32>
    %c0_3 = arith.constant 0 : index
    %c0_4 = arith.constant 0 : index
    %c0_5 = arith.constant 0 : index
    %c0_6 = arith.constant 0 : index
    %2 = vector.load %arg5[%c0_3, %c0_4, %c0_5, %c0_6] : memref<1x1x1x128xf32, #tpu.memory_space<vmem>>, vector<1x1x1x128xf32>
    %3 = vector.broadcast %2 : vector<1x1x1x128xf32> to vector<1x2x2x128xf32>
    %4 = arith.mulf %1, %3 : vector<1x2x2x128xf32>
    %c0_7 = arith.constant 0 : index
    %c0_8 = arith.constant 0 : index
    %c0_9 = arith.constant 0 : index
    %c0_10 = arith.constant 0 : index
    %5 = vector.load %arg6[%c0_7, %c0_8, %c0_9, %c0_10] : memref<1x1x1x128xf32, #tpu.memory_space<vmem>>, vector<1x1x1x128xf32>
    %6 = vector.broadcast %5 : vector<1x1x1x128xf32> to vector<1x2x2x128xf32>
    %7 = arith.addf %4, %6 : vector<1x2x2x128xf32>
    %cst = arith.constant 0.000000e+00 : f32
    %8 = vector.broadcast %cst : f32 to vector<1x2x2x128xf32>
    %9 = arith.maximumf %7, %8 : vector<1x2x2x128xf32>
    %c0_11 = arith.constant 0 : index
    %c0_12 = arith.constant 0 : index
    %c0_13 = arith.constant 0 : index
    %c0_14 = arith.constant 0 : index
    %10 = vector.load %arg2[%c0_11, %c0_12, %c0_13, %c0_14] : memref<1x2x2x128xbf16, #tpu.memory_space<vmem>>, vector<1x2x2x128xbf16>
    %11 = arith.extf %10 : vector<1x2x2x128xbf16> to vector<1x2x2x128xf32>
    %c0_15 = arith.constant 0 : index
    %c0_16 = arith.constant 0 : index
    %c0_17 = arith.constant 0 : index
    %c0_18 = arith.constant 0 : index
    %12 = vector.load %arg5[%c0_15, %c0_16, %c0_17, %c0_18] : memref<1x1x1x128xf32, #tpu.memory_space<vmem>>, vector<1x1x1x128xf32>
    %13 = vector.broadcast %12 : vector<1x1x1x128xf32> to vector<1x2x2x128xf32>
    %14 = arith.mulf %11, %13 : vector<1x2x2x128xf32>
    %c0_19 = arith.constant 0 : index
    %c0_20 = arith.constant 0 : index
    %c0_21 = arith.constant 0 : index
    %c0_22 = arith.constant 0 : index
    %15 = vector.load %arg6[%c0_19, %c0_20, %c0_21, %c0_22] : memref<1x1x1x128xf32, #tpu.memory_space<vmem>>, vector<1x1x1x128xf32>
    %16 = vector.broadcast %15 : vector<1x1x1x128xf32> to vector<1x2x2x128xf32>
    %17 = arith.addf %14, %16 : vector<1x2x2x128xf32>
    %cst_23 = arith.constant 0.000000e+00 : f32
    %18 = vector.broadcast %cst_23 : f32 to vector<1x2x2x128xf32>
    %19 = arith.maximumf %17, %18 : vector<1x2x2x128xf32>
    %20 = arith.addf %9, %19 : vector<1x2x2x128xf32>
    %c0_24 = arith.constant 0 : index
    %c0_25 = arith.constant 0 : index
    %c0_26 = arith.constant 0 : index
    %c0_27 = arith.constant 0 : index
    %21 = vector.load %arg3[%c0_24, %c0_25, %c0_26, %c0_27] : memref<1x2x2x128xbf16, #tpu.memory_space<vmem>>, vector<1x2x2x128xbf16>
    %22 = arith.extf %21 : vector<1x2x2x128xbf16> to vector<1x2x2x128xf32>
    %c0_28 = arith.constant 0 : index
    %c0_29 = arith.constant 0 : index
    %c0_30 = arith.constant 0 : index
    %c0_31 = arith.constant 0 : index
    %23 = vector.load %arg5[%c0_28, %c0_29, %c0_30, %c0_31] : memref<1x1x1x128xf32, #tpu.memory_space<vmem>>, vector<1x1x1x128xf32>
    %24 = vector.broadcast %23 : vector<1x1x1x128xf32> to vector<1x2x2x128xf32>
    %25 = arith.mulf %22, %24 : vector<1x2x2x128xf32>
    %c0_32 = arith.constant 0 : index
    %c0_33 = arith.constant 0 : index
    %c0_34 = arith.constant 0 : index
    %c0_35 = arith.constant 0 : index
    %26 = vector.load %arg6[%c0_32, %c0_33, %c0_34, %c0_35] : memref<1x1x1x128xf32, #tpu.memory_space<vmem>>, vector<1x1x1x128xf32>
    %27 = vector.broadcast %26 : vector<1x1x1x128xf32> to vector<1x2x2x128xf32>
    %28 = arith.addf %25, %27 : vector<1x2x2x128xf32>
    %cst_36 = arith.constant 0.000000e+00 : f32
    %29 = vector.broadcast %cst_36 : f32 to vector<1x2x2x128xf32>
    %30 = arith.maximumf %28, %29 : vector<1x2x2x128xf32>
    %31 = arith.addf %20, %30 : vector<1x2x2x128xf32>
    %c0_37 = arith.constant 0 : index
    %c0_38 = arith.constant 0 : index
    %c0_39 = arith.constant 0 : index
    %c0_40 = arith.constant 0 : index
    %32 = vector.load %arg4[%c0_37, %c0_38, %c0_39, %c0_40] : memref<1x2x2x128xbf16, #tpu.memory_space<vmem>>, vector<1x2x2x128xbf16>
    %33 = arith.extf %32 : vector<1x2x2x128xbf16> to vector<1x2x2x128xf32>
    %c0_41 = arith.constant 0 : index
    %c0_42 = arith.constant 0 : index
    %c0_43 = arith.constant 0 : index
    %c0_44 = arith.constant 0 : index
    %34 = vector.load %arg5[%c0_41, %c0_42, %c0_43, %c0_44] : memref<1x1x1x128xf32, #tpu.memory_space<vmem>>, vector<1x1x1x128xf32>
    %35 = vector.broadcast %34 : vector<1x1x1x128xf32> to vector<1x2x2x128xf32>
    %36 = arith.mulf %33, %35 : vector<1x2x2x128xf32>
    %c0_45 = arith.constant 0 : index
    %c0_46 = arith.constant 0 : index
    %c0_47 = arith.constant 0 : index
    %c0_48 = arith.constant 0 : index
    %37 = vector.load %arg6[%c0_45, %c0_46, %c0_47, %c0_48] : memref<1x1x1x128xf32, #tpu.memory_space<vmem>>, vector<1x1x1x128xf32>
    %38 = vector.broadcast %37 : vector<1x1x1x128xf32> to vector<1x2x2x128xf32>
    %39 = arith.addf %36, %38 : vector<1x2x2x128xf32>
    %cst_49 = arith.constant 0.000000e+00 : f32
    %40 = vector.broadcast %cst_49 : f32 to vector<1x2x2x128xf32>
    %41 = arith.maximumf %39, %40 : vector<1x2x2x128xf32>
    %42 = arith.addf %31, %41 : vector<1x2x2x128xf32>
    %cst_50 = arith.constant 2.500000e-01 : f32
    %43 = vector.broadcast %cst_50 : f32 to vector<1x2x2x128xf32>
    %44 = arith.mulf %42, %43 : vector<1x2x2x128xf32>
    %45 = arith.truncf %44 : vector<1x2x2x128xf32> to vector<1x2x2x128xbf16>
    %c0_51 = arith.constant 0 : index
    %c0_52 = arith.constant 0 : index
    %c0_53 = arith.constant 0 : index
    %c0_54 = arith.constant 0 : index
    %46 = vector.load %arg7[%c0_51, %c0_52, %c0_53, %c0_54] : memref<1x2x2x128xbf16, #tpu.memory_space<vmem>>, vector<1x2x2x128xbf16>
    tpu.vector_store %arg7[%c0_51, %c0_52, %c0_53, %c0_54], %45 {strides = array<i32>} : memref<1x2x2x128xbf16, #tpu.memory_space<vmem>>, vector<1x2x2x128xbf16>,
    return
  }
  func.func @transform_0(%arg0: i32) -> (i32, i32, i32, i32) {
    %c0_i32 = arith.constant 0 : i32
    %c0_i32_0 = arith.constant 0 : i32
    %c0_i32_1 = arith.constant 0 : i32
    %c0_i32_2 = arith.constant 0 : i32
    return %arg0, %c0_i32, %c0_i32_0, %c0_i32_1 : i32, i32, i32, i32
  }
  func.func @transform_1(%arg0: i32) -> (i32, i32, i32, i32) {
    %c0_i32 = arith.constant 0 : i32
    %c0_i32_0 = arith.constant 0 : i32
    %c0_i32_1 = arith.constant 0 : i32
    %c0_i32_2 = arith.constant 0 : i32
    return %arg0, %c0_i32, %c0_i32_0, %c0_i32_1 : i32, i32, i32, i32
  }
  func.func @transform_2(%arg0: i32) -> (i32, i32, i32, i32) {
    %c0_i32 = arith.constant 0 : i32
    %c0_i32_0 = arith.constant 0 : i32
    %c0_i32_1 = arith.constant 0 : i32
    %c0_i32_2 = arith.constant 0 : i32
    return %arg0, %c0_i32, %c0_i32_0, %c0_i32_1 : i32, i32, i32, i32
  }
  func.func @transform_3(%arg0: i32) -> (i32, i32, i32, i32) {
    %c0_i32 = arith.constant 0 : i32
    %c0_i32_0 = arith.constant 0 : i32
    %c0_i32_1 = arith.constant 0 : i32
    %c0_i32_2 = arith.constant 0 : i32
    return %arg0, %c0_i32, %c0_i32_0, %c0_i32_1 : i32, i32, i32, i32
  }
  func.func @transform_4(%arg0: i32) -> (i32, i32, i32, i32) {
    %c0_i32 = arith.constant 0 : i32
    %c0_i32_0 = arith.constant 0 : i32
    %c0_i32_1 = arith.constant 0 : i32
    %c0_i32_2 = arith.constant 0 : i32
    %c0_i32_3 = arith.constant 0 : i32
    return %c0_i32, %c0_i32_0, %c0_i32_1, %c0_i32_2 : i32, i32, i32, i32
  }
  func.func @transform_5(%arg0: i32) -> (i32, i32, i32, i32) {
    %c0_i32 = arith.constant 0 : i32
    %c0_i32_0 = arith.constant 0 : i32
    %c0_i32_1 = arith.constant 0 : i32
    %c0_i32_2 = arith.constant 0 : i32
    %c0_i32_3 = arith.constant 0 : i32
    return %c0_i32, %c0_i32_0, %c0_i32_1, %c0_i32_2 : i32, i32, i32, i32
  }
  func.func @transform_6(%arg0: i32) -> (i32, i32, i32, i32) {
    %c0_i32 = arith.constant 0 : i32
    %c0_i32_0 = arith.constant 0 : i32
    %c0_i32_1 = arith.constant 0 : i32
    %c0_i32_2 = arith.constant 0 : i32
    return %arg0, %c0_i32, %c0_i32_0, %c0_i32_1 : i32, i32, i32, i32
  }
}

module attributes {stable_mosaic.version = 11 : i64} {
  func.func @_fused_matmul_kernel(%arg0: i32, %arg1: i32, %arg2: i32, %arg3: memref<128x128xbf16, #tpu.memory_space<vmem>>, %arg4: memref<128x128xbf16, #tpu.memory_space<vmem>>, %arg5: memref<128x128xbf16, #tpu.memory_space<vmem>>, %arg6: memref<128x128xf32, #tpu.memory_space<vmem>>) attributes {dimension_semantics = [#tpu.dimension_semantics<parallel>, #tpu.dimension_semantics<parallel>, #tpu.dimension_semantics<arbitrary>], iteration_bounds = array<i64: 1, 1, 1>, scalar_prefetch = 0 : i64, scratch_operands = 1 : i64, tpu.core_type = #tpu.core_type<tc>, window_params = [{transform_indices = @transform_0, window_bounds = array<i64: 128, 128>}, {transform_indices = @transform_1, window_bounds = array<i64: 128, 128>}, {transform_indices = @transform_2, window_bounds = array<i64: 128, 128>}]} {
    %c0_i32 = arith.constant 0 : i32
    %0 = arith.cmpi eq, %arg2, %c0_i32 : i32
    %1 = arith.extui %0 : i1 to i32
    %c0_i32_0 = arith.constant 0 : i32
    %2 = arith.cmpi ne, %1, %c0_i32_0 : i32
    scf.if %2 {
      %cst_10 = arith.constant 0.000000e+00 : f32
      %12 = vector.broadcast %cst_10 : f32 to vector<128x128xf32>
      %c0_11 = arith.constant 0 : index
      %c0_12 = arith.constant 0 : index
      %13 = vector.load %arg6[%c0_11, %c0_12] : memref<128x128xf32, #tpu.memory_space<vmem>>, vector<128x128xf32>
      tpu.vector_store %arg6[%c0_11, %c0_12], %12 {strides = array<i32>} : memref<128x128xf32, #tpu.memory_space<vmem>>, vector<128x128xf32>,
    } else {
    }
    %c0 = arith.constant 0 : index
    %c0_1 = arith.constant 0 : index
    %3 = vector.load %arg3[%c0, %c0_1] : memref<128x128xbf16, #tpu.memory_space<vmem>>, vector<128x128xbf16>
    %c0_2 = arith.constant 0 : index
    %c0_3 = arith.constant 0 : index
    %4 = vector.load %arg6[%c0_2, %c0_3] : memref<128x128xf32, #tpu.memory_space<vmem>>, vector<128x128xf32>
    %c0_4 = arith.constant 0 : index
    %c0_5 = arith.constant 0 : index
    %5 = vector.load %arg4[%c0_4, %c0_5] : memref<128x128xbf16, #tpu.memory_space<vmem>>, vector<128x128xbf16>
    %cst = arith.constant dense<0.000000e+00> : vector<128x128xf32>
    %6 = tpu.matmul %3, %5, %cst {dimension_numbers = #tpu.dot_dimension_numbers<[1], [0], [0], [1], [0, 0, 1, 1], [], []>} : vector<128x128xbf16>, vector<128x128xbf16>, vector<128x128xf32> -> vector<128x128xf32>
    %7 = arith.addf %4, %6 : vector<128x128xf32>
    %c0_6 = arith.constant 0 : index
    %c0_7 = arith.constant 0 : index
    %8 = vector.load %arg6[%c0_6, %c0_7] : memref<128x128xf32, #tpu.memory_space<vmem>>, vector<128x128xf32>
    tpu.vector_store %arg6[%c0_6, %c0_7], %7 {strides = array<i32>} : memref<128x128xf32, #tpu.memory_space<vmem>>, vector<128x128xf32>,
    %c0_i32_8 = arith.constant 0 : i32
    %9 = arith.cmpi eq, %arg2, %c0_i32_8 : i32
    %10 = arith.extui %9 : i1 to i32
    %c0_i32_9 = arith.constant 0 : i32
    %11 = arith.cmpi ne, %10, %c0_i32_9 : i32
    scf.if %11 {
      %c0_10 = arith.constant 0 : index
      %c0_11 = arith.constant 0 : index
      %12 = vector.load %arg6[%c0_10, %c0_11] : memref<128x128xf32, #tpu.memory_space<vmem>>, vector<128x128xf32>
      %13 = arith.truncf %12 : vector<128x128xf32> to vector<128x128xbf16>
      %c0_12 = arith.constant 0 : index
      %c0_13 = arith.constant 0 : index
      %14 = vector.load %arg5[%c0_12, %c0_13] : memref<128x128xbf16, #tpu.memory_space<vmem>>, vector<128x128xbf16>
      tpu.vector_store %arg5[%c0_12, %c0_13], %13 {strides = array<i32>} : memref<128x128xbf16, #tpu.memory_space<vmem>>, vector<128x128xbf16>,
    } else {
    }
    return
  }
  func.func @transform_0(%arg0: i32, %arg1: i32, %arg2: i32) -> (i32, i32) {
    %c0_i32 = arith.constant 0 : i32
    return %arg0, %arg2 : i32, i32
  }
  func.func @transform_1(%arg0: i32, %arg1: i32, %arg2: i32) -> (i32, i32) {
    %c0_i32 = arith.constant 0 : i32
    return %arg2, %arg1 : i32, i32
  }
  func.func @transform_2(%arg0: i32, %arg1: i32, %arg2: i32) -> (i32, i32) {
    %c0_i32 = arith.constant 0 : i32
    return %arg0, %arg1 : i32, i32
  }
}

module attributes {stable_mosaic.version = 11 : i64} {
  func.func @_dense_conv_concat_kernel(%arg0: i32, %arg1: memref<1x2x2x128xbf16, #tpu.memory_space<vmem>>, %arg2: memref<1x2x2x128xbf16, #tpu.memory_space<vmem>>, %arg3: memref<9x128x32xbf16, #tpu.memory_space<vmem>>, %arg4: memref<1x2x2x128xbf16, #tpu.memory_space<vmem>>, %arg5: memref<20x128xbf16, #tpu.memory_space<vmem>>, %arg6: memref<8x32xf32, #tpu.memory_space<vmem>>) attributes {dimension_semantics = [#tpu.dimension_semantics<parallel>], iteration_bounds = array<i64: 2>, scalar_prefetch = 0 : i64, scratch_operands = 2 : i64, tpu.core_type = #tpu.core_type<tc>, window_params = [{transform_indices = @transform_0, window_bounds = array<i64: 1, 2, 2, 128>}, {transform_indices = @transform_1, window_bounds = array<i64: 1, 2, 2, 128>}, {pipeline_mode = #tpu.pipeline_mode<synchronous>, transform_indices = @transform_2, window_bounds = array<i64: 9, 128, 32>}, {transform_indices = @transform_3, window_bounds = array<i64: 1, 2, 2, 128>}]} {
    %cst = arith.constant 0.000000e+00 : bf16
    %0 = vector.broadcast %cst : bf16 to vector<20x128xbf16>
    %c0 = arith.constant 0 : index
    %c0_0 = arith.constant 0 : index
    %1 = vector.load %arg5[%c0, %c0_0] : memref<20x128xbf16, #tpu.memory_space<vmem>>, vector<20x128xbf16>
    tpu.vector_store %arg5[%c0, %c0_0], %0 {strides = array<i32>} : memref<20x128xbf16, #tpu.memory_space<vmem>>, vector<20x128xbf16>,
    %c0_1 = arith.constant 0 : index
    %c0_2 = arith.constant 0 : index
    %c0_3 = arith.constant 0 : index
    %c0_4 = arith.constant 0 : index
    %2 = vector.load %arg1[%c0_1, %c0_2, %c0_3, %c0_4] : memref<1x2x2x128xbf16, #tpu.memory_space<vmem>>, vector<1x1x2x128xbf16>
    %3 = vector.shape_cast %2 : vector<1x1x2x128xbf16> to vector<2x128xbf16>
    %c5 = arith.constant 5 : index
    %c0_5 = arith.constant 0 : index
    %4 = vector.load %arg5[%c5, %c0_5] : memref<20x128xbf16, #tpu.memory_space<vmem>>, vector<2x128xbf16>
    tpu.vector_store %arg5[%c5, %c0_5], %3 {strides = array<i32>} : memref<20x128xbf16, #tpu.memory_space<vmem>>, vector<2x128xbf16>,
    %c0_6 = arith.constant 0 : index
    %c1 = arith.constant 1 : index
    %c0_7 = arith.constant 0 : index
    %c0_8 = arith.constant 0 : index
    %5 = vector.load %arg1[%c0_6, %c1, %c0_7, %c0_8] : memref<1x2x2x128xbf16, #tpu.memory_space<vmem>>, vector<1x1x2x128xbf16>
    %6 = vector.shape_cast %5 : vector<1x1x2x128xbf16> to vector<2x128xbf16>
    %c9 = arith.constant 9 : index
    %c0_9 = arith.constant 0 : index
    %7 = vector.load %arg5[%c9, %c0_9] : memref<20x128xbf16, #tpu.memory_space<vmem>>, vector<2x128xbf16>
    tpu.vector_store %arg5[%c9, %c0_9], %6 {strides = array<i32>} : memref<20x128xbf16, #tpu.memory_space<vmem>>, vector<2x128xbf16>,
    %cst_10 = arith.constant 0.000000e+00 : f32
    %8 = vector.broadcast %cst_10 : f32 to vector<8x32xf32>
    %c0_11 = arith.constant 0 : index
    %c0_12 = arith.constant 0 : index
    %9 = vector.load %arg6[%c0_11, %c0_12] : memref<8x32xf32, #tpu.memory_space<vmem>>, vector<8x32xf32>
    tpu.vector_store %arg6[%c0_11, %c0_12], %8 {strides = array<i32>} : memref<8x32xf32, #tpu.memory_space<vmem>>, vector<8x32xf32>,
    %c0_13 = arith.constant 0 : index
    %c0_14 = arith.constant 0 : index
    %10 = vector.load %arg5[%c0_13, %c0_14] : memref<20x128xbf16, #tpu.memory_space<vmem>>, vector<8x128xbf16>
    %c0_15 = arith.constant 0 : index
    %c0_16 = arith.constant 0 : index
    %11 = vector.load %arg6[%c0_15, %c0_16] : memref<8x32xf32, #tpu.memory_space<vmem>>, vector<8x32xf32>
    %c0_17 = arith.constant 0 : index
    %c0_18 = arith.constant 0 : index
    %c0_19 = arith.constant 0 : index
    %12 = vector.load %arg3[%c0_17, %c0_18, %c0_19] : memref<9x128x32xbf16, #tpu.memory_space<vmem>>, vector<1x128x32xbf16>
    %13 = vector.shape_cast %12 : vector<1x128x32xbf16> to vector<128x32xbf16>
    %cst_20 = arith.constant dense<0.000000e+00> : vector<8x32xf32>
    %14 = tpu.matmul %10, %13, %cst_20 {dimension_numbers = #tpu.dot_dimension_numbers<[1], [0], [0], [1], [0, 0, 1, 1], [], []>} : vector<8x128xbf16>, vector<128x32xbf16>, vector<8x32xf32> -> vector<8x32xf32>
    %15 = arith.addf %11, %14 : vector<8x32xf32>
    %c0_21 = arith.constant 0 : index
    %c0_22 = arith.constant 0 : index
    %16 = vector.load %arg6[%c0_21, %c0_22] : memref<8x32xf32, #tpu.memory_space<vmem>>, vector<8x32xf32>
    tpu.vector_store %arg6[%c0_21, %c0_22], %15 {strides = array<i32>} : memref<8x32xf32, #tpu.memory_space<vmem>>, vector<8x32xf32>,
    %c1_23 = arith.constant 1 : index
    %c0_24 = arith.constant 0 : index
    %17 = vector.load %arg5[%c1_23, %c0_24] : memref<20x128xbf16, #tpu.memory_space<vmem>>, vector<8x128xbf16>
    %c0_25 = arith.constant 0 : index
    %c0_26 = arith.constant 0 : index
    %18 = vector.load %arg6[%c0_25, %c0_26] : memref<8x32xf32, #tpu.memory_space<vmem>>, vector<8x32xf32>
    %c1_27 = arith.constant 1 : index
    %c0_28 = arith.constant 0 : index
    %c0_29 = arith.constant 0 : index
    %19 = vector.load %arg3[%c1_27, %c0_28, %c0_29] : memref<9x128x32xbf16, #tpu.memory_space<vmem>>, vector<1x128x32xbf16>
    %20 = vector.shape_cast %19 : vector<1x128x32xbf16> to vector<128x32xbf16>
    %cst_30 = arith.constant dense<0.000000e+00> : vector<8x32xf32>
    %21 = tpu.matmul %17, %20, %cst_30 {dimension_numbers = #tpu.dot_dimension_numbers<[1], [0], [0], [1], [0, 0, 1, 1], [], []>} : vector<8x128xbf16>, vector<128x32xbf16>, vector<8x32xf32> -> vector<8x32xf32>
    %22 = arith.addf %18, %21 : vector<8x32xf32>
    %c0_31 = arith.constant 0 : index
    %c0_32 = arith.constant 0 : index
    %23 = vector.load %arg6[%c0_31, %c0_32] : memref<8x32xf32, #tpu.memory_space<vmem>>, vector<8x32xf32>
    tpu.vector_store %arg6[%c0_31, %c0_32], %22 {strides = array<i32>} : memref<8x32xf32, #tpu.memory_space<vmem>>, vector<8x32xf32>,
    %c2 = arith.constant 2 : index
    %c0_33 = arith.constant 0 : index
    %24 = vector.load %arg5[%c2, %c0_33] : memref<20x128xbf16, #tpu.memory_space<vmem>>, vector<8x128xbf16>
    %c0_34 = arith.constant 0 : index
    %c0_35 = arith.constant 0 : index
    %25 = vector.load %arg6[%c0_34, %c0_35] : memref<8x32xf32, #tpu.memory_space<vmem>>, vector<8x32xf32>
    %c2_36 = arith.constant 2 : index
    %c0_37 = arith.constant 0 : index
    %c0_38 = arith.constant 0 : index
    %26 = vector.load %arg3[%c2_36, %c0_37, %c0_38] : memref<9x128x32xbf16, #tpu.memory_space<vmem>>, vector<1x128x32xbf16>
    %27 = vector.shape_cast %26 : vector<1x128x32xbf16> to vector<128x32xbf16>
    %cst_39 = arith.constant dense<0.000000e+00> : vector<8x32xf32>
    %28 = tpu.matmul %24, %27, %cst_39 {dimension_numbers = #tpu.dot_dimension_numbers<[1], [0], [0], [1], [0, 0, 1, 1], [], []>} : vector<8x128xbf16>, vector<128x32xbf16>, vector<8x32xf32> -> vector<8x32xf32>
    %29 = arith.addf %25, %28 : vector<8x32xf32>
    %c0_40 = arith.constant 0 : index
    %c0_41 = arith.constant 0 : index
    %30 = vector.load %arg6[%c0_40, %c0_41] : memref<8x32xf32, #tpu.memory_space<vmem>>, vector<8x32xf32>
    tpu.vector_store %arg6[%c0_40, %c0_41], %29 {strides = array<i32>} : memref<8x32xf32, #tpu.memory_space<vmem>>, vector<8x32xf32>,
    %c4 = arith.constant 4 : index
    %c0_42 = arith.constant 0 : index
    %31 = vector.load %arg5[%c4, %c0_42] : memref<20x128xbf16, #tpu.memory_space<vmem>>, vector<8x128xbf16>
    %c0_43 = arith.constant 0 : index
    %c0_44 = arith.constant 0 : index
    %32 = vector.load %arg6[%c0_43, %c0_44] : memref<8x32xf32, #tpu.memory_space<vmem>>, vector<8x32xf32>
    %c3 = arith.constant 3 : index
    %c0_45 = arith.constant 0 : index
    %c0_46 = arith.constant 0 : index
    %33 = vector.load %arg3[%c3, %c0_45, %c0_46] : memref<9x128x32xbf16, #tpu.memory_space<vmem>>, vector<1x128x32xbf16>
    %34 = vector.shape_cast %33 : vector<1x128x32xbf16> to vector<128x32xbf16>
    %cst_47 = arith.constant dense<0.000000e+00> : vector<8x32xf32>
    %35 = tpu.matmul %31, %34, %cst_47 {dimension_numbers = #tpu.dot_dimension_numbers<[1], [0], [0], [1], [0, 0, 1, 1], [], []>} : vector<8x128xbf16>, vector<128x32xbf16>, vector<8x32xf32> -> vector<8x32xf32>
    %36 = arith.addf %32, %35 : vector<8x32xf32>
    %c0_48 = arith.constant 0 : index
    %c0_49 = arith.constant 0 : index
    %37 = vector.load %arg6[%c0_48, %c0_49] : memref<8x32xf32, #tpu.memory_space<vmem>>, vector<8x32xf32>
    tpu.vector_store %arg6[%c0_48, %c0_49], %36 {strides = array<i32>} : memref<8x32xf32, #tpu.memory_space<vmem>>, vector<8x32xf32>,
    %c5_50 = arith.constant 5 : index
    %c0_51 = arith.constant 0 : index
    %38 = vector.load %arg5[%c5_50, %c0_51] : memref<20x128xbf16, #tpu.memory_space<vmem>>, vector<8x128xbf16>
    %c0_52 = arith.constant 0 : index
    %c0_53 = arith.constant 0 : index
    %39 = vector.load %arg6[%c0_52, %c0_53] : memref<8x32xf32, #tpu.memory_space<vmem>>, vector<8x32xf32>
    %c4_54 = arith.constant 4 : index
    %c0_55 = arith.constant 0 : index
    %c0_56 = arith.constant 0 : index
    %40 = vector.load %arg3[%c4_54, %c0_55, %c0_56] : memref<9x128x32xbf16, #tpu.memory_space<vmem>>, vector<1x128x32xbf16>
    %41 = vector.shape_cast %40 : vector<1x128x32xbf16> to vector<128x32xbf16>
    %cst_57 = arith.constant dense<0.000000e+00> : vector<8x32xf32>
    %42 = tpu.matmul %38, %41, %cst_57 {dimension_numbers = #tpu.dot_dimension_numbers<[1], [0], [0], [1], [0, 0, 1, 1], [], []>} : vector<8x128xbf16>, vector<128x32xbf16>, vector<8x32xf32> -> vector<8x32xf32>
    %43 = arith.addf %39, %42 : vector<8x32xf32>
    %c0_58 = arith.constant 0 : index
    %c0_59 = arith.constant 0 : index
    %44 = vector.load %arg6[%c0_58, %c0_59] : memref<8x32xf32, #tpu.memory_space<vmem>>, vector<8x32xf32>
    tpu.vector_store %arg6[%c0_58, %c0_59], %43 {strides = array<i32>} : memref<8x32xf32, #tpu.memory_space<vmem>>, vector<8x32xf32>,
    %c6 = arith.constant 6 : index
    %c0_60 = arith.constant 0 : index
    %45 = vector.load %arg5[%c6, %c0_60] : memref<20x128xbf16, #tpu.memory_space<vmem>>, vector<8x128xbf16>
    %c0_61 = arith.constant 0 : index
    %c0_62 = arith.constant 0 : index
    %46 = vector.load %arg6[%c0_61, %c0_62] : memref<8x32xf32, #tpu.memory_space<vmem>>, vector<8x32xf32>
    %c5_63 = arith.constant 5 : index
    %c0_64 = arith.constant 0 : index
    %c0_65 = arith.constant 0 : index
    %47 = vector.load %arg3[%c5_63, %c0_64, %c0_65] : memref<9x128x32xbf16, #tpu.memory_space<vmem>>, vector<1x128x32xbf16>
    %48 = vector.shape_cast %47 : vector<1x128x32xbf16> to vector<128x32xbf16>
    %cst_66 = arith.constant dense<0.000000e+00> : vector<8x32xf32>
    %49 = tpu.matmul %45, %48, %cst_66 {dimension_numbers = #tpu.dot_dimension_numbers<[1], [0], [0], [1], [0, 0, 1, 1], [], []>} : vector<8x128xbf16>, vector<128x32xbf16>, vector<8x32xf32> -> vector<8x32xf32>
    %50 = arith.addf %46, %49 : vector<8x32xf32>
    %c0_67 = arith.constant 0 : index
    %c0_68 = arith.constant 0 : index
    %51 = vector.load %arg6[%c0_67, %c0_68] : memref<8x32xf32, #tpu.memory_space<vmem>>, vector<8x32xf32>
    tpu.vector_store %arg6[%c0_67, %c0_68], %50 {strides = array<i32>} : memref<8x32xf32, #tpu.memory_space<vmem>>, vector<8x32xf32>,
    %c8 = arith.constant 8 : index
    %c0_69 = arith.constant 0 : index
    %52 = vector.load %arg5[%c8, %c0_69] : memref<20x128xbf16, #tpu.memory_space<vmem>>, vector<8x128xbf16>
    %c0_70 = arith.constant 0 : index
    %c0_71 = arith.constant 0 : index
    %53 = vector.load %arg6[%c0_70, %c0_71] : memref<8x32xf32, #tpu.memory_space<vmem>>, vector<8x32xf32>
    %c6_72 = arith.constant 6 : index
    %c0_73 = arith.constant 0 : index
    %c0_74 = arith.constant 0 : index
    %54 = vector.load %arg3[%c6_72, %c0_73, %c0_74] : memref<9x128x32xbf16, #tpu.memory_space<vmem>>, vector<1x128x32xbf16>
    %55 = vector.shape_cast %54 : vector<1x128x32xbf16> to vector<128x32xbf16>
    %cst_75 = arith.constant dense<0.000000e+00> : vector<8x32xf32>
    %56 = tpu.matmul %52, %55, %cst_75 {dimension_numbers = #tpu.dot_dimension_numbers<[1], [0], [0], [1], [0, 0, 1, 1], [], []>} : vector<8x128xbf16>, vector<128x32xbf16>, vector<8x32xf32> -> vector<8x32xf32>
    %57 = arith.addf %53, %56 : vector<8x32xf32>
    %c0_76 = arith.constant 0 : index
    %c0_77 = arith.constant 0 : index
    %58 = vector.load %arg6[%c0_76, %c0_77] : memref<8x32xf32, #tpu.memory_space<vmem>>, vector<8x32xf32>
    tpu.vector_store %arg6[%c0_76, %c0_77], %57 {strides = array<i32>} : memref<8x32xf32, #tpu.memory_space<vmem>>, vector<8x32xf32>,
    %c9_78 = arith.constant 9 : index
    %c0_79 = arith.constant 0 : index
    %59 = vector.load %arg5[%c9_78, %c0_79] : memref<20x128xbf16, #tpu.memory_space<vmem>>, vector<8x128xbf16>
    %c0_80 = arith.constant 0 : index
    %c0_81 = arith.constant 0 : index
    %60 = vector.load %arg6[%c0_80, %c0_81] : memref<8x32xf32, #tpu.memory_space<vmem>>, vector<8x32xf32>
    %c7 = arith.constant 7 : index
    %c0_82 = arith.constant 0 : index
    %c0_83 = arith.constant 0 : index
    %61 = vector.load %arg3[%c7, %c0_82, %c0_83] : memref<9x128x32xbf16, #tpu.memory_space<vmem>>, vector<1x128x32xbf16>
    %62 = vector.shape_cast %61 : vector<1x128x32xbf16> to vector<128x32xbf16>
    %cst_84 = arith.constant dense<0.000000e+00> : vector<8x32xf32>
    %63 = tpu.matmul %59, %62, %cst_84 {dimension_numbers = #tpu.dot_dimension_numbers<[1], [0], [0], [1], [0, 0, 1, 1], [], []>} : vector<8x128xbf16>, vector<128x32xbf16>, vector<8x32xf32> -> vector<8x32xf32>
    %64 = arith.addf %60, %63 : vector<8x32xf32>
    %c0_85 = arith.constant 0 : index
    %c0_86 = arith.constant 0 : index
    %65 = vector.load %arg6[%c0_85, %c0_86] : memref<8x32xf32, #tpu.memory_space<vmem>>, vector<8x32xf32>
    tpu.vector_store %arg6[%c0_85, %c0_86], %64 {strides = array<i32>} : memref<8x32xf32, #tpu.memory_space<vmem>>, vector<8x32xf32>,
    %c10 = arith.constant 10 : index
    %c0_87 = arith.constant 0 : index
    %66 = vector.load %arg5[%c10, %c0_87] : memref<20x128xbf16, #tpu.memory_space<vmem>>, vector<8x128xbf16>
    %c0_88 = arith.constant 0 : index
    %c0_89 = arith.constant 0 : index
    %67 = vector.load %arg6[%c0_88, %c0_89] : memref<8x32xf32, #tpu.memory_space<vmem>>, vector<8x32xf32>
    %c8_90 = arith.constant 8 : index
    %c0_91 = arith.constant 0 : index
    %c0_92 = arith.constant 0 : index
    %68 = vector.load %arg3[%c8_90, %c0_91, %c0_92] : memref<9x128x32xbf16, #tpu.memory_space<vmem>>, vector<1x128x32xbf16>
    %69 = vector.shape_cast %68 : vector<1x128x32xbf16> to vector<128x32xbf16>
    %cst_93 = arith.constant dense<0.000000e+00> : vector<8x32xf32>
    %70 = tpu.matmul %66, %69, %cst_93 {dimension_numbers = #tpu.dot_dimension_numbers<[1], [0], [0], [1], [0, 0, 1, 1], [], []>} : vector<8x128xbf16>, vector<128x32xbf16>, vector<8x32xf32> -> vector<8x32xf32>
    %71 = arith.addf %67, %70 : vector<8x32xf32>
    %c0_94 = arith.constant 0 : index
    %c0_95 = arith.constant 0 : index
    %72 = vector.load %arg6[%c0_94, %c0_95] : memref<8x32xf32, #tpu.memory_space<vmem>>, vector<8x32xf32>
    tpu.vector_store %arg6[%c0_94, %c0_95], %71 {strides = array<i32>} : memref<8x32xf32, #tpu.memory_space<vmem>>, vector<8x32xf32>,
    %c0_96 = arith.constant 0 : index
    %c0_97 = arith.constant 0 : index
    %c0_98 = arith.constant 0 : index
    %c0_99 = arith.constant 0 : index
    %73 = vector.load %arg2[%c0_96, %c0_97, %c0_98, %c0_99] : memref<1x2x2x128xbf16, #tpu.memory_space<vmem>>, vector<1x2x2x128xbf16>
    %c0_100 = arith.constant 0 : index
    %c0_101 = arith.constant 0 : index
    %c0_102 = arith.constant 0 : index
    %c0_103 = arith.constant 0 : index
    %74 = vector.load %arg4[%c0_100, %c0_101, %c0_102, %c0_103] : memref<1x2x2x128xbf16, #tpu.memory_space<vmem>>, vector<1x2x2x128xbf16>
    tpu.vector_store %arg4[%c0_100, %c0_101, %c0_102, %c0_103], %73 {strides = array<i32>} : memref<1x2x2x128xbf16, #tpu.memory_space<vmem>>, vector<1x2x2x128xbf16>,
    %c0_104 = arith.constant 0 : index
    %c0_105 = arith.constant 0 : index
    %75 = vector.load %arg6[%c0_104, %c0_105] : memref<8x32xf32, #tpu.memory_space<vmem>>, vector<2x32xf32>
    %76 = arith.truncf %75 : vector<2x32xf32> to vector<2x32xbf16>
    %c0_106 = arith.constant 0 : index
    %c0_107 = arith.constant 0 : index
    %c0_108 = arith.constant 0 : index
    %c64 = arith.constant 64 : index
    %77 = vector.load %arg4[%c0_106, %c0_107, %c0_108, %c64] : memref<1x2x2x128xbf16, #tpu.memory_space<vmem>>, vector<1x1x2x32xbf16>
    %78 = vector.shape_cast %77 : vector<1x1x2x32xbf16> to vector<2x32xbf16>
    %79 = vector.shape_cast %76 : vector<2x32xbf16> to vector<1x1x2x32xbf16>
    tpu.vector_store %arg4[%c0_106, %c0_107, %c0_108, %c64], %79 {strides = array<i32>} : memref<1x2x2x128xbf16, #tpu.memory_space<vmem>>, vector<1x1x2x32xbf16>,
    %c4_109 = arith.constant 4 : index
    %c0_110 = arith.constant 0 : index
    %80 = vector.load %arg6[%c4_109, %c0_110] : memref<8x32xf32, #tpu.memory_space<vmem>>, vector<2x32xf32>
    %81 = arith.truncf %80 : vector<2x32xf32> to vector<2x32xbf16>
    %c0_111 = arith.constant 0 : index
    %c1_112 = arith.constant 1 : index
    %c0_113 = arith.constant 0 : index
    %c64_114 = arith.constant 64 : index
    %82 = vector.load %arg4[%c0_111, %c1_112, %c0_113, %c64_114] : memref<1x2x2x128xbf16, #tpu.memory_space<vmem>>, vector<1x1x2x32xbf16>
    %83 = vector.shape_cast %82 : vector<1x1x2x32xbf16> to vector<2x32xbf16>
    %84 = vector.shape_cast %81 : vector<2x32xbf16> to vector<1x1x2x32xbf16>
    tpu.vector_store %arg4[%c0_111, %c1_112, %c0_113, %c64_114], %84 {strides = array<i32>} : memref<1x2x2x128xbf16, #tpu.memory_space<vmem>>, vector<1x1x2x32xbf16>,
    return
  }
  func.func @transform_0(%arg0: i32) -> (i32, i32, i32, i32) {
    %c0_i32 = arith.constant 0 : i32
    %c0_i32_0 = arith.constant 0 : i32
    %c0_i32_1 = arith.constant 0 : i32
    %c0_i32_2 = arith.constant 0 : i32
    return %arg0, %c0_i32, %c0_i32_0, %c0_i32_1 : i32, i32, i32, i32
  }
  func.func @transform_1(%arg0: i32) -> (i32, i32, i32, i32) {
    %c0_i32 = arith.constant 0 : i32
    %c0_i32_0 = arith.constant 0 : i32
    %c0_i32_1 = arith.constant 0 : i32
    %c0_i32_2 = arith.constant 0 : i32
    return %arg0, %c0_i32, %c0_i32_0, %c0_i32_1 : i32, i32, i32, i32
  }
  func.func @transform_2(%arg0: i32) -> (i32, i32, i32) {
    %c0_i32 = arith.constant 0 : i32
    %c0_i32_0 = arith.constant 0 : i32
    %c0_i32_1 = arith.constant 0 : i32
    %c0_i32_2 = arith.constant 0 : i32
    return %c0_i32, %c0_i32_0, %c0_i32_1 : i32, i32, i32
  }
  func.func @transform_3(%arg0: i32) -> (i32, i32, i32, i32) {
    %c0_i32 = arith.constant 0 : i32
    %c0_i32_0 = arith.constant 0 : i32
    %c0_i32_1 = arith.constant 0 : i32
    %c0_i32_2 = arith.constant 0 : i32
    return %arg0, %c0_i32, %c0_i32_0, %c0_i32_1 : i32, i32, i32, i32
  }
}

module attributes {stable_mosaic.version = 11 : i64} {
  func.func @_dense_conv_concat_kernel(%arg0: i32, %arg1: memref<1x2x2x128xbf16, #tpu.memory_space<vmem>>, %arg2: memref<1x2x2x128xbf16, #tpu.memory_space<vmem>>, %arg3: memref<9x128x32xbf16, #tpu.memory_space<vmem>>, %arg4: memref<1x2x2x128xbf16, #tpu.memory_space<vmem>>, %arg5: memref<20x128xbf16, #tpu.memory_space<vmem>>, %arg6: memref<8x32xf32, #tpu.memory_space<vmem>>) attributes {dimension_semantics = [#tpu.dimension_semantics<parallel>], iteration_bounds = array<i64: 2>, scalar_prefetch = 0 : i64, scratch_operands = 2 : i64, tpu.core_type = #tpu.core_type<tc>, window_params = [{transform_indices = @transform_0, window_bounds = array<i64: 1, 2, 2, 128>}, {transform_indices = @transform_1, window_bounds = array<i64: 1, 2, 2, 128>}, {pipeline_mode = #tpu.pipeline_mode<synchronous>, transform_indices = @transform_2, window_bounds = array<i64: 9, 128, 32>}, {transform_indices = @transform_3, window_bounds = array<i64: 1, 2, 2, 128>}]} {
    %cst = arith.constant 0.000000e+00 : bf16
    %0 = vector.broadcast %cst : bf16 to vector<20x128xbf16>
    %c0 = arith.constant 0 : index
    %c0_0 = arith.constant 0 : index
    %1 = vector.load %arg5[%c0, %c0_0] : memref<20x128xbf16, #tpu.memory_space<vmem>>, vector<20x128xbf16>
    tpu.vector_store %arg5[%c0, %c0_0], %0 {strides = array<i32>} : memref<20x128xbf16, #tpu.memory_space<vmem>>, vector<20x128xbf16>,
    %c0_1 = arith.constant 0 : index
    %c0_2 = arith.constant 0 : index
    %c0_3 = arith.constant 0 : index
    %c0_4 = arith.constant 0 : index
    %2 = vector.load %arg1[%c0_1, %c0_2, %c0_3, %c0_4] : memref<1x2x2x128xbf16, #tpu.memory_space<vmem>>, vector<1x1x2x128xbf16>
    %3 = vector.shape_cast %2 : vector<1x1x2x128xbf16> to vector<2x128xbf16>
    %c5 = arith.constant 5 : index
    %c0_5 = arith.constant 0 : index
    %4 = vector.load %arg5[%c5, %c0_5] : memref<20x128xbf16, #tpu.memory_space<vmem>>, vector<2x128xbf16>
    tpu.vector_store %arg5[%c5, %c0_5], %3 {strides = array<i32>} : memref<20x128xbf16, #tpu.memory_space<vmem>>, vector<2x128xbf16>,
    %c0_6 = arith.constant 0 : index
    %c1 = arith.constant 1 : index
    %c0_7 = arith.constant 0 : index
    %c0_8 = arith.constant 0 : index
    %5 = vector.load %arg1[%c0_6, %c1, %c0_7, %c0_8] : memref<1x2x2x128xbf16, #tpu.memory_space<vmem>>, vector<1x1x2x128xbf16>
    %6 = vector.shape_cast %5 : vector<1x1x2x128xbf16> to vector<2x128xbf16>
    %c9 = arith.constant 9 : index
    %c0_9 = arith.constant 0 : index
    %7 = vector.load %arg5[%c9, %c0_9] : memref<20x128xbf16, #tpu.memory_space<vmem>>, vector<2x128xbf16>
    tpu.vector_store %arg5[%c9, %c0_9], %6 {strides = array<i32>} : memref<20x128xbf16, #tpu.memory_space<vmem>>, vector<2x128xbf16>,
    %cst_10 = arith.constant 0.000000e+00 : f32
    %8 = vector.broadcast %cst_10 : f32 to vector<8x32xf32>
    %c0_11 = arith.constant 0 : index
    %c0_12 = arith.constant 0 : index
    %9 = vector.load %arg6[%c0_11, %c0_12] : memref<8x32xf32, #tpu.memory_space<vmem>>, vector<8x32xf32>
    tpu.vector_store %arg6[%c0_11, %c0_12], %8 {strides = array<i32>} : memref<8x32xf32, #tpu.memory_space<vmem>>, vector<8x32xf32>,
    %c0_13 = arith.constant 0 : index
    %c0_14 = arith.constant 0 : index
    %10 = vector.load %arg5[%c0_13, %c0_14] : memref<20x128xbf16, #tpu.memory_space<vmem>>, vector<8x128xbf16>
    %c0_15 = arith.constant 0 : index
    %c0_16 = arith.constant 0 : index
    %11 = vector.load %arg6[%c0_15, %c0_16] : memref<8x32xf32, #tpu.memory_space<vmem>>, vector<8x32xf32>
    %c0_17 = arith.constant 0 : index
    %c0_18 = arith.constant 0 : index
    %c0_19 = arith.constant 0 : index
    %12 = vector.load %arg3[%c0_17, %c0_18, %c0_19] : memref<9x128x32xbf16, #tpu.memory_space<vmem>>, vector<1x128x32xbf16>
    %13 = vector.shape_cast %12 : vector<1x128x32xbf16> to vector<128x32xbf16>
    %cst_20 = arith.constant dense<0.000000e+00> : vector<8x32xf32>
    %14 = tpu.matmul %10, %13, %cst_20 {dimension_numbers = #tpu.dot_dimension_numbers<[1], [0], [0], [1], [0, 0, 1, 1], [], []>} : vector<8x128xbf16>, vector<128x32xbf16>, vector<8x32xf32> -> vector<8x32xf32>
    %15 = arith.addf %11, %14 : vector<8x32xf32>
    %c0_21 = arith.constant 0 : index
    %c0_22 = arith.constant 0 : index
    %16 = vector.load %arg6[%c0_21, %c0_22] : memref<8x32xf32, #tpu.memory_space<vmem>>, vector<8x32xf32>
    tpu.vector_store %arg6[%c0_21, %c0_22], %15 {strides = array<i32>} : memref<8x32xf32, #tpu.memory_space<vmem>>, vector<8x32xf32>,
    %c1_23 = arith.constant 1 : index
    %c0_24 = arith.constant 0 : index
    %17 = vector.load %arg5[%c1_23, %c0_24] : memref<20x128xbf16, #tpu.memory_space<vmem>>, vector<8x128xbf16>
    %c0_25 = arith.constant 0 : index
    %c0_26 = arith.constant 0 : index
    %18 = vector.load %arg6[%c0_25, %c0_26] : memref<8x32xf32, #tpu.memory_space<vmem>>, vector<8x32xf32>
    %c1_27 = arith.constant 1 : index
    %c0_28 = arith.constant 0 : index
    %c0_29 = arith.constant 0 : index
    %19 = vector.load %arg3[%c1_27, %c0_28, %c0_29] : memref<9x128x32xbf16, #tpu.memory_space<vmem>>, vector<1x128x32xbf16>
    %20 = vector.shape_cast %19 : vector<1x128x32xbf16> to vector<128x32xbf16>
    %cst_30 = arith.constant dense<0.000000e+00> : vector<8x32xf32>
    %21 = tpu.matmul %17, %20, %cst_30 {dimension_numbers = #tpu.dot_dimension_numbers<[1], [0], [0], [1], [0, 0, 1, 1], [], []>} : vector<8x128xbf16>, vector<128x32xbf16>, vector<8x32xf32> -> vector<8x32xf32>
    %22 = arith.addf %18, %21 : vector<8x32xf32>
    %c0_31 = arith.constant 0 : index
    %c0_32 = arith.constant 0 : index
    %23 = vector.load %arg6[%c0_31, %c0_32] : memref<8x32xf32, #tpu.memory_space<vmem>>, vector<8x32xf32>
    tpu.vector_store %arg6[%c0_31, %c0_32], %22 {strides = array<i32>} : memref<8x32xf32, #tpu.memory_space<vmem>>, vector<8x32xf32>,
    %c2 = arith.constant 2 : index
    %c0_33 = arith.constant 0 : index
    %24 = vector.load %arg5[%c2, %c0_33] : memref<20x128xbf16, #tpu.memory_space<vmem>>, vector<8x128xbf16>
    %c0_34 = arith.constant 0 : index
    %c0_35 = arith.constant 0 : index
    %25 = vector.load %arg6[%c0_34, %c0_35] : memref<8x32xf32, #tpu.memory_space<vmem>>, vector<8x32xf32>
    %c2_36 = arith.constant 2 : index
    %c0_37 = arith.constant 0 : index
    %c0_38 = arith.constant 0 : index
    %26 = vector.load %arg3[%c2_36, %c0_37, %c0_38] : memref<9x128x32xbf16, #tpu.memory_space<vmem>>, vector<1x128x32xbf16>
    %27 = vector.shape_cast %26 : vector<1x128x32xbf16> to vector<128x32xbf16>
    %cst_39 = arith.constant dense<0.000000e+00> : vector<8x32xf32>
    %28 = tpu.matmul %24, %27, %cst_39 {dimension_numbers = #tpu.dot_dimension_numbers<[1], [0], [0], [1], [0, 0, 1, 1], [], []>} : vector<8x128xbf16>, vector<128x32xbf16>, vector<8x32xf32> -> vector<8x32xf32>
    %29 = arith.addf %25, %28 : vector<8x32xf32>
    %c0_40 = arith.constant 0 : index
    %c0_41 = arith.constant 0 : index
    %30 = vector.load %arg6[%c0_40, %c0_41] : memref<8x32xf32, #tpu.memory_space<vmem>>, vector<8x32xf32>
    tpu.vector_store %arg6[%c0_40, %c0_41], %29 {strides = array<i32>} : memref<8x32xf32, #tpu.memory_space<vmem>>, vector<8x32xf32>,
    %c4 = arith.constant 4 : index
    %c0_42 = arith.constant 0 : index
    %31 = vector.load %arg5[%c4, %c0_42] : memref<20x128xbf16, #tpu.memory_space<vmem>>, vector<8x128xbf16>
    %c0_43 = arith.constant 0 : index
    %c0_44 = arith.constant 0 : index
    %32 = vector.load %arg6[%c0_43, %c0_44] : memref<8x32xf32, #tpu.memory_space<vmem>>, vector<8x32xf32>
    %c3 = arith.constant 3 : index
    %c0_45 = arith.constant 0 : index
    %c0_46 = arith.constant 0 : index
    %33 = vector.load %arg3[%c3, %c0_45, %c0_46] : memref<9x128x32xbf16, #tpu.memory_space<vmem>>, vector<1x128x32xbf16>
    %34 = vector.shape_cast %33 : vector<1x128x32xbf16> to vector<128x32xbf16>
    %cst_47 = arith.constant dense<0.000000e+00> : vector<8x32xf32>
    %35 = tpu.matmul %31, %34, %cst_47 {dimension_numbers = #tpu.dot_dimension_numbers<[1], [0], [0], [1], [0, 0, 1, 1], [], []>} : vector<8x128xbf16>, vector<128x32xbf16>, vector<8x32xf32> -> vector<8x32xf32>
    %36 = arith.addf %32, %35 : vector<8x32xf32>
    %c0_48 = arith.constant 0 : index
    %c0_49 = arith.constant 0 : index
    %37 = vector.load %arg6[%c0_48, %c0_49] : memref<8x32xf32, #tpu.memory_space<vmem>>, vector<8x32xf32>
    tpu.vector_store %arg6[%c0_48, %c0_49], %36 {strides = array<i32>} : memref<8x32xf32, #tpu.memory_space<vmem>>, vector<8x32xf32>,
    %c5_50 = arith.constant 5 : index
    %c0_51 = arith.constant 0 : index
    %38 = vector.load %arg5[%c5_50, %c0_51] : memref<20x128xbf16, #tpu.memory_space<vmem>>, vector<8x128xbf16>
    %c0_52 = arith.constant 0 : index
    %c0_53 = arith.constant 0 : index
    %39 = vector.load %arg6[%c0_52, %c0_53] : memref<8x32xf32, #tpu.memory_space<vmem>>, vector<8x32xf32>
    %c4_54 = arith.constant 4 : index
    %c0_55 = arith.constant 0 : index
    %c0_56 = arith.constant 0 : index
    %40 = vector.load %arg3[%c4_54, %c0_55, %c0_56] : memref<9x128x32xbf16, #tpu.memory_space<vmem>>, vector<1x128x32xbf16>
    %41 = vector.shape_cast %40 : vector<1x128x32xbf16> to vector<128x32xbf16>
    %cst_57 = arith.constant dense<0.000000e+00> : vector<8x32xf32>
    %42 = tpu.matmul %38, %41, %cst_57 {dimension_numbers = #tpu.dot_dimension_numbers<[1], [0], [0], [1], [0, 0, 1, 1], [], []>} : vector<8x128xbf16>, vector<128x32xbf16>, vector<8x32xf32> -> vector<8x32xf32>
    %43 = arith.addf %39, %42 : vector<8x32xf32>
    %c0_58 = arith.constant 0 : index
    %c0_59 = arith.constant 0 : index
    %44 = vector.load %arg6[%c0_58, %c0_59] : memref<8x32xf32, #tpu.memory_space<vmem>>, vector<8x32xf32>
    tpu.vector_store %arg6[%c0_58, %c0_59], %43 {strides = array<i32>} : memref<8x32xf32, #tpu.memory_space<vmem>>, vector<8x32xf32>,
    %c6 = arith.constant 6 : index
    %c0_60 = arith.constant 0 : index
    %45 = vector.load %arg5[%c6, %c0_60] : memref<20x128xbf16, #tpu.memory_space<vmem>>, vector<8x128xbf16>
    %c0_61 = arith.constant 0 : index
    %c0_62 = arith.constant 0 : index
    %46 = vector.load %arg6[%c0_61, %c0_62] : memref<8x32xf32, #tpu.memory_space<vmem>>, vector<8x32xf32>
    %c5_63 = arith.constant 5 : index
    %c0_64 = arith.constant 0 : index
    %c0_65 = arith.constant 0 : index
    %47 = vector.load %arg3[%c5_63, %c0_64, %c0_65] : memref<9x128x32xbf16, #tpu.memory_space<vmem>>, vector<1x128x32xbf16>
    %48 = vector.shape_cast %47 : vector<1x128x32xbf16> to vector<128x32xbf16>
    %cst_66 = arith.constant dense<0.000000e+00> : vector<8x32xf32>
    %49 = tpu.matmul %45, %48, %cst_66 {dimension_numbers = #tpu.dot_dimension_numbers<[1], [0], [0], [1], [0, 0, 1, 1], [], []>} : vector<8x128xbf16>, vector<128x32xbf16>, vector<8x32xf32> -> vector<8x32xf32>
    %50 = arith.addf %46, %49 : vector<8x32xf32>
    %c0_67 = arith.constant 0 : index
    %c0_68 = arith.constant 0 : index
    %51 = vector.load %arg6[%c0_67, %c0_68] : memref<8x32xf32, #tpu.memory_space<vmem>>, vector<8x32xf32>
    tpu.vector_store %arg6[%c0_67, %c0_68], %50 {strides = array<i32>} : memref<8x32xf32, #tpu.memory_space<vmem>>, vector<8x32xf32>,
    %c8 = arith.constant 8 : index
    %c0_69 = arith.constant 0 : index
    %52 = vector.load %arg5[%c8, %c0_69] : memref<20x128xbf16, #tpu.memory_space<vmem>>, vector<8x128xbf16>
    %c0_70 = arith.constant 0 : index
    %c0_71 = arith.constant 0 : index
    %53 = vector.load %arg6[%c0_70, %c0_71] : memref<8x32xf32, #tpu.memory_space<vmem>>, vector<8x32xf32>
    %c6_72 = arith.constant 6 : index
    %c0_73 = arith.constant 0 : index
    %c0_74 = arith.constant 0 : index
    %54 = vector.load %arg3[%c6_72, %c0_73, %c0_74] : memref<9x128x32xbf16, #tpu.memory_space<vmem>>, vector<1x128x32xbf16>
    %55 = vector.shape_cast %54 : vector<1x128x32xbf16> to vector<128x32xbf16>
    %cst_75 = arith.constant dense<0.000000e+00> : vector<8x32xf32>
    %56 = tpu.matmul %52, %55, %cst_75 {dimension_numbers = #tpu.dot_dimension_numbers<[1], [0], [0], [1], [0, 0, 1, 1], [], []>} : vector<8x128xbf16>, vector<128x32xbf16>, vector<8x32xf32> -> vector<8x32xf32>
    %57 = arith.addf %53, %56 : vector<8x32xf32>
    %c0_76 = arith.constant 0 : index
    %c0_77 = arith.constant 0 : index
    %58 = vector.load %arg6[%c0_76, %c0_77] : memref<8x32xf32, #tpu.memory_space<vmem>>, vector<8x32xf32>
    tpu.vector_store %arg6[%c0_76, %c0_77], %57 {strides = array<i32>} : memref<8x32xf32, #tpu.memory_space<vmem>>, vector<8x32xf32>,
    %c9_78 = arith.constant 9 : index
    %c0_79 = arith.constant 0 : index
    %59 = vector.load %arg5[%c9_78, %c0_79] : memref<20x128xbf16, #tpu.memory_space<vmem>>, vector<8x128xbf16>
    %c0_80 = arith.constant 0 : index
    %c0_81 = arith.constant 0 : index
    %60 = vector.load %arg6[%c0_80, %c0_81] : memref<8x32xf32, #tpu.memory_space<vmem>>, vector<8x32xf32>
    %c7 = arith.constant 7 : index
    %c0_82 = arith.constant 0 : index
    %c0_83 = arith.constant 0 : index
    %61 = vector.load %arg3[%c7, %c0_82, %c0_83] : memref<9x128x32xbf16, #tpu.memory_space<vmem>>, vector<1x128x32xbf16>
    %62 = vector.shape_cast %61 : vector<1x128x32xbf16> to vector<128x32xbf16>
    %cst_84 = arith.constant dense<0.000000e+00> : vector<8x32xf32>
    %63 = tpu.matmul %59, %62, %cst_84 {dimension_numbers = #tpu.dot_dimension_numbers<[1], [0], [0], [1], [0, 0, 1, 1], [], []>} : vector<8x128xbf16>, vector<128x32xbf16>, vector<8x32xf32> -> vector<8x32xf32>
    %64 = arith.addf %60, %63 : vector<8x32xf32>
    %c0_85 = arith.constant 0 : index
    %c0_86 = arith.constant 0 : index
    %65 = vector.load %arg6[%c0_85, %c0_86] : memref<8x32xf32, #tpu.memory_space<vmem>>, vector<8x32xf32>
    tpu.vector_store %arg6[%c0_85, %c0_86], %64 {strides = array<i32>} : memref<8x32xf32, #tpu.memory_space<vmem>>, vector<8x32xf32>,
    %c10 = arith.constant 10 : index
    %c0_87 = arith.constant 0 : index
    %66 = vector.load %arg5[%c10, %c0_87] : memref<20x128xbf16, #tpu.memory_space<vmem>>, vector<8x128xbf16>
    %c0_88 = arith.constant 0 : index
    %c0_89 = arith.constant 0 : index
    %67 = vector.load %arg6[%c0_88, %c0_89] : memref<8x32xf32, #tpu.memory_space<vmem>>, vector<8x32xf32>
    %c8_90 = arith.constant 8 : index
    %c0_91 = arith.constant 0 : index
    %c0_92 = arith.constant 0 : index
    %68 = vector.load %arg3[%c8_90, %c0_91, %c0_92] : memref<9x128x32xbf16, #tpu.memory_space<vmem>>, vector<1x128x32xbf16>
    %69 = vector.shape_cast %68 : vector<1x128x32xbf16> to vector<128x32xbf16>
    %cst_93 = arith.constant dense<0.000000e+00> : vector<8x32xf32>
    %70 = tpu.matmul %66, %69, %cst_93 {dimension_numbers = #tpu.dot_dimension_numbers<[1], [0], [0], [1], [0, 0, 1, 1], [], []>} : vector<8x128xbf16>, vector<128x32xbf16>, vector<8x32xf32> -> vector<8x32xf32>
    %71 = arith.addf %67, %70 : vector<8x32xf32>
    %c0_94 = arith.constant 0 : index
    %c0_95 = arith.constant 0 : index
    %72 = vector.load %arg6[%c0_94, %c0_95] : memref<8x32xf32, #tpu.memory_space<vmem>>, vector<8x32xf32>
    tpu.vector_store %arg6[%c0_94, %c0_95], %71 {strides = array<i32>} : memref<8x32xf32, #tpu.memory_space<vmem>>, vector<8x32xf32>,
    %c0_96 = arith.constant 0 : index
    %c0_97 = arith.constant 0 : index
    %c0_98 = arith.constant 0 : index
    %c0_99 = arith.constant 0 : index
    %73 = vector.load %arg2[%c0_96, %c0_97, %c0_98, %c0_99] : memref<1x2x2x128xbf16, #tpu.memory_space<vmem>>, vector<1x2x2x128xbf16>
    %c0_100 = arith.constant 0 : index
    %c0_101 = arith.constant 0 : index
    %c0_102 = arith.constant 0 : index
    %c0_103 = arith.constant 0 : index
    %74 = vector.load %arg4[%c0_100, %c0_101, %c0_102, %c0_103] : memref<1x2x2x128xbf16, #tpu.memory_space<vmem>>, vector<1x2x2x128xbf16>
    tpu.vector_store %arg4[%c0_100, %c0_101, %c0_102, %c0_103], %73 {strides = array<i32>} : memref<1x2x2x128xbf16, #tpu.memory_space<vmem>>, vector<1x2x2x128xbf16>,
    %c0_104 = arith.constant 0 : index
    %c0_105 = arith.constant 0 : index
    %75 = vector.load %arg6[%c0_104, %c0_105] : memref<8x32xf32, #tpu.memory_space<vmem>>, vector<2x32xf32>
    %76 = arith.truncf %75 : vector<2x32xf32> to vector<2x32xbf16>
    %c0_106 = arith.constant 0 : index
    %c0_107 = arith.constant 0 : index
    %c0_108 = arith.constant 0 : index
    %c96 = arith.constant 96 : index
    %77 = vector.load %arg4[%c0_106, %c0_107, %c0_108, %c96] : memref<1x2x2x128xbf16, #tpu.memory_space<vmem>>, vector<1x1x2x32xbf16>
    %78 = vector.shape_cast %77 : vector<1x1x2x32xbf16> to vector<2x32xbf16>
    %79 = vector.shape_cast %76 : vector<2x32xbf16> to vector<1x1x2x32xbf16>
    tpu.vector_store %arg4[%c0_106, %c0_107, %c0_108, %c96], %79 {strides = array<i32>} : memref<1x2x2x128xbf16, #tpu.memory_space<vmem>>, vector<1x1x2x32xbf16>,
    %c4_109 = arith.constant 4 : index
    %c0_110 = arith.constant 0 : index
    %80 = vector.load %arg6[%c4_109, %c0_110] : memref<8x32xf32, #tpu.memory_space<vmem>>, vector<2x32xf32>
    %81 = arith.truncf %80 : vector<2x32xf32> to vector<2x32xbf16>
    %c0_111 = arith.constant 0 : index
    %c1_112 = arith.constant 1 : index
    %c0_113 = arith.constant 0 : index
    %c96_114 = arith.constant 96 : index
    %82 = vector.load %arg4[%c0_111, %c1_112, %c0_113, %c96_114] : memref<1x2x2x128xbf16, #tpu.memory_space<vmem>>, vector<1x1x2x32xbf16>
    %83 = vector.shape_cast %82 : vector<1x1x2x32xbf16> to vector<2x32xbf16>
    %84 = vector.shape_cast %81 : vector<2x32xbf16> to vector<1x1x2x32xbf16>
    tpu.vector_store %arg4[%c0_111, %c1_112, %c0_113, %c96_114], %84 {strides = array<i32>} : memref<1x2x2x128xbf16, #tpu.memory_space<vmem>>, vector<1x1x2x32xbf16>,
    return
  }
  func.func @transform_0(%arg0: i32) -> (i32, i32, i32, i32) {
    %c0_i32 = arith.constant 0 : i32
    %c0_i32_0 = arith.constant 0 : i32
    %c0_i32_1 = arith.constant 0 : i32
    %c0_i32_2 = arith.constant 0 : i32
    return %arg0, %c0_i32, %c0_i32_0, %c0_i32_1 : i32, i32, i32, i32
  }
  func.func @transform_1(%arg0: i32) -> (i32, i32, i32, i32) {
    %c0_i32 = arith.constant 0 : i32
    %c0_i32_0 = arith.constant 0 : i32
    %c0_i32_1 = arith.constant 0 : i32
    %c0_i32_2 = arith.constant 0 : i32
    return %arg0, %c0_i32, %c0_i32_0, %c0_i32_1 : i32, i32, i32, i32
  }
  func.func @transform_2(%arg0: i32) -> (i32, i32, i32) {
    %c0_i32 = arith.constant 0 : i32
    %c0_i32_0 = arith.constant 0 : i32
    %c0_i32_1 = arith.constant 0 : i32
    %c0_i32_2 = arith.constant 0 : i32
    return %c0_i32, %c0_i32_0, %c0_i32_1 : i32, i32, i32
  }
  func.func @transform_3(%arg0: i32) -> (i32, i32, i32, i32) {
    %c0_i32 = arith.constant 0 : i32
    %c0_i32_0 = arith.constant 0 : i32
    %c0_i32_1 = arith.constant 0 : i32
    %c0_i32_2 = arith.constant 0 : i32
    return %arg0, %c0_i32, %c0_i32_0, %c0_i32_1 : i32, i32, i32, i32
  }
}

</mosaic_0001>

<llo_original>
// kernel: densenet_forward.12
$region0: #{densenet_forward.12}
  #allocation0 [shape = 'u32[]', space=smem, size = 0x4, offset = 0x4, fixed_abs, tag = 'smem constant byte address 0x4 - core index']
  #allocation1 [shape = 'u32[144,128]{1,0:T(1,128)}', space=vmem, size = 0x12000, scoped, tag = 'internal scratch']
  #allocation2 [shape = 'f32[128,128]{1,0:T(8,128)}', space=vmem, size = 0x10000, scoped, tag = 'scratch operand']
  %s0 = inlined_call_operand.vmem [shape: bf16[128,256], index: 0, kind: input, shape index: {}]
  %s1 = inlined_call_operand.vmem [shape: bf16[256,128], index: 1, kind: input, shape index: {}]
  %s2 = inlined_call_operand.vmem [shape: f32[1,128], index: 2, kind: input, shape index: {}]
  %s3 = inlined_call_operand.vmem [shape: f32[1,128], index: 3, kind: input, shape index: {}]
  %s4 = inlined_call_operand.vmem [shape: bf16[128,128], index: 4, kind: output, shape index: {}]
  %s5 = sld [smem:[#allocation0]]
  $region34: #{densenet_forward.12} parent=0
    _
  %s7 = ssub.s32 1, %s5
  %s8 = scalar_select 0, %s7, %s5
  // Predicated region
  $region2: #{densenet_forward.12} parent=0 // pred_check
    _
  $region3: #{densenet_forward.12} parent=0 // pred_check_branch
    %10 = sbr.rel (0) target = $region5
  $region4: #{densenet_forward.12} parent=0 // pred_region
    _
  $region5: #{densenet_forward.12} parent=0 // pred_fallthru
    _
  // Predicated region
  $region6: #{densenet_forward.12} parent=0 // pred_check
    _
  $region7: #{densenet_forward.12} parent=0 // pred_check_branch
    %12 = sbr.rel (0) target = $region9
  $region8: #{densenet_forward.12} parent=0 // pred_region
    _
  $region9: #{densenet_forward.12} parent=0 // pred_fallthru
    _
  // Predicated region
  $region10: #{densenet_forward.12} parent=0 // pred_check
    _
  $region11: #{densenet_forward.12} parent=0 // pred_check_branch
    %14 = sbr.rel (0) target = $region13
  $region12: #{densenet_forward.12} parent=0 // pred_region
    _
  $region13: #{densenet_forward.12} parent=0 // pred_fallthru
    _
  // Predicated region
  $region14: #{densenet_forward.12} parent=0 // pred_check
    _
  $region15: #{densenet_forward.12} parent=0 // pred_check_branch
    %16 = sbr.rel (0) target = $region17
  $region16: #{densenet_forward.12} parent=0 // pred_region
    _
  $region17: #{densenet_forward.12} parent=0 // pred_fallthru
    _
  %p18 = scmp.eq.s32.totalorder 0, 0
  // Predicated region
  $region18: #{densenet_forward.12} parent=0 // pred_check
    %p19 = pneg %p18
  $region19: #{densenet_forward.12} parent=0 // pred_check_branch
    %21 = sbr.rel (%p19) target = $region21
  $region20: #{densenet_forward.12} parent=0 // pred_region
    %22 = vst [vmem:[#allocation2] sm:$0xff] 0.0
    %23 = vst [vmem:[#allocation2 + $0x8] sm:$0xff] 0.0
    %24 = vst [vmem:[#allocation2 + $0x10] sm:$0xff] 0.0
    %25 = vst [vmem:[#allocation2 + $0x18] sm:$0xff] 0.0
    %26 = vst [vmem:[#allocation2 + $0x20] sm:$0xff] 0.0
    %27 = vst [vmem:[#allocation2 + $0x28] sm:$0xff] 0.0
    %28 = vst [vmem:[#allocation2 + $0x30] sm:$0xff] 0.0
    %29 = vst [vmem:[#allocation2 + $0x38] sm:$0xff] 0.0
    %30 = vst [vmem:[#allocation2 + $0x40] sm:$0xff] 0.0
    %31 = vst [vmem:[#allocation2 + $0x48] sm:$0xff] 0.0
    %32 = vst [vmem:[#allocation2 + $0x50] sm:$0xff] 0.0
    %33 = vst [vmem:[#allocation2 + $0x58] sm:$0xff] 0.0
    %34 = vst [vmem:[#allocation2 + $0x60] sm:$0xff] 0.0
    %35 = vst [vmem:[#allocation2 + $0x68] sm:$0xff] 0.0
    %36 = vst [vmem:[#allocation2 + $0x70] sm:$0xff] 0.0
    %37 = vst [vmem:[#allocation2 + $0x78] sm:$0xff] 0.0
  $region21: #{densenet_forward.12} parent=0 // pred_fallthru
    _
  %v38 = vld [vmem:[%s0] sm:$0xff]
  %v39 = vld [vmem:[%s0 + $0x8] sm:$0xff]
  %v40 = vld [vmem:[%s0 + $0x10] sm:$0xff]
  %v41 = vld [vmem:[%s0 + $0x18] sm:$0xff]
  %v42 = vld [vmem:[%s0 + $0x20] sm:$0xff]
  %v43 = vld [vmem:[%s0 + $0x28] sm:$0xff]
  %v44 = vld [vmem:[%s0 + $0x30] sm:$0xff]
  %v45 = vld [vmem:[%s0 + $0x38] sm:$0xff]
  %v46 = vld [vmem:[%s0 + $0x40] sm:$0xff]
  %v47 = vld [vmem:[%s0 + $0x48] sm:$0xff]
  %v48 = vld [vmem:[%s0 + $0x50] sm:$0xff]
  %v49 = vld [vmem:[%s0 + $0x58] sm:$0xff]
  %v50 = vld [vmem:[%s0 + $0x60] sm:$0xff]
  %v51 = vld [vmem:[%s0 + $0x68] sm:$0xff]
  %v52 = vld [vmem:[%s0 + $0x70] sm:$0xff]
  %v53 = vld [vmem:[%s0 + $0x78] sm:$0xff]
  %v54 = vld [vmem:[#allocation2] sm:$0xff]
  %v55 = vld [vmem:[#allocation2 + $0x8] sm:$0xff]
  %v56 = vld [vmem:[#allocation2 + $0x10] sm:$0xff]
  %v57 = vld [vmem:[#allocation2 + $0x18] sm:$0xff]
  %v58 = vld [vmem:[#allocation2 + $0x20] sm:$0xff]
  %v59 = vld [vmem:[#allocation2 + $0x28] sm:$0xff]
  %v60 = vld [vmem:[#allocation2 + $0x30] sm:$0xff]
  %v61 = vld [vmem:[#allocation2 + $0x38] sm:$0xff]
  %v62 = vld [vmem:[#allocation2 + $0x40] sm:$0xff]
  %v63 = vld [vmem:[#allocation2 + $0x48] sm:$0xff]
  %v64 = vld [vmem:[#allocation2 + $0x50] sm:$0xff]
  %v65 = vld [vmem:[#allocation2 + $0x58] sm:$0xff]
  %v66 = vld [vmem:[#allocation2 + $0x60] sm:$0xff]
  %v67 = vld [vmem:[#allocation2 + $0x68] sm:$0xff]
  %v68 = vld [vmem:[#allocation2 + $0x70] sm:$0xff]
  %v69 = vld [vmem:[#allocation2 + $0x78] sm:$0xff]
  %v70 = vld [vmem:[%s1] sm:$0xf]
  %v71 = vld [vmem:[%s1 + $0x4] sm:$0xf]
  %v72 = vld [vmem:[%s1 + $0x8] sm:$0xf]
  %v73 = vld [vmem:[%s1 + $0xc] sm:$0xf]
  %v74 = vld [vmem:[%s1 + $0x10] sm:$0xf]
  %v75 = vld [vmem:[%s1 + $0x14] sm:$0xf]
  %v76 = vld [vmem:[%s1 + $0x18] sm:$0xf]
  %v77 = vld [vmem:[%s1 + $0x1c] sm:$0xf]
  %v78 = vld [vmem:[%s1 + $0x20] sm:$0xf]
  %v79 = vld [vmem:[%s1 + $0x24] sm:$0xf]
  %v80 = vld [vmem:[%s1 + $0x28] sm:$0xf]
  %v81 = vld [vmem:[%s1 + $0x2c] sm:$0xf]
  %v82 = vld [vmem:[%s1 + $0x30] sm:$0xf]
  %v83 = vld [vmem:[%s1 + $0x34] sm:$0xf]
  %v84 = vld [vmem:[%s1 + $0x38] sm:$0xf]
  %v85 = vld [vmem:[%s1 + $0x3c] sm:$0xf]
  %v86 = vld [vmem:[%s1 + $0x40] sm:$0xf]
  %v87 = vld [vmem:[%s1 + $0x44] sm:$0xf]
  %v88 = vld [vmem:[%s1 + $0x48] sm:$0xf]
  %v89 = vld [vmem:[%s1 + $0x4c] sm:$0xf]
  %v90 = vld [vmem:[%s1 + $0x50] sm:$0xf]
  %v91 = vld [vmem:[%s1 + $0x54] sm:$0xf]
  %v92 = vld [vmem:[%s1 + $0x58] sm:$0xf]
  %v93 = vld [vmem:[%s1 + $0x5c] sm:$0xf]
  %v94 = vld [vmem:[%s1 + $0x60] sm:$0xf]
  %v95 = vld [vmem:[%s1 + $0x64] sm:$0xf]
  %v96 = vld [vmem:[%s1 + $0x68] sm:$0xf]
  %v97 = vld [vmem:[%s1 + $0x6c] sm:$0xf]
  %v98 = vld [vmem:[%s1 + $0x70] sm:$0xf]
  %v99 = vld [vmem:[%s1 + $0x74] sm:$0xf]
  %v100 = vld [vmem:[%s1 + $0x78] sm:$0xf]
  %v101 = vld [vmem:[%s1 + $0x7c] sm:$0xf]
  %v118 = vunpack.c.l.b16 %v38
  %v119 = vunpack.c.h.b16 %v38
  %v120 = vunpack.c.l.b16 %v39
  %v121 = vunpack.c.h.b16 %v39
  %v122 = vunpack.c.l.b16 %v40
  %v123 = vunpack.c.h.b16 %v40
  %v124 = vunpack.c.l.b16 %v41
  %v125 = vunpack.c.h.b16 %v41
  %v126 = vunpack.c.l.b16 %v42
  %v127 = vunpack.c.h.b16 %v42
  %v128 = vunpack.c.l.b16 %v43
  %v129 = vunpack.c.h.b16 %v43
  %v130 = vunpack.c.l.b16 %v44
  %v131 = vunpack.c.h.b16 %v44
  %v132 = vunpack.c.l.b16 %v45
  %v133 = vunpack.c.h.b16 %v45
  %v134 = vunpack.c.l.b16 %v46
  %v135 = vunpack.c.h.b16 %v46
  %v136 = vunpack.c.l.b16 %v47
  %v137 = vunpack.c.h.b16 %v47
  %v138 = vunpack.c.l.b16 %v48
  %v139 = vunpack.c.h.b16 %v48
  %v140 = vunpack.c.l.b16 %v49
  %v141 = vunpack.c.h.b16 %v49
  %v142 = vunpack.c.l.b16 %v50
  %v143 = vunpack.c.h.b16 %v50
  %v144 = vunpack.c.l.b16 %v51
  %v145 = vunpack.c.h.b16 %v51
  %v146 = vunpack.c.l.b16 %v52
  %v147 = vunpack.c.h.b16 %v52
  %v148 = vunpack.c.l.b16 %v53
  %v149 = vunpack.c.h.b16 %v53
  %v150 = vpack.c.b16 %v120, %v118
  %v151 = vpack.c.b16 %v121, %v119
  %v152 = vpack.c.b16 %v124, %v122
  %v153 = vpack.c.b16 %v125, %v123
  %v154 = vpack.c.b16 %v128, %v126
  %v155 = vpack.c.b16 %v129, %v127
  %v156 = vpack.c.b16 %v132, %v130
  %v157 = vpack.c.b16 %v133, %v131
  %v158 = vpack.c.b16 %v136, %v134
  %v159 = vpack.c.b16 %v137, %v135
  %v160 = vpack.c.b16 %v140, %v138
  %v161 = vpack.c.b16 %v141, %v139
  %v162 = vpack.c.b16 %v144, %v142
  %v163 = vpack.c.b16 %v145, %v143
  %v164 = vpack.c.b16 %v148, %v146
  %v165 = vpack.c.b16 %v149, %v147
  %v214 = vunpack.c.l.b16 %v70
  %v215 = vunpack.c.l.b16 %v71
  %v216 = vunpack.c.l.b16 %v72
  %v217 = vunpack.c.l.b16 %v73
  %v218 = vunpack.c.l.b16 %v74
  %v219 = vunpack.c.l.b16 %v75
  %v220 = vunpack.c.l.b16 %v76
  %v221 = vunpack.c.l.b16 %v77
  %v222 = vunpack.c.l.b16 %v78
  %v223 = vunpack.c.l.b16 %v79
  %v224 = vunpack.c.l.b16 %v80
  %v225 = vunpack.c.l.b16 %v81
  %v226 = vunpack.c.l.b16 %v82
  %v227 = vunpack.c.l.b16 %v83
  %v228 = vunpack.c.l.b16 %v84
  %v229 = vunpack.c.l.b16 %v85
  %v230 = vunpack.c.l.b16 %v86
  %v231 = vunpack.c.l.b16 %v87
  %v232 = vunpack.c.l.b16 %v88
  %v233 = vunpack.c.l.b16 %v89
  %v234 = vunpack.c.l.b16 %v90
  %v235 = vunpack.c.l.b16 %v91
  %v236 = vunpack.c.l.b16 %v92
  %v237 = vunpack.c.l.b16 %v93
  %v238 = vunpack.c.l.b16 %v94
  %v239 = vunpack.c.l.b16 %v95
  %v240 = vunpack.c.l.b16 %v96
  %v241 = vunpack.c.l.b16 %v97
  %v242 = vunpack.c.l.b16 %v98
  %v243 = vunpack.c.l.b16 %v99
  %v244 = vunpack.c.l.b16 %v100
  %v245 = vunpack.c.l.b16 %v101
  %v246 = vpack.c.b16 %v215, %v214
  %v247 = vpack.c.b16 %v217, %v216
  %v248 = vpack.c.b16 %v219, %v218
  %v249 = vpack.c.b16 %v221, %v220
  %v250 = vpack.c.b16 %v223, %v222
  %v251 = vpack.c.b16 %v225, %v224
  %v252 = vpack.c.b16 %v227, %v226
  %v253 = vpack.c.b16 %v229, %v228
  %v254 = vpack.c.b16 %v231, %v230
  %v255 = vpack.c.b16 %v233, %v232
  %v256 = vpack.c.b16 %v235, %v234
  %v257 = vpack.c.b16 %v237, %v236
  %v258 = vpack.c.b16 %v239, %v238
  %v259 = vpack.c.b16 %v241, %v240
  %v260 = vpack.c.b16 %v243, %v242
  %v261 = vpack.c.b16 %v245, %v244
  %278 = vmatprep.subr.bf16.mxu0 0
  %279 = vmatpush1.bf16.msra.mxu0 %v246
  %280 = vmatprep.subr.bf16.mxu0 0
  %281 = vmatpush1.bf16.msra.mxu0 %v247
  %282 = vmatprep.subr.bf16.mxu0 0
  %283 = vmatpush1.bf16.msra.mxu0 %v248
  %284 = vmatprep.subr.bf16.mxu0 0
  %285 = vmatpush1.bf16.msra.mxu0 %v249
  %286 = vmatprep.subr.bf16.mxu0 0
  %287 = vmatpush1.bf16.msra.mxu0 %v250
  %288 = vmatprep.subr.bf16.mxu0 0
  %289 = vmatpush1.bf16.msra.mxu0 %v251
  %290 = vmatprep.subr.bf16.mxu0 0
  %291 = vmatpush1.bf16.msra.mxu0 %v252
  %292 = vmatprep.subr.bf16.mxu0 0
  %293 = vmatpush1.bf16.msra.mxu0 %v253
  %294 = vmatprep.subr.bf16.mxu0 0
  %295 = vmatpush1.bf16.msra.mxu0 %v254
  %296 = vmatprep.subr.bf16.mxu0 0
  %297 = vmatpush1.bf16.msra.mxu0 %v255
  %298 = vmatprep.subr.bf16.mxu0 0
  %299 = vmatpush1.bf16.msra.mxu0 %v256
  %300 = vmatprep.subr.bf16.mxu0 0
  %301 = vmatpush1.bf16.msra.mxu0 %v257
  %302 = vmatprep.subr.bf16.mxu0 0
  %303 = vmatpush1.bf16.msra.mxu0 %v258
  %304 = vmatprep.subr.bf16.mxu0 0
  %305 = vmatpush1.bf16.msra.mxu0 %v259
  %306 = vmatprep.subr.bf16.mxu0 0
  %307 = vmatpush1.bf16.msra.mxu0 %v260
  %308 = vmatprep.subr.bf16.mxu0 0
  %309 = vmatpush1.bf16.msra.mxu0 %v261
  %310 = vmatprep.mubr.bf16.mxu0 %v151
  %311 = vmatmul.mubr.bf16.gmra.mrb[0].mxu0 %v150
  %v312 = vpop.f32.mrb[0].mxu0
  %v313 = vadd.f32 0.0, %v312
  %v314 = vpop.f32.mrb[0].mxu0
  %v315 = vpop.f32.mrb[0].mxu0
  %v316 = vadd.f32 0.0, %v315
  %v317 = vpop.f32.mrb[0].mxu0
  %318 = vmatprep.mubr.bf16.mxu0 %v153
  %319 = vmatmul.mubr.bf16.gmra.mrb[0].mxu0 %v152
  %v320 = vpop.f32.mrb[0].mxu0
  %v321 = vadd.f32 0.0, %v320
  %v322 = vpop.f32.mrb[0].mxu0
  %v323 = vpop.f32.mrb[0].mxu0
  %v324 = vadd.f32 0.0, %v323
  %v325 = vpop.f32.mrb[0].mxu0
  %326 = vmatprep.mubr.bf16.mxu0 %v155
  %327 = vmatmul.mubr.bf16.gmra.mrb[0].mxu0 %v154
  %v328 = vpop.f32.mrb[0].mxu0
  %v329 = vadd.f32 0.0, %v328
  %v330 = vpop.f32.mrb[0].mxu0
  %v331 = vpop.f32.mrb[0].mxu0
  %v332 = vadd.f32 0.0, %v331
  %v333 = vpop.f32.mrb[0].mxu0
  %334 = vmatprep.mubr.bf16.mxu0 %v157
  %335 = vmatmul.mubr.bf16.gmra.mrb[0].mxu0 %v156
  %v336 = vpop.f32.mrb[0].mxu0
  %v337 = vadd.f32 0.0, %v336
  %v338 = vpop.f32.mrb[0].mxu0
  %v339 = vpop.f32.mrb[0].mxu0
  %v340 = vadd.f32 0.0, %v339
  %v341 = vpop.f32.mrb[0].mxu0
  %342 = vmatprep.mubr.bf16.mxu0 %v159
  %343 = vmatmul.mubr.bf16.gmra.mrb[0].mxu0 %v158
  %v344 = vpop.f32.mrb[0].mxu0
  %v345 = vadd.f32 0.0, %v344
  %v346 = vpop.f32.mrb[0].mxu0
  %v347 = vpop.f32.mrb[0].mxu0
  %v348 = vadd.f32 0.0, %v347
  %v349 = vpop.f32.mrb[0].mxu0
  %350 = vmatprep.mubr.bf16.mxu0 %v161
  %351 = vmatmul.mubr.bf16.gmra.mrb[0].mxu0 %v160
  %v352 = vpop.f32.mrb[0].mxu0
  %v353 = vadd.f32 0.0, %v352
  %v354 = vpop.f32.mrb[0].mxu0
  %v355 = vpop.f32.mrb[0].mxu0
  %v356 = vadd.f32 0.0, %v355
  %v357 = vpop.f32.mrb[0].mxu0
  %358 = vmatprep.mubr.bf16.mxu0 %v163
  %359 = vmatmul.mubr.bf16.gmra.mrb[0].mxu0 %v162
  %v360 = vpop.f32.mrb[0].mxu0
  %v361 = vadd.f32 0.0, %v360
  %v362 = vpop.f32.mrb[0].mxu0
  %v363 = vpop.f32.mrb[0].mxu0
  %v364 = vadd.f32 0.0, %v363
  %v365 = vpop.f32.mrb[0].mxu0
  %366 = vmatprep.mubr.bf16.mxu0 %v165
  %367 = vmatmul.mubr.bf16.gmra.mrb[0].mxu0 %v164
  %v368 = vpop.f32.mrb[0].mxu0
  %v369 = vadd.f32 0.0, %v368
  %v370 = vpop.f32.mrb[0].mxu0
  %v371 = vpop.f32.mrb[0].mxu0
  %v372 = vadd.f32 0.0, %v371
  %v373 = vpop.f32.mrb[0].mxu0
  %374 = vdwg.mxu0
  %v375 = vadd.f32 %v54, %v313
  %v376 = vadd.f32 %v55, %v316
  %v377 = vadd.f32 %v56, %v321
  %v378 = vadd.f32 %v57, %v324
  %v379 = vadd.f32 %v58, %v329
  %v380 = vadd.f32 %v59, %v332
  %v381 = vadd.f32 %v60, %v337
  %v382 = vadd.f32 %v61, %v340
  %v383 = vadd.f32 %v62, %v345
  %v384 = vadd.f32 %v63, %v348
  %v385 = vadd.f32 %v64, %v353
  %v386 = vadd.f32 %v65, %v356
  %v387 = vadd.f32 %v66, %v361
  %v388 = vadd.f32 %v67, %v364
  %v389 = vadd.f32 %v68, %v369
  %v390 = vadd.f32 %v69, %v372
  %391 = vst [vmem:[#allocation2] sm:$0xff] %v375
  %392 = vst [vmem:[#allocation2 + $0x8] sm:$0xff] %v376
  %393 = vst [vmem:[#allocation2 + $0x10] sm:$0xff] %v377
  %394 = vst [vmem:[#allocation2 + $0x18] sm:$0xff] %v378
  %395 = vst [vmem:[#allocation2 + $0x20] sm:$0xff] %v379
  %396 = vst [vmem:[#allocation2 + $0x28] sm:$0xff] %v380
  %397 = vst [vmem:[#allocation2 + $0x30] sm:$0xff] %v381
  %398 = vst [vmem:[#allocation2 + $0x38] sm:$0xff] %v382
  %399 = vst [vmem:[#allocation2 + $0x40] sm:$0xff] %v383
  %400 = vst [vmem:[#allocation2 + $0x48] sm:$0xff] %v384
  %401 = vst [vmem:[#allocation2 + $0x50] sm:$0xff] %v385
  %402 = vst [vmem:[#allocation2 + $0x58] sm:$0xff] %v386
  %403 = vst [vmem:[#allocation2 + $0x60] sm:$0xff] %v387
  %404 = vst [vmem:[#allocation2 + $0x68] sm:$0xff] %v388
  %405 = vst [vmem:[#allocation2 + $0x70] sm:$0xff] %v389
  %406 = vst [vmem:[#allocation2 + $0x78] sm:$0xff] %v390
  // Predicated region
  $region22: #{densenet_forward.12} parent=0 // pred_check
    %p407 = pneg %p18
  $region23: #{densenet_forward.12} parent=0 // pred_check_branch
    %409 = sbr.rel (%p407) target = $region25
  $region24: #{densenet_forward.12} parent=0 // pred_region
    %v410 = vld [vmem:[#allocation2] sm:$0xff]
    %v411 = vld [vmem:[#allocation2 + $0x8] sm:$0xff]
    %v412 = vld [vmem:[#allocation2 + $0x10] sm:$0xff]
    %v413 = vld [vmem:[#allocation2 + $0x18] sm:$0xff]
    %v414 = vld [vmem:[#allocation2 + $0x20] sm:$0xff]
    %v415 = vld [vmem:[#allocation2 + $0x28] sm:$0xff]
    %v416 = vld [vmem:[#allocation2 + $0x30] sm:$0xff]
    %v417 = vld [vmem:[#allocation2 + $0x38] sm:$0xff]
    %v418 = vld [vmem:[#allocation2 + $0x40] sm:$0xff]
    %v419 = vld [vmem:[#allocation2 + $0x48] sm:$0xff]
    %v420 = vld [vmem:[#allocation2 + $0x50] sm:$0xff]
    %v421 = vld [vmem:[#allocation2 + $0x58] sm:$0xff]
    %v422 = vld [vmem:[#allocation2 + $0x60] sm:$0xff]
    %v423 = vld [vmem:[#allocation2 + $0x68] sm:$0xff]
    %v424 = vld [vmem:[#allocation2 + $0x70] sm:$0xff]
    %v425 = vld [vmem:[#allocation2 + $0x78] sm:$0xff]
    %v426 = vld [vmem:[%s2] sm:$0x1]
    %v428 = vlaneseq
    %v429 = vshrl.u32 %v428, 7
    %v430 = vsub.s32 0, %v429
    %v431 = vrot.slane %v426, %v430
    %v433 = vmul.f32 %v410, %v431
    %v434 = vmul.f32 %v411, %v431
    %v435 = vmul.f32 %v412, %v431
    %v436 = vmul.f32 %v413, %v431
    %v437 = vmul.f32 %v414, %v431
    %v438 = vmul.f32 %v415, %v431
    %v439 = vmul.f32 %v416, %v431
    %v440 = vmul.f32 %v417, %v431
    %v441 = vmul.f32 %v418, %v431
    %v442 = vmul.f32 %v419, %v431
    %v443 = vmul.f32 %v420, %v431
    %v444 = vmul.f32 %v421, %v431
    %v445 = vmul.f32 %v422, %v431
    %v446 = vmul.f32 %v423, %v431
    %v447 = vmul.f32 %v424, %v431
    %v448 = vmul.f32 %v425, %v431
    %v449 = vld [vmem:[%s3] sm:$0x1]
    %v451 = vlaneseq
    %v452 = vshrl.u32 %v451, 7
    %v453 = vsub.s32 0, %v452
    %v454 = vrot.slane %v449, %v453
    %v456 = vadd.f32 %v433, %v454
    %v457 = vadd.f32 %v434, %v454
    %v458 = vadd.f32 %v435, %v454
    %v459 = vadd.f32 %v436, %v454
    %v460 = vadd.f32 %v437, %v454
    %v461 = vadd.f32 %v438, %v454
    %v462 = vadd.f32 %v439, %v454
    %v463 = vadd.f32 %v440, %v454
    %v464 = vadd.f32 %v441, %v454
    %v465 = vadd.f32 %v442, %v454
    %v466 = vadd.f32 %v443, %v454
    %v467 = vadd.f32 %v444, %v454
    %v468 = vadd.f32 %v445, %v454
    %v469 = vadd.f32 %v446, %v454
    %v470 = vadd.f32 %v447, %v454
    %v471 = vadd.f32 %v448, %v454
    %v472 = vmax.f32 %v456, 0.0
    %v473 = vmax.f32 %v457, 0.0
    %v474 = vmax.f32 %v458, 0.0
    %v475 = vmax.f32 %v459, 0.0
    %v476 = vmax.f32 %v460, 0.0
    %v477 = vmax.f32 %v461, 0.0
    %v478 = vmax.f32 %v462, 0.0
    %v479 = vmax.f32 %v463, 0.0
    %v480 = vmax.f32 %v464, 0.0
    %v481 = vmax.f32 %v465, 0.0
    %v482 = vmax.f32 %v466, 0.0
    %v483 = vmax.f32 %v467, 0.0
    %v484 = vmax.f32 %v468, 0.0
    %v485 = vmax.f32 %v469, 0.0
    %v486 = vmax.f32 %v470, 0.0
    %v487 = vmax.f32 %v471, 0.0
    %v488 = vpack.c.bf16 %v473, %v472
    %v489 = vpack.c.bf16 %v475, %v474
    %v490 = vpack.c.bf16 %v477, %v476
    %v491 = vpack.c.bf16 %v479, %v478
    %v492 = vpack.c.bf16 %v481, %v480
    %v493 = vpack.c.bf16 %v483, %v482
    %v494 = vpack.c.bf16 %v485, %v484
    %v495 = vpack.c.bf16 %v487, %v486
    %v504 = vunpack.c.l.b16 %v488
    %v505 = vunpack.c.h.b16 %v488
    %v506 = vunpack.c.l.b16 %v489
    %v507 = vunpack.c.h.b16 %v489
    %v508 = vunpack.c.l.b16 %v490
    %v509 = vunpack.c.h.b16 %v490
    %v510 = vunpack.c.l.b16 %v491
    %v511 = vunpack.c.h.b16 %v491
    %v512 = vunpack.c.l.b16 %v492
    %v513 = vunpack.c.h.b16 %v492
    %v514 = vunpack.c.l.b16 %v493
    %v515 = vunpack.c.h.b16 %v493
    %v516 = vunpack.c.l.b16 %v494
    %v517 = vunpack.c.h.b16 %v494
    %v518 = vunpack.c.l.b16 %v495
    %v519 = vunpack.c.h.b16 %v495
    %v520 = vpack.c.b16 %v504, %v504
    %v521 = vpack.c.b16 %v505, %v505
    %v522 = vpack.c.b16 %v506, %v506
    %v523 = vpack.c.b16 %v507, %v507
    %v524 = vpack.c.b16 %v508, %v508
    %v525 = vpack.c.b16 %v509, %v509
    %v526 = vpack.c.b16 %v510, %v510
    %v527 = vpack.c.b16 %v511, %v511
    %v528 = vpack.c.b16 %v512, %v512
    %v529 = vpack.c.b16 %v513, %v513
    %v530 = vpack.c.b16 %v514, %v514
    %v531 = vpack.c.b16 %v515, %v515
    %v532 = vpack.c.b16 %v516, %v516
    %v533 = vpack.c.b16 %v517, %v517
    %v534 = vpack.c.b16 %v518, %v518
    %v535 = vpack.c.b16 %v519, %v519
    %552 = vst [vmem:[%s4] sm:$0xf] %v520
    %553 = vst [vmem:[%s4 + $0x4] sm:$0xf] %v521
    %554 = vst [vmem:[%s4 + $0x8] sm:$0xf] %v522
    %555 = vst [vmem:[%s4 + $0xc] sm:$0xf] %v523
    %556 = vst [vmem:[%s4 + $0x10] sm:$0xf] %v524
    %557 = vst [vmem:[%s4 + $0x14] sm:$0xf] %v525
    %558 = vst [vmem:[%s4 + $0x18] sm:$0xf] %v526
    %559 = vst [vmem:[%s4 + $0x1c] sm:$0xf] %v527
    %560 = vst [vmem:[%s4 + $0x20] sm:$0xf] %v528
    %561 = vst [vmem:[%s4 + $0x24] sm:$0xf] %v529
    %562 = vst [vmem:[%s4 + $0x28] sm:$0xf] %v530
    %563 = vst [vmem:[%s4 + $0x2c] sm:$0xf] %v531
    %564 = vst [vmem:[%s4 + $0x30] sm:$0xf] %v532
    %565 = vst [vmem:[%s4 + $0x34] sm:$0xf] %v533
    %566 = vst [vmem:[%s4 + $0x38] sm:$0xf] %v534
    %567 = vst [vmem:[%s4 + $0x3c] sm:$0xf] %v535
  $region25: #{densenet_forward.12} parent=0 // pred_fallthru
    _
  // Predicated region
  $region26: #{densenet_forward.12} parent=0 // pred_check
    _
  $region27: #{densenet_forward.12} parent=0 // pred_check_branch
    %569 = sbr.rel (0) target = $region29
  $region28: #{densenet_forward.12} parent=0 // pred_region
    _
  $region29: #{densenet_forward.12} parent=0 // pred_fallthru
    _
  // Predicated region
  $region30: #{densenet_forward.12} parent=0 // pred_check
    _
  $region31: #{densenet_forward.12} parent=0 // pred_check_branch
    %571 = sbr.rel (0) target = $region33
  $region32: #{densenet_forward.12} parent=0 // pred_region
    _
  $region33: #{densenet_forward.12} parent=0 // pred_fallthru
    _

// kernel: densenet_forward.13
$region0: #{densenet_forward.13}
  #allocation0 [shape = 'u32[]', space=smem, size = 0x4, offset = 0x4, fixed_abs, tag = 'smem constant byte address 0x4 - core index']
  #allocation1 [shape = 'u32[144,128]{1,0:T(1,128)}', space=vmem, size = 0x12000, scoped, tag = 'internal scratch']
  %s0 = inlined_call_operand.vmem [shape: bf16[2,5,5,128], index: 0, kind: input, shape index: {}]
  %s1 = inlined_call_operand.vmem [shape: bf16[2,5,5,128], index: 1, kind: input, shape index: {}]
  %s2 = inlined_call_operand.vmem [shape: bf16[2,5,5,128], index: 2, kind: input, shape index: {}]
  %s3 = inlined_call_operand.vmem [shape: bf16[2,5,5,128], index: 3, kind: input, shape index: {}]
  %s4 = inlined_call_operand.vmem [shape: bf16[2,4,4,128], index: 4, kind: output, shape index: {}]
  %s5 = sld [smem:[#allocation0]]
  $region49: #{densenet_forward.13} parent=0
    _
  %s7 = ssub.s32 1, %s5
  %s8 = scalar_select 0, %s7, %s5
  loop: start=0, step=1, limit=4
  $region2: #{densenet_forward.13} parent=0 // loop_pre_header
    _
  $region3: #{densenet_forward.13} parent=0 // loop_header
    %s10 = sphi 0, %s14
    %p11 = scmp.ge.s32.totalorder %s10, 4
    %s20 = sphi 0, %s22
    %s23 = sphi 0, %s20
    %s24 = sphi 0, %s23
    %s40 = sphi 0, %s24
    %s46 = sphi 0, %s48
    %s49 = sphi 0, %s46
    %s50 = sphi 0, %s49
    %s66 = sphi 0, %s50
    %s72 = sphi 0, %s74
    %s75 = sphi 0, %s72
    %s76 = sphi 0, %s75
    %s92 = sphi 0, %s76
    %s98 = sphi 0, %s100
    %s101 = sphi 0, %s98
    %s102 = sphi 0, %s101
    %s118 = sphi 0, %s102
    %s124 = sphi 0, %s126
    %s127 = sphi 0, %s124
    %s128 = sphi 0, %s127
    %s144 = sphi 0, %s128
  $region4: #{densenet_forward.13} parent=0 // loop_header_branch
    %13 = sbr.rel (%p11) target = $region8
  $region5: #{densenet_forward.13} parent=0 // loop_body
    %s15 = ssub.s32 %s10, 1
    %s16 = ssub.s32 %s10, 2
    %s17 = sadd.s32 %s10, 1
    %s18 = ssub.s32 %s10, %s17
    %p19 = scmp.eq.s32.totalorder %s18, 0
    %s21 = sadd.s32 %s20, 1
    %s22 = scalar_select %p19, %s20, %s21
    %p25 = pneg %p19
    %p26 = scmp.eq.s32.totalorder %s10, 1
    %p27 = por %p25, %p26
    %p28 = scmp.ne.s32.totalorder %s20, %s23
    %p29 = scmp.eq.s32.totalorder %s10, 0
    %p30 = por %p28, %p29
    %p31 = scmp.ne.s32.totalorder %s20, %s23
    %p32 = scmp.eq.s32.totalorder %s15, 1
    %p33 = por %p31, %p32
    %p34 = scmp.ne.s32.totalorder %s23, %s24
    %p35 = scmp.eq.s32.totalorder %s15, 0
    %p36 = por %p34, %p35
    %p37 = scmp.ne.s32.totalorder %s23, %s24
    %p38 = scmp.eq.s32.totalorder %s16, 1
    %p39 = por %p37, %p38
    %p41 = scmp.ne.s32.totalorder %s24, %s40
    %p42 = scmp.eq.s32.totalorder %s16, 0
    %p43 = por %p41, %p42
    %s44 = ssub.s32 %s10, %s17
    %p45 = scmp.eq.s32.totalorder %s44, 0
    %s47 = sadd.s32 %s46, 1
    %s48 = scalar_select %p45, %s46, %s47
    %p51 = pneg %p45
    %p52 = scmp.eq.s32.totalorder %s10, 1
    %p53 = por %p51, %p52
    %p54 = scmp.ne.s32.totalorder %s46, %s49
    %p55 = scmp.eq.s32.totalorder %s10, 0
    %p56 = por %p54, %p55
    %p57 = scmp.ne.s32.totalorder %s46, %s49
    %p58 = scmp.eq.s32.totalorder %s15, 1
    %p59 = por %p57, %p58
    %p60 = scmp.ne.s32.totalorder %s49, %s50
    %p61 = scmp.eq.s32.totalorder %s15, 0
    %p62 = por %p60, %p61
    %p63 = scmp.ne.s32.totalorder %s49, %s50
    %p64 = scmp.eq.s32.totalorder %s16, 1
    %p65 = por %p63, %p64
    %p67 = scmp.ne.s32.totalorder %s50, %s66
    %p68 = scmp.eq.s32.totalorder %s16, 0
    %p69 = por %p67, %p68
    %s70 = ssub.s32 %s10, %s17
    %p71 = scmp.eq.s32.totalorder %s70, 0
    %s73 = sadd.s32 %s72, 1
    %s74 = scalar_select %p71, %s72, %s73
    %p77 = pneg %p71
    %p78 = scmp.eq.s32.totalorder %s10, 1
    %p79 = por %p77, %p78
    %p80 = scmp.ne.s32.totalorder %s72, %s75
    %p81 = scmp.eq.s32.totalorder %s10, 0
    %p82 = por %p80, %p81
    %p83 = scmp.ne.s32.totalorder %s72, %s75
    %p84 = scmp.eq.s32.totalorder %s15, 1
    %p85 = por %p83, %p84
    %p86 = scmp.ne.s32.totalorder %s75, %s76
    %p87 = scmp.eq.s32.totalorder %s15, 0
    %p88 = por %p86, %p87
    %p89 = scmp.ne.s32.totalorder %s75, %s76
    %p90 = scmp.eq.s32.totalorder %s16, 1
    %p91 = por %p89, %p90
    %p93 = scmp.ne.s32.totalorder %s76, %s92
    %p94 = scmp.eq.s32.totalorder %s16, 0
    %p95 = por %p93, %p94
    %s96 = ssub.s32 %s10, %s17
    %p97 = scmp.eq.s32.totalorder %s96, 0
    %s99 = sadd.s32 %s98, 1
    %s100 = scalar_select %p97, %s98, %s99
    %p103 = pneg %p97
    %p104 = scmp.eq.s32.totalorder %s10, 1
    %p105 = por %p103, %p104
    %p106 = scmp.ne.s32.totalorder %s98, %s101
    %p107 = scmp.eq.s32.totalorder %s10, 0
    %p108 = por %p106, %p107
    %p109 = scmp.ne.s32.totalorder %s98, %s101
    %p110 = scmp.eq.s32.totalorder %s15, 1
    %p111 = por %p109, %p110
    %p112 = scmp.ne.s32.totalorder %s101, %s102
    %p113 = scmp.eq.s32.totalorder %s15, 0
    %p114 = por %p112, %p113
    %p115 = scmp.ne.s32.totalorder %s101, %s102
    %p116 = scmp.eq.s32.totalorder %s16, 1
    %p117 = por %p115, %p116
    %p119 = scmp.ne.s32.totalorder %s102, %s118
    %p120 = scmp.eq.s32.totalorder %s16, 0
    %p121 = por %p119, %p120
    %s122 = ssub.s32 %s10, %s17
    %p123 = scmp.eq.s32.totalorder %s122, 0
    %s125 = sadd.s32 %s124, 1
    %s126 = scalar_select %p123, %s124, %s125
    %p129 = pneg %p123
    %p130 = scmp.eq.s32.totalorder %s10, 1
    %p131 = por %p129, %p130
    %p132 = scmp.ne.s32.totalorder %s124, %s127
    %p133 = scmp.eq.s32.totalorder %s10, 0
    %p134 = por %p132, %p133
    %p135 = scmp.ne.s32.totalorder %s124, %s127
    %p136 = scmp.eq.s32.totalorder %s15, 1
    %p137 = por %p135, %p136
    %p138 = scmp.ne.s32.totalorder %s127, %s128
    %p139 = scmp.eq.s32.totalorder %s15, 0
    %p140 = por %p138, %p139
    %p141 = scmp.ne.s32.totalorder %s127, %s128
    %p142 = scmp.eq.s32.totalorder %s16, 1
    %p143 = por %p141, %p142
    %p145 = scmp.ne.s32.totalorder %s128, %s144
    %p146 = scmp.eq.s32.totalorder %s16, 0
    %p147 = por %p145, %p146
    %p148 = scmp.le.s32.totalorder 1, %s10
    %p149 = scmp.lt.s32.totalorder %s10, 3
    %p150 = pnand %p148, %p149
    %p151 = pneg %p150
    // Predicated region
    $region9: #{densenet_forward.13} parent=5 // pred_check
      _
    $region10: #{densenet_forward.13} parent=5 // pred_check_branch
      %153 = sbr.rel (%p150) target = $region12
    $region11: #{densenet_forward.13} parent=5 // pred_region
      %s154 = ssub.s32 %s10, 1
    $region12: #{densenet_forward.13} parent=5 // pred_fallthru
      _
    %p155 = scmp.lt.s32.totalorder %s10, 2
    // Predicated region
    $region13: #{densenet_forward.13} parent=5 // pred_check
      %p156 = pneg %p155
    $region14: #{densenet_forward.13} parent=5 // pred_check_branch
      %158 = sbr.rel (%p156) target = $region16
    $region15: #{densenet_forward.13} parent=5 // pred_region
      // Predicated region
      $region17: #{densenet_forward.13} parent=15 // pred_check
        %p159 = pneg %p30
      $region18: #{densenet_forward.13} parent=15 // pred_check_branch
        %161 = sbr.rel (%p159) target = $region20
      $region19: #{densenet_forward.13} parent=15 // pred_region
        %p162 = scmp.lt.s32.totalorder %s10, 1
        %s163 = scalar_select %p162, %s10, 1
        %s164 = smul.addr %s163, 5
        %s165 = smul.addr %s164, 4
        %s166 = scalar_lea.vmem %s0, %s165
      $region20: #{densenet_forward.13} parent=15 // pred_fallthru
        _
      // Predicated region
      $region21: #{densenet_forward.13} parent=15 // pred_check
        %p167 = pneg %p56
      $region22: #{densenet_forward.13} parent=15 // pred_check_branch
        %169 = sbr.rel (%p167) target = $region24
      $region23: #{densenet_forward.13} parent=15 // pred_region
        %p170 = scmp.lt.s32.totalorder %s10, 1
        %s171 = scalar_select %p170, %s10, 1
        %s172 = smul.addr %s171, 5
        %s173 = smul.addr %s172, 4
        %s174 = scalar_lea.vmem %s1, %s173
      $region24: #{densenet_forward.13} parent=15 // pred_fallthru
        _
      // Predicated region
      $region25: #{densenet_forward.13} parent=15 // pred_check
        %p175 = pneg %p82
      $region26: #{densenet_forward.13} parent=15 // pred_check_branch
        %177 = sbr.rel (%p175) target = $region28
      $region27: #{densenet_forward.13} parent=15 // pred_region
        %p178 = scmp.lt.s32.totalorder %s10, 1
        %s179 = scalar_select %p178, %s10, 1
        %s180 = smul.addr %s179, 5
        %s181 = smul.addr %s180, 4
        %s182 = scalar_lea.vmem %s2, %s181
      $region28: #{densenet_forward.13} parent=15 // pred_fallthru
        _
      // Predicated region
      $region29: #{densenet_forward.13} parent=15 // pred_check
        %p183 = pneg %p108
      $region30: #{densenet_forward.13} parent=15 // pred_check_branch
        %185 = sbr.rel (%p183) target = $region32
      $region31: #{densenet_forward.13} parent=15 // pred_region
        %p186 = scmp.lt.s32.totalorder %s10, 1
        %s187 = scalar_select %p186, %s10, 1
        %s188 = smul.addr %s187, 5
        %s189 = smul.addr %s188, 4
        %s190 = scalar_lea.vmem %s3, %s189
      $region32: #{densenet_forward.13} parent=15 // pred_fallthru
        _
    $region16: #{densenet_forward.13} parent=5 // pred_fallthru
      _
    %p191 = scmp.le.s32.totalorder 1, %s10
    %p192 = scmp.lt.s32.totalorder %s10, 3
    %p193 = pnand %p191, %p192
    %p194 = pneg %p193
    // Predicated region
    $region33: #{densenet_forward.13} parent=5 // pred_check
      _
    $region34: #{densenet_forward.13} parent=5 // pred_check_branch
      %196 = sbr.rel (%p193) target = $region36
    $region35: #{densenet_forward.13} parent=5 // pred_region
      %s197 = ssub.s32 %s10, 1
      %p198 = scmp.lt.s32.totalorder %s15, 1
      %s199 = scalar_select %p198, %s15, 1
      %s200 = smul.addr %s199, 5
      %s201 = smul.addr %s200, 4
      %s202 = scalar_lea.vmem %s0, %s201
      %p203 = pneg %p36
      %p204 = pneg %p33
      %p205 = scmp.lt.s32.totalorder %s15, 1
      %s206 = scalar_select %p205, %s15, 1
      %s207 = smul.addr %s206, 5
      %s208 = smul.addr %s207, 4
      %s209 = scalar_lea.vmem %s1, %s208
      %p210 = pneg %p62
      %p211 = pneg %p59
      %p212 = scmp.lt.s32.totalorder %s15, 1
      %s213 = scalar_select %p212, %s15, 1
      %s214 = smul.addr %s213, 5
      %s215 = smul.addr %s214, 4
      %s216 = scalar_lea.vmem %s2, %s215
      %p217 = pneg %p88
      %p218 = pneg %p85
      %p219 = scmp.lt.s32.totalorder %s15, 1
      %s220 = scalar_select %p219, %s15, 1
      %s221 = smul.addr %s220, 5
      %s222 = smul.addr %s221, 4
      %s223 = scalar_lea.vmem %s3, %s222
      %p224 = pneg %p114
      %p225 = pneg %p111
      %p226 = pneg %p140
      %p227 = pneg %p137
      %p228 = scmp.lt.s32.totalorder %s15, 1
      %s229 = scalar_select %p228, %s15, 1
      %s230 = smul.addr %s229, 4
      %s231 = smul.addr %s230, 2
      %s232 = scalar_lea.vmem %s4, %s231
      %p233 = scmp.lt.s32.totalorder %s15, 1
      %s234 = scalar_select %p233, %s15, 1
      %s235 = smul.addr %s234, 5
      %s236 = smul.addr %s235, 4
      %s237 = scalar_lea.vmem %s0, %s236
      %p238 = scmp.lt.s32.totalorder %s15, 1
      %s239 = scalar_select %p238, %s15, 1
      %s240 = smul.addr %s239, 5
      %s241 = smul.addr %s240, 4
      %s242 = scalar_lea.vmem %s1, %s241
      %p243 = scmp.lt.s32.totalorder %s15, 1
      %s244 = scalar_select %p243, %s15, 1
      %s245 = smul.addr %s244, 5
      %s246 = smul.addr %s245, 4
      %s247 = scalar_lea.vmem %s2, %s246
      %p248 = scmp.lt.s32.totalorder %s15, 1
      %s249 = scalar_select %p248, %s15, 1
      %s250 = smul.addr %s249, 5
      %s251 = smul.addr %s250, 4
      %s252 = scalar_lea.vmem %s3, %s251
      %p253 = scmp.lt.s32.totalorder %s15, 1
      %s254 = scalar_select %p253, %s15, 1
      %s255 = smul.addr %s254, 4
      %s256 = smul.addr %s255, 2
      %s257 = scalar_lea.vmem %s4, %s256
      %v258 = vld [vmem:[%s237] sm:$0x3]
      %v259 = vld [vmem:[%s237 + $0x4] sm:$0x3]
      %v260 = vld [vmem:[%s237 + $0x8] sm:$0x3]
      %v261 = vld [vmem:[%s237 + $0xc] sm:$0x3]
      %v262 = vld [vmem:[%s242] sm:$0x3]
      %v263 = vld [vmem:[%s242 + $0x4] sm:$0x3]
      %v264 = vld [vmem:[%s242 + $0x8] sm:$0x3]
      %v265 = vld [vmem:[%s242 + $0xc] sm:$0x3]
      %v266 = vmax.bf16 %v258, %v262
      %v267 = vmax.bf16 %v259, %v263
      %v268 = vmax.bf16 %v260, %v264
      %v269 = vmax.bf16 %v261, %v265
      %v270 = vld [vmem:[%s237] sm:$0x7]
      %v271 = vld [vmem:[%s237 + $0x4] sm:$0x7]
      %v272 = vld [vmem:[%s237 + $0x8] sm:$0x7]
      %v273 = vld [vmem:[%s237 + $0xc] sm:$0x7]
      %v275 = vshrl.u32 %v270, 16
      %v277 = vrot.slane %v275, 4
      %v278 = vshll.u32 %v270, 16
      %v280 = vrot.slane %v278, 5
      %v281 = vor.u32 %v277, %v280
      %v282 = vrot.slane %v281, 4
      %v284 = vshrl.u32 %v271, 16
      %v286 = vrot.slane %v284, 4
      %v287 = vshll.u32 %v271, 16
      %v289 = vrot.slane %v287, 5
      %v290 = vor.u32 %v286, %v289
      %v291 = vrot.slane %v290, 4
      %v293 = vshrl.u32 %v272, 16
      %v295 = vrot.slane %v293, 4
      %v296 = vshll.u32 %v272, 16
      %v298 = vrot.slane %v296, 5
      %v299 = vor.u32 %v295, %v298
      %v300 = vrot.slane %v299, 4
      %v302 = vshrl.u32 %v273, 16
      %v304 = vrot.slane %v302, 4
      %v305 = vshll.u32 %v273, 16
      %v307 = vrot.slane %v305, 5
      %v308 = vor.u32 %v304, %v307
      %v309 = vrot.slane %v308, 4
      %v314 = vmax.bf16 %v266, %v282
      %v315 = vmax.bf16 %v267, %v291
      %v316 = vmax.bf16 %v268, %v300
      %v317 = vmax.bf16 %v269, %v309
      %v318 = vld [vmem:[%s247] sm:$0x3]
      %v319 = vld [vmem:[%s247 + $0x4] sm:$0x3]
      %v320 = vld [vmem:[%s247 + $0x8] sm:$0x3]
      %v321 = vld [vmem:[%s247 + $0xc] sm:$0x3]
      %v322 = vmax.bf16 %v314, %v318
      %v323 = vmax.bf16 %v315, %v319
      %v324 = vmax.bf16 %v316, %v320
      %v325 = vmax.bf16 %v317, %v321
      %v326 = vld [vmem:[%s252] sm:$0x3]
      %v327 = vld [vmem:[%s252 + $0x4] sm:$0x3]
      %v328 = vld [vmem:[%s252 + $0x8] sm:$0x3]
      %v329 = vld [vmem:[%s252 + $0xc] sm:$0x3]
      %v330 = vmax.bf16 %v322, %v326
      %v331 = vmax.bf16 %v323, %v327
      %v332 = vmax.bf16 %v324, %v328
      %v333 = vmax.bf16 %v325, %v329
      %v334 = vld [vmem:[%s247] sm:$0x7]
      %v335 = vld [vmem:[%s247 + $0x4] sm:$0x7]
      %v336 = vld [vmem:[%s247 + $0x8] sm:$0x7]
      %v337 = vld [vmem:[%s247 + $0xc] sm:$0x7]
      %v339 = vshrl.u32 %v334, 16
      %v341 = vrot.slane %v339, 4
      %v342 = vshll.u32 %v334, 16
      %v344 = vrot.slane %v342, 5
      %v345 = vor.u32 %v341, %v344
      %v346 = vrot.slane %v345, 4
      %v348 = vshrl.u32 %v335, 16
      %v350 = vrot.slane %v348, 4
      %v351 = vshll.u32 %v335, 16
      %v353 = vrot.slane %v351, 5
      %v354 = vor.u32 %v350, %v353
      %v355 = vrot.slane %v354, 4
      %v357 = vshrl.u32 %v336, 16
      %v359 = vrot.slane %v357, 4
      %v360 = vshll.u32 %v336, 16
      %v362 = vrot.slane %v360, 5
      %v363 = vor.u32 %v359, %v362
      %v364 = vrot.slane %v363, 4
      %v366 = vshrl.u32 %v337, 16
      %v368 = vrot.slane %v366, 4
      %v369 = vshll.u32 %v337, 16
      %v371 = vrot.slane %v369, 5
      %v372 = vor.u32 %v368, %v371
      %v373 = vrot.slane %v372, 4
      %v378 = vmax.bf16 %v330, %v346
      %v379 = vmax.bf16 %v331, %v355
      %v380 = vmax.bf16 %v332, %v364
      %v381 = vmax.bf16 %v333, %v373
      %s382 = scalar_lea.vmem %s237, 4
      %v383 = vld [vmem:[%s382] sm:$0x3]
      %v384 = vld [vmem:[%s382 + $0x4] sm:$0x3]
      %v385 = vld [vmem:[%s382 + $0x8] sm:$0x3]
      %v386 = vld [vmem:[%s382 + $0xc] sm:$0x3]
      %v387 = vmax.bf16 %v378, %v383
      %v388 = vmax.bf16 %v379, %v384
      %v389 = vmax.bf16 %v380, %v385
      %v390 = vmax.bf16 %v381, %v386
      %s391 = scalar_lea.vmem %s242, 4
      %v392 = vld [vmem:[%s391] sm:$0x3]
      %v393 = vld [vmem:[%s391 + $0x4] sm:$0x3]
      %v394 = vld [vmem:[%s391 + $0x8] sm:$0x3]
      %v395 = vld [vmem:[%s391 + $0xc] sm:$0x3]
      %v396 = vmax.bf16 %v387, %v392
      %v397 = vmax.bf16 %v388, %v393
      %v398 = vmax.bf16 %v389, %v394
      %v399 = vmax.bf16 %v390, %v395
      %v400 = vld [vmem:[%s382] sm:$0x7]
      %v401 = vld [vmem:[%s382 + $0x4] sm:$0x7]
      %v402 = vld [vmem:[%s382 + $0x8] sm:$0x7]
      %v403 = vld [vmem:[%s382 + $0xc] sm:$0x7]
      %v405 = vshrl.u32 %v400, 16
      %v407 = vrot.slane %v405, 4
      %v408 = vshll.u32 %v400, 16
      %v410 = vrot.slane %v408, 5
      %v411 = vor.u32 %v407, %v410
      %v412 = vrot.slane %v411, 4
      %v414 = vshrl.u32 %v401, 16
      %v416 = vrot.slane %v414, 4
      %v417 = vshll.u32 %v401, 16
      %v419 = vrot.slane %v417, 5
      %v420 = vor.u32 %v416, %v419
      %v421 = vrot.slane %v420, 4
      %v423 = vshrl.u32 %v402, 16
      %v425 = vrot.slane %v423, 4
      %v426 = vshll.u32 %v402, 16
      %v428 = vrot.slane %v426, 5
      %v429 = vor.u32 %v425, %v428
      %v430 = vrot.slane %v429, 4
      %v432 = vshrl.u32 %v403, 16
      %v434 = vrot.slane %v432, 4
      %v435 = vshll.u32 %v403, 16
      %v437 = vrot.slane %v435, 5
      %v438 = vor.u32 %v434, %v437
      %v439 = vrot.slane %v438, 4
      %v444 = vmax.bf16 %v396, %v412
      %v445 = vmax.bf16 %v397, %v421
      %v446 = vmax.bf16 %v398, %v430
      %v447 = vmax.bf16 %v399, %v439
      %448 = vst [vmem:[%s257] sm:$0x3] %v444
      %449 = vst [vmem:[%s257 + $0x2] sm:$0x3] %v445
      %450 = vst [vmem:[%s257 + $0x4] sm:$0x3] %v446
      %451 = vst [vmem:[%s257 + $0x6] sm:$0x3] %v447
      %p452 = scmp.lt.s32.totalorder %s15, 1
      %s453 = scalar_select %p452, %s15, 1
      %s454 = smul.addr %s453, 4
      %s455 = smul.addr %s454, 2
      %s456 = scalar_lea.vmem %s4, %s455
      // Predicated region
      $region37: #{densenet_forward.13} parent=35 // pred_check
        %p457 = pneg %p137
      $region38: #{densenet_forward.13} parent=35 // pred_check_branch
        %459 = sbr.rel (%p457) target = $region40
      $region39: #{densenet_forward.13} parent=35 // pred_region
        _
      $region40: #{densenet_forward.13} parent=35 // pred_fallthru
        _
    $region36: #{densenet_forward.13} parent=5 // pred_fallthru
      _
    %p460 = scmp.le.s32.totalorder 2, %s10
    // Predicated region
    $region41: #{densenet_forward.13} parent=5 // pred_check
      %p461 = pneg %p460
    $region42: #{densenet_forward.13} parent=5 // pred_check_branch
      %463 = sbr.rel (%p461) target = $region44
    $region43: #{densenet_forward.13} parent=5 // pred_region
      %s464 = ssub.s32 %s10, 2
      // Predicated region
      $region45: #{densenet_forward.13} parent=43 // pred_check
        %p465 = pneg %p143
      $region46: #{densenet_forward.13} parent=43 // pred_check_branch
        %467 = sbr.rel (%p465) target = $region48
      $region47: #{densenet_forward.13} parent=43 // pred_region
        %p468 = scmp.lt.s32.totalorder %s16, 1
        %s469 = scalar_select %p468, %s16, 1
        %s470 = smul.addr %s469, 4
        %s471 = smul.addr %s470, 2
        %s472 = scalar_lea.vmem %s4, %s471
      $region48: #{densenet_forward.13} parent=43 // pred_fallthru
        _
    $region44: #{densenet_forward.13} parent=5 // pred_fallthru
      _
  $region6: #{densenet_forward.13} parent=0 // loop_footer
    %s14 = sadd.s32 1, %s10
  $region7: #{densenet_forward.13} parent=0 // loop_footer_branch
    %9 = sbr.rel target = $region3
  $region8: #{densenet_forward.13} parent=0 // loop_exit
    _

// kernel: densenet_forward.14
$region0: #{densenet_forward.14}
  #allocation0 [shape = 'u32[]', space=smem, size = 0x4, offset = 0x4, fixed_abs, tag = 'smem constant byte address 0x4 - core index']
  #allocation1 [shape = 'u32[144,128]{1,0:T(1,128)}', space=vmem, size = 0x12000, scoped, tag = 'internal scratch']
  #allocation2 [shape = 'f32[128,128]{1,0:T(8,128)}', space=vmem, size = 0x10000, scoped, tag = 'scratch operand']
  %s0 = inlined_call_operand.vmem [shape: bf16[128,128], index: 0, kind: input, shape index: {}]
  %s1 = inlined_call_operand.vmem [shape: bf16[128,128], index: 1, kind: input, shape index: {}]
  %s2 = inlined_call_operand.vmem [shape: f32[1,128], index: 2, kind: input, shape index: {}]
  %s3 = inlined_call_operand.vmem [shape: f32[1,128], index: 3, kind: input, shape index: {}]
  %s4 = inlined_call_operand.vmem [shape: f32[1,128], index: 4, kind: input, shape index: {}]
  %s5 = inlined_call_operand.vmem [shape: f32[1,128], index: 5, kind: input, shape index: {}]
  %s6 = inlined_call_operand.vmem [shape: bf16[128,128], index: 6, kind: output, shape index: {}]
  %s7 = sld [smem:[#allocation0]]
  $region42: #{densenet_forward.14} parent=0
    _
  %s9 = ssub.s32 1, %s7
  %s10 = scalar_select 0, %s9, %s7
  // Predicated region
  $region2: #{densenet_forward.14} parent=0 // pred_check
    _
  $region3: #{densenet_forward.14} parent=0 // pred_check_branch
    %12 = sbr.rel (0) target = $region5
  $region4: #{densenet_forward.14} parent=0 // pred_region
    _
  $region5: #{densenet_forward.14} parent=0 // pred_fallthru
    _
  // Predicated region
  $region6: #{densenet_forward.14} parent=0 // pred_check
    _
  $region7: #{densenet_forward.14} parent=0 // pred_check_branch
    %14 = sbr.rel (0) target = $region9
  $region8: #{densenet_forward.14} parent=0 // pred_region
    _
  $region9: #{densenet_forward.14} parent=0 // pred_fallthru
    _
  // Predicated region
  $region10: #{densenet_forward.14} parent=0 // pred_check
    _
  $region11: #{densenet_forward.14} parent=0 // pred_check_branch
    %16 = sbr.rel (0) target = $region13
  $region12: #{densenet_forward.14} parent=0 // pred_region
    _
  $region13: #{densenet_forward.14} parent=0 // pred_fallthru
    _
  // Predicated region
  $region14: #{densenet_forward.14} parent=0 // pred_check
    _
  $region15: #{densenet_forward.14} parent=0 // pred_check_branch
    %18 = sbr.rel (0) target = $region17
  $region16: #{densenet_forward.14} parent=0 // pred_region
    _
  $region17: #{densenet_forward.14} parent=0 // pred_fallthru
    _
  // Predicated region
  $region18: #{densenet_forward.14} parent=0 // pred_check
    _
  $region19: #{densenet_forward.14} parent=0 // pred_check_branch
    %20 = sbr.rel (0) target = $region21
  $region20: #{densenet_forward.14} parent=0 // pred_region
    _
  $region21: #{densenet_forward.14} parent=0 // pred_fallthru
    _
  // Predicated region
  $region22: #{densenet_forward.14} parent=0 // pred_check
    _
  $region23: #{densenet_forward.14} parent=0 // pred_check_branch
    %22 = sbr.rel (0) target = $region25
  $region24: #{densenet_forward.14} parent=0 // pred_region
    _
  $region25: #{densenet_forward.14} parent=0 // pred_fallthru
    _
  %p24 = scmp.eq.s32.totalorder 0, 0
  // Predicated region
  $region26: #{densenet_forward.14} parent=0 // pred_check
    %p25 = pneg %p24
  $region27: #{densenet_forward.14} parent=0 // pred_check_branch
    %27 = sbr.rel (%p25) target = $region29
  $region28: #{densenet_forward.14} parent=0 // pred_region
    %28 = vst [vmem:[#allocation2] sm:$0xff] 0.0
    %29 = vst [vmem:[#allocation2 + $0x8] sm:$0xff] 0.0
    %30 = vst [vmem:[#allocation2 + $0x10] sm:$0xff] 0.0
    %31 = vst [vmem:[#allocation2 + $0x18] sm:$0xff] 0.0
    %32 = vst [vmem:[#allocation2 + $0x20] sm:$0xff] 0.0
    %33 = vst [vmem:[#allocation2 + $0x28] sm:$0xff] 0.0
    %34 = vst [vmem:[#allocation2 + $0x30] sm:$0xff] 0.0
    %35 = vst [vmem:[#allocation2 + $0x38] sm:$0xff] 0.0
    %36 = vst [vmem:[#allocation2 + $0x40] sm:$0xff] 0.0
    %37 = vst [vmem:[#allocation2 + $0x48] sm:$0xff] 0.0
    %38 = vst [vmem:[#allocation2 + $0x50] sm:$0xff] 0.0
    %39 = vst [vmem:[#allocation2 + $0x58] sm:$0xff] 0.0
    %40 = vst [vmem:[#allocation2 + $0x60] sm:$0xff] 0.0
    %41 = vst [vmem:[#allocation2 + $0x68] sm:$0xff] 0.0
    %42 = vst [vmem:[#allocation2 + $0x70] sm:$0xff] 0.0
    %43 = vst [vmem:[#allocation2 + $0x78] sm:$0xff] 0.0
  $region29: #{densenet_forward.14} parent=0 // pred_fallthru
    _
  %v44 = vld [vmem:[%s0] sm:$0xf]
  %v45 = vld [vmem:[%s0 + $0x4] sm:$0xf]
  %v46 = vld [vmem:[%s0 + $0x8] sm:$0xf]
  %v47 = vld [vmem:[%s0 + $0xc] sm:$0xf]
  %v48 = vld [vmem:[%s0 + $0x10] sm:$0xf]
  %v49 = vld [vmem:[%s0 + $0x14] sm:$0xf]
  %v50 = vld [vmem:[%s0 + $0x18] sm:$0xf]
  %v51 = vld [vmem:[%s0 + $0x1c] sm:$0xf]
  %v52 = vld [vmem:[%s0 + $0x20] sm:$0xf]
  %v53 = vld [vmem:[%s0 + $0x24] sm:$0xf]
  %v54 = vld [vmem:[%s0 + $0x28] sm:$0xf]
  %v55 = vld [vmem:[%s0 + $0x2c] sm:$0xf]
  %v56 = vld [vmem:[%s0 + $0x30] sm:$0xf]
  %v57 = vld [vmem:[%s0 + $0x34] sm:$0xf]
  %v58 = vld [vmem:[%s0 + $0x38] sm:$0xf]
  %v59 = vld [vmem:[%s0 + $0x3c] sm:$0xf]
  %v60 = vunpack.c.l.bf16 %v44
  %v61 = vunpack.c.l.bf16 %v45
  %v62 = vunpack.c.l.bf16 %v46
  %v63 = vunpack.c.l.bf16 %v47
  %v64 = vunpack.c.l.bf16 %v48
  %v65 = vunpack.c.l.bf16 %v49
  %v66 = vunpack.c.l.bf16 %v50
  %v67 = vunpack.c.l.bf16 %v51
  %v68 = vunpack.c.l.bf16 %v52
  %v69 = vunpack.c.l.bf16 %v53
  %v70 = vunpack.c.l.bf16 %v54
  %v71 = vunpack.c.l.bf16 %v55
  %v72 = vunpack.c.l.bf16 %v56
  %v73 = vunpack.c.l.bf16 %v57
  %v74 = vunpack.c.l.bf16 %v58
  %v75 = vunpack.c.l.bf16 %v59
  %v76 = vld [vmem:[%s2] sm:$0x1]
  %v78 = vlaneseq
  %v79 = vshrl.u32 %v78, 7
  %v80 = vsub.s32 0, %v79
  %v81 = vrot.slane %v76, %v80
  %v83 = vmul.f32 %v60, %v81
  %v84 = vmul.f32 %v61, %v81
  %v85 = vmul.f32 %v62, %v81
  %v86 = vmul.f32 %v63, %v81
  %v87 = vmul.f32 %v64, %v81
  %v88 = vmul.f32 %v65, %v81
  %v89 = vmul.f32 %v66, %v81
  %v90 = vmul.f32 %v67, %v81
  %v91 = vmul.f32 %v68, %v81
  %v92 = vmul.f32 %v69, %v81
  %v93 = vmul.f32 %v70, %v81
  %v94 = vmul.f32 %v71, %v81
  %v95 = vmul.f32 %v72, %v81
  %v96 = vmul.f32 %v73, %v81
  %v97 = vmul.f32 %v74, %v81
  %v98 = vmul.f32 %v75, %v81
  %v99 = vld [vmem:[%s3] sm:$0x1]
  %v101 = vlaneseq
  %v102 = vshrl.u32 %v101, 7
  %v103 = vsub.s32 0, %v102
  %v104 = vrot.slane %v99, %v103
  %v106 = vadd.f32 %v83, %v104
  %v107 = vadd.f32 %v84, %v104
  %v108 = vadd.f32 %v85, %v104
  %v109 = vadd.f32 %v86, %v104
  %v110 = vadd.f32 %v87, %v104
  %v111 = vadd.f32 %v88, %v104
  %v112 = vadd.f32 %v89, %v104
  %v113 = vadd.f32 %v90, %v104
  %v114 = vadd.f32 %v91, %v104
  %v115 = vadd.f32 %v92, %v104
  %v116 = vadd.f32 %v93, %v104
  %v117 = vadd.f32 %v94, %v104
  %v118 = vadd.f32 %v95, %v104
  %v119 = vadd.f32 %v96, %v104
  %v120 = vadd.f32 %v97, %v104
  %v121 = vadd.f32 %v98, %v104
  %v122 = vmax.f32 %v106, 0.0
  %v123 = vmax.f32 %v107, 0.0
  %v124 = vmax.f32 %v108, 0.0
  %v125 = vmax.f32 %v109, 0.0
  %v126 = vmax.f32 %v110, 0.0
  %v127 = vmax.f32 %v111, 0.0
  %v128 = vmax.f32 %v112, 0.0
  %v129 = vmax.f32 %v113, 0.0
  %v130 = vmax.f32 %v114, 0.0
  %v131 = vmax.f32 %v115, 0.0
  %v132 = vmax.f32 %v116, 0.0
  %v133 = vmax.f32 %v117, 0.0
  %v134 = vmax.f32 %v118, 0.0
  %v135 = vmax.f32 %v119, 0.0
  %v136 = vmax.f32 %v120, 0.0
  %v137 = vmax.f32 %v121, 0.0
  %v138 = vpack.c.bf16 %v123, %v122
  %v139 = vpack.c.bf16 %v125, %v124
  %v140 = vpack.c.bf16 %v127, %v126
  %v141 = vpack.c.bf16 %v129, %v128
  %v142 = vpack.c.bf16 %v131, %v130
  %v143 = vpack.c.bf16 %v133, %v132
  %v144 = vpack.c.bf16 %v135, %v134
  %v145 = vpack.c.bf16 %v137, %v136
  %v146 = vld [vmem:[#allocation2] sm:$0xff]
  %v147 = vld [vmem:[#allocation2 + $0x8] sm:$0xff]
  %v148 = vld [vmem:[#allocation2 + $0x10] sm:$0xff]
  %v149 = vld [vmem:[#allocation2 + $0x18] sm:$0xff]
  %v150 = vld [vmem:[#allocation2 + $0x20] sm:$0xff]
  %v151 = vld [vmem:[#allocation2 + $0x28] sm:$0xff]
  %v152 = vld [vmem:[#allocation2 + $0x30] sm:$0xff]
  %v153 = vld [vmem:[#allocation2 + $0x38] sm:$0xff]
  %v154 = vld [vmem:[#allocation2 + $0x40] sm:$0xff]
  %v155 = vld [vmem:[#allocation2 + $0x48] sm:$0xff]
  %v156 = vld [vmem:[#allocation2 + $0x50] sm:$0xff]
  %v157 = vld [vmem:[#allocation2 + $0x58] sm:$0xff]
  %v158 = vld [vmem:[#allocation2 + $0x60] sm:$0xff]
  %v159 = vld [vmem:[#allocation2 + $0x68] sm:$0xff]
  %v160 = vld [vmem:[#allocation2 + $0x70] sm:$0xff]
  %v161 = vld [vmem:[#allocation2 + $0x78] sm:$0xff]
  %v162 = vld [vmem:[%s1] sm:$0xf]
  %v163 = vld [vmem:[%s1 + $0x4] sm:$0xf]
  %v164 = vld [vmem:[%s1 + $0x8] sm:$0xf]
  %v165 = vld [vmem:[%s1 + $0xc] sm:$0xf]
  %v166 = vld [vmem:[%s1 + $0x10] sm:$0xf]
  %v167 = vld [vmem:[%s1 + $0x14] sm:$0xf]
  %v168 = vld [vmem:[%s1 + $0x18] sm:$0xf]
  %v169 = vld [vmem:[%s1 + $0x1c] sm:$0xf]
  %v170 = vld [vmem:[%s1 + $0x20] sm:$0xf]
  %v171 = vld [vmem:[%s1 + $0x24] sm:$0xf]
  %v172 = vld [vmem:[%s1 + $0x28] sm:$0xf]
  %v173 = vld [vmem:[%s1 + $0x2c] sm:$0xf]
  %v174 = vld [vmem:[%s1 + $0x30] sm:$0xf]
  %v175 = vld [vmem:[%s1 + $0x34] sm:$0xf]
  %v176 = vld [vmem:[%s1 + $0x38] sm:$0xf]
  %v177 = vld [vmem:[%s1 + $0x3c] sm:$0xf]
  %v194 = vunpack.c.l.b16 %v162
  %v195 = vunpack.c.l.b16 %v163
  %v196 = vunpack.c.l.b16 %v164
  %v197 = vunpack.c.l.b16 %v165
  %v198 = vunpack.c.l.b16 %v166
  %v199 = vunpack.c.l.b16 %v167
  %v200 = vunpack.c.l.b16 %v168
  %v201 = vunpack.c.l.b16 %v169
  %v202 = vunpack.c.l.b16 %v170
  %v203 = vunpack.c.l.b16 %v171
  %v204 = vunpack.c.l.b16 %v172
  %v205 = vunpack.c.l.b16 %v173
  %v206 = vunpack.c.l.b16 %v174
  %v207 = vunpack.c.l.b16 %v175
  %v208 = vunpack.c.l.b16 %v176
  %v209 = vunpack.c.l.b16 %v177
  %v210 = vpack.c.b16 %v195, %v194
  %v211 = vpack.c.b16 %v197, %v196
  %v212 = vpack.c.b16 %v199, %v198
  %v213 = vpack.c.b16 %v201, %v200
  %v214 = vpack.c.b16 %v203, %v202
  %v215 = vpack.c.b16 %v205, %v204
  %v216 = vpack.c.b16 %v207, %v206
  %v217 = vpack.c.b16 %v209, %v208
  %226 = vmatprep.subr.bf16.mxu0 0
  %227 = vmatpush1.bf16.msra.mxu0 %v210
  %228 = vmatprep.subr.bf16.mxu0 0
  %229 = vmatpush1.bf16.msra.mxu0 %v211
  %230 = vmatprep.subr.bf16.mxu0 0
  %231 = vmatpush1.bf16.msra.mxu0 %v212
  %232 = vmatprep.subr.bf16.mxu0 0
  %233 = vmatpush1.bf16.msra.mxu0 %v213
  %234 = vmatprep.subr.bf16.mxu0 0
  %235 = vmatpush1.bf16.msra.mxu0 %v214
  %236 = vmatprep.subr.bf16.mxu0 0
  %237 = vmatpush1.bf16.msra.mxu0 %v215
  %238 = vmatprep.subr.bf16.mxu0 0
  %239 = vmatpush1.bf16.msra.mxu0 %v216
  %240 = vmatprep.subr.bf16.mxu0 0
  %241 = vmatpush1.bf16.msra.mxu0 %v217
  %242 = vmatprep.subr.bf16.mxu0 0
  %243 = vmatpush1.bf16.msra.mxu0 0
  %244 = vmatprep.subr.bf16.mxu0 0
  %245 = vmatpush1.bf16.msra.mxu0 0
  %246 = vmatprep.subr.bf16.mxu0 0
  %247 = vmatpush1.bf16.msra.mxu0 0
  %248 = vmatprep.subr.bf16.mxu0 0
  %249 = vmatpush1.bf16.msra.mxu0 0
  %250 = vmatprep.subr.bf16.mxu0 0
  %251 = vmatpush1.bf16.msra.mxu0 0
  %252 = vmatprep.subr.bf16.mxu0 0
  %253 = vmatpush1.bf16.msra.mxu0 0
  %254 = vmatprep.subr.bf16.mxu0 0
  %255 = vmatpush1.bf16.msra.mxu0 0
  %256 = vmatprep.subr.bf16.mxu0 0
  %257 = vmatpush1.bf16.msra.mxu0 0
  %258 = vmatprep.mubr.bf16.mxu0 0
  %259 = vmatmul.mubr.bf16.gmra.mrb[0].mxu0 %v138
  %v260 = vpop.f32.mrb[0].mxu0
  %v261 = vadd.f32 0.0, %v260
  %v262 = vpop.f32.mrb[0].mxu0
  %v263 = vpop.f32.mrb[0].mxu0
  %v264 = vadd.f32 0.0, %v263
  %v265 = vpop.f32.mrb[0].mxu0
  %266 = vmatprep.mubr.bf16.mxu0 0
  %267 = vmatmul.mubr.bf16.gmra.mrb[0].mxu0 %v139
  %v268 = vpop.f32.mrb[0].mxu0
  %v269 = vadd.f32 0.0, %v268
  %v270 = vpop.f32.mrb[0].mxu0
  %v271 = vpop.f32.mrb[0].mxu0
  %v272 = vadd.f32 0.0, %v271
  %v273 = vpop.f32.mrb[0].mxu0
  %274 = vmatprep.mubr.bf16.mxu0 0
  %275 = vmatmul.mubr.bf16.gmra.mrb[0].mxu0 %v140
  %v276 = vpop.f32.mrb[0].mxu0
  %v277 = vadd.f32 0.0, %v276
  %v278 = vpop.f32.mrb[0].mxu0
  %v279 = vpop.f32.mrb[0].mxu0
  %v280 = vadd.f32 0.0, %v279
  %v281 = vpop.f32.mrb[0].mxu0
  %282 = vmatprep.mubr.bf16.mxu0 0
  %283 = vmatmul.mubr.bf16.gmra.mrb[0].mxu0 %v141
  %v284 = vpop.f32.mrb[0].mxu0
  %v285 = vadd.f32 0.0, %v284
  %v286 = vpop.f32.mrb[0].mxu0
  %v287 = vpop.f32.mrb[0].mxu0
  %v288 = vadd.f32 0.0, %v287
  %v289 = vpop.f32.mrb[0].mxu0
  %290 = vmatprep.mubr.bf16.mxu0 0
  %291 = vmatmul.mubr.bf16.gmra.mrb[0].mxu0 %v142
  %v292 = vpop.f32.mrb[0].mxu0
  %v293 = vadd.f32 0.0, %v292
  %v294 = vpop.f32.mrb[0].mxu0
  %v295 = vpop.f32.mrb[0].mxu0
  %v296 = vadd.f32 0.0, %v295
  %v297 = vpop.f32.mrb[0].mxu0
  %298 = vmatprep.mubr.bf16.mxu0 0
  %299 = vmatmul.mubr.bf16.gmra.mrb[0].mxu0 %v143
  %v300 = vpop.f32.mrb[0].mxu0
  %v301 = vadd.f32 0.0, %v300
  %v302 = vpop.f32.mrb[0].mxu0
  %v303 = vpop.f32.mrb[0].mxu0
  %v304 = vadd.f32 0.0, %v303
  %v305 = vpop.f32.mrb[0].mxu0
  %306 = vmatprep.mubr.bf16.mxu0 0
  %307 = vmatmul.mubr.bf16.gmra.mrb[0].mxu0 %v144
  %v308 = vpop.f32.mrb[0].mxu0
  %v309 = vadd.f32 0.0, %v308
  %v310 = vpop.f32.mrb[0].mxu0
  %v311 = vpop.f32.mrb[0].mxu0
  %v312 = vadd.f32 0.0, %v311
  %v313 = vpop.f32.mrb[0].mxu0
  %314 = vmatprep.mubr.bf16.mxu0 0
  %315 = vmatmul.mubr.bf16.gmra.mrb[0].mxu0 %v145
  %v316 = vpop.f32.mrb[0].mxu0
  %v317 = vadd.f32 0.0, %v316
  %v318 = vpop.f32.mrb[0].mxu0
  %v319 = vpop.f32.mrb[0].mxu0
  %v320 = vadd.f32 0.0, %v319
  %v321 = vpop.f32.mrb[0].mxu0
  %322 = vdwg.mxu0
  %v323 = vadd.f32 %v146, %v261
  %v324 = vadd.f32 %v147, %v264
  %v325 = vadd.f32 %v148, %v269
  %v326 = vadd.f32 %v149, %v272
  %v327 = vadd.f32 %v150, %v277
  %v328 = vadd.f32 %v151, %v280
  %v329 = vadd.f32 %v152, %v285
  %v330 = vadd.f32 %v153, %v288
  %v331 = vadd.f32 %v154, %v293
  %v332 = vadd.f32 %v155, %v296
  %v333 = vadd.f32 %v156, %v301
  %v334 = vadd.f32 %v157, %v304
  %v335 = vadd.f32 %v158, %v309
  %v336 = vadd.f32 %v159, %v312
  %v337 = vadd.f32 %v160, %v317
  %v338 = vadd.f32 %v161, %v320
  %339 = vst [vmem:[#allocation2] sm:$0xff] %v323
  %340 = vst [vmem:[#allocation2 + $0x8] sm:$0xff] %v324
  %341 = vst [vmem:[#allocation2 + $0x10] sm:$0xff] %v325
  %342 = vst [vmem:[#allocation2 + $0x18] sm:$0xff] %v326
  %343 = vst [vmem:[#allocation2 + $0x20] sm:$0xff] %v327
  %344 = vst [vmem:[#allocation2 + $0x28] sm:$0xff] %v328
  %345 = vst [vmem:[#allocation2 + $0x30] sm:$0xff] %v329
  %346 = vst [vmem:[#allocation2 + $0x38] sm:$0xff] %v330
  %347 = vst [vmem:[#allocation2 + $0x40] sm:$0xff] %v331
  %348 = vst [vmem:[#allocation2 + $0x48] sm:$0xff] %v332
  %349 = vst [vmem:[#allocation2 + $0x50] sm:$0xff] %v333
  %350 = vst [vmem:[#allocation2 + $0x58] sm:$0xff] %v334
  %351 = vst [vmem:[#allocation2 + $0x60] sm:$0xff] %v335
  %352 = vst [vmem:[#allocation2 + $0x68] sm:$0xff] %v336
  %353 = vst [vmem:[#allocation2 + $0x70] sm:$0xff] %v337
  %354 = vst [vmem:[#allocation2 + $0x78] sm:$0xff] %v338
  // Predicated region
  $region30: #{densenet_forward.14} parent=0 // pred_check
    %p355 = pneg %p24
  $region31: #{densenet_forward.14} parent=0 // pred_check_branch
    %357 = sbr.rel (%p355) target = $region33
  $region32: #{densenet_forward.14} parent=0 // pred_region
    %v358 = vld [vmem:[#allocation2] sm:$0xff]
    %v359 = vld [vmem:[#allocation2 + $0x8] sm:$0xff]
    %v360 = vld [vmem:[#allocation2 + $0x10] sm:$0xff]
    %v361 = vld [vmem:[#allocation2 + $0x18] sm:$0xff]
    %v362 = vld [vmem:[#allocation2 + $0x20] sm:$0xff]
    %v363 = vld [vmem:[#allocation2 + $0x28] sm:$0xff]
    %v364 = vld [vmem:[#allocation2 + $0x30] sm:$0xff]
    %v365 = vld [vmem:[#allocation2 + $0x38] sm:$0xff]
    %v366 = vld [vmem:[#allocation2 + $0x40] sm:$0xff]
    %v367 = vld [vmem:[#allocation2 + $0x48] sm:$0xff]
    %v368 = vld [vmem:[#allocation2 + $0x50] sm:$0xff]
    %v369 = vld [vmem:[#allocation2 + $0x58] sm:$0xff]
    %v370 = vld [vmem:[#allocation2 + $0x60] sm:$0xff]
    %v371 = vld [vmem:[#allocation2 + $0x68] sm:$0xff]
    %v372 = vld [vmem:[#allocation2 + $0x70] sm:$0xff]
    %v373 = vld [vmem:[#allocation2 + $0x78] sm:$0xff]
    %v374 = vld [vmem:[%s4] sm:$0x1]
    %v376 = vlaneseq
    %v377 = vshrl.u32 %v376, 7
    %v378 = vsub.s32 0, %v377
    %v379 = vrot.slane %v374, %v378
    %v381 = vmul.f32 %v358, %v379
    %v382 = vmul.f32 %v359, %v379
    %v383 = vmul.f32 %v360, %v379
    %v384 = vmul.f32 %v361, %v379
    %v385 = vmul.f32 %v362, %v379
    %v386 = vmul.f32 %v363, %v379
    %v387 = vmul.f32 %v364, %v379
    %v388 = vmul.f32 %v365, %v379
    %v389 = vmul.f32 %v366, %v379
    %v390 = vmul.f32 %v367, %v379
    %v391 = vmul.f32 %v368, %v379
    %v392 = vmul.f32 %v369, %v379
    %v393 = vmul.f32 %v370, %v379
    %v394 = vmul.f32 %v371, %v379
    %v395 = vmul.f32 %v372, %v379
    %v396 = vmul.f32 %v373, %v379
    %v397 = vld [vmem:[%s5] sm:$0x1]
    %v399 = vlaneseq
    %v400 = vshrl.u32 %v399, 7
    %v401 = vsub.s32 0, %v400
    %v402 = vrot.slane %v397, %v401
    %v404 = vadd.f32 %v381, %v402
    %v405 = vadd.f32 %v382, %v402
    %v406 = vadd.f32 %v383, %v402
    %v407 = vadd.f32 %v384, %v402
    %v408 = vadd.f32 %v385, %v402
    %v409 = vadd.f32 %v386, %v402
    %v410 = vadd.f32 %v387, %v402
    %v411 = vadd.f32 %v388, %v402
    %v412 = vadd.f32 %v389, %v402
    %v413 = vadd.f32 %v390, %v402
    %v414 = vadd.f32 %v391, %v402
    %v415 = vadd.f32 %v392, %v402
    %v416 = vadd.f32 %v393, %v402
    %v417 = vadd.f32 %v394, %v402
    %v418 = vadd.f32 %v395, %v402
    %v419 = vadd.f32 %v396, %v402
    %v420 = vmax.f32 %v404, 0.0
    %v421 = vmax.f32 %v405, 0.0
    %v422 = vmax.f32 %v406, 0.0
    %v423 = vmax.f32 %v407, 0.0
    %v424 = vmax.f32 %v408, 0.0
    %v425 = vmax.f32 %v409, 0.0
    %v426 = vmax.f32 %v410, 0.0
    %v427 = vmax.f32 %v411, 0.0
    %v428 = vmax.f32 %v412, 0.0
    %v429 = vmax.f32 %v413, 0.0
    %v430 = vmax.f32 %v414, 0.0
    %v431 = vmax.f32 %v415, 0.0
    %v432 = vmax.f32 %v416, 0.0
    %v433 = vmax.f32 %v417, 0.0
    %v434 = vmax.f32 %v418, 0.0
    %v435 = vmax.f32 %v419, 0.0
    %v436 = vpack.c.bf16 %v421, %v420
    %v437 = vpack.c.bf16 %v423, %v422
    %v438 = vpack.c.bf16 %v425, %v424
    %v439 = vpack.c.bf16 %v427, %v426
    %v440 = vpack.c.bf16 %v429, %v428
    %v441 = vpack.c.bf16 %v431, %v430
    %v442 = vpack.c.bf16 %v433, %v432
    %v443 = vpack.c.bf16 %v435, %v434
    %v452 = vunpack.c.l.b16 %v436
    %v453 = vunpack.c.h.b16 %v436
    %v454 = vunpack.c.l.b16 %v437
    %v455 = vunpack.c.h.b16 %v437
    %v456 = vunpack.c.l.b16 %v438
    %v457 = vunpack.c.h.b16 %v438
    %v458 = vunpack.c.l.b16 %v439
    %v459 = vunpack.c.h.b16 %v439
    %v460 = vunpack.c.l.b16 %v440
    %v461 = vunpack.c.h.b16 %v440
    %v462 = vunpack.c.l.b16 %v441
    %v463 = vunpack.c.h.b16 %v441
    %v464 = vunpack.c.l.b16 %v442
    %v465 = vunpack.c.h.b16 %v442
    %v466 = vunpack.c.l.b16 %v443
    %v467 = vunpack.c.h.b16 %v443
    %v468 = vpack.c.b16 %v452, %v452
    %v469 = vpack.c.b16 %v453, %v453
    %v470 = vpack.c.b16 %v454, %v454
    %v471 = vpack.c.b16 %v455, %v455
    %v472 = vpack.c.b16 %v456, %v456
    %v473 = vpack.c.b16 %v457, %v457
    %v474 = vpack.c.b16 %v458, %v458
    %v475 = vpack.c.b16 %v459, %v459
    %v476 = vpack.c.b16 %v460, %v460
    %v477 = vpack.c.b16 %v461, %v461
    %v478 = vpack.c.b16 %v462, %v462
    %v479 = vpack.c.b16 %v463, %v463
    %v480 = vpack.c.b16 %v464, %v464
    %v481 = vpack.c.b16 %v465, %v465
    %v482 = vpack.c.b16 %v466, %v466
    %v483 = vpack.c.b16 %v467, %v467
    %500 = vst [vmem:[%s6] sm:$0xf] %v468
    %501 = vst [vmem:[%s6 + $0x4] sm:$0xf] %v469
    %502 = vst [vmem:[%s6 + $0x8] sm:$0xf] %v470
    %503 = vst [vmem:[%s6 + $0xc] sm:$0xf] %v471
    %504 = vst [vmem:[%s6 + $0x10] sm:$0xf] %v472
    %505 = vst [vmem:[%s6 + $0x14] sm:$0xf] %v473
    %506 = vst [vmem:[%s6 + $0x18] sm:$0xf] %v474
    %507 = vst [vmem:[%s6 + $0x1c] sm:$0xf] %v475
    %508 = vst [vmem:[%s6 + $0x20] sm:$0xf] %v476
    %509 = vst [vmem:[%s6 + $0x24] sm:$0xf] %v477
    %510 = vst [vmem:[%s6 + $0x28] sm:$0xf] %v478
    %511 = vst [vmem:[%s6 + $0x2c] sm:$0xf] %v479
    %512 = vst [vmem:[%s6 + $0x30] sm:$0xf] %v480
    %513 = vst [vmem:[%s6 + $0x34] sm:$0xf] %v481
    %514 = vst [vmem:[%s6 + $0x38] sm:$0xf] %v482
    %515 = vst [vmem:[%s6 + $0x3c] sm:$0xf] %v483
  $region33: #{densenet_forward.14} parent=0 // pred_fallthru
    _
  // Predicated region
  $region34: #{densenet_forward.14} parent=0 // pred_check
    _
  $region35: #{densenet_forward.14} parent=0 // pred_check_branch
    %517 = sbr.rel (0) target = $region37
  $region36: #{densenet_forward.14} parent=0 // pred_region
    _
  $region37: #{densenet_forward.14} parent=0 // pred_fallthru
    _
  // Predicated region
  $region38: #{densenet_forward.14} parent=0 // pred_check
    _
  $region39: #{densenet_forward.14} parent=0 // pred_check_branch
    %519 = sbr.rel (0) target = $region41
  $region40: #{densenet_forward.14} parent=0 // pred_region
    _
  $region41: #{densenet_forward.14} parent=0 // pred_fallthru
    _

// kernel: densenet_forward.15
$region0: #{densenet_forward.15}
  #allocation0 [shape = 'u32[]', space=smem, size = 0x4, offset = 0x4, fixed_abs, tag = 'smem constant byte address 0x4 - core index']
  #allocation1 [shape = 'u32[144,128]{1,0:T(1,128)}', space=vmem, size = 0x12000, scoped, tag = 'internal scratch']
  #allocation2 [shape = 'bf16[42,128]{1,0:T(8,128)(2,1)}', space=vmem, size = 0x3000, scoped, tag = 'scratch operand']
  #allocation3 [shape = 'f32[24,32]{1,0:T(8,128)}', space=vmem, size = 0x3000, scoped, tag = 'scratch operand']
  %s0 = inlined_call_operand.vmem [shape: bf16[2,4,4,128], index: 0, kind: input, shape index: {}]
  %s1 = inlined_call_operand.vmem [shape: bf16[2,4,4,128], index: 1, kind: input, shape index: {}]
  %s2 = inlined_call_operand.vmem [shape: bf16[9,128,32], index: 2, kind: input, shape index: {}]
  %s3 = inlined_call_operand.vmem [shape: bf16[2,4,4,128], index: 3, kind: output, shape index: {}]
  %s4 = sld [smem:[#allocation0]]
  $region45: #{densenet_forward.15} parent=0
    _
  %s6 = ssub.s32 1, %s4
  %s7 = scalar_select 0, %s6, %s4
  loop: start=0, step=1, limit=4
  $region2: #{densenet_forward.15} parent=0 // loop_pre_header
    _
  $region3: #{densenet_forward.15} parent=0 // loop_header
    %s9 = sphi 0, %s13
    %p10 = scmp.ge.s32.totalorder %s9, 4
    %s19 = sphi 0, %s21
    %s22 = sphi 0, %s19
    %s23 = sphi 0, %s22
    %s39 = sphi 0, %s23
    %s45 = sphi 0, %s47
    %s48 = sphi 0, %s45
    %s49 = sphi 0, %s48
    %s65 = sphi 0, %s49
    %s69 = sphi 0, %s69
    %s71 = sphi 0, %s69
    %s72 = sphi 0, %s71
    %s86 = sphi 0, %s72
    %s92 = sphi 0, %s94
    %s95 = sphi 0, %s92
    %s96 = sphi 0, %s95
    %s112 = sphi 0, %s96
  $region4: #{densenet_forward.15} parent=0 // loop_header_branch
    %12 = sbr.rel (%p10) target = $region8
  $region5: #{densenet_forward.15} parent=0 // loop_body
    %s14 = ssub.s32 %s9, 1
    %s15 = ssub.s32 %s9, 2
    %s16 = sadd.s32 %s9, 1
    %s17 = ssub.s32 %s9, %s16
    %p18 = scmp.eq.s32.totalorder %s17, 0
    %s20 = sadd.s32 %s19, 1
    %s21 = scalar_select %p18, %s19, %s20
    %p24 = pneg %p18
    %p25 = scmp.eq.s32.totalorder %s9, 1
    %p26 = por %p24, %p25
    %p27 = scmp.ne.s32.totalorder %s19, %s22
    %p28 = scmp.eq.s32.totalorder %s9, 0
    %p29 = por %p27, %p28
    %p30 = scmp.ne.s32.totalorder %s19, %s22
    %p31 = scmp.eq.s32.totalorder %s14, 1
    %p32 = por %p30, %p31
    %p33 = scmp.ne.s32.totalorder %s22, %s23
    %p34 = scmp.eq.s32.totalorder %s14, 0
    %p35 = por %p33, %p34
    %p36 = scmp.ne.s32.totalorder %s22, %s23
    %p37 = scmp.eq.s32.totalorder %s15, 1
    %p38 = por %p36, %p37
    %p40 = scmp.ne.s32.totalorder %s23, %s39
    %p41 = scmp.eq.s32.totalorder %s15, 0
    %p42 = por %p40, %p41
    %s43 = ssub.s32 %s9, %s16
    %p44 = scmp.eq.s32.totalorder %s43, 0
    %s46 = sadd.s32 %s45, 1
    %s47 = scalar_select %p44, %s45, %s46
    %p50 = pneg %p44
    %p51 = scmp.eq.s32.totalorder %s9, 1
    %p52 = por %p50, %p51
    %p53 = scmp.ne.s32.totalorder %s45, %s48
    %p54 = scmp.eq.s32.totalorder %s9, 0
    %p55 = por %p53, %p54
    %p56 = scmp.ne.s32.totalorder %s45, %s48
    %p57 = scmp.eq.s32.totalorder %s14, 1
    %p58 = por %p56, %p57
    %p59 = scmp.ne.s32.totalorder %s48, %s49
    %p60 = scmp.eq.s32.totalorder %s14, 0
    %p61 = por %p59, %p60
    %p62 = scmp.ne.s32.totalorder %s48, %s49
    %p63 = scmp.eq.s32.totalorder %s15, 1
    %p64 = por %p62, %p63
    %p66 = scmp.ne.s32.totalorder %s49, %s65
    %p67 = scmp.eq.s32.totalorder %s15, 0
    %p68 = por %p66, %p67
    %s70 = sadd.s32 %s69, 1
    %p73 = scmp.eq.s32.totalorder %s9, 1
    %p74 = scmp.ne.s32.totalorder %s69, %s71
    %p75 = scmp.eq.s32.totalorder %s9, 0
    %p76 = por %p74, %p75
    %p77 = scmp.ne.s32.totalorder %s69, %s71
    %p78 = scmp.eq.s32.totalorder %s14, 1
    %p79 = por %p77, %p78
    %p80 = scmp.ne.s32.totalorder %s71, %s72
    %p81 = scmp.eq.s32.totalorder %s14, 0
    %p82 = por %p80, %p81
    %p83 = scmp.ne.s32.totalorder %s71, %s72
    %p84 = scmp.eq.s32.totalorder %s15, 1
    %p85 = por %p83, %p84
    %p87 = scmp.ne.s32.totalorder %s72, %s86
    %p88 = scmp.eq.s32.totalorder %s15, 0
    %p89 = por %p87, %p88
    %s90 = ssub.s32 %s9, %s16
    %p91 = scmp.eq.s32.totalorder %s90, 0
    %s93 = sadd.s32 %s92, 1
    %s94 = scalar_select %p91, %s92, %s93
    %p97 = pneg %p91
    %p98 = scmp.eq.s32.totalorder %s9, 1
    %p99 = por %p97, %p98
    %p100 = scmp.ne.s32.totalorder %s92, %s95
    %p101 = scmp.eq.s32.totalorder %s9, 0
    %p102 = por %p100, %p101
    %p103 = scmp.ne.s32.totalorder %s92, %s95
    %p104 = scmp.eq.s32.totalorder %s14, 1
    %p105 = por %p103, %p104
    %p106 = scmp.ne.s32.totalorder %s95, %s96
    %p107 = scmp.eq.s32.totalorder %s14, 0
    %p108 = por %p106, %p107
    %p109 = scmp.ne.s32.totalorder %s95, %s96
    %p110 = scmp.eq.s32.totalorder %s15, 1
    %p111 = por %p109, %p110
    %p113 = scmp.ne.s32.totalorder %s96, %s112
    %p114 = scmp.eq.s32.totalorder %s15, 0
    %p115 = por %p113, %p114
    %p116 = scmp.le.s32.totalorder 1, %s9
    %p117 = scmp.lt.s32.totalorder %s9, 3
    %p118 = pnand %p116, %p117
    %p119 = pneg %p118
    // Predicated region
    $region9: #{densenet_forward.15} parent=5 // pred_check
      _
    $region10: #{densenet_forward.15} parent=5 // pred_check_branch
      %121 = sbr.rel (%p118) target = $region12
    $region11: #{densenet_forward.15} parent=5 // pred_region
      %s122 = ssub.s32 %s9, 1
      // Predicated region
      $region13: #{densenet_forward.15} parent=11 // pred_check
        %p123 = pneg %p82
      $region14: #{densenet_forward.15} parent=11 // pred_check_branch
        %125 = sbr.rel (%p123) target = $region16
      $region15: #{densenet_forward.15} parent=11 // pred_region
        _
      $region16: #{densenet_forward.15} parent=11 // pred_fallthru
        _
    $region12: #{densenet_forward.15} parent=5 // pred_fallthru
      _
    %p126 = scmp.lt.s32.totalorder %s9, 2
    // Predicated region
    $region17: #{densenet_forward.15} parent=5 // pred_check
      %p127 = pneg %p126
    $region18: #{densenet_forward.15} parent=5 // pred_check_branch
      %129 = sbr.rel (%p127) target = $region20
    $region19: #{densenet_forward.15} parent=5 // pred_region
      // Predicated region
      $region21: #{densenet_forward.15} parent=19 // pred_check
        %p130 = pneg %p29
      $region22: #{densenet_forward.15} parent=19 // pred_check_branch
        %132 = sbr.rel (%p130) target = $region24
      $region23: #{densenet_forward.15} parent=19 // pred_region
        %p133 = scmp.lt.s32.totalorder %s9, 1
        %s134 = scalar_select %p133, %s9, 1
        %s135 = smul.addr %s134, 4
        %s136 = smul.addr %s135, 2
        %s137 = scalar_lea.vmem %s0, %s136
      $region24: #{densenet_forward.15} parent=19 // pred_fallthru
        _
      // Predicated region
      $region25: #{densenet_forward.15} parent=19 // pred_check
        %p138 = pneg %p55
      $region26: #{densenet_forward.15} parent=19 // pred_check_branch
        %140 = sbr.rel (%p138) target = $region28
      $region27: #{densenet_forward.15} parent=19 // pred_region
        %p141 = scmp.lt.s32.totalorder %s9, 1
        %s142 = scalar_select %p141, %s9, 1
        %s143 = smul.addr %s142, 4
        %s144 = smul.addr %s143, 2
        %s145 = scalar_lea.vmem %s1, %s144
      $region28: #{densenet_forward.15} parent=19 // pred_fallthru
        _
    $region20: #{densenet_forward.15} parent=5 // pred_fallthru
      _
    %p146 = scmp.le.s32.totalorder 1, %s9
    %p147 = scmp.lt.s32.totalorder %s9, 3
    %p148 = pnand %p146, %p147
    %p149 = pneg %p148
    // Predicated region
    $region29: #{densenet_forward.15} parent=5 // pred_check
      _
    $region30: #{densenet_forward.15} parent=5 // pred_check_branch
      %151 = sbr.rel (%p148) target = $region32
    $region31: #{densenet_forward.15} parent=5 // pred_region
      %s152 = ssub.s32 %s9, 1
      %p153 = scmp.lt.s32.totalorder %s14, 1
      %s154 = scalar_select %p153, %s14, 1
      %s155 = smul.addr %s154, 4
      %s156 = smul.addr %s155, 2
      %s157 = scalar_lea.vmem %s0, %s156
      %p158 = pneg %p35
      %p159 = pneg %p32
      %p160 = scmp.lt.s32.totalorder %s14, 1
      %s161 = scalar_select %p160, %s14, 1
      %s162 = smul.addr %s161, 4
      %s163 = smul.addr %s162, 2
      %s164 = scalar_lea.vmem %s1, %s163
      %p165 = pneg %p61
      %p166 = pneg %p58
      %p167 = pneg %p82
      %p168 = pneg %p79
      %p169 = pneg %p108
      %p170 = pneg %p105
      %p171 = scmp.lt.s32.totalorder %s14, 1
      %s172 = scalar_select %p171, %s14, 1
      %s173 = smul.addr %s172, 4
      %s174 = smul.addr %s173, 2
      %s175 = scalar_lea.vmem %s3, %s174
      %p176 = scmp.lt.s32.totalorder %s14, 1
      %s177 = scalar_select %p176, %s14, 1
      %s178 = smul.addr %s177, 4
      %s179 = smul.addr %s178, 2
      %s180 = scalar_lea.vmem %s0, %s179
      %p181 = scmp.lt.s32.totalorder %s14, 1
      %s182 = scalar_select %p181, %s14, 1
      %s183 = smul.addr %s182, 4
      %s184 = smul.addr %s183, 2
      %s185 = scalar_lea.vmem %s1, %s184
      %p186 = scmp.lt.s32.totalorder %s14, 1
      %s187 = scalar_select %p186, %s14, 1
      %s188 = smul.addr %s187, 4
      %s189 = smul.addr %s188, 2
      %s190 = scalar_lea.vmem %s3, %s189
      %192 = vst [vmem:[#allocation2] sm:$0xf] 0
      %193 = vst [vmem:[#allocation2 + $0x4] sm:$0xf] 0
      %194 = vst [vmem:[#allocation2 + $0x8] sm:$0xf] 0
      %195 = vst [vmem:[#allocation2 + $0xc] sm:$0xf] 0
      %196 = vst [vmem:[#allocation2 + $0x10] sm:$0xf] 0
      %197 = vst [vmem:[#allocation2 + $0x14] sm:$0x1] 0
      %v198 = vld [vmem:[%s180] sm:$0x3]
      %v201 = vunpack.c.l.s4 1983009808
      %v202 = vunpack.c.0.s8 %v201
      %v203 = vlaneseq
      %v204 = vshrl.u32 %v203, 7
      %v205 = vsub.s32 %v202, %v204
      %v206 = vrot.slane %v198, %v205
      %v208 = vshll.u32 %v206, 16
      %v210 = vrot.slane %v208, 5
      %v211 = vshrl.u32 %v206, 16
      %v213 = vrot.slane %v211, 4
      %v214 = vor.u32 %v213, %v210
      %v215 = vrot.slane %v214, 4
      %vm218 = vcmask 1043459
      %vm219 = vsmask.f32 7950
      %vm220 = vmand %vm218, %vm219
      %v221 = vld [vmem:[#allocation2] sm:$0x8]
      %v222 = vsel %vm220, %v210, %v221
      %223 = vst [vmem:[#allocation2] sm:$0x8] %v222
      %vm224 = vcmask 1041408
      %vm225 = vsmask.f32 1280
      %vm226 = vmand %vm224, %vm225
      %v227 = vld [vmem:[#allocation2 + $0x4] sm:$0x3]
      %v228 = vsel %vm226, %v215, %v227
      %229 = vst [vmem:[#allocation2 + $0x4] sm:$0x3] %v228
      %s230 = scalar_lea.vmem %s180, 2
      %v231 = vld [vmem:[%s230] sm:$0x3]
      %v234 = vunpack.c.l.s4 1983009808
      %v235 = vunpack.c.0.s8 %v234
      %v236 = vlaneseq
      %v237 = vshrl.u32 %v236, 7
      %v238 = vsub.s32 %v235, %v237
      %v239 = vrot.slane %v231, %v238
      %v241 = vshrl.u32 %v239, 16
      %v243 = vrot.slane %v241, 5
      %v244 = vshll.u32 %v239, 16
      %v246 = vrot.slane %v244, 6
      %v247 = vor.u32 %v243, %v246
      %v248 = vrot.slane %v243, 4
      %vm251 = vcmask 1043458
      %vm252 = vsmask.f32 7946
      %vm253 = vmand %vm251, %vm252
      %v254 = vld [vmem:[#allocation2 + $0x4] sm:$0xc]
      %v255 = vsel %vm253, %v247, %v254
      %256 = vst [vmem:[#allocation2 + $0x4] sm:$0xc] %v255
      %vm257 = vcmask 1040384
      %vm258 = vsmask.f32 256
      %vm259 = vmand %vm257, %vm258
      %v260 = vld [vmem:[#allocation2 + $0x8] sm:$0x1]
      %v261 = vsel %vm259, %v248, %v260
      %262 = vst [vmem:[#allocation2 + $0x8] sm:$0x1] %v261
      %s263 = scalar_lea.vmem %s180, 4
      %v264 = vld [vmem:[%s263] sm:$0x3]
      %v267 = vunpack.c.l.s4 1983009808
      %v268 = vunpack.c.0.s8 %v267
      %v269 = vlaneseq
      %v270 = vshrl.u32 %v269, 7
      %v271 = vsub.s32 %v268, %v270
      %v272 = vrot.slane %v264, %v271
      %v274 = vshrl.u32 %v272, 16
      %v276 = vrot.slane %v274, 6
      %v277 = vshll.u32 %v272, 16
      %v279 = vrot.slane %v277, 7
      %v280 = vor.u32 %v276, %v279
      %vm282 = vcmask 1043457
      %vm283 = vsmask.f32 3334
      %vm284 = vmand %vm282, %vm283
      %v285 = vld [vmem:[#allocation2 + $0x8] sm:$0xe]
      %v286 = vsel %vm284, %v280, %v285
      %287 = vst [vmem:[#allocation2 + $0x8] sm:$0xe] %v286
      %s288 = scalar_lea.vmem %s180, 6
      %v289 = vld [vmem:[%s288] sm:$0x3]
      %v292 = vunpack.c.l.s4 1983009808
      %v293 = vunpack.c.0.s8 %v292
      %v294 = vlaneseq
      %v295 = vshrl.u32 %v294, 7
      %v296 = vsub.s32 %v293, %v295
      %v297 = vrot.slane %v289, %v296
      %v299 = vshrl.u32 %v297, 16
      %v301 = vrot.slane %v299, 7
      %v302 = vshll.u32 %v297, 16
      %v304 = vor.u32 %v301, %v302
      %vm306 = vcmask 1042432
      %vm307 = vsmask.f32 2306
      %vm308 = vmand %vm306, %vm307
      %v309 = vld [vmem:[#allocation2 + $0xc] sm:$0x7]
      %v310 = vsel %vm308, %v304, %v309
      %311 = vst [vmem:[#allocation2 + $0xc] sm:$0x7] %v310
      %vm312 = vcmask 261120
      %313 = vst.msk [vmem:[#allocation3] sm:$0xff] %vm312, 0.0
      %314 = vst.msk [vmem:[#allocation3 + $0x8] sm:$0xff] %vm312, 0.0
      %315 = vst.msk [vmem:[#allocation3 + $0x10] sm:$0xff] %vm312, 0.0
      %v316 = vld [vmem:[#allocation2] sm:$0xf]
      %v317 = vld [vmem:[#allocation2 + $0x4] sm:$0xf]
      %v318 = vld [vmem:[#allocation2 + $0x8] sm:$0xf]
      %v319 = vld [vmem:[#allocation3] sm:$0xff]
      %v320 = vld [vmem:[#allocation3 + $0x8] sm:$0xff]
      %v321 = vld [vmem:[#allocation3 + $0x10] sm:$0xff]
      %v322 = vld [vmem:[%s2] sm:$0xf]
      %v323 = vld [vmem:[%s2 + $0x4] sm:$0xf]
      %v324 = vld [vmem:[%s2 + $0x8] sm:$0xf]
      %v325 = vld [vmem:[%s2 + $0xc] sm:$0xf]
      %v326 = vld [vmem:[%s2 + $0x10] sm:$0xf]
      %v327 = vld [vmem:[%s2 + $0x14] sm:$0xf]
      %v328 = vld [vmem:[%s2 + $0x18] sm:$0xf]
      %v329 = vld [vmem:[%s2 + $0x1c] sm:$0xf]
      %v330 = vld [vmem:[%s2 + $0x20] sm:$0xf]
      %v331 = vld [vmem:[%s2 + $0x24] sm:$0xf]
      %v332 = vld [vmem:[%s2 + $0x28] sm:$0xf]
      %v333 = vld [vmem:[%s2 + $0x2c] sm:$0xf]
      %v334 = vld [vmem:[%s2 + $0x30] sm:$0xf]
      %v335 = vld [vmem:[%s2 + $0x34] sm:$0xf]
      %v336 = vld [vmem:[%s2 + $0x38] sm:$0xf]
      %v337 = vld [vmem:[%s2 + $0x3c] sm:$0xf]
      %v341 = vunpack.c.l.b16 %v316
      %v342 = vunpack.c.l.b16 %v317
      %v343 = vunpack.c.l.b16 %v318
      %v344 = vpack.c.b16 %v342, %v341
      %v345 = vpack.c.b16 %v343, %v343
      %v364 = vunpack.c.l.b16 %v322
      %v365 = vunpack.c.l.b16 %v323
      %v366 = vunpack.c.l.b16 %v324
      %v367 = vunpack.c.l.b16 %v325
      %v368 = vunpack.c.l.b16 %v326
      %v369 = vunpack.c.l.b16 %v327
      %v370 = vunpack.c.l.b16 %v328
      %v371 = vunpack.c.l.b16 %v329
      %v372 = vunpack.c.l.b16 %v330
      %v373 = vunpack.c.l.b16 %v331
      %v374 = vunpack.c.l.b16 %v332
      %v375 = vunpack.c.l.b16 %v333
      %v376 = vunpack.c.l.b16 %v334
      %v377 = vunpack.c.l.b16 %v335
      %v378 = vunpack.c.l.b16 %v336
      %v379 = vunpack.c.l.b16 %v337
      %v380 = vpack.c.b16 %v365, %v364
      %v381 = vpack.c.b16 %v367, %v366
      %v382 = vpack.c.b16 %v369, %v368
      %v383 = vpack.c.b16 %v371, %v370
      %v384 = vpack.c.b16 %v373, %v372
      %v385 = vpack.c.b16 %v375, %v374
      %v386 = vpack.c.b16 %v377, %v376
      %v387 = vpack.c.b16 %v379, %v378
      %396 = vmatprep.subr.bf16.mxu0 0
      %397 = vmatpush1.bf16.msra.mxu0 %v380
      %398 = vmatprep.subr.bf16.mxu0 0
      %399 = vmatpush1.bf16.msra.mxu0 %v381
      %400 = vmatprep.subr.bf16.mxu0 0
      %401 = vmatpush1.bf16.msra.mxu0 %v382
      %402 = vmatprep.subr.bf16.mxu0 0
      %403 = vmatpush1.bf16.msra.mxu0 %v383
      %404 = vmatprep.subr.bf16.mxu0 0
      %405 = vmatpush1.bf16.msra.mxu0 %v384
      %406 = vmatprep.subr.bf16.mxu0 0
      %407 = vmatpush1.bf16.msra.mxu0 %v385
      %408 = vmatprep.subr.bf16.mxu0 0
      %409 = vmatpush1.bf16.msra.mxu0 %v386
      %410 = vmatprep.subr.bf16.mxu0 0
      %411 = vmatpush1.bf16.msra.mxu0 %v387
      %412 = vmatprep.subr.bf16.mxu0 0
      %413 = vmatpush1.bf16.msra.mxu0 0
      %414 = vmatprep.subr.bf16.mxu0 0
      %415 = vmatpush1.bf16.msra.mxu0 0
      %416 = vmatprep.subr.bf16.mxu0 0
      %417 = vmatpush1.bf16.msra.mxu0 0
      %418 = vmatprep.subr.bf16.mxu0 0
      %419 = vmatpush1.bf16.msra.mxu0 0
      %420 = vmatprep.subr.bf16.mxu0 0
      %421 = vmatpush1.bf16.msra.mxu0 0
      %422 = vmatprep.subr.bf16.mxu0 0
      %423 = vmatpush1.bf16.msra.mxu0 0
      %424 = vmatprep.subr.bf16.mxu0 0
      %425 = vmatpush1.bf16.msra.mxu0 0
      %426 = vmatprep.subr.bf16.mxu0 0
      %427 = vmatpush1.bf16.msra.mxu0 0
      %428 = vmatprep.mubr.bf16.mxu0 0
      %429 = vmatmul.mubr.bf16.gmra.mrb[0].mxu0 %v344
      %v430 = vpop.f32.mrb[0].mxu0
      %v431 = vadd.f32 0.0, %v430
      %v432 = vpop.f32.mrb[0].mxu0
      %v433 = vpop.f32.mrb[0].mxu0
      %v434 = vadd.f32 0.0, %v433
      %v435 = vpop.f32.mrb[0].mxu0
      %436 = vmatprep.mubr.bf16.mxu0 0
      %437 = vmatmul.mubr.bf16.gmra.mrb[0].mxu0 %v345
      %v438 = vpop.f32.mrb[0].mxu0
      %v439 = vadd.f32 0.0, %v438
      %v440 = vpop.f32.mrb[0].mxu0
      %v441 = vpop.f32.mrb[0].mxu0
      %v442 = vpop.f32.mrb[0].mxu0
      %443 = vdwg.mxu0
      %v444 = vadd.f32 %v319, %v431
      %v445 = vadd.f32 %v320, %v434
      %v446 = vadd.f32 %v321, %v439
      %447 = vst.msk [vmem:[#allocation3] sm:$0xff] %vm312, %v444
      %448 = vst.msk [vmem:[#allocation3 + $0x8] sm:$0xff] %vm312, %v445
      %449 = vst.msk [vmem:[#allocation3 + $0x10] sm:$0xff] %vm312, %v446
      %v450 = vld [vmem:[#allocation2] sm:$0xf]
      %v451 = vld [vmem:[#allocation2 + $0x4] sm:$0xf]
      %v452 = vld [vmem:[#allocation2 + $0x8] sm:$0xf]
      %v453 = vld [vmem:[#allocation2 + $0xc] sm:$0x1]
      %v454 = vld [vmem:[#allocation3] sm:$0xff]
      %v455 = vld [vmem:[#allocation3 + $0x8] sm:$0xff]
      %v456 = vld [vmem:[#allocation3 + $0x10] sm:$0xff]
      %s457 = scalar_lea.vmem %s2, 64
      %v458 = vld [vmem:[%s457] sm:$0xf]
      %v459 = vld [vmem:[%s457 + $0x4] sm:$0xf]
      %v460 = vld [vmem:[%s457 + $0x8] sm:$0xf]
      %v461 = vld [vmem:[%s457 + $0xc] sm:$0xf]
      %v462 = vld [vmem:[%s457 + $0x10] sm:$0xf]
      %v463 = vld [vmem:[%s457 + $0x14] sm:$0xf]
      %v464 = vld [vmem:[%s457 + $0x18] sm:$0xf]
      %v465 = vld [vmem:[%s457 + $0x1c] sm:$0xf]
      %v466 = vld [vmem:[%s457 + $0x20] sm:$0xf]
      %v467 = vld [vmem:[%s457 + $0x24] sm:$0xf]
      %v468 = vld [vmem:[%s457 + $0x28] sm:$0xf]
      %v469 = vld [vmem:[%s457 + $0x2c] sm:$0xf]
      %v470 = vld [vmem:[%s457 + $0x30] sm:$0xf]
      %v471 = vld [vmem:[%s457 + $0x34] sm:$0xf]
      %v472 = vld [vmem:[%s457 + $0x38] sm:$0xf]
      %v473 = vld [vmem:[%s457 + $0x3c] sm:$0xf]
      %v478 = vunpack.c.l.b16 %v450
      %v479 = vunpack.c.l.b16 %v451
      %v480 = vunpack.c.l.b16 %v452
      %v481 = vunpack.c.l.b16 %v453
      %v482 = vpack.c.b16 %v479, %v478
      %v483 = vpack.c.b16 %v481, %v480
      %vm484 = vsmask.f32 7424
      %v486 = vshrl.u32 %v482, 16
      %v488 = vshll.u32 %v482, 16
      %v490 = vrot.slane %v488, 1
      %v491 = vor.u32 %v486, %v490
      %v493 = vshll.u32 %v483, 16
      %v495 = vrot.slane %v493, 1
      %v496 = vsel %vm484, %v491, %v495
      %v497 = vshrl.u32 %v483, 16
      %v499 = vor.u32 %v497, %v495
      %v518 = vunpack.c.l.b16 %v458
      %v519 = vunpack.c.l.b16 %v459
      %v520 = vunpack.c.l.b16 %v460
      %v521 = vunpack.c.l.b16 %v461
      %v522 = vunpack.c.l.b16 %v462
      %v523 = vunpack.c.l.b16 %v463
      %v524 = vunpack.c.l.b16 %v464
      %v525 = vunpack.c.l.b16 %v465
      %v526 = vunpack.c.l.b16 %v466
      %v527 = vunpack.c.l.b16 %v467
      %v528 = vunpack.c.l.b16 %v468
      %v529 = vunpack.c.l.b16 %v469
      %v530 = vunpack.c.l.b16 %v470
      %v531 = vunpack.c.l.b16 %v471
      %v532 = vunpack.c.l.b16 %v472
      %v533 = vunpack.c.l.b16 %v473
      %v534 = vpack.c.b16 %v519, %v518
      %v535 = vpack.c.b16 %v521, %v520
      %v536 = vpack.c.b16 %v523, %v522
      %v537 = vpack.c.b16 %v525, %v524
      %v538 = vpack.c.b16 %v527, %v526
      %v539 = vpack.c.b16 %v529, %v528
      %v540 = vpack.c.b16 %v531, %v530
      %v541 = vpack.c.b16 %v533, %v532
      %550 = vmatprep.subr.bf16.mxu0 0
      %551 = vmatpush1.bf16.msra.mxu0 %v534
      %552 = vmatprep.subr.bf16.mxu0 0
      %553 = vmatpush1.bf16.msra.mxu0 %v535
      %554 = vmatprep.subr.bf16.mxu0 0
      %555 = vmatpush1.bf16.msra.mxu0 %v536
      %556 = vmatprep.subr.bf16.mxu0 0
      %557 = vmatpush1.bf16.msra.mxu0 %v537
      %558 = vmatprep.subr.bf16.mxu0 0
      %559 = vmatpush1.bf16.msra.mxu0 %v538
      %560 = vmatprep.subr.bf16.mxu0 0
      %561 = vmatpush1.bf16.msra.mxu0 %v539
      %562 = vmatprep.subr.bf16.mxu0 0
      %563 = vmatpush1.bf16.msra.mxu0 %v540
      %564 = vmatprep.subr.bf16.mxu0 0
      %565 = vmatpush1.bf16.msra.mxu0 %v541
      %566 = vmatprep.subr.bf16.mxu0 0
      %567 = vmatpush1.bf16.msra.mxu0 0
      %568 = vmatprep.subr.bf16.mxu0 0
      %569 = vmatpush1.bf16.msra.mxu0 0
      %570 = vmatprep.subr.bf16.mxu0 0
      %571 = vmatpush1.bf16.msra.mxu0 0
      %572 = vmatprep.subr.bf16.mxu0 0
      %573 = vmatpush1.bf16.msra.mxu0 0
      %574 = vmatprep.subr.bf16.mxu0 0
      %575 = vmatpush1.bf16.msra.mxu0 0
      %576 = vmatprep.subr.bf16.mxu0 0
      %577 = vmatpush1.bf16.msra.mxu0 0
      %578 = vmatprep.subr.bf16.mxu0 0
      %579 = vmatpush1.bf16.msra.mxu0 0
      %580 = vmatprep.subr.bf16.mxu0 0
      %581 = vmatpush1.bf16.msra.mxu0 0
      %582 = vmatprep.mubr.bf16.mxu0 0
      %583 = vmatmul.mubr.bf16.gmra.mrb[0].mxu0 %v496
      %v584 = vpop.f32.mrb[0].mxu0
      %v585 = vadd.f32 0.0, %v584
      %v586 = vpop.f32.mrb[0].mxu0
      %v587 = vpop.f32.mrb[0].mxu0
      %v588 = vadd.f32 0.0, %v587
      %v589 = vpop.f32.mrb[0].mxu0
      %590 = vmatprep.mubr.bf16.mxu0 0
      %591 = vmatmul.mubr.bf16.gmra.mrb[0].mxu0 %v499
      %v592 = vpop.f32.mrb[0].mxu0
      %v593 = vadd.f32 0.0, %v592
      %v594 = vpop.f32.mrb[0].mxu0
      %v595 = vpop.f32.mrb[0].mxu0
      %v596 = vpop.f32.mrb[0].mxu0
      %597 = vdwg.mxu0
      %v598 = vadd.f32 %v454, %v585
      %v599 = vadd.f32 %v455, %v588
      %v600 = vadd.f32 %v456, %v593
      %601 = vst.msk [vmem:[#allocation3] sm:$0xff] %vm312, %v598
      %602 = vst.msk [vmem:[#allocation3 + $0x8] sm:$0xff] %vm312, %v599
      %603 = vst.msk [vmem:[#allocation3 + $0x10] sm:$0xff] %vm312, %v600
      %v604 = vld [vmem:[#allocation2] sm:$0xe]
      %v605 = vld [vmem:[#allocation2 + $0x4] sm:$0xf]
      %v606 = vld [vmem:[#allocation2 + $0x8] sm:$0xf]
      %v607 = vld [vmem:[#allocation2 + $0xc] sm:$0x1]
      %v608 = vld [vmem:[#allocation3] sm:$0xff]
      %v609 = vld [vmem:[#allocation3 + $0x8] sm:$0xff]
      %v610 = vld [vmem:[#allocation3 + $0x10] sm:$0xff]
      %s611 = scalar_lea.vmem %s2, 128
      %v612 = vld [vmem:[%s611] sm:$0xf]
      %v613 = vld [vmem:[%s611 + $0x4] sm:$0xf]
      %v614 = vld [vmem:[%s611 + $0x8] sm:$0xf]
      %v615 = vld [vmem:[%s611 + $0xc] sm:$0xf]
      %v616 = vld [vmem:[%s611 + $0x10] sm:$0xf]
      %v617 = vld [vmem:[%s611 + $0x14] sm:$0xf]
      %v618 = vld [vmem:[%s611 + $0x18] sm:$0xf]
      %v619 = vld [vmem:[%s611 + $0x1c] sm:$0xf]
      %v620 = vld [vmem:[%s611 + $0x20] sm:$0xf]
      %v621 = vld [vmem:[%s611 + $0x24] sm:$0xf]
      %v622 = vld [vmem:[%s611 + $0x28] sm:$0xf]
      %v623 = vld [vmem:[%s611 + $0x2c] sm:$0xf]
      %v624 = vld [vmem:[%s611 + $0x30] sm:$0xf]
      %v625 = vld [vmem:[%s611 + $0x34] sm:$0xf]
      %v626 = vld [vmem:[%s611 + $0x38] sm:$0xf]
      %v627 = vld [vmem:[%s611 + $0x3c] sm:$0xf]
      %v632 = vunpack.c.l.b16 %v604
      %v633 = vunpack.c.l.b16 %v605
      %v634 = vunpack.c.l.b16 %v606
      %v635 = vunpack.c.l.b16 %v607
      %v636 = vpack.c.b16 %v633, %v632
      %v637 = vpack.c.b16 %v635, %v634
      %vm638 = vcmask 1046528
      %v639 = vrot.slane %v636, 1
      %v640 = vrot.slane %v637, 1
      %v641 = vsel %vm638, %v639, %v640
      %v660 = vunpack.c.l.b16 %v612
      %v661 = vunpack.c.l.b16 %v613
      %v662 = vunpack.c.l.b16 %v614
      %v663 = vunpack.c.l.b16 %v615
      %v664 = vunpack.c.l.b16 %v616
      %v665 = vunpack.c.l.b16 %v617
      %v666 = vunpack.c.l.b16 %v618
      %v667 = vunpack.c.l.b16 %v619
      %v668 = vunpack.c.l.b16 %v620
      %v669 = vunpack.c.l.b16 %v621
      %v670 = vunpack.c.l.b16 %v622
      %v671 = vunpack.c.l.b16 %v623
      %v672 = vunpack.c.l.b16 %v624
      %v673 = vunpack.c.l.b16 %v625
      %v674 = vunpack.c.l.b16 %v626
      %v675 = vunpack.c.l.b16 %v627
      %v676 = vpack.c.b16 %v661, %v660
      %v677 = vpack.c.b16 %v663, %v662
      %v678 = vpack.c.b16 %v665, %v664
      %v679 = vpack.c.b16 %v667, %v666
      %v680 = vpack.c.b16 %v669, %v668
      %v681 = vpack.c.b16 %v671, %v670
      %v682 = vpack.c.b16 %v673, %v672
      %v683 = vpack.c.b16 %v675, %v674
      %692 = vmatprep.subr.bf16.mxu0 0
      %693 = vmatpush1.bf16.msra.mxu0 %v676
      %694 = vmatprep.subr.bf16.mxu0 0
      %695 = vmatpush1.bf16.msra.mxu0 %v677
      %696 = vmatprep.subr.bf16.mxu0 0
      %697 = vmatpush1.bf16.msra.mxu0 %v678
      %698 = vmatprep.subr.bf16.mxu0 0
      %699 = vmatpush1.bf16.msra.mxu0 %v679
      %700 = vmatprep.subr.bf16.mxu0 0
      %701 = vmatpush1.bf16.msra.mxu0 %v680
      %702 = vmatprep.subr.bf16.mxu0 0
      %703 = vmatpush1.bf16.msra.mxu0 %v681
      %704 = vmatprep.subr.bf16.mxu0 0
      %705 = vmatpush1.bf16.msra.mxu0 %v682
      %706 = vmatprep.subr.bf16.mxu0 0
      %707 = vmatpush1.bf16.msra.mxu0 %v683
      %708 = vmatprep.subr.bf16.mxu0 0
      %709 = vmatpush1.bf16.msra.mxu0 0
      %710 = vmatprep.subr.bf16.mxu0 0
      %711 = vmatpush1.bf16.msra.mxu0 0
      %712 = vmatprep.subr.bf16.mxu0 0
      %713 = vmatpush1.bf16.msra.mxu0 0
      %714 = vmatprep.subr.bf16.mxu0 0
      %715 = vmatpush1.bf16.msra.mxu0 0
      %716 = vmatprep.subr.bf16.mxu0 0
      %717 = vmatpush1.bf16.msra.mxu0 0
      %718 = vmatprep.subr.bf16.mxu0 0
      %719 = vmatpush1.bf16.msra.mxu0 0
      %720 = vmatprep.subr.bf16.mxu0 0
      %721 = vmatpush1.bf16.msra.mxu0 0
      %722 = vmatprep.subr.bf16.mxu0 0
      %723 = vmatpush1.bf16.msra.mxu0 0
      %724 = vmatprep.mubr.bf16.mxu0 0
      %725 = vmatmul.mubr.bf16.gmra.mrb[0].mxu0 %v641
      %v726 = vpop.f32.mrb[0].mxu0
      %v727 = vadd.f32 0.0, %v726
      %v728 = vpop.f32.mrb[0].mxu0
      %v729 = vpop.f32.mrb[0].mxu0
      %v730 = vadd.f32 0.0, %v729
      %v731 = vpop.f32.mrb[0].mxu0
      %732 = vmatprep.mubr.bf16.mxu0 0
      %733 = vmatmul.mubr.bf16.gmra.mrb[0].mxu0 %v640
      %v734 = vpop.f32.mrb[0].mxu0
      %v735 = vadd.f32 0.0, %v734
      %v736 = vpop.f32.mrb[0].mxu0
      %v737 = vpop.f32.mrb[0].mxu0
      %v738 = vpop.f32.mrb[0].mxu0
      %739 = vdwg.mxu0
      %v740 = vadd.f32 %v608, %v727
      %v741 = vadd.f32 %v609, %v730
      %v742 = vadd.f32 %v610, %v735
      %743 = vst.msk [vmem:[#allocation3] sm:$0xff] %vm312, %v740
      %744 = vst.msk [vmem:[#allocation3 + $0x8] sm:$0xff] %vm312, %v741
      %745 = vst.msk [vmem:[#allocation3 + $0x10] sm:$0xff] %vm312, %v742
      %v746 = vld [vmem:[#allocation2] sm:$0x8]
      %v747 = vld [vmem:[#allocation2 + $0x4] sm:$0xf]
      %v748 = vld [vmem:[#allocation2 + $0x8] sm:$0xf]
      %v749 = vld [vmem:[#allocation2 + $0xc] sm:$0x7]
      %v750 = vld [vmem:[#allocation3] sm:$0xff]
      %v751 = vld [vmem:[#allocation3 + $0x8] sm:$0xff]
      %v752 = vld [vmem:[#allocation3 + $0x10] sm:$0xff]
      %s753 = scalar_lea.vmem %s2, 192
      %v754 = vld [vmem:[%s753] sm:$0xf]
      %v755 = vld [vmem:[%s753 + $0x4] sm:$0xf]
      %v756 = vld [vmem:[%s753 + $0x8] sm:$0xf]
      %v757 = vld [vmem:[%s753 + $0xc] sm:$0xf]
      %v758 = vld [vmem:[%s753 + $0x10] sm:$0xf]
      %v759 = vld [vmem:[%s753 + $0x14] sm:$0xf]
      %v760 = vld [vmem:[%s753 + $0x18] sm:$0xf]
      %v761 = vld [vmem:[%s753 + $0x1c] sm:$0xf]
      %v762 = vld [vmem:[%s753 + $0x20] sm:$0xf]
      %v763 = vld [vmem:[%s753 + $0x24] sm:$0xf]
      %v764 = vld [vmem:[%s753 + $0x28] sm:$0xf]
      %v765 = vld [vmem:[%s753 + $0x2c] sm:$0xf]
      %v766 = vld [vmem:[%s753 + $0x30] sm:$0xf]
      %v767 = vld [vmem:[%s753 + $0x34] sm:$0xf]
      %v768 = vld [vmem:[%s753 + $0x38] sm:$0xf]
      %v769 = vld [vmem:[%s753 + $0x3c] sm:$0xf]
      %v774 = vunpack.c.l.b16 %v746
      %v775 = vunpack.c.l.b16 %v747
      %v776 = vunpack.c.l.b16 %v748
      %v777 = vunpack.c.l.b16 %v749
      %v778 = vpack.c.b16 %v775, %v774
      %v779 = vpack.c.b16 %v777, %v776
      %vm780 = vcmask 1044480
      %v781 = vrot.slane %v778, 3
      %v782 = vrot.slane %v779, 3
      %v783 = vsel %vm780, %v781, %v782
      %v802 = vunpack.c.l.b16 %v754
      %v803 = vunpack.c.l.b16 %v755
      %v804 = vunpack.c.l.b16 %v756
      %v805 = vunpack.c.l.b16 %v757
      %v806 = vunpack.c.l.b16 %v758
      %v807 = vunpack.c.l.b16 %v759
      %v808 = vunpack.c.l.b16 %v760
      %v809 = vunpack.c.l.b16 %v761
      %v810 = vunpack.c.l.b16 %v762
      %v811 = vunpack.c.l.b16 %v763
      %v812 = vunpack.c.l.b16 %v764
      %v813 = vunpack.c.l.b16 %v765
      %v814 = vunpack.c.l.b16 %v766
      %v815 = vunpack.c.l.b16 %v767
      %v816 = vunpack.c.l.b16 %v768
      %v817 = vunpack.c.l.b16 %v769
      %v818 = vpack.c.b16 %v803, %v802
      %v819 = vpack.c.b16 %v805, %v804
      %v820 = vpack.c.b16 %v807, %v806
      %v821 = vpack.c.b16 %v809, %v808
      %v822 = vpack.c.b16 %v811, %v810
      %v823 = vpack.c.b16 %v813, %v812
      %v824 = vpack.c.b16 %v815, %v814
      %v825 = vpack.c.b16 %v817, %v816
      %834 = vmatprep.subr.bf16.mxu0 0
      %835 = vmatpush1.bf16.msra.mxu0 %v818
      %836 = vmatprep.subr.bf16.mxu0 0
      %837 = vmatpush1.bf16.msra.mxu0 %v819
      %838 = vmatprep.subr.bf16.mxu0 0
      %839 = vmatpush1.bf16.msra.mxu0 %v820
      %840 = vmatprep.subr.bf16.mxu0 0
      %841 = vmatpush1.bf16.msra.mxu0 %v821
      %842 = vmatprep.subr.bf16.mxu0 0
      %843 = vmatpush1.bf16.msra.mxu0 %v822
      %844 = vmatprep.subr.bf16.mxu0 0
      %845 = vmatpush1.bf16.msra.mxu0 %v823
      %846 = vmatprep.subr.bf16.mxu0 0
      %847 = vmatpush1.bf16.msra.mxu0 %v824
      %848 = vmatprep.subr.bf16.mxu0 0
      %849 = vmatpush1.bf16.msra.mxu0 %v825
      %850 = vmatprep.subr.bf16.mxu0 0
      %851 = vmatpush1.bf16.msra.mxu0 0
      %852 = vmatprep.subr.bf16.mxu0 0
      %853 = vmatpush1.bf16.msra.mxu0 0
      %854 = vmatprep.subr.bf16.mxu0 0
      %855 = vmatpush1.bf16.msra.mxu0 0
      %856 = vmatprep.subr.bf16.mxu0 0
      %857 = vmatpush1.bf16.msra.mxu0 0
      %858 = vmatprep.subr.bf16.mxu0 0
      %859 = vmatpush1.bf16.msra.mxu0 0
      %860 = vmatprep.subr.bf16.mxu0 0
      %861 = vmatpush1.bf16.msra.mxu0 0
      %862 = vmatprep.subr.bf16.mxu0 0
      %863 = vmatpush1.bf16.msra.mxu0 0
      %864 = vmatprep.subr.bf16.mxu0 0
      %865 = vmatpush1.bf16.msra.mxu0 0
      %866 = vmatprep.mubr.bf16.mxu0 0
      %867 = vmatmul.mubr.bf16.gmra.mrb[0].mxu0 %v783
      %v868 = vpop.f32.mrb[0].mxu0
      %v869 = vadd.f32 0.0, %v868
      %v870 = vpop.f32.mrb[0].mxu0
      %v871 = vpop.f32.mrb[0].mxu0
      %v872 = vadd.f32 0.0, %v871
      %v873 = vpop.f32.mrb[0].mxu0
      %874 = vmatprep.mubr.bf16.mxu0 0
      %875 = vmatmul.mubr.bf16.gmra.mrb[0].mxu0 %v782
      %v876 = vpop.f32.mrb[0].mxu0
      %v877 = vadd.f32 0.0, %v876
      %v878 = vpop.f32.mrb[0].mxu0
      %v879 = vpop.f32.mrb[0].mxu0
      %v880 = vpop.f32.mrb[0].mxu0
      %881 = vdwg.mxu0
      %v882 = vadd.f32 %v750, %v869
      %v883 = vadd.f32 %v751, %v872
      %v884 = vadd.f32 %v752, %v877
      %885 = vst.msk [vmem:[#allocation3] sm:$0xff] %vm312, %v882
      %886 = vst.msk [vmem:[#allocation3 + $0x8] sm:$0xff] %vm312, %v883
      %887 = vst.msk [vmem:[#allocation3 + $0x10] sm:$0xff] %vm312, %v884
      %v888 = vld [vmem:[#allocation2] sm:$0x8]
      %v889 = vld [vmem:[#allocation2 + $0x4] sm:$0xf]
      %v890 = vld [vmem:[#allocation2 + $0x8] sm:$0xf]
      %v891 = vld [vmem:[#allocation2 + $0xc] sm:$0xf]
      %v892 = vld [vmem:[#allocation3] sm:$0xff]
      %v893 = vld [vmem:[#allocation3 + $0x8] sm:$0xff]
      %v894 = vld [vmem:[#allocation3 + $0x10] sm:$0xff]
      %s895 = scalar_lea.vmem %s2, 256
      %v896 = vld [vmem:[%s895] sm:$0xf]
      %v897 = vld [vmem:[%s895 + $0x4] sm:$0xf]
      %v898 = vld [vmem:[%s895 + $0x8] sm:$0xf]
      %v899 = vld [vmem:[%s895 + $0xc] sm:$0xf]
      %v900 = vld [vmem:[%s895 + $0x10] sm:$0xf]
      %v901 = vld [vmem:[%s895 + $0x14] sm:$0xf]
      %v902 = vld [vmem:[%s895 + $0x18] sm:$0xf]
      %v903 = vld [vmem:[%s895 + $0x1c] sm:$0xf]
      %v904 = vld [vmem:[%s895 + $0x20] sm:$0xf]
      %v905 = vld [vmem:[%s895 + $0x24] sm:$0xf]
      %v906 = vld [vmem:[%s895 + $0x28] sm:$0xf]
      %v907 = vld [vmem:[%s895 + $0x2c] sm:$0xf]
      %v908 = vld [vmem:[%s895 + $0x30] sm:$0xf]
      %v909 = vld [vmem:[%s895 + $0x34] sm:$0xf]
      %v910 = vld [vmem:[%s895 + $0x38] sm:$0xf]
      %v911 = vld [vmem:[%s895 + $0x3c] sm:$0xf]
      %v916 = vunpack.c.l.b16 %v888
      %v917 = vunpack.c.l.b16 %v889
      %v918 = vunpack.c.l.b16 %v890
      %v919 = vunpack.c.l.b16 %v891
      %v920 = vpack.c.b16 %v917, %v916
      %v921 = vpack.c.b16 %v919, %v918
      %vm922 = vsmask.f32 4352
      %v924 = vshrl.u32 %v920, 16
      %v926 = vrot.slane %v924, 3
      %v927 = vshll.u32 %v920, 16
      %v929 = vrot.slane %v927, 4
      %v930 = vor.u32 %v926, %v929
      %v932 = vshrl.u32 %v921, 16
      %v934 = vrot.slane %v932, 3
      %v935 = vshll.u32 %v921, 16
      %v937 = vrot.slane %v935, 4
      %v938 = vor.u32 %v934, %v937
      %v939 = vsel %vm922, %v930, %v938
      %v958 = vunpack.c.l.b16 %v896
      %v959 = vunpack.c.l.b16 %v897
      %v960 = vunpack.c.l.b16 %v898
      %v961 = vunpack.c.l.b16 %v899
      %v962 = vunpack.c.l.b16 %v900
      %v963 = vunpack.c.l.b16 %v901
      %v964 = vunpack.c.l.b16 %v902
      %v965 = vunpack.c.l.b16 %v903
      %v966 = vunpack.c.l.b16 %v904
      %v967 = vunpack.c.l.b16 %v905
      %v968 = vunpack.c.l.b16 %v906
      %v969 = vunpack.c.l.b16 %v907
      %v970 = vunpack.c.l.b16 %v908
      %v971 = vunpack.c.l.b16 %v909
      %v972 = vunpack.c.l.b16 %v910
      %v973 = vunpack.c.l.b16 %v911
      %v974 = vpack.c.b16 %v959, %v958
      %v975 = vpack.c.b16 %v961, %v960
      %v976 = vpack.c.b16 %v963, %v962
      %v977 = vpack.c.b16 %v965, %v964
      %v978 = vpack.c.b16 %v967, %v966
      %v979 = vpack.c.b16 %v969, %v968
      %v980 = vpack.c.b16 %v971, %v970
      %v981 = vpack.c.b16 %v973, %v972
      %990 = vmatprep.subr.bf16.mxu0 0
      %991 = vmatpush1.bf16.msra.mxu0 %v974
      %992 = vmatprep.subr.bf16.mxu0 0
      %993 = vmatpush1.bf16.msra.mxu0 %v975
      %994 = vmatprep.subr.bf16.mxu0 0
      %995 = vmatpush1.bf16.msra.mxu0 %v976
      %996 = vmatprep.subr.bf16.mxu0 0
      %997 = vmatpush1.bf16.msra.mxu0 %v977
      %998 = vmatprep.subr.bf16.mxu0 0
      %999 = vmatpush1.bf16.msra.mxu0 %v978
      %1000 = vmatprep.subr.bf16.mxu0 0
      %1001 = vmatpush1.bf16.msra.mxu0 %v979
      %1002 = vmatprep.subr.bf16.mxu0 0
      %1003 = vmatpush1.bf16.msra.mxu0 %v980
      %1004 = vmatprep.subr.bf16.mxu0 0
      %1005 = vmatpush1.bf16.msra.mxu0 %v981
      %1006 = vmatprep.subr.bf16.mxu0 0
      %1007 = vmatpush1.bf16.msra.mxu0 0
      %1008 = vmatprep.subr.bf16.mxu0 0
      %1009 = vmatpush1.bf16.msra.mxu0 0
      %1010 = vmatprep.subr.bf16.mxu0 0
      %1011 = vmatpush1.bf16.msra.mxu0 0
      %1012 = vmatprep.subr.bf16.mxu0 0
      %1013 = vmatpush1.bf16.msra.mxu0 0
      %1014 = vmatprep.subr.bf16.mxu0 0
      %1015 = vmatpush1.bf16.msra.mxu0 0
      %1016 = vmatprep.subr.bf16.mxu0 0
      %1017 = vmatpush1.bf16.msra.mxu0 0
      %1018 = vmatprep.subr.bf16.mxu0 0
      %1019 = vmatpush1.bf16.msra.mxu0 0
      %1020 = vmatprep.subr.bf16.mxu0 0
      %1021 = vmatpush1.bf16.msra.mxu0 0
      %1022 = vmatprep.mubr.bf16.mxu0 0
      %1023 = vmatmul.mubr.bf16.gmra.mrb[0].mxu0 %v939
      %v1024 = vpop.f32.mrb[0].mxu0
      %v1025 = vadd.f32 0.0, %v1024
      %v1026 = vpop.f32.mrb[0].mxu0
      %v1027 = vpop.f32.mrb[0].mxu0
      %v1028 = vadd.f32 0.0, %v1027
      %v1029 = vpop.f32.mrb[0].mxu0
      %1030 = vmatprep.mubr.bf16.mxu0 0
      %1031 = vmatmul.mubr.bf16.gmra.mrb[0].mxu0 %v938
      %v1032 = vpop.f32.mrb[0].mxu0
      %v1033 = vadd.f32 0.0, %v1032
      %v1034 = vpop.f32.mrb[0].mxu0
      %v1035 = vpop.f32.mrb[0].mxu0
      %v1036 = vpop.f32.mrb[0].mxu0
      %1037 = vdwg.mxu0
      %v1038 = vadd.f32 %v892, %v1025
      %v1039 = vadd.f32 %v893, %v1028
      %v1040 = vadd.f32 %v894, %v1033
      %1041 = vst.msk [vmem:[#allocation3] sm:$0xff] %vm312, %v1038
      %1042 = vst.msk [vmem:[#allocation3 + $0x8] sm:$0xff] %vm312, %v1039
      %1043 = vst.msk [vmem:[#allocation3 + $0x10] sm:$0xff] %vm312, %v1040
      %v1044 = vld [vmem:[#allocation2 + $0x4] sm:$0xf]
      %v1045 = vld [vmem:[#allocation2 + $0x8] sm:$0xf]
      %v1046 = vld [vmem:[#allocation2 + $0xc] sm:$0xf]
      %v1047 = vld [vmem:[#allocation3] sm:$0xff]
      %v1048 = vld [vmem:[#allocation3 + $0x8] sm:$0xff]
      %v1049 = vld [vmem:[#allocation3 + $0x10] sm:$0xff]
      %s1050 = scalar_lea.vmem %s2, 320
      %v1051 = vld [vmem:[%s1050] sm:$0xf]
      %v1052 = vld [vmem:[%s1050 + $0x4] sm:$0xf]
      %v1053 = vld [vmem:[%s1050 + $0x8] sm:$0xf]
      %v1054 = vld [vmem:[%s1050 + $0xc] sm:$0xf]
      %v1055 = vld [vmem:[%s1050 + $0x10] sm:$0xf]
      %v1056 = vld [vmem:[%s1050 + $0x14] sm:$0xf]
      %v1057 = vld [vmem:[%s1050 + $0x18] sm:$0xf]
      %v1058 = vld [vmem:[%s1050 + $0x1c] sm:$0xf]
      %v1059 = vld [vmem:[%s1050 + $0x20] sm:$0xf]
      %v1060 = vld [vmem:[%s1050 + $0x24] sm:$0xf]
      %v1061 = vld [vmem:[%s1050 + $0x28] sm:$0xf]
      %v1062 = vld [vmem:[%s1050 + $0x2c] sm:$0xf]
      %v1063 = vld [vmem:[%s1050 + $0x30] sm:$0xf]
      %v1064 = vld [vmem:[%s1050 + $0x34] sm:$0xf]
      %v1065 = vld [vmem:[%s1050 + $0x38] sm:$0xf]
      %v1066 = vld [vmem:[%s1050 + $0x3c] sm:$0xf]
      %v1070 = vunpack.c.l.b16 %v1044
      %v1071 = vunpack.c.l.b16 %v1045
      %v1072 = vunpack.c.l.b16 %v1046
      %v1073 = vpack.c.b16 %v1071, %v1070
      %v1074 = vpack.c.b16 %v1072, %v1072
      %v1093 = vunpack.c.l.b16 %v1051
      %v1094 = vunpack.c.l.b16 %v1052
      %v1095 = vunpack.c.l.b16 %v1053
      %v1096 = vunpack.c.l.b16 %v1054
      %v1097 = vunpack.c.l.b16 %v1055
      %v1098 = vunpack.c.l.b16 %v1056
      %v1099 = vunpack.c.l.b16 %v1057
      %v1100 = vunpack.c.l.b16 %v1058
      %v1101 = vunpack.c.l.b16 %v1059
      %v1102 = vunpack.c.l.b16 %v1060
      %v1103 = vunpack.c.l.b16 %v1061
      %v1104 = vunpack.c.l.b16 %v1062
      %v1105 = vunpack.c.l.b16 %v1063
      %v1106 = vunpack.c.l.b16 %v1064
      %v1107 = vunpack.c.l.b16 %v1065
      %v1108 = vunpack.c.l.b16 %v1066
      %v1109 = vpack.c.b16 %v1094, %v1093
      %v1110 = vpack.c.b16 %v1096, %v1095
      %v1111 = vpack.c.b16 %v1098, %v1097
      %v1112 = vpack.c.b16 %v1100, %v1099
      %v1113 = vpack.c.b16 %v1102, %v1101
      %v1114 = vpack.c.b16 %v1104, %v1103
      %v1115 = vpack.c.b16 %v1106, %v1105
      %v1116 = vpack.c.b16 %v1108, %v1107
      %1125 = vmatprep.subr.bf16.mxu0 0
      %1126 = vmatpush1.bf16.msra.mxu0 %v1109
      %1127 = vmatprep.subr.bf16.mxu0 0
      %1128 = vmatpush1.bf16.msra.mxu0 %v1110
      %1129 = vmatprep.subr.bf16.mxu0 0
      %1130 = vmatpush1.bf16.msra.mxu0 %v1111
      %1131 = vmatprep.subr.bf16.mxu0 0
      %1132 = vmatpush1.bf16.msra.mxu0 %v1112
      %1133 = vmatprep.subr.bf16.mxu0 0
      %1134 = vmatpush1.bf16.msra.mxu0 %v1113
      %1135 = vmatprep.subr.bf16.mxu0 0
      %1136 = vmatpush1.bf16.msra.mxu0 %v1114
      %1137 = vmatprep.subr.bf16.mxu0 0
      %1138 = vmatpush1.bf16.msra.mxu0 %v1115
      %1139 = vmatprep.subr.bf16.mxu0 0
      %1140 = vmatpush1.bf16.msra.mxu0 %v1116
      %1141 = vmatprep.subr.bf16.mxu0 0
      %1142 = vmatpush1.bf16.msra.mxu0 0
      %1143 = vmatprep.subr.bf16.mxu0 0
      %1144 = vmatpush1.bf16.msra.mxu0 0
      %1145 = vmatprep.subr.bf16.mxu0 0
      %1146 = vmatpush1.bf16.msra.mxu0 0
      %1147 = vmatprep.subr.bf16.mxu0 0
      %1148 = vmatpush1.bf16.msra.mxu0 0
      %1149 = vmatprep.subr.bf16.mxu0 0
      %1150 = vmatpush1.bf16.msra.mxu0 0
      %1151 = vmatprep.subr.bf16.mxu0 0
      %1152 = vmatpush1.bf16.msra.mxu0 0
      %1153 = vmatprep.subr.bf16.mxu0 0
      %1154 = vmatpush1.bf16.msra.mxu0 0
      %1155 = vmatprep.subr.bf16.mxu0 0
      %1156 = vmatpush1.bf16.msra.mxu0 0
      %1157 = vmatprep.mubr.bf16.mxu0 0
      %1158 = vmatmul.mubr.bf16.gmra.mrb[0].mxu0 %v1073
      %v1159 = vpop.f32.mrb[0].mxu0
      %v1160 = vadd.f32 0.0, %v1159
      %v1161 = vpop.f32.mrb[0].mxu0
      %v1162 = vpop.f32.mrb[0].mxu0
      %v1163 = vadd.f32 0.0, %v1162
      %v1164 = vpop.f32.mrb[0].mxu0
      %1165 = vmatprep.mubr.bf16.mxu0 0
      %1166 = vmatmul.mubr.bf16.gmra.mrb[0].mxu0 %v1074
      %v1167 = vpop.f32.mrb[0].mxu0
      %v1168 = vadd.f32 0.0, %v1167
      %v1169 = vpop.f32.mrb[0].mxu0
      %v1170 = vpop.f32.mrb[0].mxu0
      %v1171 = vpop.f32.mrb[0].mxu0
      %1172 = vdwg.mxu0
      %v1173 = vadd.f32 %v1047, %v1160
      %v1174 = vadd.f32 %v1048, %v1163
      %v1175 = vadd.f32 %v1049, %v1168
      %1176 = vst.msk [vmem:[#allocation3] sm:$0xff] %vm312, %v1173
      %1177 = vst.msk [vmem:[#allocation3 + $0x8] sm:$0xff] %vm312, %v1174
      %1178 = vst.msk [vmem:[#allocation3 + $0x10] sm:$0xff] %vm312, %v1175
      %v1179 = vld [vmem:[#allocation2 + $0x4] sm:$0xc]
      %v1180 = vld [vmem:[#allocation2 + $0x8] sm:$0xf]
      %v1181 = vld [vmem:[#allocation2 + $0xc] sm:$0xf]
      %v1182 = vld [vmem:[#allocation2 + $0x10] sm:$0x3]
      %v1183 = vld [vmem:[#allocation3] sm:$0xff]
      %v1184 = vld [vmem:[#allocation3 + $0x8] sm:$0xff]
      %v1185 = vld [vmem:[#allocation3 + $0x10] sm:$0xff]
      %s1186 = scalar_lea.vmem %s2, 384
      %v1187 = vld [vmem:[%s1186] sm:$0xf]
      %v1188 = vld [vmem:[%s1186 + $0x4] sm:$0xf]
      %v1189 = vld [vmem:[%s1186 + $0x8] sm:$0xf]
      %v1190 = vld [vmem:[%s1186 + $0xc] sm:$0xf]
      %v1191 = vld [vmem:[%s1186 + $0x10] sm:$0xf]
      %v1192 = vld [vmem:[%s1186 + $0x14] sm:$0xf]
      %v1193 = vld [vmem:[%s1186 + $0x18] sm:$0xf]
      %v1194 = vld [vmem:[%s1186 + $0x1c] sm:$0xf]
      %v1195 = vld [vmem:[%s1186 + $0x20] sm:$0xf]
      %v1196 = vld [vmem:[%s1186 + $0x24] sm:$0xf]
      %v1197 = vld [vmem:[%s1186 + $0x28] sm:$0xf]
      %v1198 = vld [vmem:[%s1186 + $0x2c] sm:$0xf]
      %v1199 = vld [vmem:[%s1186 + $0x30] sm:$0xf]
      %v1200 = vld [vmem:[%s1186 + $0x34] sm:$0xf]
      %v1201 = vld [vmem:[%s1186 + $0x38] sm:$0xf]
      %v1202 = vld [vmem:[%s1186 + $0x3c] sm:$0xf]
      %v1207 = vunpack.c.l.b16 %v1179
      %v1208 = vunpack.c.l.b16 %v1180
      %v1209 = vunpack.c.l.b16 %v1181
      %v1210 = vunpack.c.l.b16 %v1182
      %v1211 = vpack.c.b16 %v1208, %v1207
      %v1212 = vpack.c.b16 %v1210, %v1209
      %vm1213 = vcmask 1045504
      %v1214 = vrot.slane %v1211, 2
      %v1215 = vrot.slane %v1212, 2
      %v1216 = vsel %vm1213, %v1214, %v1215
      %v1235 = vunpack.c.l.b16 %v1187
      %v1236 = vunpack.c.l.b16 %v1188
      %v1237 = vunpack.c.l.b16 %v1189
      %v1238 = vunpack.c.l.b16 %v1190
      %v1239 = vunpack.c.l.b16 %v1191
      %v1240 = vunpack.c.l.b16 %v1192
      %v1241 = vunpack.c.l.b16 %v1193
      %v1242 = vunpack.c.l.b16 %v1194
      %v1243 = vunpack.c.l.b16 %v1195
      %v1244 = vunpack.c.l.b16 %v1196
      %v1245 = vunpack.c.l.b16 %v1197
      %v1246 = vunpack.c.l.b16 %v1198
      %v1247 = vunpack.c.l.b16 %v1199
      %v1248 = vunpack.c.l.b16 %v1200
      %v1249 = vunpack.c.l.b16 %v1201
      %v1250 = vunpack.c.l.b16 %v1202
      %v1251 = vpack.c.b16 %v1236, %v1235
      %v1252 = vpack.c.b16 %v1238, %v1237
      %v1253 = vpack.c.b16 %v1240, %v1239
      %v1254 = vpack.c.b16 %v1242, %v1241
      %v1255 = vpack.c.b16 %v1244, %v1243
      %v1256 = vpack.c.b16 %v1246, %v1245
      %v1257 = vpack.c.b16 %v1248, %v1247
      %v1258 = vpack.c.b16 %v1250, %v1249
      %1267 = vmatprep.subr.bf16.mxu0 0
      %1268 = vmatpush1.bf16.msra.mxu0 %v1251
      %1269 = vmatprep.subr.bf16.mxu0 0
      %1270 = vmatpush1.bf16.msra.mxu0 %v1252
      %1271 = vmatprep.subr.bf16.mxu0 0
      %1272 = vmatpush1.bf16.msra.mxu0 %v1253
      %1273 = vmatprep.subr.bf16.mxu0 0
      %1274 = vmatpush1.bf16.msra.mxu0 %v1254
      %1275 = vmatprep.subr.bf16.mxu0 0
      %1276 = vmatpush1.bf16.msra.mxu0 %v1255
      %1277 = vmatprep.subr.bf16.mxu0 0
      %1278 = vmatpush1.bf16.msra.mxu0 %v1256
      %1279 = vmatprep.subr.bf16.mxu0 0
      %1280 = vmatpush1.bf16.msra.mxu0 %v1257
      %1281 = vmatprep.subr.bf16.mxu0 0
      %1282 = vmatpush1.bf16.msra.mxu0 %v1258
      %1283 = vmatprep.subr.bf16.mxu0 0
      %1284 = vmatpush1.bf16.msra.mxu0 0
      %1285 = vmatprep.subr.bf16.mxu0 0
      %1286 = vmatpush1.bf16.msra.mxu0 0
      %1287 = vmatprep.subr.bf16.mxu0 0
      %1288 = vmatpush1.bf16.msra.mxu0 0
      %1289 = vmatprep.subr.bf16.mxu0 0
      %1290 = vmatpush1.bf16.msra.mxu0 0
      %1291 = vmatprep.subr.bf16.mxu0 0
      %1292 = vmatpush1.bf16.msra.mxu0 0
      %1293 = vmatprep.subr.bf16.mxu0 0
      %1294 = vmatpush1.bf16.msra.mxu0 0
      %1295 = vmatprep.subr.bf16.mxu0 0
      %1296 = vmatpush1.bf16.msra.mxu0 0
      %1297 = vmatprep.subr.bf16.mxu0 0
      %1298 = vmatpush1.bf16.msra.mxu0 0
      %1299 = vmatprep.mubr.bf16.mxu0 0
      %1300 = vmatmul.mubr.bf16.gmra.mrb[0].mxu0 %v1216
      %v1301 = vpop.f32.mrb[0].mxu0
      %v1302 = vadd.f32 0.0, %v1301
      %v1303 = vpop.f32.mrb[0].mxu0
      %v1304 = vpop.f32.mrb[0].mxu0
      %v1305 = vadd.f32 0.0, %v1304
      %v1306 = vpop.f32.mrb[0].mxu0
      %1307 = vmatprep.mubr.bf16.mxu0 0
      %1308 = vmatmul.mubr.bf16.gmra.mrb[0].mxu0 %v1215
      %v1309 = vpop.f32.mrb[0].mxu0
      %v1310 = vadd.f32 0.0, %v1309
      %v1311 = vpop.f32.mrb[0].mxu0
      %v1312 = vpop.f32.mrb[0].mxu0
      %v1313 = vpop.f32.mrb[0].mxu0
      %1314 = vdwg.mxu0
      %v1315 = vadd.f32 %v1183, %v1302
      %v1316 = vadd.f32 %v1184, %v1305
      %v1317 = vadd.f32 %v1185, %v1310
      %1318 = vst.msk [vmem:[#allocation3] sm:$0xff] %vm312, %v1315
      %1319 = vst.msk [vmem:[#allocation3 + $0x8] sm:$0xff] %vm312, %v1316
      %1320 = vst.msk [vmem:[#allocation3 + $0x10] sm:$0xff] %vm312, %v1317
      %v1321 = vld [vmem:[#allocation2 + $0x4] sm:$0xc]
      %v1322 = vld [vmem:[#allocation2 + $0x8] sm:$0xf]
      %v1323 = vld [vmem:[#allocation2 + $0xc] sm:$0xf]
      %v1324 = vld [vmem:[#allocation2 + $0x10] sm:$0x7]
      %v1325 = vld [vmem:[#allocation3] sm:$0xff]
      %v1326 = vld [vmem:[#allocation3 + $0x8] sm:$0xff]
      %v1327 = vld [vmem:[#allocation3 + $0x10] sm:$0xff]
      %s1328 = scalar_lea.vmem %s2, 448
      %v1329 = vld [vmem:[%s1328] sm:$0xf]
      %v1330 = vld [vmem:[%s1328 + $0x4] sm:$0xf]
      %v1331 = vld [vmem:[%s1328 + $0x8] sm:$0xf]
      %v1332 = vld [vmem:[%s1328 + $0xc] sm:$0xf]
      %v1333 = vld [vmem:[%s1328 + $0x10] sm:$0xf]
      %v1334 = vld [vmem:[%s1328 + $0x14] sm:$0xf]
      %v1335 = vld [vmem:[%s1328 + $0x18] sm:$0xf]
      %v1336 = vld [vmem:[%s1328 + $0x1c] sm:$0xf]
      %v1337 = vld [vmem:[%s1328 + $0x20] sm:$0xf]
      %v1338 = vld [vmem:[%s1328 + $0x24] sm:$0xf]
      %v1339 = vld [vmem:[%s1328 + $0x28] sm:$0xf]
      %v1340 = vld [vmem:[%s1328 + $0x2c] sm:$0xf]
      %v1341 = vld [vmem:[%s1328 + $0x30] sm:$0xf]
      %v1342 = vld [vmem:[%s1328 + $0x34] sm:$0xf]
      %v1343 = vld [vmem:[%s1328 + $0x38] sm:$0xf]
      %v1344 = vld [vmem:[%s1328 + $0x3c] sm:$0xf]
      %v1349 = vunpack.c.l.b16 %v1321
      %v1350 = vunpack.c.l.b16 %v1322
      %v1351 = vunpack.c.l.b16 %v1323
      %v1352 = vunpack.c.l.b16 %v1324
      %v1353 = vpack.c.b16 %v1350, %v1349
      %v1354 = vpack.c.b16 %v1352, %v1351
      %vm1355 = vsmask.f32 5376
      %v1357 = vshrl.u32 %v1353, 16
      %v1359 = vrot.slane %v1357, 2
      %v1360 = vshll.u32 %v1353, 16
      %v1362 = vrot.slane %v1360, 3
      %v1363 = vor.u32 %v1359, %v1362
      %v1365 = vshrl.u32 %v1354, 16
      %v1367 = vrot.slane %v1365, 2
      %v1368 = vshll.u32 %v1354, 16
      %v1370 = vrot.slane %v1368, 3
      %v1371 = vor.u32 %v1367, %v1370
      %v1372 = vsel %vm1355, %v1363, %v1371
      %v1391 = vunpack.c.l.b16 %v1329
      %v1392 = vunpack.c.l.b16 %v1330
      %v1393 = vunpack.c.l.b16 %v1331
      %v1394 = vunpack.c.l.b16 %v1332
      %v1395 = vunpack.c.l.b16 %v1333
      %v1396 = vunpack.c.l.b16 %v1334
      %v1397 = vunpack.c.l.b16 %v1335
      %v1398 = vunpack.c.l.b16 %v1336
      %v1399 = vunpack.c.l.b16 %v1337
      %v1400 = vunpack.c.l.b16 %v1338
      %v1401 = vunpack.c.l.b16 %v1339
      %v1402 = vunpack.c.l.b16 %v1340
      %v1403 = vunpack.c.l.b16 %v1341
      %v1404 = vunpack.c.l.b16 %v1342
      %v1405 = vunpack.c.l.b16 %v1343
      %v1406 = vunpack.c.l.b16 %v1344
      %v1407 = vpack.c.b16 %v1392, %v1391
      %v1408 = vpack.c.b16 %v1394, %v1393
      %v1409 = vpack.c.b16 %v1396, %v1395
      %v1410 = vpack.c.b16 %v1398, %v1397
      %v1411 = vpack.c.b16 %v1400, %v1399
      %v1412 = vpack.c.b16 %v1402, %v1401
      %v1413 = vpack.c.b16 %v1404, %v1403
      %v1414 = vpack.c.b16 %v1406, %v1405
      %1423 = vmatprep.subr.bf16.mxu0 0
      %1424 = vmatpush1.bf16.msra.mxu0 %v1407
      %1425 = vmatprep.subr.bf16.mxu0 0
      %1426 = vmatpush1.bf16.msra.mxu0 %v1408
      %1427 = vmatprep.subr.bf16.mxu0 0
      %1428 = vmatpush1.bf16.msra.mxu0 %v1409
      %1429 = vmatprep.subr.bf16.mxu0 0
      %1430 = vmatpush1.bf16.msra.mxu0 %v1410
      %1431 = vmatprep.subr.bf16.mxu0 0
      %1432 = vmatpush1.bf16.msra.mxu0 %v1411
      %1433 = vmatprep.subr.bf16.mxu0 0
      %1434 = vmatpush1.bf16.msra.mxu0 %v1412
      %1435 = vmatprep.subr.bf16.mxu0 0
      %1436 = vmatpush1.bf16.msra.mxu0 %v1413
      %1437 = vmatprep.subr.bf16.mxu0 0
      %1438 = vmatpush1.bf16.msra.mxu0 %v1414
      %1439 = vmatprep.subr.bf16.mxu0 0
      %1440 = vmatpush1.bf16.msra.mxu0 0
      %1441 = vmatprep.subr.bf16.mxu0 0
      %1442 = vmatpush1.bf16.msra.mxu0 0
      %1443 = vmatprep.subr.bf16.mxu0 0
      %1444 = vmatpush1.bf16.msra.mxu0 0
      %1445 = vmatprep.subr.bf16.mxu0 0
      %1446 = vmatpush1.bf16.msra.mxu0 0
      %1447 = vmatprep.subr.bf16.mxu0 0
      %1448 = vmatpush1.bf16.msra.mxu0 0
      %1449 = vmatprep.subr.bf16.mxu0 0
      %1450 = vmatpush1.bf16.msra.mxu0 0
      %1451 = vmatprep.subr.bf16.mxu0 0
      %1452 = vmatpush1.bf16.msra.mxu0 0
      %1453 = vmatprep.subr.bf16.mxu0 0
      %1454 = vmatpush1.bf16.msra.mxu0 0
      %1455 = vmatprep.mubr.bf16.mxu0 0
      %1456 = vmatmul.mubr.bf16.gmra.mrb[0].mxu0 %v1372
      %v1457 = vpop.f32.mrb[0].mxu0
      %v1458 = vadd.f32 0.0, %v1457
      %v1459 = vpop.f32.mrb[0].mxu0
      %v1460 = vpop.f32.mrb[0].mxu0
      %v1461 = vadd.f32 0.0, %v1460
      %v1462 = vpop.f32.mrb[0].mxu0
      %1463 = vmatprep.mubr.bf16.mxu0 0
      %1464 = vmatmul.mubr.bf16.gmra.mrb[0].mxu0 %v1371
      %v1465 = vpop.f32.mrb[0].mxu0
      %v1466 = vadd.f32 0.0, %v1465
      %v1467 = vpop.f32.mrb[0].mxu0
      %v1468 = vpop.f32.mrb[0].mxu0
      %v1469 = vpop.f32.mrb[0].mxu0
      %1470 = vdwg.mxu0
      %v1471 = vadd.f32 %v1325, %v1458
      %v1472 = vadd.f32 %v1326, %v1461
      %v1473 = vadd.f32 %v1327, %v1466
      %1474 = vst.msk [vmem:[#allocation3] sm:$0xff] %vm312, %v1471
      %1475 = vst.msk [vmem:[#allocation3 + $0x8] sm:$0xff] %vm312, %v1472
      %1476 = vst.msk [vmem:[#allocation3 + $0x10] sm:$0xff] %vm312, %v1473
      %v1477 = vld [vmem:[#allocation2 + $0x4] sm:$0x8]
      %v1478 = vld [vmem:[#allocation2 + $0x8] sm:$0xf]
      %v1479 = vld [vmem:[#allocation2 + $0xc] sm:$0xf]
      %v1480 = vld [vmem:[#allocation2 + $0x10] sm:$0x7]
      %v1481 = vld [vmem:[#allocation3] sm:$0xff]
      %v1482 = vld [vmem:[#allocation3 + $0x8] sm:$0xff]
      %v1483 = vld [vmem:[#allocation3 + $0x10] sm:$0xff]
      %s1484 = scalar_lea.vmem %s2, 512
      %v1485 = vld [vmem:[%s1484] sm:$0xf]
      %v1486 = vld [vmem:[%s1484 + $0x4] sm:$0xf]
      %v1487 = vld [vmem:[%s1484 + $0x8] sm:$0xf]
      %v1488 = vld [vmem:[%s1484 + $0xc] sm:$0xf]
      %v1489 = vld [vmem:[%s1484 + $0x10] sm:$0xf]
      %v1490 = vld [vmem:[%s1484 + $0x14] sm:$0xf]
      %v1491 = vld [vmem:[%s1484 + $0x18] sm:$0xf]
      %v1492 = vld [vmem:[%s1484 + $0x1c] sm:$0xf]
      %v1493 = vld [vmem:[%s1484 + $0x20] sm:$0xf]
      %v1494 = vld [vmem:[%s1484 + $0x24] sm:$0xf]
      %v1495 = vld [vmem:[%s1484 + $0x28] sm:$0xf]
      %v1496 = vld [vmem:[%s1484 + $0x2c] sm:$0xf]
      %v1497 = vld [vmem:[%s1484 + $0x30] sm:$0xf]
      %v1498 = vld [vmem:[%s1484 + $0x34] sm:$0xf]
      %v1499 = vld [vmem:[%s1484 + $0x38] sm:$0xf]
      %v1500 = vld [vmem:[%s1484 + $0x3c] sm:$0xf]
      %v1505 = vunpack.c.l.b16 %v1477
      %v1506 = vunpack.c.l.b16 %v1478
      %v1507 = vunpack.c.l.b16 %v1479
      %v1508 = vunpack.c.l.b16 %v1480
      %v1509 = vpack.c.b16 %v1506, %v1505
      %v1510 = vpack.c.b16 %v1508, %v1507
      %v1511 = vrot.slane %v1509, 3
      %v1512 = vrot.slane %v1510, 3
      %v1513 = vsel %vm780, %v1511, %v1512
      %v1532 = vunpack.c.l.b16 %v1485
      %v1533 = vunpack.c.l.b16 %v1486
      %v1534 = vunpack.c.l.b16 %v1487
      %v1535 = vunpack.c.l.b16 %v1488
      %v1536 = vunpack.c.l.b16 %v1489
      %v1537 = vunpack.c.l.b16 %v1490
      %v1538 = vunpack.c.l.b16 %v1491
      %v1539 = vunpack.c.l.b16 %v1492
      %v1540 = vunpack.c.l.b16 %v1493
      %v1541 = vunpack.c.l.b16 %v1494
      %v1542 = vunpack.c.l.b16 %v1495
      %v1543 = vunpack.c.l.b16 %v1496
      %v1544 = vunpack.c.l.b16 %v1497
      %v1545 = vunpack.c.l.b16 %v1498
      %v1546 = vunpack.c.l.b16 %v1499
      %v1547 = vunpack.c.l.b16 %v1500
      %v1548 = vpack.c.b16 %v1533, %v1532
      %v1549 = vpack.c.b16 %v1535, %v1534
      %v1550 = vpack.c.b16 %v1537, %v1536
      %v1551 = vpack.c.b16 %v1539, %v1538
      %v1552 = vpack.c.b16 %v1541, %v1540
      %v1553 = vpack.c.b16 %v1543, %v1542
      %v1554 = vpack.c.b16 %v1545, %v1544
      %v1555 = vpack.c.b16 %v1547, %v1546
      %1564 = vmatprep.subr.bf16.mxu0 0
      %1565 = vmatpush1.bf16.msra.mxu0 %v1548
      %1566 = vmatprep.subr.bf16.mxu0 0
      %1567 = vmatpush1.bf16.msra.mxu0 %v1549
      %1568 = vmatprep.subr.bf16.mxu0 0
      %1569 = vmatpush1.bf16.msra.mxu0 %v1550
      %1570 = vmatprep.subr.bf16.mxu0 0
      %1571 = vmatpush1.bf16.msra.mxu0 %v1551
      %1572 = vmatprep.subr.bf16.mxu0 0
      %1573 = vmatpush1.bf16.msra.mxu0 %v1552
      %1574 = vmatprep.subr.bf16.mxu0 0
      %1575 = vmatpush1.bf16.msra.mxu0 %v1553
      %1576 = vmatprep.subr.bf16.mxu0 0
      %1577 = vmatpush1.bf16.msra.mxu0 %v1554
      %1578 = vmatprep.subr.bf16.mxu0 0
      %1579 = vmatpush1.bf16.msra.mxu0 %v1555
      %1580 = vmatprep.subr.bf16.mxu0 0
      %1581 = vmatpush1.bf16.msra.mxu0 0
      %1582 = vmatprep.subr.bf16.mxu0 0
      %1583 = vmatpush1.bf16.msra.mxu0 0
      %1584 = vmatprep.subr.bf16.mxu0 0
      %1585 = vmatpush1.bf16.msra.mxu0 0
      %1586 = vmatprep.subr.bf16.mxu0 0
      %1587 = vmatpush1.bf16.msra.mxu0 0
      %1588 = vmatprep.subr.bf16.mxu0 0
      %1589 = vmatpush1.bf16.msra.mxu0 0
      %1590 = vmatprep.subr.bf16.mxu0 0
      %1591 = vmatpush1.bf16.msra.mxu0 0
      %1592 = vmatprep.subr.bf16.mxu0 0
      %1593 = vmatpush1.bf16.msra.mxu0 0
      %1594 = vmatprep.subr.bf16.mxu0 0
      %1595 = vmatpush1.bf16.msra.mxu0 0
      %1596 = vmatprep.mubr.bf16.mxu0 0
      %1597 = vmatmul.mubr.bf16.gmra.mrb[0].mxu0 %v1513
      %v1598 = vpop.f32.mrb[0].mxu0
      %v1599 = vadd.f32 0.0, %v1598
      %v1600 = vpop.f32.mrb[0].mxu0
      %v1601 = vpop.f32.mrb[0].mxu0
      %v1602 = vadd.f32 0.0, %v1601
      %v1603 = vpop.f32.mrb[0].mxu0
      %1604 = vmatprep.mubr.bf16.mxu0 0
      %1605 = vmatmul.mubr.bf16.gmra.mrb[0].mxu0 %v1512
      %v1606 = vpop.f32.mrb[0].mxu0
      %v1607 = vadd.f32 0.0, %v1606
      %v1608 = vpop.f32.mrb[0].mxu0
      %v1609 = vpop.f32.mrb[0].mxu0
      %v1610 = vpop.f32.mrb[0].mxu0
      %1611 = vdwg.mxu0
      %v1612 = vadd.f32 %v1481, %v1599
      %v1613 = vadd.f32 %v1482, %v1602
      %v1614 = vadd.f32 %v1483, %v1607
      %1615 = vst.msk [vmem:[#allocation3] sm:$0xff] %vm312, %v1612
      %1616 = vst.msk [vmem:[#allocation3 + $0x8] sm:$0xff] %vm312, %v1613
      %1617 = vst.msk [vmem:[#allocation3 + $0x10] sm:$0xff] %vm312, %v1614
      %v1618 = vld [vmem:[%s185] sm:$0x3]
      %v1619 = vld [vmem:[%s185 + $0x2] sm:$0x3]
      %v1620 = vld [vmem:[%s185 + $0x4] sm:$0x3]
      %v1621 = vld [vmem:[%s185 + $0x6] sm:$0x3]
      %1622 = vst [vmem:[%s190] sm:$0x3] %v1618
      %1623 = vst [vmem:[%s190 + $0x2] sm:$0x3] %v1619
      %1624 = vst [vmem:[%s190 + $0x4] sm:$0x3] %v1620
      %1625 = vst [vmem:[%s190 + $0x6] sm:$0x3] %v1621
      %v1626 = vld [vmem:[#allocation3] sm:$0xf]
      %v1627 = vpack.c.bf16 %v1626, %v1626
      %v1630 = vunpack.c.l.s4 1983009808
      %v1631 = vunpack.c.0.s8 %v1630
      %v1632 = vlaneseq
      %v1633 = vshrl.u32 %v1632, 7
      %v1634 = vsub.s32 %v1631, %v1633
      %v1635 = vrot.slane %v1627, %v1634
      %1636 = vrot.lane.b32.xlu0 %v1635, 64
      %v1637 = vpop.permute.xlu0 %1636
      %vm1639 = vcmask 779776
      %1640 = vst.msk [vmem:[%s190] sm:$0x3] %vm1639, %v1637
      %v1641 = vld [vmem:[#allocation3 + $0x6] sm:$0xf]
      %v1642 = vpack.c.bf16 %v1641, %v1641
      %v1645 = vunpack.c.l.s4 1983009808
      %v1646 = vunpack.c.0.s8 %v1645
      %v1647 = vlaneseq
      %v1648 = vshrl.u32 %v1647, 7
      %v1649 = vsub.s32 %v1646, %v1648
      %v1650 = vrot.slane %v1642, %v1649
      %1651 = vrot.lane.b32.xlu0 %v1650, 64
      %v1652 = vpop.permute.xlu0 %1651
      %s1654 = scalar_lea.vmem %s190, 2
      %1655 = vst.msk [vmem:[%s1654] sm:$0x3] %vm1639, %v1652
      %v1656 = vld [vmem:[#allocation3 + $0xc] sm:$0xf]
      %v1657 = vpack.c.bf16 %v1656, %v1656
      %v1660 = vunpack.c.l.s4 1983009808
      %v1661 = vunpack.c.0.s8 %v1660
      %v1662 = vlaneseq
      %v1663 = vshrl.u32 %v1662, 7
      %v1664 = vsub.s32 %v1661, %v1663
      %v1665 = vrot.slane %v1657, %v1664
      %1666 = vrot.lane.b32.xlu0 %v1665, 64
      %v1667 = vpop.permute.xlu0 %1666
      %s1669 = scalar_lea.vmem %s190, 4
      %1670 = vst.msk [vmem:[%s1669] sm:$0x3] %vm1639, %v1667
      %v1671 = vld [vmem:[#allocation3 + $0x12] sm:$0xf]
      %v1672 = vpack.c.bf16 %v1671, %v1671
      %v1675 = vunpack.c.l.s4 1983009808
      %v1676 = vunpack.c.0.s8 %v1675
      %v1677 = vlaneseq
      %v1678 = vshrl.u32 %v1677, 7
      %v1679 = vsub.s32 %v1676, %v1678
      %v1680 = vrot.slane %v1672, %v1679
      %1681 = vrot.lane.b32.xlu0 %v1680, 64
      %v1682 = vpop.permute.xlu0 %1681
      %s1684 = scalar_lea.vmem %s190, 6
      %1685 = vst.msk [vmem:[%s1684] sm:$0x3] %vm1639, %v1682
      %p1686 = scmp.lt.s32.totalorder %s14, 1
      %s1687 = scalar_select %p1686, %s14, 1
      %s1688 = smul.addr %s1687, 4
      %s1689 = smul.addr %s1688, 2
      %s1690 = scalar_lea.vmem %s3, %s1689
      // Predicated region
      $region33: #{densenet_forward.15} parent=31 // pred_check
        %p1691 = pneg %p105
      $region34: #{densenet_forward.15} parent=31 // pred_check_branch
        %1693 = sbr.rel (%p1691) target = $region36
      $region35: #{densenet_forward.15} parent=31 // pred_region
        _
      $region36: #{densenet_forward.15} parent=31 // pred_fallthru
        _
    $region32: #{densenet_forward.15} parent=5 // pred_fallthru
      _
    %p1694 = scmp.le.s32.totalorder 2, %s9
    // Predicated region
    $region37: #{densenet_forward.15} parent=5 // pred_check
      %p1695 = pneg %p1694
    $region38: #{densenet_forward.15} parent=5 // pred_check_branch
      %1697 = sbr.rel (%p1695) target = $region40
    $region39: #{densenet_forward.15} parent=5 // pred_region
      %s1698 = ssub.s32 %s9, 2
      // Predicated region
      $region41: #{densenet_forward.15} parent=39 // pred_check
        %p1699 = pneg %p111
      $region42: #{densenet_forward.15} parent=39 // pred_check_branch
        %1701 = sbr.rel (%p1699) target = $region44
      $region43: #{densenet_forward.15} parent=39 // pred_region
        %p1702 = scmp.lt.s32.totalorder %s15, 1
        %s1703 = scalar_select %p1702, %s15, 1
        %s1704 = smul.addr %s1703, 4
        %s1705 = smul.addr %s1704, 2
        %s1706 = scalar_lea.vmem %s3, %s1705
      $region44: #{densenet_forward.15} parent=39 // pred_fallthru
        _
    $region40: #{densenet_forward.15} parent=5 // pred_fallthru
      _
  $region6: #{densenet_forward.15} parent=0 // loop_footer
    %s13 = sadd.s32 1, %s9
  $region7: #{densenet_forward.15} parent=0 // loop_footer_branch
    %8 = sbr.rel target = $region3
  $region8: #{densenet_forward.15} parent=0 // loop_exit
    _

// kernel: densenet_forward.18
$region0: #{densenet_forward.18}
  #allocation0 [shape = 'u32[]', space=smem, size = 0x4, offset = 0x4, fixed_abs, tag = 'smem constant byte address 0x4 - core index']
  #allocation1 [shape = 'u32[144,128]{1,0:T(1,128)}', space=vmem, size = 0x12000, scoped, tag = 'internal scratch']
  %s0 = inlined_call_operand.vmem [shape: bf16[2,2,2,128], index: 0, kind: input, shape index: {}]
  %s1 = inlined_call_operand.vmem [shape: bf16[2,2,2,128], index: 1, kind: input, shape index: {}]
  %s2 = inlined_call_operand.vmem [shape: bf16[2,2,2,128], index: 2, kind: input, shape index: {}]
  %s3 = inlined_call_operand.vmem [shape: bf16[2,2,2,128], index: 3, kind: input, shape index: {}]
  %s4 = inlined_call_operand.vmem [shape: f32[1,1,1,128], index: 4, kind: input, shape index: {}]
  %s5 = inlined_call_operand.vmem [shape: f32[1,1,1,128], index: 5, kind: input, shape index: {}]
  %s6 = inlined_call_operand.vmem [shape: bf16[2,2,2,128], index: 6, kind: output, shape index: {}]
  %s7 = sld [smem:[#allocation0]]
  $region57: #{densenet_forward.18} parent=0
    _
  %s9 = ssub.s32 1, %s7
  %s10 = scalar_select 0, %s9, %s7
  loop: start=0, step=1, limit=4
  $region2: #{densenet_forward.18} parent=0 // loop_pre_header
    _
  $region3: #{densenet_forward.18} parent=0 // loop_header
    %s12 = sphi 0, %s16
    %p13 = scmp.ge.s32.totalorder %s12, 4
    %s22 = sphi 0, %s24
    %s25 = sphi 0, %s22
    %s26 = sphi 0, %s25
    %s42 = sphi 0, %s26
    %s48 = sphi 0, %s50
    %s51 = sphi 0, %s48
    %s52 = sphi 0, %s51
    %s68 = sphi 0, %s52
    %s74 = sphi 0, %s76
    %s77 = sphi 0, %s74
    %s78 = sphi 0, %s77
    %s94 = sphi 0, %s78
    %s100 = sphi 0, %s102
    %s103 = sphi 0, %s100
    %s104 = sphi 0, %s103
    %s120 = sphi 0, %s104
    %s124 = sphi 0, %s124
    %s126 = sphi 0, %s124
    %s127 = sphi 0, %s126
    %s141 = sphi 0, %s127
    %s145 = sphi 0, %s145
    %s147 = sphi 0, %s145
    %s148 = sphi 0, %s147
    %s162 = sphi 0, %s148
    %s168 = sphi 0, %s170
    %s171 = sphi 0, %s168
    %s172 = sphi 0, %s171
    %s188 = sphi 0, %s172
  $region4: #{densenet_forward.18} parent=0 // loop_header_branch
    %15 = sbr.rel (%p13) target = $region8
  $region5: #{densenet_forward.18} parent=0 // loop_body
    %s17 = ssub.s32 %s12, 1
    %s18 = ssub.s32 %s12, 2
    %s19 = sadd.s32 %s12, 1
    %s20 = ssub.s32 %s12, %s19
    %p21 = scmp.eq.s32.totalorder %s20, 0
    %s23 = sadd.s32 %s22, 1
    %s24 = scalar_select %p21, %s22, %s23
    %p27 = pneg %p21
    %p28 = scmp.eq.s32.totalorder %s12, 1
    %p29 = por %p27, %p28
    %p30 = scmp.ne.s32.totalorder %s22, %s25
    %p31 = scmp.eq.s32.totalorder %s12, 0
    %p32 = por %p30, %p31
    %p33 = scmp.ne.s32.totalorder %s22, %s25
    %p34 = scmp.eq.s32.totalorder %s17, 1
    %p35 = por %p33, %p34
    %p36 = scmp.ne.s32.totalorder %s25, %s26
    %p37 = scmp.eq.s32.totalorder %s17, 0
    %p38 = por %p36, %p37
    %p39 = scmp.ne.s32.totalorder %s25, %s26
    %p40 = scmp.eq.s32.totalorder %s18, 1
    %p41 = por %p39, %p40
    %p43 = scmp.ne.s32.totalorder %s26, %s42
    %p44 = scmp.eq.s32.totalorder %s18, 0
    %p45 = por %p43, %p44
    %s46 = ssub.s32 %s12, %s19
    %p47 = scmp.eq.s32.totalorder %s46, 0
    %s49 = sadd.s32 %s48, 1
    %s50 = scalar_select %p47, %s48, %s49
    %p53 = pneg %p47
    %p54 = scmp.eq.s32.totalorder %s12, 1
    %p55 = por %p53, %p54
    %p56 = scmp.ne.s32.totalorder %s48, %s51
    %p57 = scmp.eq.s32.totalorder %s12, 0
    %p58 = por %p56, %p57
    %p59 = scmp.ne.s32.totalorder %s48, %s51
    %p60 = scmp.eq.s32.totalorder %s17, 1
    %p61 = por %p59, %p60
    %p62 = scmp.ne.s32.totalorder %s51, %s52
    %p63 = scmp.eq.s32.totalorder %s17, 0
    %p64 = por %p62, %p63
    %p65 = scmp.ne.s32.totalorder %s51, %s52
    %p66 = scmp.eq.s32.totalorder %s18, 1
    %p67 = por %p65, %p66
    %p69 = scmp.ne.s32.totalorder %s52, %s68
    %p70 = scmp.eq.s32.totalorder %s18, 0
    %p71 = por %p69, %p70
    %s72 = ssub.s32 %s12, %s19
    %p73 = scmp.eq.s32.totalorder %s72, 0
    %s75 = sadd.s32 %s74, 1
    %s76 = scalar_select %p73, %s74, %s75
    %p79 = pneg %p73
    %p80 = scmp.eq.s32.totalorder %s12, 1
    %p81 = por %p79, %p80
    %p82 = scmp.ne.s32.totalorder %s74, %s77
    %p83 = scmp.eq.s32.totalorder %s12, 0
    %p84 = por %p82, %p83
    %p85 = scmp.ne.s32.totalorder %s74, %s77
    %p86 = scmp.eq.s32.totalorder %s17, 1
    %p87 = por %p85, %p86
    %p88 = scmp.ne.s32.totalorder %s77, %s78
    %p89 = scmp.eq.s32.totalorder %s17, 0
    %p90 = por %p88, %p89
    %p91 = scmp.ne.s32.totalorder %s77, %s78
    %p92 = scmp.eq.s32.totalorder %s18, 1
    %p93 = por %p91, %p92
    %p95 = scmp.ne.s32.totalorder %s78, %s94
    %p96 = scmp.eq.s32.totalorder %s18, 0
    %p97 = por %p95, %p96
    %s98 = ssub.s32 %s12, %s19
    %p99 = scmp.eq.s32.totalorder %s98, 0
    %s101 = sadd.s32 %s100, 1
    %s102 = scalar_select %p99, %s100, %s101
    %p105 = pneg %p99
    %p106 = scmp.eq.s32.totalorder %s12, 1
    %p107 = por %p105, %p106
    %p108 = scmp.ne.s32.totalorder %s100, %s103
    %p109 = scmp.eq.s32.totalorder %s12, 0
    %p110 = por %p108, %p109
    %p111 = scmp.ne.s32.totalorder %s100, %s103
    %p112 = scmp.eq.s32.totalorder %s17, 1
    %p113 = por %p111, %p112
    %p114 = scmp.ne.s32.totalorder %s103, %s104
    %p115 = scmp.eq.s32.totalorder %s17, 0
    %p116 = por %p114, %p115
    %p117 = scmp.ne.s32.totalorder %s103, %s104
    %p118 = scmp.eq.s32.totalorder %s18, 1
    %p119 = por %p117, %p118
    %p121 = scmp.ne.s32.totalorder %s104, %s120
    %p122 = scmp.eq.s32.totalorder %s18, 0
    %p123 = por %p121, %p122
    %s125 = sadd.s32 %s124, 1
    %p128 = scmp.eq.s32.totalorder %s12, 1
    %p129 = scmp.ne.s32.totalorder %s124, %s126
    %p130 = scmp.eq.s32.totalorder %s12, 0
    %p131 = por %p129, %p130
    %p132 = scmp.ne.s32.totalorder %s124, %s126
    %p133 = scmp.eq.s32.totalorder %s17, 1
    %p134 = por %p132, %p133
    %p135 = scmp.ne.s32.totalorder %s126, %s127
    %p136 = scmp.eq.s32.totalorder %s17, 0
    %p137 = por %p135, %p136
    %p138 = scmp.ne.s32.totalorder %s126, %s127
    %p139 = scmp.eq.s32.totalorder %s18, 1
    %p140 = por %p138, %p139
    %p142 = scmp.ne.s32.totalorder %s127, %s141
    %p143 = scmp.eq.s32.totalorder %s18, 0
    %p144 = por %p142, %p143
    %s146 = sadd.s32 %s145, 1
    %p149 = scmp.eq.s32.totalorder %s12, 1
    %p150 = scmp.ne.s32.totalorder %s145, %s147
    %p151 = scmp.eq.s32.totalorder %s12, 0
    %p152 = por %p150, %p151
    %p153 = scmp.ne.s32.totalorder %s145, %s147
    %p154 = scmp.eq.s32.totalorder %s17, 1
    %p155 = por %p153, %p154
    %p156 = scmp.ne.s32.totalorder %s147, %s148
    %p157 = scmp.eq.s32.totalorder %s17, 0
    %p158 = por %p156, %p157
    %p159 = scmp.ne.s32.totalorder %s147, %s148
    %p160 = scmp.eq.s32.totalorder %s18, 1
    %p161 = por %p159, %p160
    %p163 = scmp.ne.s32.totalorder %s148, %s162
    %p164 = scmp.eq.s32.totalorder %s18, 0
    %p165 = por %p163, %p164
    %s166 = ssub.s32 %s12, %s19
    %p167 = scmp.eq.s32.totalorder %s166, 0
    %s169 = sadd.s32 %s168, 1
    %s170 = scalar_select %p167, %s168, %s169
    %p173 = pneg %p167
    %p174 = scmp.eq.s32.totalorder %s12, 1
    %p175 = por %p173, %p174
    %p176 = scmp.ne.s32.totalorder %s168, %s171
    %p177 = scmp.eq.s32.totalorder %s12, 0
    %p178 = por %p176, %p177
    %p179 = scmp.ne.s32.totalorder %s168, %s171
    %p180 = scmp.eq.s32.totalorder %s17, 1
    %p181 = por %p179, %p180
    %p182 = scmp.ne.s32.totalorder %s171, %s172
    %p183 = scmp.eq.s32.totalorder %s17, 0
    %p184 = por %p182, %p183
    %p185 = scmp.ne.s32.totalorder %s171, %s172
    %p186 = scmp.eq.s32.totalorder %s18, 1
    %p187 = por %p185, %p186
    %p189 = scmp.ne.s32.totalorder %s172, %s188
    %p190 = scmp.eq.s32.totalorder %s18, 0
    %p191 = por %p189, %p190
    %p192 = scmp.le.s32.totalorder 1, %s12
    %p193 = scmp.lt.s32.totalorder %s12, 3
    %p194 = pnand %p192, %p193
    %p195 = pneg %p194
    // Predicated region
    $region9: #{densenet_forward.18} parent=5 // pred_check
      _
    $region10: #{densenet_forward.18} parent=5 // pred_check_branch
      %197 = sbr.rel (%p194) target = $region12
    $region11: #{densenet_forward.18} parent=5 // pred_region
      %s198 = ssub.s32 %s12, 1
      // Predicated region
      $region13: #{densenet_forward.18} parent=11 // pred_check
        %p199 = pneg %p137
      $region14: #{densenet_forward.18} parent=11 // pred_check_branch
        %201 = sbr.rel (%p199) target = $region16
      $region15: #{densenet_forward.18} parent=11 // pred_region
        _
      $region16: #{densenet_forward.18} parent=11 // pred_fallthru
        _
      // Predicated region
      $region17: #{densenet_forward.18} parent=11 // pred_check
        %p202 = pneg %p158
      $region18: #{densenet_forward.18} parent=11 // pred_check_branch
        %204 = sbr.rel (%p202) target = $region20
      $region19: #{densenet_forward.18} parent=11 // pred_region
        _
      $region20: #{densenet_forward.18} parent=11 // pred_fallthru
        _
    $region12: #{densenet_forward.18} parent=5 // pred_fallthru
      _
    %p205 = scmp.lt.s32.totalorder %s12, 2
    // Predicated region
    $region21: #{densenet_forward.18} parent=5 // pred_check
      %p206 = pneg %p205
    $region22: #{densenet_forward.18} parent=5 // pred_check_branch
      %208 = sbr.rel (%p206) target = $region24
    $region23: #{densenet_forward.18} parent=5 // pred_region
      // Predicated region
      $region25: #{densenet_forward.18} parent=23 // pred_check
        %p209 = pneg %p32
      $region26: #{densenet_forward.18} parent=23 // pred_check_branch
        %211 = sbr.rel (%p209) target = $region28
      $region27: #{densenet_forward.18} parent=23 // pred_region
        %p212 = scmp.lt.s32.totalorder %s12, 1
        %s213 = scalar_select %p212, %s12, 1
        %s214 = smul.addr %s213, 2
        %s215 = scalar_lea.vmem %s0, %s214
      $region28: #{densenet_forward.18} parent=23 // pred_fallthru
        _
      // Predicated region
      $region29: #{densenet_forward.18} parent=23 // pred_check
        %p216 = pneg %p58
      $region30: #{densenet_forward.18} parent=23 // pred_check_branch
        %218 = sbr.rel (%p216) target = $region32
      $region31: #{densenet_forward.18} parent=23 // pred_region
        %p219 = scmp.lt.s32.totalorder %s12, 1
        %s220 = scalar_select %p219, %s12, 1
        %s221 = smul.addr %s220, 2
        %s222 = scalar_lea.vmem %s1, %s221
      $region32: #{densenet_forward.18} parent=23 // pred_fallthru
        _
      // Predicated region
      $region33: #{densenet_forward.18} parent=23 // pred_check
        %p223 = pneg %p84
      $region34: #{densenet_forward.18} parent=23 // pred_check_branch
        %225 = sbr.rel (%p223) target = $region36
      $region35: #{densenet_forward.18} parent=23 // pred_region
        %p226 = scmp.lt.s32.totalorder %s12, 1
        %s227 = scalar_select %p226, %s12, 1
        %s228 = smul.addr %s227, 2
        %s229 = scalar_lea.vmem %s2, %s228
      $region36: #{densenet_forward.18} parent=23 // pred_fallthru
        _
      // Predicated region
      $region37: #{densenet_forward.18} parent=23 // pred_check
        %p230 = pneg %p110
      $region38: #{densenet_forward.18} parent=23 // pred_check_branch
        %232 = sbr.rel (%p230) target = $region40
      $region39: #{densenet_forward.18} parent=23 // pred_region
        %p233 = scmp.lt.s32.totalorder %s12, 1
        %s234 = scalar_select %p233, %s12, 1
        %s235 = smul.addr %s234, 2
        %s236 = scalar_lea.vmem %s3, %s235
      $region40: #{densenet_forward.18} parent=23 // pred_fallthru
        _
    $region24: #{densenet_forward.18} parent=5 // pred_fallthru
      _
    %p237 = scmp.le.s32.totalorder 1, %s12
    %p238 = scmp.lt.s32.totalorder %s12, 3
    %p239 = pnand %p237, %p238
    %p240 = pneg %p239
    // Predicated region
    $region41: #{densenet_forward.18} parent=5 // pred_check
      _
    $region42: #{densenet_forward.18} parent=5 // pred_check_branch
      %242 = sbr.rel (%p239) target = $region44
    $region43: #{densenet_forward.18} parent=5 // pred_region
      %s243 = ssub.s32 %s12, 1
      %p244 = scmp.lt.s32.totalorder %s17, 1
      %s245 = scalar_select %p244, %s17, 1
      %s246 = smul.addr %s245, 2
      %s247 = scalar_lea.vmem %s0, %s246
      %p248 = pneg %p38
      %p249 = pneg %p35
      %p250 = scmp.lt.s32.totalorder %s17, 1
      %s251 = scalar_select %p250, %s17, 1
      %s252 = smul.addr %s251, 2
      %s253 = scalar_lea.vmem %s1, %s252
      %p254 = pneg %p64
      %p255 = pneg %p61
      %p256 = scmp.lt.s32.totalorder %s17, 1
      %s257 = scalar_select %p256, %s17, 1
      %s258 = smul.addr %s257, 2
      %s259 = scalar_lea.vmem %s2, %s258
      %p260 = pneg %p90
      %p261 = pneg %p87
      %p262 = scmp.lt.s32.totalorder %s17, 1
      %s263 = scalar_select %p262, %s17, 1
      %s264 = smul.addr %s263, 2
      %s265 = scalar_lea.vmem %s3, %s264
      %p266 = pneg %p116
      %p267 = pneg %p113
      %p268 = pneg %p137
      %p269 = pneg %p134
      %p270 = pneg %p158
      %p271 = pneg %p155
      %p272 = pneg %p184
      %p273 = pneg %p181
      %p274 = scmp.lt.s32.totalorder %s17, 1
      %s275 = scalar_select %p274, %s17, 1
      %s276 = smul.addr %s275, 2
      %s277 = scalar_lea.vmem %s6, %s276
      %p278 = scmp.lt.s32.totalorder %s17, 1
      %s279 = scalar_select %p278, %s17, 1
      %s280 = smul.addr %s279, 2
      %s281 = scalar_lea.vmem %s0, %s280
      %p282 = scmp.lt.s32.totalorder %s17, 1
      %s283 = scalar_select %p282, %s17, 1
      %s284 = smul.addr %s283, 2
      %s285 = scalar_lea.vmem %s1, %s284
      %p286 = scmp.lt.s32.totalorder %s17, 1
      %s287 = scalar_select %p286, %s17, 1
      %s288 = smul.addr %s287, 2
      %s289 = scalar_lea.vmem %s2, %s288
      %p290 = scmp.lt.s32.totalorder %s17, 1
      %s291 = scalar_select %p290, %s17, 1
      %s292 = smul.addr %s291, 2
      %s293 = scalar_lea.vmem %s3, %s292
      %p294 = scmp.lt.s32.totalorder %s17, 1
      %s295 = scalar_select %p294, %s17, 1
      %s296 = smul.addr %s295, 2
      %s297 = scalar_lea.vmem %s6, %s296
      %v298 = vld [vmem:[%s281] sm:$0x1]
      %v299 = vld [vmem:[%s281 + $0x1] sm:$0x1]
      %v300 = vunpack.c.l.bf16 %v298
      %v301 = vunpack.c.l.bf16 %v299
      %v302 = vld [vmem:[%s4] sm:$0x1]
      %v304 = vlaneseq
      %v305 = vshrl.u32 %v304, 7
      %v306 = vsub.s32 0, %v305
      %v307 = vrot.slane %v302, %v306
      %v309 = vmul.f32 %v300, %v307
      %v310 = vmul.f32 %v301, %v307
      %v311 = vld [vmem:[%s5] sm:$0x1]
      %v313 = vlaneseq
      %v314 = vshrl.u32 %v313, 7
      %v315 = vsub.s32 0, %v314
      %v316 = vrot.slane %v311, %v315
      %v318 = vadd.f32 %v309, %v316
      %v319 = vadd.f32 %v310, %v316
      %v320 = vmax.f32 %v318, 0.0
      %v321 = vmax.f32 %v319, 0.0
      %v322 = vld [vmem:[%s285] sm:$0x1]
      %v323 = vld [vmem:[%s285 + $0x1] sm:$0x1]
      %v324 = vunpack.c.l.bf16 %v322
      %v325 = vunpack.c.l.bf16 %v323
      %v326 = vmul.f32 %v324, %v307
      %v327 = vmul.f32 %v325, %v307
      %v328 = vadd.f32 %v326, %v316
      %v329 = vadd.f32 %v327, %v316
      %v330 = vmax.f32 %v328, 0.0
      %v331 = vmax.f32 %v329, 0.0
      %v332 = vadd.f32 %v320, %v330
      %v333 = vadd.f32 %v321, %v331
      %v334 = vld [vmem:[%s289] sm:$0x1]
      %v335 = vld [vmem:[%s289 + $0x1] sm:$0x1]
      %v336 = vunpack.c.l.bf16 %v334
      %v337 = vunpack.c.l.bf16 %v335
      %v338 = vmul.f32 %v336, %v307
      %v339 = vmul.f32 %v337, %v307
      %v340 = vadd.f32 %v338, %v316
      %v341 = vadd.f32 %v339, %v316
      %v342 = vmax.f32 %v340, 0.0
      %v343 = vmax.f32 %v341, 0.0
      %v344 = vadd.f32 %v332, %v342
      %v345 = vadd.f32 %v333, %v343
      %v346 = vld [vmem:[%s293] sm:$0x1]
      %v347 = vld [vmem:[%s293 + $0x1] sm:$0x1]
      %v348 = vunpack.c.l.bf16 %v346
      %v349 = vunpack.c.l.bf16 %v347
      %v350 = vmul.f32 %v348, %v307
      %v351 = vmul.f32 %v349, %v307
      %v352 = vadd.f32 %v350, %v316
      %v353 = vadd.f32 %v351, %v316
      %v354 = vmax.f32 %v352, 0.0
      %v355 = vmax.f32 %v353, 0.0
      %v356 = vadd.f32 %v344, %v354
      %v357 = vadd.f32 %v345, %v355
      %v358 = vmul.f32 %v356, 0.25
      %v359 = vmul.f32 %v357, 0.25
      %v360 = vpack.c.bf16 %v358, %v358
      %v361 = vpack.c.bf16 %v359, %v359
      %362 = vst [vmem:[%s297] sm:$0x1] %v360
      %363 = vst [vmem:[%s297 + $0x1] sm:$0x1] %v361
      %p364 = scmp.lt.s32.totalorder %s17, 1
      %s365 = scalar_select %p364, %s17, 1
      %s366 = smul.addr %s365, 2
      %s367 = scalar_lea.vmem %s6, %s366
      // Predicated region
      $region45: #{densenet_forward.18} parent=43 // pred_check
        %p368 = pneg %p181
      $region46: #{densenet_forward.18} parent=43 // pred_check_branch
        %370 = sbr.rel (%p368) target = $region48
      $region47: #{densenet_forward.18} parent=43 // pred_region
        _
      $region48: #{densenet_forward.18} parent=43 // pred_fallthru
        _
    $region44: #{densenet_forward.18} parent=5 // pred_fallthru
      _
    %p371 = scmp.le.s32.totalorder 2, %s12
    // Predicated region
    $region49: #{densenet_forward.18} parent=5 // pred_check
      %p372 = pneg %p371
    $region50: #{densenet_forward.18} parent=5 // pred_check_branch
      %374 = sbr.rel (%p372) target = $region52
    $region51: #{densenet_forward.18} parent=5 // pred_region
      %s375 = ssub.s32 %s12, 2
      // Predicated region
      $region53: #{densenet_forward.18} parent=51 // pred_check
        %p376 = pneg %p187
      $region54: #{densenet_forward.18} parent=51 // pred_check_branch
        %378 = sbr.rel (%p376) target = $region56
      $region55: #{densenet_forward.18} parent=51 // pred_region
        %p379 = scmp.lt.s32.totalorder %s18, 1
        %s380 = scalar_select %p379, %s18, 1
        %s381 = smul.addr %s380, 2
        %s382 = scalar_lea.vmem %s6, %s381
      $region56: #{densenet_forward.18} parent=51 // pred_fallthru
        _
    $region52: #{densenet_forward.18} parent=5 // pred_fallthru
      _
  $region6: #{densenet_forward.18} parent=0 // loop_footer
    %s16 = sadd.s32 1, %s12
  $region7: #{densenet_forward.18} parent=0 // loop_footer_branch
    %11 = sbr.rel target = $region3
  $region8: #{densenet_forward.18} parent=0 // loop_exit
    _

// kernel: densenet_forward.17
$region0: #{densenet_forward.17}
  #allocation0 [shape = 'u32[]', space=smem, size = 0x4, offset = 0x4, fixed_abs, tag = 'smem constant byte address 0x4 - core index']
  #allocation1 [shape = 'u32[144,128]{1,0:T(1,128)}', space=vmem, size = 0x12000, scoped, tag = 'internal scratch']
  #allocation2 [shape = 'bf16[42,128]{1,0:T(8,128)(2,1)}', space=vmem, size = 0x3000, scoped, tag = 'scratch operand']
  #allocation3 [shape = 'f32[24,32]{1,0:T(8,128)}', space=vmem, size = 0x3000, scoped, tag = 'scratch operand']
  %s0 = inlined_call_operand.vmem [shape: bf16[2,4,4,128], index: 0, kind: input, shape index: {}]
  %s1 = inlined_call_operand.vmem [shape: bf16[2,4,4,128], index: 1, kind: input, shape index: {}]
  %s2 = inlined_call_operand.vmem [shape: bf16[9,128,32], index: 2, kind: input, shape index: {}]
  %s3 = inlined_call_operand.vmem [shape: bf16[2,4,4,128], index: 3, kind: output, shape index: {}]
  %s4 = sld [smem:[#allocation0]]
  $region45: #{densenet_forward.17} parent=0
    _
  %s6 = ssub.s32 1, %s4
  %s7 = scalar_select 0, %s6, %s4
  loop: start=0, step=1, limit=4
  $region2: #{densenet_forward.17} parent=0 // loop_pre_header
    _
  $region3: #{densenet_forward.17} parent=0 // loop_header
    %s9 = sphi 0, %s13
    %p10 = scmp.ge.s32.totalorder %s9, 4
    %s19 = sphi 0, %s21
    %s22 = sphi 0, %s19
    %s23 = sphi 0, %s22
    %s39 = sphi 0, %s23
    %s45 = sphi 0, %s47
    %s48 = sphi 0, %s45
    %s49 = sphi 0, %s48
    %s65 = sphi 0, %s49
    %s69 = sphi 0, %s69
    %s71 = sphi 0, %s69
    %s72 = sphi 0, %s71
    %s86 = sphi 0, %s72
    %s92 = sphi 0, %s94
    %s95 = sphi 0, %s92
    %s96 = sphi 0, %s95
    %s112 = sphi 0, %s96
  $region4: #{densenet_forward.17} parent=0 // loop_header_branch
    %12 = sbr.rel (%p10) target = $region8
  $region5: #{densenet_forward.17} parent=0 // loop_body
    %s14 = ssub.s32 %s9, 1
    %s15 = ssub.s32 %s9, 2
    %s16 = sadd.s32 %s9, 1
    %s17 = ssub.s32 %s9, %s16
    %p18 = scmp.eq.s32.totalorder %s17, 0
    %s20 = sadd.s32 %s19, 1
    %s21 = scalar_select %p18, %s19, %s20
    %p24 = pneg %p18
    %p25 = scmp.eq.s32.totalorder %s9, 1
    %p26 = por %p24, %p25
    %p27 = scmp.ne.s32.totalorder %s19, %s22
    %p28 = scmp.eq.s32.totalorder %s9, 0
    %p29 = por %p27, %p28
    %p30 = scmp.ne.s32.totalorder %s19, %s22
    %p31 = scmp.eq.s32.totalorder %s14, 1
    %p32 = por %p30, %p31
    %p33 = scmp.ne.s32.totalorder %s22, %s23
    %p34 = scmp.eq.s32.totalorder %s14, 0
    %p35 = por %p33, %p34
    %p36 = scmp.ne.s32.totalorder %s22, %s23
    %p37 = scmp.eq.s32.totalorder %s15, 1
    %p38 = por %p36, %p37
    %p40 = scmp.ne.s32.totalorder %s23, %s39
    %p41 = scmp.eq.s32.totalorder %s15, 0
    %p42 = por %p40, %p41
    %s43 = ssub.s32 %s9, %s16
    %p44 = scmp.eq.s32.totalorder %s43, 0
    %s46 = sadd.s32 %s45, 1
    %s47 = scalar_select %p44, %s45, %s46
    %p50 = pneg %p44
    %p51 = scmp.eq.s32.totalorder %s9, 1
    %p52 = por %p50, %p51
    %p53 = scmp.ne.s32.totalorder %s45, %s48
    %p54 = scmp.eq.s32.totalorder %s9, 0
    %p55 = por %p53, %p54
    %p56 = scmp.ne.s32.totalorder %s45, %s48
    %p57 = scmp.eq.s32.totalorder %s14, 1
    %p58 = por %p56, %p57
    %p59 = scmp.ne.s32.totalorder %s48, %s49
    %p60 = scmp.eq.s32.totalorder %s14, 0
    %p61 = por %p59, %p60
    %p62 = scmp.ne.s32.totalorder %s48, %s49
    %p63 = scmp.eq.s32.totalorder %s15, 1
    %p64 = por %p62, %p63
    %p66 = scmp.ne.s32.totalorder %s49, %s65
    %p67 = scmp.eq.s32.totalorder %s15, 0
    %p68 = por %p66, %p67
    %s70 = sadd.s32 %s69, 1
    %p73 = scmp.eq.s32.totalorder %s9, 1
    %p74 = scmp.ne.s32.totalorder %s69, %s71
    %p75 = scmp.eq.s32.totalorder %s9, 0
    %p76 = por %p74, %p75
    %p77 = scmp.ne.s32.totalorder %s69, %s71
    %p78 = scmp.eq.s32.totalorder %s14, 1
    %p79 = por %p77, %p78
    %p80 = scmp.ne.s32.totalorder %s71, %s72
    %p81 = scmp.eq.s32.totalorder %s14, 0
    %p82 = por %p80, %p81
    %p83 = scmp.ne.s32.totalorder %s71, %s72
    %p84 = scmp.eq.s32.totalorder %s15, 1
    %p85 = por %p83, %p84
    %p87 = scmp.ne.s32.totalorder %s72, %s86
    %p88 = scmp.eq.s32.totalorder %s15, 0
    %p89 = por %p87, %p88
    %s90 = ssub.s32 %s9, %s16
    %p91 = scmp.eq.s32.totalorder %s90, 0
    %s93 = sadd.s32 %s92, 1
    %s94 = scalar_select %p91, %s92, %s93
    %p97 = pneg %p91
    %p98 = scmp.eq.s32.totalorder %s9, 1
    %p99 = por %p97, %p98
    %p100 = scmp.ne.s32.totalorder %s92, %s95
    %p101 = scmp.eq.s32.totalorder %s9, 0
    %p102 = por %p100, %p101
    %p103 = scmp.ne.s32.totalorder %s92, %s95
    %p104 = scmp.eq.s32.totalorder %s14, 1
    %p105 = por %p103, %p104
    %p106 = scmp.ne.s32.totalorder %s95, %s96
    %p107 = scmp.eq.s32.totalorder %s14, 0
    %p108 = por %p106, %p107
    %p109 = scmp.ne.s32.totalorder %s95, %s96
    %p110 = scmp.eq.s32.totalorder %s15, 1
    %p111 = por %p109, %p110
    %p113 = scmp.ne.s32.totalorder %s96, %s112
    %p114 = scmp.eq.s32.totalorder %s15, 0
    %p115 = por %p113, %p114
    %p116 = scmp.le.s32.totalorder 1, %s9
    %p117 = scmp.lt.s32.totalorder %s9, 3
    %p118 = pnand %p116, %p117
    %p119 = pneg %p118
    // Predicated region
    $region9: #{densenet_forward.17} parent=5 // pred_check
      _
    $region10: #{densenet_forward.17} parent=5 // pred_check_branch
      %121 = sbr.rel (%p118) target = $region12
    $region11: #{densenet_forward.17} parent=5 // pred_region
      %s122 = ssub.s32 %s9, 1
      // Predicated region
      $region13: #{densenet_forward.17} parent=11 // pred_check
        %p123 = pneg %p82
      $region14: #{densenet_forward.17} parent=11 // pred_check_branch
        %125 = sbr.rel (%p123) target = $region16
      $region15: #{densenet_forward.17} parent=11 // pred_region
        _
      $region16: #{densenet_forward.17} parent=11 // pred_fallthru
        _
    $region12: #{densenet_forward.17} parent=5 // pred_fallthru
      _
    %p126 = scmp.lt.s32.totalorder %s9, 2
    // Predicated region
    $region17: #{densenet_forward.17} parent=5 // pred_check
      %p127 = pneg %p126
    $region18: #{densenet_forward.17} parent=5 // pred_check_branch
      %129 = sbr.rel (%p127) target = $region20
    $region19: #{densenet_forward.17} parent=5 // pred_region
      // Predicated region
      $region21: #{densenet_forward.17} parent=19 // pred_check
        %p130 = pneg %p29
      $region22: #{densenet_forward.17} parent=19 // pred_check_branch
        %132 = sbr.rel (%p130) target = $region24
      $region23: #{densenet_forward.17} parent=19 // pred_region
        %p133 = scmp.lt.s32.totalorder %s9, 1
        %s134 = scalar_select %p133, %s9, 1
        %s135 = smul.addr %s134, 4
        %s136 = smul.addr %s135, 2
        %s137 = scalar_lea.vmem %s0, %s136
      $region24: #{densenet_forward.17} parent=19 // pred_fallthru
        _
      // Predicated region
      $region25: #{densenet_forward.17} parent=19 // pred_check
        %p138 = pneg %p55
      $region26: #{densenet_forward.17} parent=19 // pred_check_branch
        %140 = sbr.rel (%p138) target = $region28
      $region27: #{densenet_forward.17} parent=19 // pred_region
        %p141 = scmp.lt.s32.totalorder %s9, 1
        %s142 = scalar_select %p141, %s9, 1
        %s143 = smul.addr %s142, 4
        %s144 = smul.addr %s143, 2
        %s145 = scalar_lea.vmem %s1, %s144
      $region28: #{densenet_forward.17} parent=19 // pred_fallthru
        _
    $region20: #{densenet_forward.17} parent=5 // pred_fallthru
      _
    %p146 = scmp.le.s32.totalorder 1, %s9
    %p147 = scmp.lt.s32.totalorder %s9, 3
    %p148 = pnand %p146, %p147
    %p149 = pneg %p148
    // Predicated region
    $region29: #{densenet_forward.17} parent=5 // pred_check
      _
    $region30: #{densenet_forward.17} parent=5 // pred_check_branch
      %151 = sbr.rel (%p148) target = $region32
    $region31: #{densenet_forward.17} parent=5 // pred_region
      %s152 = ssub.s32 %s9, 1
      %p153 = scmp.lt.s32.totalorder %s14, 1
      %s154 = scalar_select %p153, %s14, 1
      %s155 = smul.addr %s154, 4
      %s156 = smul.addr %s155, 2
      %s157 = scalar_lea.vmem %s0, %s156
      %p158 = pneg %p35
      %p159 = pneg %p32
      %p160 = scmp.lt.s32.totalorder %s14, 1
      %s161 = scalar_select %p160, %s14, 1
      %s162 = smul.addr %s161, 4
      %s163 = smul.addr %s162, 2
      %s164 = scalar_lea.vmem %s1, %s163
      %p165 = pneg %p61
      %p166 = pneg %p58
      %p167 = pneg %p82
      %p168 = pneg %p79
      %p169 = pneg %p108
      %p170 = pneg %p105
      %p171 = scmp.lt.s32.totalorder %s14, 1
      %s172 = scalar_select %p171, %s14, 1
      %s173 = smul.addr %s172, 4
      %s174 = smul.addr %s173, 2
      %s175 = scalar_lea.vmem %s3, %s174
      %p176 = scmp.lt.s32.totalorder %s14, 1
      %s177 = scalar_select %p176, %s14, 1
      %s178 = smul.addr %s177, 4
      %s179 = smul.addr %s178, 2
      %s180 = scalar_lea.vmem %s0, %s179
      %p181 = scmp.lt.s32.totalorder %s14, 1
      %s182 = scalar_select %p181, %s14, 1
      %s183 = smul.addr %s182, 4
      %s184 = smul.addr %s183, 2
      %s185 = scalar_lea.vmem %s1, %s184
      %p186 = scmp.lt.s32.totalorder %s14, 1
      %s187 = scalar_select %p186, %s14, 1
      %s188 = smul.addr %s187, 4
      %s189 = smul.addr %s188, 2
      %s190 = scalar_lea.vmem %s3, %s189
      %192 = vst [vmem:[#allocation2] sm:$0xf] 0
      %193 = vst [vmem:[#allocation2 + $0x4] sm:$0xf] 0
      %194 = vst [vmem:[#allocation2 + $0x8] sm:$0xf] 0
      %195 = vst [vmem:[#allocation2 + $0xc] sm:$0xf] 0
      %196 = vst [vmem:[#allocation2 + $0x10] sm:$0xf] 0
      %197 = vst [vmem:[#allocation2 + $0x14] sm:$0x1] 0
      %v198 = vld [vmem:[%s180] sm:$0x3]
      %v201 = vunpack.c.l.s4 1983009808
      %v202 = vunpack.c.0.s8 %v201
      %v203 = vlaneseq
      %v204 = vshrl.u32 %v203, 7
      %v205 = vsub.s32 %v202, %v204
      %v206 = vrot.slane %v198, %v205
      %v208 = vshll.u32 %v206, 16
      %v210 = vrot.slane %v208, 5
      %v211 = vshrl.u32 %v206, 16
      %v213 = vrot.slane %v211, 4
      %v214 = vor.u32 %v213, %v210
      %v215 = vrot.slane %v214, 4
      %vm218 = vcmask 1043459
      %vm219 = vsmask.f32 7950
      %vm220 = vmand %vm218, %vm219
      %v221 = vld [vmem:[#allocation2] sm:$0x8]
      %v222 = vsel %vm220, %v210, %v221
      %223 = vst [vmem:[#allocation2] sm:$0x8] %v222
      %vm224 = vcmask 1041408
      %vm225 = vsmask.f32 1280
      %vm226 = vmand %vm224, %vm225
      %v227 = vld [vmem:[#allocation2 + $0x4] sm:$0x3]
      %v228 = vsel %vm226, %v215, %v227
      %229 = vst [vmem:[#allocation2 + $0x4] sm:$0x3] %v228
      %s230 = scalar_lea.vmem %s180, 2
      %v231 = vld [vmem:[%s230] sm:$0x3]
      %v234 = vunpack.c.l.s4 1983009808
      %v235 = vunpack.c.0.s8 %v234
      %v236 = vlaneseq
      %v237 = vshrl.u32 %v236, 7
      %v238 = vsub.s32 %v235, %v237
      %v239 = vrot.slane %v231, %v238
      %v241 = vshrl.u32 %v239, 16
      %v243 = vrot.slane %v241, 5
      %v244 = vshll.u32 %v239, 16
      %v246 = vrot.slane %v244, 6
      %v247 = vor.u32 %v243, %v246
      %v248 = vrot.slane %v243, 4
      %vm251 = vcmask 1043458
      %vm252 = vsmask.f32 7946
      %vm253 = vmand %vm251, %vm252
      %v254 = vld [vmem:[#allocation2 + $0x4] sm:$0xc]
      %v255 = vsel %vm253, %v247, %v254
      %256 = vst [vmem:[#allocation2 + $0x4] sm:$0xc] %v255
      %vm257 = vcmask 1040384
      %vm258 = vsmask.f32 256
      %vm259 = vmand %vm257, %vm258
      %v260 = vld [vmem:[#allocation2 + $0x8] sm:$0x1]
      %v261 = vsel %vm259, %v248, %v260
      %262 = vst [vmem:[#allocation2 + $0x8] sm:$0x1] %v261
      %s263 = scalar_lea.vmem %s180, 4
      %v264 = vld [vmem:[%s263] sm:$0x3]
      %v267 = vunpack.c.l.s4 1983009808
      %v268 = vunpack.c.0.s8 %v267
      %v269 = vlaneseq
      %v270 = vshrl.u32 %v269, 7
      %v271 = vsub.s32 %v268, %v270
      %v272 = vrot.slane %v264, %v271
      %v274 = vshrl.u32 %v272, 16
      %v276 = vrot.slane %v274, 6
      %v277 = vshll.u32 %v272, 16
      %v279 = vrot.slane %v277, 7
      %v280 = vor.u32 %v276, %v279
      %vm282 = vcmask 1043457
      %vm283 = vsmask.f32 3334
      %vm284 = vmand %vm282, %vm283
      %v285 = vld [vmem:[#allocation2 + $0x8] sm:$0xe]
      %v286 = vsel %vm284, %v280, %v285
      %287 = vst [vmem:[#allocation2 + $0x8] sm:$0xe] %v286
      %s288 = scalar_lea.vmem %s180, 6
      %v289 = vld [vmem:[%s288] sm:$0x3]
      %v292 = vunpack.c.l.s4 1983009808
      %v293 = vunpack.c.0.s8 %v292
      %v294 = vlaneseq
      %v295 = vshrl.u32 %v294, 7
      %v296 = vsub.s32 %v293, %v295
      %v297 = vrot.slane %v289, %v296
      %v299 = vshrl.u32 %v297, 16
      %v301 = vrot.slane %v299, 7
      %v302 = vshll.u32 %v297, 16
      %v304 = vor.u32 %v301, %v302
      %vm306 = vcmask 1042432
      %vm307 = vsmask.f32 2306
      %vm308 = vmand %vm306, %vm307
      %v309 = vld [vmem:[#allocation2 + $0xc] sm:$0x7]
      %v310 = vsel %vm308, %v304, %v309
      %311 = vst [vmem:[#allocation2 + $0xc] sm:$0x7] %v310
      %vm312 = vcmask 261120
      %313 = vst.msk [vmem:[#allocation3] sm:$0xff] %vm312, 0.0
      %314 = vst.msk [vmem:[#allocation3 + $0x8] sm:$0xff] %vm312, 0.0
      %315 = vst.msk [vmem:[#allocation3 + $0x10] sm:$0xff] %vm312, 0.0
      %v316 = vld [vmem:[#allocation2] sm:$0xf]
      %v317 = vld [vmem:[#allocation2 + $0x4] sm:$0xf]
      %v318 = vld [vmem:[#allocation2 + $0x8] sm:$0xf]
      %v319 = vld [vmem:[#allocation3] sm:$0xff]
      %v320 = vld [vmem:[#allocation3 + $0x8] sm:$0xff]
      %v321 = vld [vmem:[#allocation3 + $0x10] sm:$0xff]
      %v322 = vld [vmem:[%s2] sm:$0xf]
      %v323 = vld [vmem:[%s2 + $0x4] sm:$0xf]
      %v324 = vld [vmem:[%s2 + $0x8] sm:$0xf]
      %v325 = vld [vmem:[%s2 + $0xc] sm:$0xf]
      %v326 = vld [vmem:[%s2 + $0x10] sm:$0xf]
      %v327 = vld [vmem:[%s2 + $0x14] sm:$0xf]
      %v328 = vld [vmem:[%s2 + $0x18] sm:$0xf]
      %v329 = vld [vmem:[%s2 + $0x1c] sm:$0xf]
      %v330 = vld [vmem:[%s2 + $0x20] sm:$0xf]
      %v331 = vld [vmem:[%s2 + $0x24] sm:$0xf]
      %v332 = vld [vmem:[%s2 + $0x28] sm:$0xf]
      %v333 = vld [vmem:[%s2 + $0x2c] sm:$0xf]
      %v334 = vld [vmem:[%s2 + $0x30] sm:$0xf]
      %v335 = vld [vmem:[%s2 + $0x34] sm:$0xf]
      %v336 = vld [vmem:[%s2 + $0x38] sm:$0xf]
      %v337 = vld [vmem:[%s2 + $0x3c] sm:$0xf]
      %v341 = vunpack.c.l.b16 %v316
      %v342 = vunpack.c.l.b16 %v317
      %v343 = vunpack.c.l.b16 %v318
      %v344 = vpack.c.b16 %v342, %v341
      %v345 = vpack.c.b16 %v343, %v343
      %v364 = vunpack.c.l.b16 %v322
      %v365 = vunpack.c.l.b16 %v323
      %v366 = vunpack.c.l.b16 %v324
      %v367 = vunpack.c.l.b16 %v325
      %v368 = vunpack.c.l.b16 %v326
      %v369 = vunpack.c.l.b16 %v327
      %v370 = vunpack.c.l.b16 %v328
      %v371 = vunpack.c.l.b16 %v329
      %v372 = vunpack.c.l.b16 %v330
      %v373 = vunpack.c.l.b16 %v331
      %v374 = vunpack.c.l.b16 %v332
      %v375 = vunpack.c.l.b16 %v333
      %v376 = vunpack.c.l.b16 %v334
      %v377 = vunpack.c.l.b16 %v335
      %v378 = vunpack.c.l.b16 %v336
      %v379 = vunpack.c.l.b16 %v337
      %v380 = vpack.c.b16 %v365, %v364
      %v381 = vpack.c.b16 %v367, %v366
      %v382 = vpack.c.b16 %v369, %v368
      %v383 = vpack.c.b16 %v371, %v370
      %v384 = vpack.c.b16 %v373, %v372
      %v385 = vpack.c.b16 %v375, %v374
      %v386 = vpack.c.b16 %v377, %v376
      %v387 = vpack.c.b16 %v379, %v378
      %396 = vmatprep.subr.bf16.mxu0 0
      %397 = vmatpush1.bf16.msra.mxu0 %v380
      %398 = vmatprep.subr.bf16.mxu0 0
      %399 = vmatpush1.bf16.msra.mxu0 %v381
      %400 = vmatprep.subr.bf16.mxu0 0
      %401 = vmatpush1.bf16.msra.mxu0 %v382
      %402 = vmatprep.subr.bf16.mxu0 0
      %403 = vmatpush1.bf16.msra.mxu0 %v383
      %404 = vmatprep.subr.bf16.mxu0 0
      %405 = vmatpush1.bf16.msra.mxu0 %v384
      %406 = vmatprep.subr.bf16.mxu0 0
      %407 = vmatpush1.bf16.msra.mxu0 %v385
      %408 = vmatprep.subr.bf16.mxu0 0
      %409 = vmatpush1.bf16.msra.mxu0 %v386
      %410 = vmatprep.subr.bf16.mxu0 0
      %411 = vmatpush1.bf16.msra.mxu0 %v387
      %412 = vmatprep.subr.bf16.mxu0 0
      %413 = vmatpush1.bf16.msra.mxu0 0
      %414 = vmatprep.subr.bf16.mxu0 0
      %415 = vmatpush1.bf16.msra.mxu0 0
      %416 = vmatprep.subr.bf16.mxu0 0
      %417 = vmatpush1.bf16.msra.mxu0 0
      %418 = vmatprep.subr.bf16.mxu0 0
      %419 = vmatpush1.bf16.msra.mxu0 0
      %420 = vmatprep.subr.bf16.mxu0 0
      %421 = vmatpush1.bf16.msra.mxu0 0
      %422 = vmatprep.subr.bf16.mxu0 0
      %423 = vmatpush1.bf16.msra.mxu0 0
      %424 = vmatprep.subr.bf16.mxu0 0
      %425 = vmatpush1.bf16.msra.mxu0 0
      %426 = vmatprep.subr.bf16.mxu0 0
      %427 = vmatpush1.bf16.msra.mxu0 0
      %428 = vmatprep.mubr.bf16.mxu0 0
      %429 = vmatmul.mubr.bf16.gmra.mrb[0].mxu0 %v344
      %v430 = vpop.f32.mrb[0].mxu0
      %v431 = vadd.f32 0.0, %v430
      %v432 = vpop.f32.mrb[0].mxu0
      %v433 = vpop.f32.mrb[0].mxu0
      %v434 = vadd.f32 0.0, %v433
      %v435 = vpop.f32.mrb[0].mxu0
      %436 = vmatprep.mubr.bf16.mxu0 0
      %437 = vmatmul.mubr.bf16.gmra.mrb[0].mxu0 %v345
      %v438 = vpop.f32.mrb[0].mxu0
      %v439 = vadd.f32 0.0, %v438
      %v440 = vpop.f32.mrb[0].mxu0
      %v441 = vpop.f32.mrb[0].mxu0
      %v442 = vpop.f32.mrb[0].mxu0
      %443 = vdwg.mxu0
      %v444 = vadd.f32 %v319, %v431
      %v445 = vadd.f32 %v320, %v434
      %v446 = vadd.f32 %v321, %v439
      %447 = vst.msk [vmem:[#allocation3] sm:$0xff] %vm312, %v444
      %448 = vst.msk [vmem:[#allocation3 + $0x8] sm:$0xff] %vm312, %v445
      %449 = vst.msk [vmem:[#allocation3 + $0x10] sm:$0xff] %vm312, %v446
      %v450 = vld [vmem:[#allocation2] sm:$0xf]
      %v451 = vld [vmem:[#allocation2 + $0x4] sm:$0xf]
      %v452 = vld [vmem:[#allocation2 + $0x8] sm:$0xf]
      %v453 = vld [vmem:[#allocation2 + $0xc] sm:$0x1]
      %v454 = vld [vmem:[#allocation3] sm:$0xff]
      %v455 = vld [vmem:[#allocation3 + $0x8] sm:$0xff]
      %v456 = vld [vmem:[#allocation3 + $0x10] sm:$0xff]
      %s457 = scalar_lea.vmem %s2, 64
      %v458 = vld [vmem:[%s457] sm:$0xf]
      %v459 = vld [vmem:[%s457 + $0x4] sm:$0xf]
      %v460 = vld [vmem:[%s457 + $0x8] sm:$0xf]
      %v461 = vld [vmem:[%s457 + $0xc] sm:$0xf]
      %v462 = vld [vmem:[%s457 + $0x10] sm:$0xf]
      %v463 = vld [vmem:[%s457 + $0x14] sm:$0xf]
      %v464 = vld [vmem:[%s457 + $0x18] sm:$0xf]
      %v465 = vld [vmem:[%s457 + $0x1c] sm:$0xf]
      %v466 = vld [vmem:[%s457 + $0x20] sm:$0xf]
      %v467 = vld [vmem:[%s457 + $0x24] sm:$0xf]
      %v468 = vld [vmem:[%s457 + $0x28] sm:$0xf]
      %v469 = vld [vmem:[%s457 + $0x2c] sm:$0xf]
      %v470 = vld [vmem:[%s457 + $0x30] sm:$0xf]
      %v471 = vld [vmem:[%s457 + $0x34] sm:$0xf]
      %v472 = vld [vmem:[%s457 + $0x38] sm:$0xf]
      %v473 = vld [vmem:[%s457 + $0x3c] sm:$0xf]
      %v478 = vunpack.c.l.b16 %v450
      %v479 = vunpack.c.l.b16 %v451
      %v480 = vunpack.c.l.b16 %v452
      %v481 = vunpack.c.l.b16 %v453
      %v482 = vpack.c.b16 %v479, %v478
      %v483 = vpack.c.b16 %v481, %v480
      %vm484 = vsmask.f32 7424
      %v486 = vshrl.u32 %v482, 16
      %v488 = vshll.u32 %v482, 16
      %v490 = vrot.slane %v488, 1
      %v491 = vor.u32 %v486, %v490
      %v493 = vshll.u32 %v483, 16
      %v495 = vrot.slane %v493, 1
      %v496 = vsel %vm484, %v491, %v495
      %v497 = vshrl.u32 %v483, 16
      %v499 = vor.u32 %v497, %v495
      %v518 = vunpack.c.l.b16 %v458
      %v519 = vunpack.c.l.b16 %v459
      %v520 = vunpack.c.l.b16 %v460
      %v521 = vunpack.c.l.b16 %v461
      %v522 = vunpack.c.l.b16 %v462
      %v523 = vunpack.c.l.b16 %v463
      %v524 = vunpack.c.l.b16 %v464
      %v525 = vunpack.c.l.b16 %v465
      %v526 = vunpack.c.l.b16 %v466
      %v527 = vunpack.c.l.b16 %v467
      %v528 = vunpack.c.l.b16 %v468
      %v529 = vunpack.c.l.b16 %v469
      %v530 = vunpack.c.l.b16 %v470
      %v531 = vunpack.c.l.b16 %v471
      %v532 = vunpack.c.l.b16 %v472
      %v533 = vunpack.c.l.b16 %v473
      %v534 = vpack.c.b16 %v519, %v518
      %v535 = vpack.c.b16 %v521, %v520
      %v536 = vpack.c.b16 %v523, %v522
      %v537 = vpack.c.b16 %v525, %v524
      %v538 = vpack.c.b16 %v527, %v526
      %v539 = vpack.c.b16 %v529, %v528
      %v540 = vpack.c.b16 %v531, %v530
      %v541 = vpack.c.b16 %v533, %v532
      %550 = vmatprep.subr.bf16.mxu0 0
      %551 = vmatpush1.bf16.msra.mxu0 %v534
      %552 = vmatprep.subr.bf16.mxu0 0
      %553 = vmatpush1.bf16.msra.mxu0 %v535
      %554 = vmatprep.subr.bf16.mxu0 0
      %555 = vmatpush1.bf16.msra.mxu0 %v536
      %556 = vmatprep.subr.bf16.mxu0 0
      %557 = vmatpush1.bf16.msra.mxu0 %v537
      %558 = vmatprep.subr.bf16.mxu0 0
      %559 = vmatpush1.bf16.msra.mxu0 %v538
      %560 = vmatprep.subr.bf16.mxu0 0
      %561 = vmatpush1.bf16.msra.mxu0 %v539
      %562 = vmatprep.subr.bf16.mxu0 0
      %563 = vmatpush1.bf16.msra.mxu0 %v540
      %564 = vmatprep.subr.bf16.mxu0 0
      %565 = vmatpush1.bf16.msra.mxu0 %v541
      %566 = vmatprep.subr.bf16.mxu0 0
      %567 = vmatpush1.bf16.msra.mxu0 0
      %568 = vmatprep.subr.bf16.mxu0 0
      %569 = vmatpush1.bf16.msra.mxu0 0
      %570 = vmatprep.subr.bf16.mxu0 0
      %571 = vmatpush1.bf16.msra.mxu0 0
      %572 = vmatprep.subr.bf16.mxu0 0
      %573 = vmatpush1.bf16.msra.mxu0 0
      %574 = vmatprep.subr.bf16.mxu0 0
      %575 = vmatpush1.bf16.msra.mxu0 0
      %576 = vmatprep.subr.bf16.mxu0 0
      %577 = vmatpush1.bf16.msra.mxu0 0
      %578 = vmatprep.subr.bf16.mxu0 0
      %579 = vmatpush1.bf16.msra.mxu0 0
      %580 = vmatprep.subr.bf16.mxu0 0
      %581 = vmatpush1.bf16.msra.mxu0 0
      %582 = vmatprep.mubr.bf16.mxu0 0
      %583 = vmatmul.mubr.bf16.gmra.mrb[0].mxu0 %v496
      %v584 = vpop.f32.mrb[0].mxu0
      %v585 = vadd.f32 0.0, %v584
      %v586 = vpop.f32.mrb[0].mxu0
      %v587 = vpop.f32.mrb[0].mxu0
      %v588 = vadd.f32 0.0, %v587
      %v589 = vpop.f32.mrb[0].mxu0
      %590 = vmatprep.mubr.bf16.mxu0 0
      %591 = vmatmul.mubr.bf16.gmra.mrb[0].mxu0 %v499
      %v592 = vpop.f32.mrb[0].mxu0
      %v593 = vadd.f32 0.0, %v592
      %v594 = vpop.f32.mrb[0].mxu0
      %v595 = vpop.f32.mrb[0].mxu0
      %v596 = vpop.f32.mrb[0].mxu0
      %597 = vdwg.mxu0
      %v598 = vadd.f32 %v454, %v585
      %v599 = vadd.f32 %v455, %v588
      %v600 = vadd.f32 %v456, %v593
      %601 = vst.msk [vmem:[#allocation3] sm:$0xff] %vm312, %v598
      %602 = vst.msk [vmem:[#allocation3 + $0x8] sm:$0xff] %vm312, %v599
      %603 = vst.msk [vmem:[#allocation3 + $0x10] sm:$0xff] %vm312, %v600
      %v604 = vld [vmem:[#allocation2] sm:$0xe]
      %v605 = vld [vmem:[#allocation2 + $0x4] sm:$0xf]
      %v606 = vld [vmem:[#allocation2 + $0x8] sm:$0xf]
      %v607 = vld [vmem:[#allocation2 + $0xc] sm:$0x1]
      %v608 = vld [vmem:[#allocation3] sm:$0xff]
      %v609 = vld [vmem:[#allocation3 + $0x8] sm:$0xff]
      %v610 = vld [vmem:[#allocation3 + $0x10] sm:$0xff]
      %s611 = scalar_lea.vmem %s2, 128
      %v612 = vld [vmem:[%s611] sm:$0xf]
      %v613 = vld [vmem:[%s611 + $0x4] sm:$0xf]
      %v614 = vld [vmem:[%s611 + $0x8] sm:$0xf]
      %v615 = vld [vmem:[%s611 + $0xc] sm:$0xf]
      %v616 = vld [vmem:[%s611 + $0x10] sm:$0xf]
      %v617 = vld [vmem:[%s611 + $0x14] sm:$0xf]
      %v618 = vld [vmem:[%s611 + $0x18] sm:$0xf]
      %v619 = vld [vmem:[%s611 + $0x1c] sm:$0xf]
      %v620 = vld [vmem:[%s611 + $0x20] sm:$0xf]
      %v621 = vld [vmem:[%s611 + $0x24] sm:$0xf]
      %v622 = vld [vmem:[%s611 + $0x28] sm:$0xf]
      %v623 = vld [vmem:[%s611 + $0x2c] sm:$0xf]
      %v624 = vld [vmem:[%s611 + $0x30] sm:$0xf]
      %v625 = vld [vmem:[%s611 + $0x34] sm:$0xf]
      %v626 = vld [vmem:[%s611 + $0x38] sm:$0xf]
      %v627 = vld [vmem:[%s611 + $0x3c] sm:$0xf]
      %v632 = vunpack.c.l.b16 %v604
      %v633 = vunpack.c.l.b16 %v605
      %v634 = vunpack.c.l.b16 %v606
      %v635 = vunpack.c.l.b16 %v607
      %v636 = vpack.c.b16 %v633, %v632
      %v637 = vpack.c.b16 %v635, %v634
      %vm638 = vcmask 1046528
      %v639 = vrot.slane %v636, 1
      %v640 = vrot.slane %v637, 1
      %v641 = vsel %vm638, %v639, %v640
      %v660 = vunpack.c.l.b16 %v612
      %v661 = vunpack.c.l.b16 %v613
      %v662 = vunpack.c.l.b16 %v614
      %v663 = vunpack.c.l.b16 %v615
      %v664 = vunpack.c.l.b16 %v616
      %v665 = vunpack.c.l.b16 %v617
      %v666 = vunpack.c.l.b16 %v618
      %v667 = vunpack.c.l.b16 %v619
      %v668 = vunpack.c.l.b16 %v620
      %v669 = vunpack.c.l.b16 %v621
      %v670 = vunpack.c.l.b16 %v622
      %v671 = vunpack.c.l.b16 %v623
      %v672 = vunpack.c.l.b16 %v624
      %v673 = vunpack.c.l.b16 %v625
      %v674 = vunpack.c.l.b16 %v626
      %v675 = vunpack.c.l.b16 %v627
      %v676 = vpack.c.b16 %v661, %v660
      %v677 = vpack.c.b16 %v663, %v662
      %v678 = vpack.c.b16 %v665, %v664
      %v679 = vpack.c.b16 %v667, %v666
      %v680 = vpack.c.b16 %v669, %v668
      %v681 = vpack.c.b16 %v671, %v670
      %v682 = vpack.c.b16 %v673, %v672
      %v683 = vpack.c.b16 %v675, %v674
      %692 = vmatprep.subr.bf16.mxu0 0
      %693 = vmatpush1.bf16.msra.mxu0 %v676
      %694 = vmatprep.subr.bf16.mxu0 0
      %695 = vmatpush1.bf16.msra.mxu0 %v677
      %696 = vmatprep.subr.bf16.mxu0 0
      %697 = vmatpush1.bf16.msra.mxu0 %v678
      %698 = vmatprep.subr.bf16.mxu0 0
      %699 = vmatpush1.bf16.msra.mxu0 %v679
      %700 = vmatprep.subr.bf16.mxu0 0
      %701 = vmatpush1.bf16.msra.mxu0 %v680
      %702 = vmatprep.subr.bf16.mxu0 0
      %703 = vmatpush1.bf16.msra.mxu0 %v681
      %704 = vmatprep.subr.bf16.mxu0 0
      %705 = vmatpush1.bf16.msra.mxu0 %v682
      %706 = vmatprep.subr.bf16.mxu0 0
      %707 = vmatpush1.bf16.msra.mxu0 %v683
      %708 = vmatprep.subr.bf16.mxu0 0
      %709 = vmatpush1.bf16.msra.mxu0 0
      %710 = vmatprep.subr.bf16.mxu0 0
      %711 = vmatpush1.bf16.msra.mxu0 0
      %712 = vmatprep.subr.bf16.mxu0 0
      %713 = vmatpush1.bf16.msra.mxu0 0
      %714 = vmatprep.subr.bf16.mxu0 0
      %715 = vmatpush1.bf16.msra.mxu0 0
      %716 = vmatprep.subr.bf16.mxu0 0
      %717 = vmatpush1.bf16.msra.mxu0 0
      %718 = vmatprep.subr.bf16.mxu0 0
      %719 = vmatpush1.bf16.msra.mxu0 0
      %720 = vmatprep.subr.bf16.mxu0 0
      %721 = vmatpush1.bf16.msra.mxu0 0
      %722 = vmatprep.subr.bf16.mxu0 0
      %723 = vmatpush1.bf16.msra.mxu0 0
      %724 = vmatprep.mubr.bf16.mxu0 0
      %725 = vmatmul.mubr.bf16.gmra.mrb[0].mxu0 %v641
      %v726 = vpop.f32.mrb[0].mxu0
      %v727 = vadd.f32 0.0, %v726
      %v728 = vpop.f32.mrb[0].mxu0
      %v729 = vpop.f32.mrb[0].mxu0
      %v730 = vadd.f32 0.0, %v729
      %v731 = vpop.f32.mrb[0].mxu0
      %732 = vmatprep.mubr.bf16.mxu0 0
      %733 = vmatmul.mubr.bf16.gmra.mrb[0].mxu0 %v640
      %v734 = vpop.f32.mrb[0].mxu0
      %v735 = vadd.f32 0.0, %v734
      %v736 = vpop.f32.mrb[0].mxu0
      %v737 = vpop.f32.mrb[0].mxu0
      %v738 = vpop.f32.mrb[0].mxu0
      %739 = vdwg.mxu0
      %v740 = vadd.f32 %v608, %v727
      %v741 = vadd.f32 %v609, %v730
      %v742 = vadd.f32 %v610, %v735
      %743 = vst.msk [vmem:[#allocation3] sm:$0xff] %vm312, %v740
      %744 = vst.msk [vmem:[#allocation3 + $0x8] sm:$0xff] %vm312, %v741
      %745 = vst.msk [vmem:[#allocation3 + $0x10] sm:$0xff] %vm312, %v742
      %v746 = vld [vmem:[#allocation2] sm:$0x8]
      %v747 = vld [vmem:[#allocation2 + $0x4] sm:$0xf]
      %v748 = vld [vmem:[#allocation2 + $0x8] sm:$0xf]
      %v749 = vld [vmem:[#allocation2 + $0xc] sm:$0x7]
      %v750 = vld [vmem:[#allocation3] sm:$0xff]
      %v751 = vld [vmem:[#allocation3 + $0x8] sm:$0xff]
      %v752 = vld [vmem:[#allocation3 + $0x10] sm:$0xff]
      %s753 = scalar_lea.vmem %s2, 192
      %v754 = vld [vmem:[%s753] sm:$0xf]
      %v755 = vld [vmem:[%s753 + $0x4] sm:$0xf]
      %v756 = vld [vmem:[%s753 + $0x8] sm:$0xf]
      %v757 = vld [vmem:[%s753 + $0xc] sm:$0xf]
      %v758 = vld [vmem:[%s753 + $0x10] sm:$0xf]
      %v759 = vld [vmem:[%s753 + $0x14] sm:$0xf]
      %v760 = vld [vmem:[%s753 + $0x18] sm:$0xf]
      %v761 = vld [vmem:[%s753 + $0x1c] sm:$0xf]
      %v762 = vld [vmem:[%s753 + $0x20] sm:$0xf]
      %v763 = vld [vmem:[%s753 + $0x24] sm:$0xf]
      %v764 = vld [vmem:[%s753 + $0x28] sm:$0xf]
      %v765 = vld [vmem:[%s753 + $0x2c] sm:$0xf]
      %v766 = vld [vmem:[%s753 + $0x30] sm:$0xf]
      %v767 = vld [vmem:[%s753 + $0x34] sm:$0xf]
      %v768 = vld [vmem:[%s753 + $0x38] sm:$0xf]
      %v769 = vld [vmem:[%s753 + $0x3c] sm:$0xf]
      %v774 = vunpack.c.l.b16 %v746
      %v775 = vunpack.c.l.b16 %v747
      %v776 = vunpack.c.l.b16 %v748
      %v777 = vunpack.c.l.b16 %v749
      %v778 = vpack.c.b16 %v775, %v774
      %v779 = vpack.c.b16 %v777, %v776
      %vm780 = vcmask 1044480
      %v781 = vrot.slane %v778, 3
      %v782 = vrot.slane %v779, 3
      %v783 = vsel %vm780, %v781, %v782
      %v802 = vunpack.c.l.b16 %v754
      %v803 = vunpack.c.l.b16 %v755
      %v804 = vunpack.c.l.b16 %v756
      %v805 = vunpack.c.l.b16 %v757
      %v806 = vunpack.c.l.b16 %v758
      %v807 = vunpack.c.l.b16 %v759
      %v808 = vunpack.c.l.b16 %v760
      %v809 = vunpack.c.l.b16 %v761
      %v810 = vunpack.c.l.b16 %v762
      %v811 = vunpack.c.l.b16 %v763
      %v812 = vunpack.c.l.b16 %v764
      %v813 = vunpack.c.l.b16 %v765
      %v814 = vunpack.c.l.b16 %v766
      %v815 = vunpack.c.l.b16 %v767
      %v816 = vunpack.c.l.b16 %v768
      %v817 = vunpack.c.l.b16 %v769
      %v818 = vpack.c.b16 %v803, %v802
      %v819 = vpack.c.b16 %v805, %v804
      %v820 = vpack.c.b16 %v807, %v806
      %v821 = vpack.c.b16 %v809, %v808
      %v822 = vpack.c.b16 %v811, %v810
      %v823 = vpack.c.b16 %v813, %v812
      %v824 = vpack.c.b16 %v815, %v814
      %v825 = vpack.c.b16 %v817, %v816
      %834 = vmatprep.subr.bf16.mxu0 0
      %835 = vmatpush1.bf16.msra.mxu0 %v818
      %836 = vmatprep.subr.bf16.mxu0 0
      %837 = vmatpush1.bf16.msra.mxu0 %v819
      %838 = vmatprep.subr.bf16.mxu0 0
      %839 = vmatpush1.bf16.msra.mxu0 %v820
      %840 = vmatprep.subr.bf16.mxu0 0
      %841 = vmatpush1.bf16.msra.mxu0 %v821
      %842 = vmatprep.subr.bf16.mxu0 0
      %843 = vmatpush1.bf16.msra.mxu0 %v822
      %844 = vmatprep.subr.bf16.mxu0 0
      %845 = vmatpush1.bf16.msra.mxu0 %v823
      %846 = vmatprep.subr.bf16.mxu0 0
      %847 = vmatpush1.bf16.msra.mxu0 %v824
      %848 = vmatprep.subr.bf16.mxu0 0
      %849 = vmatpush1.bf16.msra.mxu0 %v825
      %850 = vmatprep.subr.bf16.mxu0 0
      %851 = vmatpush1.bf16.msra.mxu0 0
      %852 = vmatprep.subr.bf16.mxu0 0
      %853 = vmatpush1.bf16.msra.mxu0 0
      %854 = vmatprep.subr.bf16.mxu0 0
      %855 = vmatpush1.bf16.msra.mxu0 0
      %856 = vmatprep.subr.bf16.mxu0 0
      %857 = vmatpush1.bf16.msra.mxu0 0
      %858 = vmatprep.subr.bf16.mxu0 0
      %859 = vmatpush1.bf16.msra.mxu0 0
      %860 = vmatprep.subr.bf16.mxu0 0
      %861 = vmatpush1.bf16.msra.mxu0 0
      %862 = vmatprep.subr.bf16.mxu0 0
      %863 = vmatpush1.bf16.msra.mxu0 0
      %864 = vmatprep.subr.bf16.mxu0 0
      %865 = vmatpush1.bf16.msra.mxu0 0
      %866 = vmatprep.mubr.bf16.mxu0 0
      %867 = vmatmul.mubr.bf16.gmra.mrb[0].mxu0 %v783
      %v868 = vpop.f32.mrb[0].mxu0
      %v869 = vadd.f32 0.0, %v868
      %v870 = vpop.f32.mrb[0].mxu0
      %v871 = vpop.f32.mrb[0].mxu0
      %v872 = vadd.f32 0.0, %v871
      %v873 = vpop.f32.mrb[0].mxu0
      %874 = vmatprep.mubr.bf16.mxu0 0
      %875 = vmatmul.mubr.bf16.gmra.mrb[0].mxu0 %v782
      %v876 = vpop.f32.mrb[0].mxu0
      %v877 = vadd.f32 0.0, %v876
      %v878 = vpop.f32.mrb[0].mxu0
      %v879 = vpop.f32.mrb[0].mxu0
      %v880 = vpop.f32.mrb[0].mxu0
      %881 = vdwg.mxu0
      %v882 = vadd.f32 %v750, %v869
      %v883 = vadd.f32 %v751, %v872
      %v884 = vadd.f32 %v752, %v877
      %885 = vst.msk [vmem:[#allocation3] sm:$0xff] %vm312, %v882
      %886 = vst.msk [vmem:[#allocation3 + $0x8] sm:$0xff] %vm312, %v883
      %887 = vst.msk [vmem:[#allocation3 + $0x10] sm:$0xff] %vm312, %v884
      %v888 = vld [vmem:[#allocation2] sm:$0x8]
      %v889 = vld [vmem:[#allocation2 + $0x4] sm:$0xf]
      %v890 = vld [vmem:[#allocation2 + $0x8] sm:$0xf]
      %v891 = vld [vmem:[#allocation2 + $0xc] sm:$0xf]
      %v892 = vld [vmem:[#allocation3] sm:$0xff]
      %v893 = vld [vmem:[#allocation3 + $0x8] sm:$0xff]
      %v894 = vld [vmem:[#allocation3 + $0x10] sm:$0xff]
      %s895 = scalar_lea.vmem %s2, 256
      %v896 = vld [vmem:[%s895] sm:$0xf]
      %v897 = vld [vmem:[%s895 + $0x4] sm:$0xf]
      %v898 = vld [vmem:[%s895 + $0x8] sm:$0xf]
      %v899 = vld [vmem:[%s895 + $0xc] sm:$0xf]
      %v900 = vld [vmem:[%s895 + $0x10] sm:$0xf]
      %v901 = vld [vmem:[%s895 + $0x14] sm:$0xf]
      %v902 = vld [vmem:[%s895 + $0x18] sm:$0xf]
      %v903 = vld [vmem:[%s895 + $0x1c] sm:$0xf]
      %v904 = vld [vmem:[%s895 + $0x20] sm:$0xf]
      %v905 = vld [vmem:[%s895 + $0x24] sm:$0xf]
      %v906 = vld [vmem:[%s895 + $0x28] sm:$0xf]
      %v907 = vld [vmem:[%s895 + $0x2c] sm:$0xf]
      %v908 = vld [vmem:[%s895 + $0x30] sm:$0xf]
      %v909 = vld [vmem:[%s895 + $0x34] sm:$0xf]
      %v910 = vld [vmem:[%s895 + $0x38] sm:$0xf]
      %v911 = vld [vmem:[%s895 + $0x3c] sm:$0xf]
      %v916 = vunpack.c.l.b16 %v888
      %v917 = vunpack.c.l.b16 %v889
      %v918 = vunpack.c.l.b16 %v890
      %v919 = vunpack.c.l.b16 %v891
      %v920 = vpack.c.b16 %v917, %v916
      %v921 = vpack.c.b16 %v919, %v918
      %vm922 = vsmask.f32 4352
      %v924 = vshrl.u32 %v920, 16
      %v926 = vrot.slane %v924, 3
      %v927 = vshll.u32 %v920, 16
      %v929 = vrot.slane %v927, 4
      %v930 = vor.u32 %v926, %v929
      %v932 = vshrl.u32 %v921, 16
      %v934 = vrot.slane %v932, 3
      %v935 = vshll.u32 %v921, 16
      %v937 = vrot.slane %v935, 4
      %v938 = vor.u32 %v934, %v937
      %v939 = vsel %vm922, %v930, %v938
      %v958 = vunpack.c.l.b16 %v896
      %v959 = vunpack.c.l.b16 %v897
      %v960 = vunpack.c.l.b16 %v898
      %v961 = vunpack.c.l.b16 %v899
      %v962 = vunpack.c.l.b16 %v900
      %v963 = vunpack.c.l.b16 %v901
      %v964 = vunpack.c.l.b16 %v902
      %v965 = vunpack.c.l.b16 %v903
      %v966 = vunpack.c.l.b16 %v904
      %v967 = vunpack.c.l.b16 %v905
      %v968 = vunpack.c.l.b16 %v906
      %v969 = vunpack.c.l.b16 %v907
      %v970 = vunpack.c.l.b16 %v908
      %v971 = vunpack.c.l.b16 %v909
      %v972 = vunpack.c.l.b16 %v910
      %v973 = vunpack.c.l.b16 %v911
      %v974 = vpack.c.b16 %v959, %v958
      %v975 = vpack.c.b16 %v961, %v960
      %v976 = vpack.c.b16 %v963, %v962
      %v977 = vpack.c.b16 %v965, %v964
      %v978 = vpack.c.b16 %v967, %v966
      %v979 = vpack.c.b16 %v969, %v968
      %v980 = vpack.c.b16 %v971, %v970
      %v981 = vpack.c.b16 %v973, %v972
      %990 = vmatprep.subr.bf16.mxu0 0
      %991 = vmatpush1.bf16.msra.mxu0 %v974
      %992 = vmatprep.subr.bf16.mxu0 0
      %993 = vmatpush1.bf16.msra.mxu0 %v975
      %994 = vmatprep.subr.bf16.mxu0 0
      %995 = vmatpush1.bf16.msra.mxu0 %v976
      %996 = vmatprep.subr.bf16.mxu0 0
      %997 = vmatpush1.bf16.msra.mxu0 %v977
      %998 = vmatprep.subr.bf16.mxu0 0
      %999 = vmatpush1.bf16.msra.mxu0 %v978
      %1000 = vmatprep.subr.bf16.mxu0 0
      %1001 = vmatpush1.bf16.msra.mxu0 %v979
      %1002 = vmatprep.subr.bf16.mxu0 0
      %1003 = vmatpush1.bf16.msra.mxu0 %v980
      %1004 = vmatprep.subr.bf16.mxu0 0
      %1005 = vmatpush1.bf16.msra.mxu0 %v981
      %1006 = vmatprep.subr.bf16.mxu0 0
      %1007 = vmatpush1.bf16.msra.mxu0 0
      %1008 = vmatprep.subr.bf16.mxu0 0
      %1009 = vmatpush1.bf16.msra.mxu0 0
      %1010 = vmatprep.subr.bf16.mxu0 0
      %1011 = vmatpush1.bf16.msra.mxu0 0
      %1012 = vmatprep.subr.bf16.mxu0 0
      %1013 = vmatpush1.bf16.msra.mxu0 0
      %1014 = vmatprep.subr.bf16.mxu0 0
      %1015 = vmatpush1.bf16.msra.mxu0 0
      %1016 = vmatprep.subr.bf16.mxu0 0
      %1017 = vmatpush1.bf16.msra.mxu0 0
      %1018 = vmatprep.subr.bf16.mxu0 0
      %1019 = vmatpush1.bf16.msra.mxu0 0
      %1020 = vmatprep.subr.bf16.mxu0 0
      %1021 = vmatpush1.bf16.msra.mxu0 0
      %1022 = vmatprep.mubr.bf16.mxu0 0
      %1023 = vmatmul.mubr.bf16.gmra.mrb[0].mxu0 %v939
      %v1024 = vpop.f32.mrb[0].mxu0
      %v1025 = vadd.f32 0.0, %v1024
      %v1026 = vpop.f32.mrb[0].mxu0
      %v1027 = vpop.f32.mrb[0].mxu0
      %v1028 = vadd.f32 0.0, %v1027
      %v1029 = vpop.f32.mrb[0].mxu0
      %1030 = vmatprep.mubr.bf16.mxu0 0
      %1031 = vmatmul.mubr.bf16.gmra.mrb[0].mxu0 %v938
      %v1032 = vpop.f32.mrb[0].mxu0
      %v1033 = vadd.f32 0.0, %v1032
      %v1034 = vpop.f32.mrb[0].mxu0
      %v1035 = vpop.f32.mrb[0].mxu0
      %v1036 = vpop.f32.mrb[0].mxu0
      %1037 = vdwg.mxu0
      %v1038 = vadd.f32 %v892, %v1025
      %v1039 = vadd.f32 %v893, %v1028
      %v1040 = vadd.f32 %v894, %v1033
      %1041 = vst.msk [vmem:[#allocation3] sm:$0xff] %vm312, %v1038
      %1042 = vst.msk [vmem:[#allocation3 + $0x8] sm:$0xff] %vm312, %v1039
      %1043 = vst.msk [vmem:[#allocation3 + $0x10] sm:$0xff] %vm312, %v1040
      %v1044 = vld [vmem:[#allocation2 + $0x4] sm:$0xf]
      %v1045 = vld [vmem:[#allocation2 + $0x8] sm:$0xf]
      %v1046 = vld [vmem:[#allocation2 + $0xc] sm:$0xf]
      %v1047 = vld [vmem:[#allocation3] sm:$0xff]
      %v1048 = vld [vmem:[#allocation3 + $0x8] sm:$0xff]
      %v1049 = vld [vmem:[#allocation3 + $0x10] sm:$0xff]
      %s1050 = scalar_lea.vmem %s2, 320
      %v1051 = vld [vmem:[%s1050] sm:$0xf]
      %v1052 = vld [vmem:[%s1050 + $0x4] sm:$0xf]
      %v1053 = vld [vmem:[%s1050 + $0x8] sm:$0xf]
      %v1054 = vld [vmem:[%s1050 + $0xc] sm:$0xf]
      %v1055 = vld [vmem:[%s1050 + $0x10] sm:$0xf]
      %v1056 = vld [vmem:[%s1050 + $0x14] sm:$0xf]
      %v1057 = vld [vmem:[%s1050 + $0x18] sm:$0xf]
      %v1058 = vld [vmem:[%s1050 + $0x1c] sm:$0xf]
      %v1059 = vld [vmem:[%s1050 + $0x20] sm:$0xf]
      %v1060 = vld [vmem:[%s1050 + $0x24] sm:$0xf]
      %v1061 = vld [vmem:[%s1050 + $0x28] sm:$0xf]
      %v1062 = vld [vmem:[%s1050 + $0x2c] sm:$0xf]
      %v1063 = vld [vmem:[%s1050 + $0x30] sm:$0xf]
      %v1064 = vld [vmem:[%s1050 + $0x34] sm:$0xf]
      %v1065 = vld [vmem:[%s1050 + $0x38] sm:$0xf]
      %v1066 = vld [vmem:[%s1050 + $0x3c] sm:$0xf]
      %v1070 = vunpack.c.l.b16 %v1044
      %v1071 = vunpack.c.l.b16 %v1045
      %v1072 = vunpack.c.l.b16 %v1046
      %v1073 = vpack.c.b16 %v1071, %v1070
      %v1074 = vpack.c.b16 %v1072, %v1072
      %v1093 = vunpack.c.l.b16 %v1051
      %v1094 = vunpack.c.l.b16 %v1052
      %v1095 = vunpack.c.l.b16 %v1053
      %v1096 = vunpack.c.l.b16 %v1054
      %v1097 = vunpack.c.l.b16 %v1055
      %v1098 = vunpack.c.l.b16 %v1056
      %v1099 = vunpack.c.l.b16 %v1057
      %v1100 = vunpack.c.l.b16 %v1058
      %v1101 = vunpack.c.l.b16 %v1059
      %v1102 = vunpack.c.l.b16 %v1060
      %v1103 = vunpack.c.l.b16 %v1061
      %v1104 = vunpack.c.l.b16 %v1062
      %v1105 = vunpack.c.l.b16 %v1063
      %v1106 = vunpack.c.l.b16 %v1064
      %v1107 = vunpack.c.l.b16 %v1065
      %v1108 = vunpack.c.l.b16 %v1066
      %v1109 = vpack.c.b16 %v1094, %v1093
      %v1110 = vpack.c.b16 %v1096, %v1095
      %v1111 = vpack.c.b16 %v1098, %v1097
      %v1112 = vpack.c.b16 %v1100, %v1099
      %v1113 = vpack.c.b16 %v1102, %v1101
      %v1114 = vpack.c.b16 %v1104, %v1103
      %v1115 = vpack.c.b16 %v1106, %v1105
      %v1116 = vpack.c.b16 %v1108, %v1107
      %1125 = vmatprep.subr.bf16.mxu0 0
      %1126 = vmatpush1.bf16.msra.mxu0 %v1109
      %1127 = vmatprep.subr.bf16.mxu0 0
      %1128 = vmatpush1.bf16.msra.mxu0 %v1110
      %1129 = vmatprep.subr.bf16.mxu0 0
      %1130 = vmatpush1.bf16.msra.mxu0 %v1111
      %1131 = vmatprep.subr.bf16.mxu0 0
      %1132 = vmatpush1.bf16.msra.mxu0 %v1112
      %1133 = vmatprep.subr.bf16.mxu0 0
      %1134 = vmatpush1.bf16.msra.mxu0 %v1113
      %1135 = vmatprep.subr.bf16.mxu0 0
      %1136 = vmatpush1.bf16.msra.mxu0 %v1114
      %1137 = vmatprep.subr.bf16.mxu0 0
      %1138 = vmatpush1.bf16.msra.mxu0 %v1115
      %1139 = vmatprep.subr.bf16.mxu0 0
      %1140 = vmatpush1.bf16.msra.mxu0 %v1116
      %1141 = vmatprep.subr.bf16.mxu0 0
      %1142 = vmatpush1.bf16.msra.mxu0 0
      %1143 = vmatprep.subr.bf16.mxu0 0
      %1144 = vmatpush1.bf16.msra.mxu0 0
      %1145 = vmatprep.subr.bf16.mxu0 0
      %1146 = vmatpush1.bf16.msra.mxu0 0
      %1147 = vmatprep.subr.bf16.mxu0 0
      %1148 = vmatpush1.bf16.msra.mxu0 0
      %1149 = vmatprep.subr.bf16.mxu0 0
      %1150 = vmatpush1.bf16.msra.mxu0 0
      %1151 = vmatprep.subr.bf16.mxu0 0
      %1152 = vmatpush1.bf16.msra.mxu0 0
      %1153 = vmatprep.subr.bf16.mxu0 0
      %1154 = vmatpush1.bf16.msra.mxu0 0
      %1155 = vmatprep.subr.bf16.mxu0 0
      %1156 = vmatpush1.bf16.msra.mxu0 0
      %1157 = vmatprep.mubr.bf16.mxu0 0
      %1158 = vmatmul.mubr.bf16.gmra.mrb[0].mxu0 %v1073
      %v1159 = vpop.f32.mrb[0].mxu0
      %v1160 = vadd.f32 0.0, %v1159
      %v1161 = vpop.f32.mrb[0].mxu0
      %v1162 = vpop.f32.mrb[0].mxu0
      %v1163 = vadd.f32 0.0, %v1162
      %v1164 = vpop.f32.mrb[0].mxu0
      %1165 = vmatprep.mubr.bf16.mxu0 0
      %1166 = vmatmul.mubr.bf16.gmra.mrb[0].mxu0 %v1074
      %v1167 = vpop.f32.mrb[0].mxu0
      %v1168 = vadd.f32 0.0, %v1167
      %v1169 = vpop.f32.mrb[0].mxu0
      %v1170 = vpop.f32.mrb[0].mxu0
      %v1171 = vpop.f32.mrb[0].mxu0
      %1172 = vdwg.mxu0
      %v1173 = vadd.f32 %v1047, %v1160
      %v1174 = vadd.f32 %v1048, %v1163
      %v1175 = vadd.f32 %v1049, %v1168
      %1176 = vst.msk [vmem:[#allocation3] sm:$0xff] %vm312, %v1173
      %1177 = vst.msk [vmem:[#allocation3 + $0x8] sm:$0xff] %vm312, %v1174
      %1178 = vst.msk [vmem:[#allocation3 + $0x10] sm:$0xff] %vm312, %v1175
      %v1179 = vld [vmem:[#allocation2 + $0x4] sm:$0xc]
      %v1180 = vld [vmem:[#allocation2 + $0x8] sm:$0xf]
      %v1181 = vld [vmem:[#allocation2 + $0xc] sm:$0xf]
      %v1182 = vld [vmem:[#allocation2 + $0x10] sm:$0x3]
      %v1183 = vld [vmem:[#allocation3] sm:$0xff]
      %v1184 = vld [vmem:[#allocation3 + $0x8] sm:$0xff]
      %v1185 = vld [vmem:[#allocation3 + $0x10] sm:$0xff]
      %s1186 = scalar_lea.vmem %s2, 384
      %v1187 = vld [vmem:[%s1186] sm:$0xf]
      %v1188 = vld [vmem:[%s1186 + $0x4] sm:$0xf]
      %v1189 = vld [vmem:[%s1186 + $0x8] sm:$0xf]
      %v1190 = vld [vmem:[%s1186 + $0xc] sm:$0xf]
      %v1191 = vld [vmem:[%s1186 + $0x10] sm:$0xf]
      %v1192 = vld [vmem:[%s1186 + $0x14] sm:$0xf]
      %v1193 = vld [vmem:[%s1186 + $0x18] sm:$0xf]
      %v1194 = vld [vmem:[%s1186 + $0x1c] sm:$0xf]
      %v1195 = vld [vmem:[%s1186 + $0x20] sm:$0xf]
      %v1196 = vld [vmem:[%s1186 + $0x24] sm:$0xf]
      %v1197 = vld [vmem:[%s1186 + $0x28] sm:$0xf]
      %v1198 = vld [vmem:[%s1186 + $0x2c] sm:$0xf]
      %v1199 = vld [vmem:[%s1186 + $0x30] sm:$0xf]
      %v1200 = vld [vmem:[%s1186 + $0x34] sm:$0xf]
      %v1201 = vld [vmem:[%s1186 + $0x38] sm:$0xf]
      %v1202 = vld [vmem:[%s1186 + $0x3c] sm:$0xf]
      %v1207 = vunpack.c.l.b16 %v1179
      %v1208 = vunpack.c.l.b16 %v1180
      %v1209 = vunpack.c.l.b16 %v1181
      %v1210 = vunpack.c.l.b16 %v1182
      %v1211 = vpack.c.b16 %v1208, %v1207
      %v1212 = vpack.c.b16 %v1210, %v1209
      %vm1213 = vcmask 1045504
      %v1214 = vrot.slane %v1211, 2
      %v1215 = vrot.slane %v1212, 2
      %v1216 = vsel %vm1213, %v1214, %v1215
      %v1235 = vunpack.c.l.b16 %v1187
      %v1236 = vunpack.c.l.b16 %v1188
      %v1237 = vunpack.c.l.b16 %v1189
      %v1238 = vunpack.c.l.b16 %v1190
      %v1239 = vunpack.c.l.b16 %v1191
      %v1240 = vunpack.c.l.b16 %v1192
      %v1241 = vunpack.c.l.b16 %v1193
      %v1242 = vunpack.c.l.b16 %v1194
      %v1243 = vunpack.c.l.b16 %v1195
      %v1244 = vunpack.c.l.b16 %v1196
      %v1245 = vunpack.c.l.b16 %v1197
      %v1246 = vunpack.c.l.b16 %v1198
      %v1247 = vunpack.c.l.b16 %v1199
      %v1248 = vunpack.c.l.b16 %v1200
      %v1249 = vunpack.c.l.b16 %v1201
      %v1250 = vunpack.c.l.b16 %v1202
      %v1251 = vpack.c.b16 %v1236, %v1235
      %v1252 = vpack.c.b16 %v1238, %v1237
      %v1253 = vpack.c.b16 %v1240, %v1239
      %v1254 = vpack.c.b16 %v1242, %v1241
      %v1255 = vpack.c.b16 %v1244, %v1243
      %v1256 = vpack.c.b16 %v1246, %v1245
      %v1257 = vpack.c.b16 %v1248, %v1247
      %v1258 = vpack.c.b16 %v1250, %v1249
      %1267 = vmatprep.subr.bf16.mxu0 0
      %1268 = vmatpush1.bf16.msra.mxu0 %v1251
      %1269 = vmatprep.subr.bf16.mxu0 0
      %1270 = vmatpush1.bf16.msra.mxu0 %v1252
      %1271 = vmatprep.subr.bf16.mxu0 0
      %1272 = vmatpush1.bf16.msra.mxu0 %v1253
      %1273 = vmatprep.subr.bf16.mxu0 0
      %1274 = vmatpush1.bf16.msra.mxu0 %v1254
      %1275 = vmatprep.subr.bf16.mxu0 0
      %1276 = vmatpush1.bf16.msra.mxu0 %v1255
      %1277 = vmatprep.subr.bf16.mxu0 0
      %1278 = vmatpush1.bf16.msra.mxu0 %v1256
      %1279 = vmatprep.subr.bf16.mxu0 0
      %1280 = vmatpush1.bf16.msra.mxu0 %v1257
      %1281 = vmatprep.subr.bf16.mxu0 0
      %1282 = vmatpush1.bf16.msra.mxu0 %v1258
      %1283 = vmatprep.subr.bf16.mxu0 0
      %1284 = vmatpush1.bf16.msra.mxu0 0
      %1285 = vmatprep.subr.bf16.mxu0 0
      %1286 = vmatpush1.bf16.msra.mxu0 0
      %1287 = vmatprep.subr.bf16.mxu0 0
      %1288 = vmatpush1.bf16.msra.mxu0 0
      %1289 = vmatprep.subr.bf16.mxu0 0
      %1290 = vmatpush1.bf16.msra.mxu0 0
      %1291 = vmatprep.subr.bf16.mxu0 0
      %1292 = vmatpush1.bf16.msra.mxu0 0
      %1293 = vmatprep.subr.bf16.mxu0 0
      %1294 = vmatpush1.bf16.msra.mxu0 0
      %1295 = vmatprep.subr.bf16.mxu0 0
      %1296 = vmatpush1.bf16.msra.mxu0 0
      %1297 = vmatprep.subr.bf16.mxu0 0
      %1298 = vmatpush1.bf16.msra.mxu0 0
      %1299 = vmatprep.mubr.bf16.mxu0 0
      %1300 = vmatmul.mubr.bf16.gmra.mrb[0].mxu0 %v1216
      %v1301 = vpop.f32.mrb[0].mxu0
      %v1302 = vadd.f32 0.0, %v1301
      %v1303 = vpop.f32.mrb[0].mxu0
      %v1304 = vpop.f32.mrb[0].mxu0
      %v1305 = vadd.f32 0.0, %v1304
      %v1306 = vpop.f32.mrb[0].mxu0
      %1307 = vmatprep.mubr.bf16.mxu0 0
      %1308 = vmatmul.mubr.bf16.gmra.mrb[0].mxu0 %v1215
      %v1309 = vpop.f32.mrb[0].mxu0
      %v1310 = vadd.f32 0.0, %v1309
      %v1311 = vpop.f32.mrb[0].mxu0
      %v1312 = vpop.f32.mrb[0].mxu0
      %v1313 = vpop.f32.mrb[0].mxu0
      %1314 = vdwg.mxu0
      %v1315 = vadd.f32 %v1183, %v1302
      %v1316 = vadd.f32 %v1184, %v1305
      %v1317 = vadd.f32 %v1185, %v1310
      %1318 = vst.msk [vmem:[#allocation3] sm:$0xff] %vm312, %v1315
      %1319 = vst.msk [vmem:[#allocation3 + $0x8] sm:$0xff] %vm312, %v1316
      %1320 = vst.msk [vmem:[#allocation3 + $0x10] sm:$0xff] %vm312, %v1317
      %v1321 = vld [vmem:[#allocation2 + $0x4] sm:$0xc]
      %v1322 = vld [vmem:[#allocation2 + $0x8] sm:$0xf]
      %v1323 = vld [vmem:[#allocation2 + $0xc] sm:$0xf]
      %v1324 = vld [vmem:[#allocation2 + $0x10] sm:$0x7]
      %v1325 = vld [vmem:[#allocation3] sm:$0xff]
      %v1326 = vld [vmem:[#allocation3 + $0x8] sm:$0xff]
      %v1327 = vld [vmem:[#allocation3 + $0x10] sm:$0xff]
      %s1328 = scalar_lea.vmem %s2, 448
      %v1329 = vld [vmem:[%s1328] sm:$0xf]
      %v1330 = vld [vmem:[%s1328 + $0x4] sm:$0xf]
      %v1331 = vld [vmem:[%s1328 + $0x8] sm:$0xf]
      %v1332 = vld [vmem:[%s1328 + $0xc] sm:$0xf]
      %v1333 = vld [vmem:[%s1328 + $0x10] sm:$0xf]
      %v1334 = vld [vmem:[%s1328 + $0x14] sm:$0xf]
      %v1335 = vld [vmem:[%s1328 + $0x18] sm:$0xf]
      %v1336 = vld [vmem:[%s1328 + $0x1c] sm:$0xf]
      %v1337 = vld [vmem:[%s1328 + $0x20] sm:$0xf]
      %v1338 = vld [vmem:[%s1328 + $0x24] sm:$0xf]
      %v1339 = vld [vmem:[%s1328 + $0x28] sm:$0xf]
      %v1340 = vld [vmem:[%s1328 + $0x2c] sm:$0xf]
      %v1341 = vld [vmem:[%s1328 + $0x30] sm:$0xf]
      %v1342 = vld [vmem:[%s1328 + $0x34] sm:$0xf]
      %v1343 = vld [vmem:[%s1328 + $0x38] sm:$0xf]
      %v1344 = vld [vmem:[%s1328 + $0x3c] sm:$0xf]
      %v1349 = vunpack.c.l.b16 %v1321
      %v1350 = vunpack.c.l.b16 %v1322
      %v1351 = vunpack.c.l.b16 %v1323
      %v1352 = vunpack.c.l.b16 %v1324
      %v1353 = vpack.c.b16 %v1350, %v1349
      %v1354 = vpack.c.b16 %v1352, %v1351
      %vm1355 = vsmask.f32 5376
      %v1357 = vshrl.u32 %v1353, 16
      %v1359 = vrot.slane %v1357, 2
      %v1360 = vshll.u32 %v1353, 16
      %v1362 = vrot.slane %v1360, 3
      %v1363 = vor.u32 %v1359, %v1362
      %v1365 = vshrl.u32 %v1354, 16
      %v1367 = vrot.slane %v1365, 2
      %v1368 = vshll.u32 %v1354, 16
      %v1370 = vrot.slane %v1368, 3
      %v1371 = vor.u32 %v1367, %v1370
      %v1372 = vsel %vm1355, %v1363, %v1371
      %v1391 = vunpack.c.l.b16 %v1329
      %v1392 = vunpack.c.l.b16 %v1330
      %v1393 = vunpack.c.l.b16 %v1331
      %v1394 = vunpack.c.l.b16 %v1332
      %v1395 = vunpack.c.l.b16 %v1333
      %v1396 = vunpack.c.l.b16 %v1334
      %v1397 = vunpack.c.l.b16 %v1335
      %v1398 = vunpack.c.l.b16 %v1336
      %v1399 = vunpack.c.l.b16 %v1337
      %v1400 = vunpack.c.l.b16 %v1338
      %v1401 = vunpack.c.l.b16 %v1339
      %v1402 = vunpack.c.l.b16 %v1340
      %v1403 = vunpack.c.l.b16 %v1341
      %v1404 = vunpack.c.l.b16 %v1342
      %v1405 = vunpack.c.l.b16 %v1343
      %v1406 = vunpack.c.l.b16 %v1344
      %v1407 = vpack.c.b16 %v1392, %v1391
      %v1408 = vpack.c.b16 %v1394, %v1393
      %v1409 = vpack.c.b16 %v1396, %v1395
      %v1410 = vpack.c.b16 %v1398, %v1397
      %v1411 = vpack.c.b16 %v1400, %v1399
      %v1412 = vpack.c.b16 %v1402, %v1401
      %v1413 = vpack.c.b16 %v1404, %v1403
      %v1414 = vpack.c.b16 %v1406, %v1405
      %1423 = vmatprep.subr.bf16.mxu0 0
      %1424 = vmatpush1.bf16.msra.mxu0 %v1407
      %1425 = vmatprep.subr.bf16.mxu0 0
      %1426 = vmatpush1.bf16.msra.mxu0 %v1408
      %1427 = vmatprep.subr.bf16.mxu0 0
      %1428 = vmatpush1.bf16.msra.mxu0 %v1409
      %1429 = vmatprep.subr.bf16.mxu0 0
      %1430 = vmatpush1.bf16.msra.mxu0 %v1410
      %1431 = vmatprep.subr.bf16.mxu0 0
      %1432 = vmatpush1.bf16.msra.mxu0 %v1411
      %1433 = vmatprep.subr.bf16.mxu0 0
      %1434 = vmatpush1.bf16.msra.mxu0 %v1412
      %1435 = vmatprep.subr.bf16.mxu0 0
      %1436 = vmatpush1.bf16.msra.mxu0 %v1413
      %1437 = vmatprep.subr.bf16.mxu0 0
      %1438 = vmatpush1.bf16.msra.mxu0 %v1414
      %1439 = vmatprep.subr.bf16.mxu0 0
      %1440 = vmatpush1.bf16.msra.mxu0 0
      %1441 = vmatprep.subr.bf16.mxu0 0
      %1442 = vmatpush1.bf16.msra.mxu0 0
      %1443 = vmatprep.subr.bf16.mxu0 0
      %1444 = vmatpush1.bf16.msra.mxu0 0
      %1445 = vmatprep.subr.bf16.mxu0 0
      %1446 = vmatpush1.bf16.msra.mxu0 0
      %1447 = vmatprep.subr.bf16.mxu0 0
      %1448 = vmatpush1.bf16.msra.mxu0 0
      %1449 = vmatprep.subr.bf16.mxu0 0
      %1450 = vmatpush1.bf16.msra.mxu0 0
      %1451 = vmatprep.subr.bf16.mxu0 0
      %1452 = vmatpush1.bf16.msra.mxu0 0
      %1453 = vmatprep.subr.bf16.mxu0 0
      %1454 = vmatpush1.bf16.msra.mxu0 0
      %1455 = vmatprep.mubr.bf16.mxu0 0
      %1456 = vmatmul.mubr.bf16.gmra.mrb[0].mxu0 %v1372
      %v1457 = vpop.f32.mrb[0].mxu0
      %v1458 = vadd.f32 0.0, %v1457
      %v1459 = vpop.f32.mrb[0].mxu0
      %v1460 = vpop.f32.mrb[0].mxu0
      %v1461 = vadd.f32 0.0, %v1460
      %v1462 = vpop.f32.mrb[0].mxu0
      %1463 = vmatprep.mubr.bf16.mxu0 0
      %1464 = vmatmul.mubr.bf16.gmra.mrb[0].mxu0 %v1371
      %v1465 = vpop.f32.mrb[0].mxu0
      %v1466 = vadd.f32 0.0, %v1465
      %v1467 = vpop.f32.mrb[0].mxu0
      %v1468 = vpop.f32.mrb[0].mxu0
      %v1469 = vpop.f32.mrb[0].mxu0
      %1470 = vdwg.mxu0
      %v1471 = vadd.f32 %v1325, %v1458
      %v1472 = vadd.f32 %v1326, %v1461
      %v1473 = vadd.f32 %v1327, %v1466
      %1474 = vst.msk [vmem:[#allocation3] sm:$0xff] %vm312, %v1471
      %1475 = vst.msk [vmem:[#allocation3 + $0x8] sm:$0xff] %vm312, %v1472
      %1476 = vst.msk [vmem:[#allocation3 + $0x10] sm:$0xff] %vm312, %v1473
      %v1477 = vld [vmem:[#allocation2 + $0x4] sm:$0x8]
      %v1478 = vld [vmem:[#allocation2 + $0x8] sm:$0xf]
      %v1479 = vld [vmem:[#allocation2 + $0xc] sm:$0xf]
      %v1480 = vld [vmem:[#allocation2 + $0x10] sm:$0x7]
      %v1481 = vld [vmem:[#allocation3] sm:$0xff]
      %v1482 = vld [vmem:[#allocation3 + $0x8] sm:$0xff]
      %v1483 = vld [vmem:[#allocation3 + $0x10] sm:$0xff]
      %s1484 = scalar_lea.vmem %s2, 512
      %v1485 = vld [vmem:[%s1484] sm:$0xf]
      %v1486 = vld [vmem:[%s1484 + $0x4] sm:$0xf]
      %v1487 = vld [vmem:[%s1484 + $0x8] sm:$0xf]
      %v1488 = vld [vmem:[%s1484 + $0xc] sm:$0xf]
      %v1489 = vld [vmem:[%s1484 + $0x10] sm:$0xf]
      %v1490 = vld [vmem:[%s1484 + $0x14] sm:$0xf]
      %v1491 = vld [vmem:[%s1484 + $0x18] sm:$0xf]
      %v1492 = vld [vmem:[%s1484 + $0x1c] sm:$0xf]
      %v1493 = vld [vmem:[%s1484 + $0x20] sm:$0xf]
      %v1494 = vld [vmem:[%s1484 + $0x24] sm:$0xf]
      %v1495 = vld [vmem:[%s1484 + $0x28] sm:$0xf]
      %v1496 = vld [vmem:[%s1484 + $0x2c] sm:$0xf]
      %v1497 = vld [vmem:[%s1484 + $0x30] sm:$0xf]
      %v1498 = vld [vmem:[%s1484 + $0x34] sm:$0xf]
      %v1499 = vld [vmem:[%s1484 + $0x38] sm:$0xf]
      %v1500 = vld [vmem:[%s1484 + $0x3c] sm:$0xf]
      %v1505 = vunpack.c.l.b16 %v1477
      %v1506 = vunpack.c.l.b16 %v1478
      %v1507 = vunpack.c.l.b16 %v1479
      %v1508 = vunpack.c.l.b16 %v1480
      %v1509 = vpack.c.b16 %v1506, %v1505
      %v1510 = vpack.c.b16 %v1508, %v1507
      %v1511 = vrot.slane %v1509, 3
      %v1512 = vrot.slane %v1510, 3
      %v1513 = vsel %vm780, %v1511, %v1512
      %v1532 = vunpack.c.l.b16 %v1485
      %v1533 = vunpack.c.l.b16 %v1486
      %v1534 = vunpack.c.l.b16 %v1487
      %v1535 = vunpack.c.l.b16 %v1488
      %v1536 = vunpack.c.l.b16 %v1489
      %v1537 = vunpack.c.l.b16 %v1490
      %v1538 = vunpack.c.l.b16 %v1491
      %v1539 = vunpack.c.l.b16 %v1492
      %v1540 = vunpack.c.l.b16 %v1493
      %v1541 = vunpack.c.l.b16 %v1494
      %v1542 = vunpack.c.l.b16 %v1495
      %v1543 = vunpack.c.l.b16 %v1496
      %v1544 = vunpack.c.l.b16 %v1497
      %v1545 = vunpack.c.l.b16 %v1498
      %v1546 = vunpack.c.l.b16 %v1499
      %v1547 = vunpack.c.l.b16 %v1500
      %v1548 = vpack.c.b16 %v1533, %v1532
      %v1549 = vpack.c.b16 %v1535, %v1534
      %v1550 = vpack.c.b16 %v1537, %v1536
      %v1551 = vpack.c.b16 %v1539, %v1538
      %v1552 = vpack.c.b16 %v1541, %v1540
      %v1553 = vpack.c.b16 %v1543, %v1542
      %v1554 = vpack.c.b16 %v1545, %v1544
      %v1555 = vpack.c.b16 %v1547, %v1546
      %1564 = vmatprep.subr.bf16.mxu0 0
      %1565 = vmatpush1.bf16.msra.mxu0 %v1548
      %1566 = vmatprep.subr.bf16.mxu0 0
      %1567 = vmatpush1.bf16.msra.mxu0 %v1549
      %1568 = vmatprep.subr.bf16.mxu0 0
      %1569 = vmatpush1.bf16.msra.mxu0 %v1550
      %1570 = vmatprep.subr.bf16.mxu0 0
      %1571 = vmatpush1.bf16.msra.mxu0 %v1551
      %1572 = vmatprep.subr.bf16.mxu0 0
      %1573 = vmatpush1.bf16.msra.mxu0 %v1552
      %1574 = vmatprep.subr.bf16.mxu0 0
      %1575 = vmatpush1.bf16.msra.mxu0 %v1553
      %1576 = vmatprep.subr.bf16.mxu0 0
      %1577 = vmatpush1.bf16.msra.mxu0 %v1554
      %1578 = vmatprep.subr.bf16.mxu0 0
      %1579 = vmatpush1.bf16.msra.mxu0 %v1555
      %1580 = vmatprep.subr.bf16.mxu0 0
      %1581 = vmatpush1.bf16.msra.mxu0 0
      %1582 = vmatprep.subr.bf16.mxu0 0
      %1583 = vmatpush1.bf16.msra.mxu0 0
      %1584 = vmatprep.subr.bf16.mxu0 0
      %1585 = vmatpush1.bf16.msra.mxu0 0
      %1586 = vmatprep.subr.bf16.mxu0 0
      %1587 = vmatpush1.bf16.msra.mxu0 0
      %1588 = vmatprep.subr.bf16.mxu0 0
      %1589 = vmatpush1.bf16.msra.mxu0 0
      %1590 = vmatprep.subr.bf16.mxu0 0
      %1591 = vmatpush1.bf16.msra.mxu0 0
      %1592 = vmatprep.subr.bf16.mxu0 0
      %1593 = vmatpush1.bf16.msra.mxu0 0
      %1594 = vmatprep.subr.bf16.mxu0 0
      %1595 = vmatpush1.bf16.msra.mxu0 0
      %1596 = vmatprep.mubr.bf16.mxu0 0
      %1597 = vmatmul.mubr.bf16.gmra.mrb[0].mxu0 %v1513
      %v1598 = vpop.f32.mrb[0].mxu0
      %v1599 = vadd.f32 0.0, %v1598
      %v1600 = vpop.f32.mrb[0].mxu0
      %v1601 = vpop.f32.mrb[0].mxu0
      %v1602 = vadd.f32 0.0, %v1601
      %v1603 = vpop.f32.mrb[0].mxu0
      %1604 = vmatprep.mubr.bf16.mxu0 0
      %1605 = vmatmul.mubr.bf16.gmra.mrb[0].mxu0 %v1512
      %v1606 = vpop.f32.mrb[0].mxu0
      %v1607 = vadd.f32 0.0, %v1606
      %v1608 = vpop.f32.mrb[0].mxu0
      %v1609 = vpop.f32.mrb[0].mxu0
      %v1610 = vpop.f32.mrb[0].mxu0
      %1611 = vdwg.mxu0
      %v1612 = vadd.f32 %v1481, %v1599
      %v1613 = vadd.f32 %v1482, %v1602
      %v1614 = vadd.f32 %v1483, %v1607
      %1615 = vst.msk [vmem:[#allocation3] sm:$0xff] %vm312, %v1612
      %1616 = vst.msk [vmem:[#allocation3 + $0x8] sm:$0xff] %vm312, %v1613
      %1617 = vst.msk [vmem:[#allocation3 + $0x10] sm:$0xff] %vm312, %v1614
      %v1618 = vld [vmem:[%s185] sm:$0x3]
      %v1619 = vld [vmem:[%s185 + $0x2] sm:$0x3]
      %v1620 = vld [vmem:[%s185 + $0x4] sm:$0x3]
      %v1621 = vld [vmem:[%s185 + $0x6] sm:$0x3]
      %1622 = vst [vmem:[%s190] sm:$0x3] %v1618
      %1623 = vst [vmem:[%s190 + $0x2] sm:$0x3] %v1619
      %1624 = vst [vmem:[%s190 + $0x4] sm:$0x3] %v1620
      %1625 = vst [vmem:[%s190 + $0x6] sm:$0x3] %v1621
      %v1626 = vld [vmem:[#allocation3] sm:$0xf]
      %v1627 = vpack.c.bf16 %v1626, %v1626
      %v1630 = vunpack.c.l.s4 1983009808
      %v1631 = vunpack.c.0.s8 %v1630
      %v1632 = vlaneseq
      %v1633 = vshrl.u32 %v1632, 7
      %v1634 = vsub.s32 %v1631, %v1633
      %v1635 = vrot.slane %v1627, %v1634
      %1636 = vrot.lane.b32.xlu0 %v1635, 96
      %v1637 = vpop.permute.xlu0 %1636
      %vm1639 = vcmask 1042176
      %1640 = vst.msk [vmem:[%s190] sm:$0x3] %vm1639, %v1637
      %v1641 = vld [vmem:[#allocation3 + $0x6] sm:$0xf]
      %v1642 = vpack.c.bf16 %v1641, %v1641
      %v1645 = vunpack.c.l.s4 1983009808
      %v1646 = vunpack.c.0.s8 %v1645
      %v1647 = vlaneseq
      %v1648 = vshrl.u32 %v1647, 7
      %v1649 = vsub.s32 %v1646, %v1648
      %v1650 = vrot.slane %v1642, %v1649
      %1651 = vrot.lane.b32.xlu0 %v1650, 96
      %v1652 = vpop.permute.xlu0 %1651
      %s1654 = scalar_lea.vmem %s190, 2
      %1655 = vst.msk [vmem:[%s1654] sm:$0x3] %vm1639, %v1652
      %v1656 = vld [vmem:[#allocation3 + $0xc] sm:$0xf]
      %v1657 = vpack.c.bf16 %v1656, %v1656
      %v1660 = vunpack.c.l.s4 1983009808
      %v1661 = vunpack.c.0.s8 %v1660
      %v1662 = vlaneseq
      %v1663 = vshrl.u32 %v1662, 7
      %v1664 = vsub.s32 %v1661, %v1663
      %v1665 = vrot.slane %v1657, %v1664
      %1666 = vrot.lane.b32.xlu0 %v1665, 96
      %v1667 = vpop.permute.xlu0 %1666
      %s1669 = scalar_lea.vmem %s190, 4
      %1670 = vst.msk [vmem:[%s1669] sm:$0x3] %vm1639, %v1667
      %v1671 = vld [vmem:[#allocation3 + $0x12] sm:$0xf]
      %v1672 = vpack.c.bf16 %v1671, %v1671
      %v1675 = vunpack.c.l.s4 1983009808
      %v1676 = vunpack.c.0.s8 %v1675
      %v1677 = vlaneseq
      %v1678 = vshrl.u32 %v1677, 7
      %v1679 = vsub.s32 %v1676, %v1678
      %v1680 = vrot.slane %v1672, %v1679
      %1681 = vrot.lane.b32.xlu0 %v1680, 96
      %v1682 = vpop.permute.xlu0 %1681
      %s1684 = scalar_lea.vmem %s190, 6
      %1685 = vst.msk [vmem:[%s1684] sm:$0x3] %vm1639, %v1682
      %p1686 = scmp.lt.s32.totalorder %s14, 1
      %s1687 = scalar_select %p1686, %s14, 1
      %s1688 = smul.addr %s1687, 4
      %s1689 = smul.addr %s1688, 2
      %s1690 = scalar_lea.vmem %s3, %s1689
      // Predicated region
      $region33: #{densenet_forward.17} parent=31 // pred_check
        %p1691 = pneg %p105
      $region34: #{densenet_forward.17} parent=31 // pred_check_branch
        %1693 = sbr.rel (%p1691) target = $region36
      $region35: #{densenet_forward.17} parent=31 // pred_region
        _
      $region36: #{densenet_forward.17} parent=31 // pred_fallthru
        _
    $region32: #{densenet_forward.17} parent=5 // pred_fallthru
      _
    %p1694 = scmp.le.s32.totalorder 2, %s9
    // Predicated region
    $region37: #{densenet_forward.17} parent=5 // pred_check
      %p1695 = pneg %p1694
    $region38: #{densenet_forward.17} parent=5 // pred_check_branch
      %1697 = sbr.rel (%p1695) target = $region40
    $region39: #{densenet_forward.17} parent=5 // pred_region
      %s1698 = ssub.s32 %s9, 2
      // Predicated region
      $region41: #{densenet_forward.17} parent=39 // pred_check
        %p1699 = pneg %p111
      $region42: #{densenet_forward.17} parent=39 // pred_check_branch
        %1701 = sbr.rel (%p1699) target = $region44
      $region43: #{densenet_forward.17} parent=39 // pred_region
        %p1702 = scmp.lt.s32.totalorder %s15, 1
        %s1703 = scalar_select %p1702, %s15, 1
        %s1704 = smul.addr %s1703, 4
        %s1705 = smul.addr %s1704, 2
        %s1706 = scalar_lea.vmem %s3, %s1705
      $region44: #{densenet_forward.17} parent=39 // pred_fallthru
        _
    $region40: #{densenet_forward.17} parent=5 // pred_fallthru
      _
  $region6: #{densenet_forward.17} parent=0 // loop_footer
    %s13 = sadd.s32 1, %s9
  $region7: #{densenet_forward.17} parent=0 // loop_footer_branch
    %8 = sbr.rel target = $region3
  $region8: #{densenet_forward.17} parent=0 // loop_exit
    _

// kernel: densenet_forward.19
$region0: #{densenet_forward.19}
  #allocation0 [shape = 'u32[]', space=smem, size = 0x4, offset = 0x4, fixed_abs, tag = 'smem constant byte address 0x4 - core index']
  #allocation1 [shape = 'u32[144,128]{1,0:T(1,128)}', space=vmem, size = 0x12000, scoped, tag = 'internal scratch']
  #allocation2 [shape = 'f32[128,128]{1,0:T(8,128)}', space=vmem, size = 0x10000, scoped, tag = 'scratch operand']
  %s0 = inlined_call_operand.vmem [shape: bf16[128,128], index: 0, kind: input, shape index: {}]
  %s1 = inlined_call_operand.vmem [shape: bf16[128,128], index: 1, kind: input, shape index: {}]
  %s2 = inlined_call_operand.vmem [shape: bf16[128,128], index: 2, kind: output, shape index: {}]
  %s3 = sld [smem:[#allocation0]]
  $region26: #{densenet_forward.19} parent=0
    _
  %s5 = ssub.s32 1, %s3
  %s6 = scalar_select 0, %s5, %s3
  // Predicated region
  $region2: #{densenet_forward.19} parent=0 // pred_check
    _
  $region3: #{densenet_forward.19} parent=0 // pred_check_branch
    %8 = sbr.rel (0) target = $region5
  $region4: #{densenet_forward.19} parent=0 // pred_region
    _
  $region5: #{densenet_forward.19} parent=0 // pred_fallthru
    _
  // Predicated region
  $region6: #{densenet_forward.19} parent=0 // pred_check
    _
  $region7: #{densenet_forward.19} parent=0 // pred_check_branch
    %10 = sbr.rel (0) target = $region9
  $region8: #{densenet_forward.19} parent=0 // pred_region
    _
  $region9: #{densenet_forward.19} parent=0 // pred_fallthru
    _
  %p12 = scmp.eq.s32.totalorder 0, 0
  // Predicated region
  $region10: #{densenet_forward.19} parent=0 // pred_check
    %p13 = pneg %p12
  $region11: #{densenet_forward.19} parent=0 // pred_check_branch
    %15 = sbr.rel (%p13) target = $region13
  $region12: #{densenet_forward.19} parent=0 // pred_region
    %16 = vst [vmem:[#allocation2] sm:$0xff] 0.0
    %17 = vst [vmem:[#allocation2 + $0x8] sm:$0xff] 0.0
    %18 = vst [vmem:[#allocation2 + $0x10] sm:$0xff] 0.0
    %19 = vst [vmem:[#allocation2 + $0x18] sm:$0xff] 0.0
    %20 = vst [vmem:[#allocation2 + $0x20] sm:$0xff] 0.0
    %21 = vst [vmem:[#allocation2 + $0x28] sm:$0xff] 0.0
    %22 = vst [vmem:[#allocation2 + $0x30] sm:$0xff] 0.0
    %23 = vst [vmem:[#allocation2 + $0x38] sm:$0xff] 0.0
    %24 = vst [vmem:[#allocation2 + $0x40] sm:$0xff] 0.0
    %25 = vst [vmem:[#allocation2 + $0x48] sm:$0xff] 0.0
    %26 = vst [vmem:[#allocation2 + $0x50] sm:$0xff] 0.0
    %27 = vst [vmem:[#allocation2 + $0x58] sm:$0xff] 0.0
    %28 = vst [vmem:[#allocation2 + $0x60] sm:$0xff] 0.0
    %29 = vst [vmem:[#allocation2 + $0x68] sm:$0xff] 0.0
    %30 = vst [vmem:[#allocation2 + $0x70] sm:$0xff] 0.0
    %31 = vst [vmem:[#allocation2 + $0x78] sm:$0xff] 0.0
  $region13: #{densenet_forward.19} parent=0 // pred_fallthru
    _
  %v32 = vld [vmem:[%s0] sm:$0xf]
  %v33 = vld [vmem:[%s0 + $0x4] sm:$0xf]
  %v34 = vld [vmem:[%s0 + $0x8] sm:$0xf]
  %v35 = vld [vmem:[%s0 + $0xc] sm:$0xf]
  %v36 = vld [vmem:[%s0 + $0x10] sm:$0xf]
  %v37 = vld [vmem:[%s0 + $0x14] sm:$0xf]
  %v38 = vld [vmem:[%s0 + $0x18] sm:$0xf]
  %v39 = vld [vmem:[%s0 + $0x1c] sm:$0xf]
  %v40 = vld [vmem:[%s0 + $0x20] sm:$0xf]
  %v41 = vld [vmem:[%s0 + $0x24] sm:$0xf]
  %v42 = vld [vmem:[%s0 + $0x28] sm:$0xf]
  %v43 = vld [vmem:[%s0 + $0x2c] sm:$0xf]
  %v44 = vld [vmem:[%s0 + $0x30] sm:$0xf]
  %v45 = vld [vmem:[%s0 + $0x34] sm:$0xf]
  %v46 = vld [vmem:[%s0 + $0x38] sm:$0xf]
  %v47 = vld [vmem:[%s0 + $0x3c] sm:$0xf]
  %v48 = vld [vmem:[#allocation2] sm:$0xff]
  %v49 = vld [vmem:[#allocation2 + $0x8] sm:$0xff]
  %v50 = vld [vmem:[#allocation2 + $0x10] sm:$0xff]
  %v51 = vld [vmem:[#allocation2 + $0x18] sm:$0xff]
  %v52 = vld [vmem:[#allocation2 + $0x20] sm:$0xff]
  %v53 = vld [vmem:[#allocation2 + $0x28] sm:$0xff]
  %v54 = vld [vmem:[#allocation2 + $0x30] sm:$0xff]
  %v55 = vld [vmem:[#allocation2 + $0x38] sm:$0xff]
  %v56 = vld [vmem:[#allocation2 + $0x40] sm:$0xff]
  %v57 = vld [vmem:[#allocation2 + $0x48] sm:$0xff]
  %v58 = vld [vmem:[#allocation2 + $0x50] sm:$0xff]
  %v59 = vld [vmem:[#allocation2 + $0x58] sm:$0xff]
  %v60 = vld [vmem:[#allocation2 + $0x60] sm:$0xff]
  %v61 = vld [vmem:[#allocation2 + $0x68] sm:$0xff]
  %v62 = vld [vmem:[#allocation2 + $0x70] sm:$0xff]
  %v63 = vld [vmem:[#allocation2 + $0x78] sm:$0xff]
  %v64 = vld [vmem:[%s1] sm:$0xf]
  %v65 = vld [vmem:[%s1 + $0x4] sm:$0xf]
  %v66 = vld [vmem:[%s1 + $0x8] sm:$0xf]
  %v67 = vld [vmem:[%s1 + $0xc] sm:$0xf]
  %v68 = vld [vmem:[%s1 + $0x10] sm:$0xf]
  %v69 = vld [vmem:[%s1 + $0x14] sm:$0xf]
  %v70 = vld [vmem:[%s1 + $0x18] sm:$0xf]
  %v71 = vld [vmem:[%s1 + $0x1c] sm:$0xf]
  %v72 = vld [vmem:[%s1 + $0x20] sm:$0xf]
  %v73 = vld [vmem:[%s1 + $0x24] sm:$0xf]
  %v74 = vld [vmem:[%s1 + $0x28] sm:$0xf]
  %v75 = vld [vmem:[%s1 + $0x2c] sm:$0xf]
  %v76 = vld [vmem:[%s1 + $0x30] sm:$0xf]
  %v77 = vld [vmem:[%s1 + $0x34] sm:$0xf]
  %v78 = vld [vmem:[%s1 + $0x38] sm:$0xf]
  %v79 = vld [vmem:[%s1 + $0x3c] sm:$0xf]
  %v96 = vunpack.c.l.b16 %v32
  %v97 = vunpack.c.l.b16 %v33
  %v98 = vunpack.c.l.b16 %v34
  %v99 = vunpack.c.l.b16 %v35
  %v100 = vunpack.c.l.b16 %v36
  %v101 = vunpack.c.l.b16 %v37
  %v102 = vunpack.c.l.b16 %v38
  %v103 = vunpack.c.l.b16 %v39
  %v104 = vunpack.c.l.b16 %v40
  %v105 = vunpack.c.l.b16 %v41
  %v106 = vunpack.c.l.b16 %v42
  %v107 = vunpack.c.l.b16 %v43
  %v108 = vunpack.c.l.b16 %v44
  %v109 = vunpack.c.l.b16 %v45
  %v110 = vunpack.c.l.b16 %v46
  %v111 = vunpack.c.l.b16 %v47
  %v112 = vpack.c.b16 %v97, %v96
  %v113 = vpack.c.b16 %v99, %v98
  %v114 = vpack.c.b16 %v101, %v100
  %v115 = vpack.c.b16 %v103, %v102
  %v116 = vpack.c.b16 %v105, %v104
  %v117 = vpack.c.b16 %v107, %v106
  %v118 = vpack.c.b16 %v109, %v108
  %v119 = vpack.c.b16 %v111, %v110
  %v144 = vunpack.c.l.b16 %v64
  %v145 = vunpack.c.l.b16 %v65
  %v146 = vunpack.c.l.b16 %v66
  %v147 = vunpack.c.l.b16 %v67
  %v148 = vunpack.c.l.b16 %v68
  %v149 = vunpack.c.l.b16 %v69
  %v150 = vunpack.c.l.b16 %v70
  %v151 = vunpack.c.l.b16 %v71
  %v152 = vunpack.c.l.b16 %v72
  %v153 = vunpack.c.l.b16 %v73
  %v154 = vunpack.c.l.b16 %v74
  %v155 = vunpack.c.l.b16 %v75
  %v156 = vunpack.c.l.b16 %v76
  %v157 = vunpack.c.l.b16 %v77
  %v158 = vunpack.c.l.b16 %v78
  %v159 = vunpack.c.l.b16 %v79
  %v160 = vpack.c.b16 %v145, %v144
  %v161 = vpack.c.b16 %v147, %v146
  %v162 = vpack.c.b16 %v149, %v148
  %v163 = vpack.c.b16 %v151, %v150
  %v164 = vpack.c.b16 %v153, %v152
  %v165 = vpack.c.b16 %v155, %v154
  %v166 = vpack.c.b16 %v157, %v156
  %v167 = vpack.c.b16 %v159, %v158
  %176 = vmatprep.subr.bf16.mxu0 0
  %177 = vmatpush1.bf16.msra.mxu0 %v160
  %178 = vmatprep.subr.bf16.mxu0 0
  %179 = vmatpush1.bf16.msra.mxu0 %v161
  %180 = vmatprep.subr.bf16.mxu0 0
  %181 = vmatpush1.bf16.msra.mxu0 %v162
  %182 = vmatprep.subr.bf16.mxu0 0
  %183 = vmatpush1.bf16.msra.mxu0 %v163
  %184 = vmatprep.subr.bf16.mxu0 0
  %185 = vmatpush1.bf16.msra.mxu0 %v164
  %186 = vmatprep.subr.bf16.mxu0 0
  %187 = vmatpush1.bf16.msra.mxu0 %v165
  %188 = vmatprep.subr.bf16.mxu0 0
  %189 = vmatpush1.bf16.msra.mxu0 %v166
  %190 = vmatprep.subr.bf16.mxu0 0
  %191 = vmatpush1.bf16.msra.mxu0 %v167
  %192 = vmatprep.subr.bf16.mxu0 0
  %193 = vmatpush1.bf16.msra.mxu0 0
  %194 = vmatprep.subr.bf16.mxu0 0
  %195 = vmatpush1.bf16.msra.mxu0 0
  %196 = vmatprep.subr.bf16.mxu0 0
  %197 = vmatpush1.bf16.msra.mxu0 0
  %198 = vmatprep.subr.bf16.mxu0 0
  %199 = vmatpush1.bf16.msra.mxu0 0
  %200 = vmatprep.subr.bf16.mxu0 0
  %201 = vmatpush1.bf16.msra.mxu0 0
  %202 = vmatprep.subr.bf16.mxu0 0
  %203 = vmatpush1.bf16.msra.mxu0 0
  %204 = vmatprep.subr.bf16.mxu0 0
  %205 = vmatpush1.bf16.msra.mxu0 0
  %206 = vmatprep.subr.bf16.mxu0 0
  %207 = vmatpush1.bf16.msra.mxu0 0
  %208 = vmatprep.mubr.bf16.mxu0 0
  %209 = vmatmul.mubr.bf16.gmra.mrb[0].mxu0 %v112
  %v210 = vpop.f32.mrb[0].mxu0
  %v211 = vadd.f32 0.0, %v210
  %v212 = vpop.f32.mrb[0].mxu0
  %v213 = vpop.f32.mrb[0].mxu0
  %v214 = vadd.f32 0.0, %v213
  %v215 = vpop.f32.mrb[0].mxu0
  %216 = vmatprep.mubr.bf16.mxu0 0
  %217 = vmatmul.mubr.bf16.gmra.mrb[0].mxu0 %v113
  %v218 = vpop.f32.mrb[0].mxu0
  %v219 = vadd.f32 0.0, %v218
  %v220 = vpop.f32.mrb[0].mxu0
  %v221 = vpop.f32.mrb[0].mxu0
  %v222 = vadd.f32 0.0, %v221
  %v223 = vpop.f32.mrb[0].mxu0
  %224 = vmatprep.mubr.bf16.mxu0 0
  %225 = vmatmul.mubr.bf16.gmra.mrb[0].mxu0 %v114
  %v226 = vpop.f32.mrb[0].mxu0
  %v227 = vadd.f32 0.0, %v226
  %v228 = vpop.f32.mrb[0].mxu0
  %v229 = vpop.f32.mrb[0].mxu0
  %v230 = vadd.f32 0.0, %v229
  %v231 = vpop.f32.mrb[0].mxu0
  %232 = vmatprep.mubr.bf16.mxu0 0
  %233 = vmatmul.mubr.bf16.gmra.mrb[0].mxu0 %v115
  %v234 = vpop.f32.mrb[0].mxu0
  %v235 = vadd.f32 0.0, %v234
  %v236 = vpop.f32.mrb[0].mxu0
  %v237 = vpop.f32.mrb[0].mxu0
  %v238 = vadd.f32 0.0, %v237
  %v239 = vpop.f32.mrb[0].mxu0
  %240 = vmatprep.mubr.bf16.mxu0 0
  %241 = vmatmul.mubr.bf16.gmra.mrb[0].mxu0 %v116
  %v242 = vpop.f32.mrb[0].mxu0
  %v243 = vadd.f32 0.0, %v242
  %v244 = vpop.f32.mrb[0].mxu0
  %v245 = vpop.f32.mrb[0].mxu0
  %v246 = vadd.f32 0.0, %v245
  %v247 = vpop.f32.mrb[0].mxu0
  %248 = vmatprep.mubr.bf16.mxu0 0
  %249 = vmatmul.mubr.bf16.gmra.mrb[0].mxu0 %v117
  %v250 = vpop.f32.mrb[0].mxu0
  %v251 = vadd.f32 0.0, %v250
  %v252 = vpop.f32.mrb[0].mxu0
  %v253 = vpop.f32.mrb[0].mxu0
  %v254 = vadd.f32 0.0, %v253
  %v255 = vpop.f32.mrb[0].mxu0
  %256 = vmatprep.mubr.bf16.mxu0 0
  %257 = vmatmul.mubr.bf16.gmra.mrb[0].mxu0 %v118
  %v258 = vpop.f32.mrb[0].mxu0
  %v259 = vadd.f32 0.0, %v258
  %v260 = vpop.f32.mrb[0].mxu0
  %v261 = vpop.f32.mrb[0].mxu0
  %v262 = vadd.f32 0.0, %v261
  %v263 = vpop.f32.mrb[0].mxu0
  %264 = vmatprep.mubr.bf16.mxu0 0
  %265 = vmatmul.mubr.bf16.gmra.mrb[0].mxu0 %v119
  %v266 = vpop.f32.mrb[0].mxu0
  %v267 = vadd.f32 0.0, %v266
  %v268 = vpop.f32.mrb[0].mxu0
  %v269 = vpop.f32.mrb[0].mxu0
  %v270 = vadd.f32 0.0, %v269
  %v271 = vpop.f32.mrb[0].mxu0
  %272 = vdwg.mxu0
  %v273 = vadd.f32 %v48, %v211
  %v274 = vadd.f32 %v49, %v214
  %v275 = vadd.f32 %v50, %v219
  %v276 = vadd.f32 %v51, %v222
  %v277 = vadd.f32 %v52, %v227
  %v278 = vadd.f32 %v53, %v230
  %v279 = vadd.f32 %v54, %v235
  %v280 = vadd.f32 %v55, %v238
  %v281 = vadd.f32 %v56, %v243
  %v282 = vadd.f32 %v57, %v246
  %v283 = vadd.f32 %v58, %v251
  %v284 = vadd.f32 %v59, %v254
  %v285 = vadd.f32 %v60, %v259
  %v286 = vadd.f32 %v61, %v262
  %v287 = vadd.f32 %v62, %v267
  %v288 = vadd.f32 %v63, %v270
  %289 = vst [vmem:[#allocation2] sm:$0xff] %v273
  %290 = vst [vmem:[#allocation2 + $0x8] sm:$0xff] %v274
  %291 = vst [vmem:[#allocation2 + $0x10] sm:$0xff] %v275
  %292 = vst [vmem:[#allocation2 + $0x18] sm:$0xff] %v276
  %293 = vst [vmem:[#allocation2 + $0x20] sm:$0xff] %v277
  %294 = vst [vmem:[#allocation2 + $0x28] sm:$0xff] %v278
  %295 = vst [vmem:[#allocation2 + $0x30] sm:$0xff] %v279
  %296 = vst [vmem:[#allocation2 + $0x38] sm:$0xff] %v280
  %297 = vst [vmem:[#allocation2 + $0x40] sm:$0xff] %v281
  %298 = vst [vmem:[#allocation2 + $0x48] sm:$0xff] %v282
  %299 = vst [vmem:[#allocation2 + $0x50] sm:$0xff] %v283
  %300 = vst [vmem:[#allocation2 + $0x58] sm:$0xff] %v284
  %301 = vst [vmem:[#allocation2 + $0x60] sm:$0xff] %v285
  %302 = vst [vmem:[#allocation2 + $0x68] sm:$0xff] %v286
  %303 = vst [vmem:[#allocation2 + $0x70] sm:$0xff] %v287
  %304 = vst [vmem:[#allocation2 + $0x78] sm:$0xff] %v288
  // Predicated region
  $region14: #{densenet_forward.19} parent=0 // pred_check
    %p305 = pneg %p12
  $region15: #{densenet_forward.19} parent=0 // pred_check_branch
    %307 = sbr.rel (%p305) target = $region17
  $region16: #{densenet_forward.19} parent=0 // pred_region
    %v308 = vld [vmem:[#allocation2] sm:$0xff]
    %v309 = vld [vmem:[#allocation2 + $0x8] sm:$0xff]
    %v310 = vld [vmem:[#allocation2 + $0x10] sm:$0xff]
    %v311 = vld [vmem:[#allocation2 + $0x18] sm:$0xff]
    %v312 = vld [vmem:[#allocation2 + $0x20] sm:$0xff]
    %v313 = vld [vmem:[#allocation2 + $0x28] sm:$0xff]
    %v314 = vld [vmem:[#allocation2 + $0x30] sm:$0xff]
    %v315 = vld [vmem:[#allocation2 + $0x38] sm:$0xff]
    %v316 = vld [vmem:[#allocation2 + $0x40] sm:$0xff]
    %v317 = vld [vmem:[#allocation2 + $0x48] sm:$0xff]
    %v318 = vld [vmem:[#allocation2 + $0x50] sm:$0xff]
    %v319 = vld [vmem:[#allocation2 + $0x58] sm:$0xff]
    %v320 = vld [vmem:[#allocation2 + $0x60] sm:$0xff]
    %v321 = vld [vmem:[#allocation2 + $0x68] sm:$0xff]
    %v322 = vld [vmem:[#allocation2 + $0x70] sm:$0xff]
    %v323 = vld [vmem:[#allocation2 + $0x78] sm:$0xff]
    %v324 = vpack.c.bf16 %v309, %v308
    %v325 = vpack.c.bf16 %v311, %v310
    %v326 = vpack.c.bf16 %v313, %v312
    %v327 = vpack.c.bf16 %v315, %v314
    %v328 = vpack.c.bf16 %v317, %v316
    %v329 = vpack.c.bf16 %v319, %v318
    %v330 = vpack.c.bf16 %v321, %v320
    %v331 = vpack.c.bf16 %v323, %v322
    %v340 = vunpack.c.l.b16 %v324
    %v341 = vunpack.c.h.b16 %v324
    %v342 = vunpack.c.l.b16 %v325
    %v343 = vunpack.c.h.b16 %v325
    %v344 = vunpack.c.l.b16 %v326
    %v345 = vunpack.c.h.b16 %v326
    %v346 = vunpack.c.l.b16 %v327
    %v347 = vunpack.c.h.b16 %v327
    %v348 = vunpack.c.l.b16 %v328
    %v349 = vunpack.c.h.b16 %v328
    %v350 = vunpack.c.l.b16 %v329
    %v351 = vunpack.c.h.b16 %v329
    %v352 = vunpack.c.l.b16 %v330
    %v353 = vunpack.c.h.b16 %v330
    %v354 = vunpack.c.l.b16 %v331
    %v355 = vunpack.c.h.b16 %v331
    %v356 = vpack.c.b16 %v340, %v340
    %v357 = vpack.c.b16 %v341, %v341
    %v358 = vpack.c.b16 %v342, %v342
    %v359 = vpack.c.b16 %v343, %v343
    %v360 = vpack.c.b16 %v344, %v344
    %v361 = vpack.c.b16 %v345, %v345
    %v362 = vpack.c.b16 %v346, %v346
    %v363 = vpack.c.b16 %v347, %v347
    %v364 = vpack.c.b16 %v348, %v348
    %v365 = vpack.c.b16 %v349, %v349
    %v366 = vpack.c.b16 %v350, %v350
    %v367 = vpack.c.b16 %v351, %v351
    %v368 = vpack.c.b16 %v352, %v352
    %v369 = vpack.c.b16 %v353, %v353
    %v370 = vpack.c.b16 %v354, %v354
    %v371 = vpack.c.b16 %v355, %v355
    %388 = vst [vmem:[%s2] sm:$0xf] %v356
    %389 = vst [vmem:[%s2 + $0x4] sm:$0xf] %v357
    %390 = vst [vmem:[%s2 + $0x8] sm:$0xf] %v358
    %391 = vst [vmem:[%s2 + $0xc] sm:$0xf] %v359
    %392 = vst [vmem:[%s2 + $0x10] sm:$0xf] %v360
    %393 = vst [vmem:[%s2 + $0x14] sm:$0xf] %v361
    %394 = vst [vmem:[%s2 + $0x18] sm:$0xf] %v362
    %395 = vst [vmem:[%s2 + $0x1c] sm:$0xf] %v363
    %396 = vst [vmem:[%s2 + $0x20] sm:$0xf] %v364
    %397 = vst [vmem:[%s2 + $0x24] sm:$0xf] %v365
    %398 = vst [vmem:[%s2 + $0x28] sm:$0xf] %v366
    %399 = vst [vmem:[%s2 + $0x2c] sm:$0xf] %v367
    %400 = vst [vmem:[%s2 + $0x30] sm:$0xf] %v368
    %401 = vst [vmem:[%s2 + $0x34] sm:$0xf] %v369
    %402 = vst [vmem:[%s2 + $0x38] sm:$0xf] %v370
    %403 = vst [vmem:[%s2 + $0x3c] sm:$0xf] %v371
  $region17: #{densenet_forward.19} parent=0 // pred_fallthru
    _
  // Predicated region
  $region18: #{densenet_forward.19} parent=0 // pred_check
    _
  $region19: #{densenet_forward.19} parent=0 // pred_check_branch
    %405 = sbr.rel (0) target = $region21
  $region20: #{densenet_forward.19} parent=0 // pred_region
    _
  $region21: #{densenet_forward.19} parent=0 // pred_fallthru
    _
  // Predicated region
  $region22: #{densenet_forward.19} parent=0 // pred_check
    _
  $region23: #{densenet_forward.19} parent=0 // pred_check_branch
    %407 = sbr.rel (0) target = $region25
  $region24: #{densenet_forward.19} parent=0 // pred_region
    _
  $region25: #{densenet_forward.19} parent=0 // pred_fallthru
    _

// kernel: densenet_forward.21
$region0: #{densenet_forward.21}
  #allocation0 [shape = 'u32[]', space=smem, size = 0x4, offset = 0x4, fixed_abs, tag = 'smem constant byte address 0x4 - core index']
  #allocation1 [shape = 'u32[144,128]{1,0:T(1,128)}', space=vmem, size = 0x12000, scoped, tag = 'internal scratch']
  #allocation2 [shape = 'bf16[20,128]{1,0:T(8,128)(2,1)}', space=vmem, size = 0x1800, scoped, tag = 'scratch operand']
  #allocation3 [shape = 'f32[8,32]{1,0:T(8,128)}', space=vmem, size = 0x1000, scoped, tag = 'scratch operand']
  %s0 = inlined_call_operand.vmem [shape: bf16[2,2,2,128], index: 0, kind: input, shape index: {}]
  %s1 = inlined_call_operand.vmem [shape: bf16[2,2,2,128], index: 1, kind: input, shape index: {}]
  %s2 = inlined_call_operand.vmem [shape: bf16[9,128,32], index: 2, kind: input, shape index: {}]
  %s3 = inlined_call_operand.vmem [shape: bf16[2,2,2,128], index: 3, kind: output, shape index: {}]
  %s4 = sld [smem:[#allocation0]]
  $region45: #{densenet_forward.21} parent=0
    _
  %s6 = ssub.s32 1, %s4
  %s7 = scalar_select 0, %s6, %s4
  loop: start=0, step=1, limit=4
  $region2: #{densenet_forward.21} parent=0 // loop_pre_header
    _
  $region3: #{densenet_forward.21} parent=0 // loop_header
    %s9 = sphi 0, %s13
    %p10 = scmp.ge.s32.totalorder %s9, 4
    %s19 = sphi 0, %s21
    %s22 = sphi 0, %s19
    %s23 = sphi 0, %s22
    %s39 = sphi 0, %s23
    %s45 = sphi 0, %s47
    %s48 = sphi 0, %s45
    %s49 = sphi 0, %s48
    %s65 = sphi 0, %s49
    %s69 = sphi 0, %s69
    %s71 = sphi 0, %s69
    %s72 = sphi 0, %s71
    %s86 = sphi 0, %s72
    %s92 = sphi 0, %s94
    %s95 = sphi 0, %s92
    %s96 = sphi 0, %s95
    %s112 = sphi 0, %s96
  $region4: #{densenet_forward.21} parent=0 // loop_header_branch
    %12 = sbr.rel (%p10) target = $region8
  $region5: #{densenet_forward.21} parent=0 // loop_body
    %s14 = ssub.s32 %s9, 1
    %s15 = ssub.s32 %s9, 2
    %s16 = sadd.s32 %s9, 1
    %s17 = ssub.s32 %s9, %s16
    %p18 = scmp.eq.s32.totalorder %s17, 0
    %s20 = sadd.s32 %s19, 1
    %s21 = scalar_select %p18, %s19, %s20
    %p24 = pneg %p18
    %p25 = scmp.eq.s32.totalorder %s9, 1
    %p26 = por %p24, %p25
    %p27 = scmp.ne.s32.totalorder %s19, %s22
    %p28 = scmp.eq.s32.totalorder %s9, 0
    %p29 = por %p27, %p28
    %p30 = scmp.ne.s32.totalorder %s19, %s22
    %p31 = scmp.eq.s32.totalorder %s14, 1
    %p32 = por %p30, %p31
    %p33 = scmp.ne.s32.totalorder %s22, %s23
    %p34 = scmp.eq.s32.totalorder %s14, 0
    %p35 = por %p33, %p34
    %p36 = scmp.ne.s32.totalorder %s22, %s23
    %p37 = scmp.eq.s32.totalorder %s15, 1
    %p38 = por %p36, %p37
    %p40 = scmp.ne.s32.totalorder %s23, %s39
    %p41 = scmp.eq.s32.totalorder %s15, 0
    %p42 = por %p40, %p41
    %s43 = ssub.s32 %s9, %s16
    %p44 = scmp.eq.s32.totalorder %s43, 0
    %s46 = sadd.s32 %s45, 1
    %s47 = scalar_select %p44, %s45, %s46
    %p50 = pneg %p44
    %p51 = scmp.eq.s32.totalorder %s9, 1
    %p52 = por %p50, %p51
    %p53 = scmp.ne.s32.totalorder %s45, %s48
    %p54 = scmp.eq.s32.totalorder %s9, 0
    %p55 = por %p53, %p54
    %p56 = scmp.ne.s32.totalorder %s45, %s48
    %p57 = scmp.eq.s32.totalorder %s14, 1
    %p58 = por %p56, %p57
    %p59 = scmp.ne.s32.totalorder %s48, %s49
    %p60 = scmp.eq.s32.totalorder %s14, 0
    %p61 = por %p59, %p60
    %p62 = scmp.ne.s32.totalorder %s48, %s49
    %p63 = scmp.eq.s32.totalorder %s15, 1
    %p64 = por %p62, %p63
    %p66 = scmp.ne.s32.totalorder %s49, %s65
    %p67 = scmp.eq.s32.totalorder %s15, 0
    %p68 = por %p66, %p67
    %s70 = sadd.s32 %s69, 1
    %p73 = scmp.eq.s32.totalorder %s9, 1
    %p74 = scmp.ne.s32.totalorder %s69, %s71
    %p75 = scmp.eq.s32.totalorder %s9, 0
    %p76 = por %p74, %p75
    %p77 = scmp.ne.s32.totalorder %s69, %s71
    %p78 = scmp.eq.s32.totalorder %s14, 1
    %p79 = por %p77, %p78
    %p80 = scmp.ne.s32.totalorder %s71, %s72
    %p81 = scmp.eq.s32.totalorder %s14, 0
    %p82 = por %p80, %p81
    %p83 = scmp.ne.s32.totalorder %s71, %s72
    %p84 = scmp.eq.s32.totalorder %s15, 1
    %p85 = por %p83, %p84
    %p87 = scmp.ne.s32.totalorder %s72, %s86
    %p88 = scmp.eq.s32.totalorder %s15, 0
    %p89 = por %p87, %p88
    %s90 = ssub.s32 %s9, %s16
    %p91 = scmp.eq.s32.totalorder %s90, 0
    %s93 = sadd.s32 %s92, 1
    %s94 = scalar_select %p91, %s92, %s93
    %p97 = pneg %p91
    %p98 = scmp.eq.s32.totalorder %s9, 1
    %p99 = por %p97, %p98
    %p100 = scmp.ne.s32.totalorder %s92, %s95
    %p101 = scmp.eq.s32.totalorder %s9, 0
    %p102 = por %p100, %p101
    %p103 = scmp.ne.s32.totalorder %s92, %s95
    %p104 = scmp.eq.s32.totalorder %s14, 1
    %p105 = por %p103, %p104
    %p106 = scmp.ne.s32.totalorder %s95, %s96
    %p107 = scmp.eq.s32.totalorder %s14, 0
    %p108 = por %p106, %p107
    %p109 = scmp.ne.s32.totalorder %s95, %s96
    %p110 = scmp.eq.s32.totalorder %s15, 1
    %p111 = por %p109, %p110
    %p113 = scmp.ne.s32.totalorder %s96, %s112
    %p114 = scmp.eq.s32.totalorder %s15, 0
    %p115 = por %p113, %p114
    %p116 = scmp.le.s32.totalorder 1, %s9
    %p117 = scmp.lt.s32.totalorder %s9, 3
    %p118 = pnand %p116, %p117
    %p119 = pneg %p118
    // Predicated region
    $region9: #{densenet_forward.21} parent=5 // pred_check
      _
    $region10: #{densenet_forward.21} parent=5 // pred_check_branch
      %121 = sbr.rel (%p118) target = $region12
    $region11: #{densenet_forward.21} parent=5 // pred_region
      %s122 = ssub.s32 %s9, 1
      // Predicated region
      $region13: #{densenet_forward.21} parent=11 // pred_check
        %p123 = pneg %p82
      $region14: #{densenet_forward.21} parent=11 // pred_check_branch
        %125 = sbr.rel (%p123) target = $region16
      $region15: #{densenet_forward.21} parent=11 // pred_region
        _
      $region16: #{densenet_forward.21} parent=11 // pred_fallthru
        _
    $region12: #{densenet_forward.21} parent=5 // pred_fallthru
      _
    %p126 = scmp.lt.s32.totalorder %s9, 2
    // Predicated region
    $region17: #{densenet_forward.21} parent=5 // pred_check
      %p127 = pneg %p126
    $region18: #{densenet_forward.21} parent=5 // pred_check_branch
      %129 = sbr.rel (%p127) target = $region20
    $region19: #{densenet_forward.21} parent=5 // pred_region
      // Predicated region
      $region21: #{densenet_forward.21} parent=19 // pred_check
        %p130 = pneg %p29
      $region22: #{densenet_forward.21} parent=19 // pred_check_branch
        %132 = sbr.rel (%p130) target = $region24
      $region23: #{densenet_forward.21} parent=19 // pred_region
        %p133 = scmp.lt.s32.totalorder %s9, 1
        %s134 = scalar_select %p133, %s9, 1
        %s135 = smul.addr %s134, 2
        %s136 = scalar_lea.vmem %s0, %s135
      $region24: #{densenet_forward.21} parent=19 // pred_fallthru
        _
      // Predicated region
      $region25: #{densenet_forward.21} parent=19 // pred_check
        %p137 = pneg %p55
      $region26: #{densenet_forward.21} parent=19 // pred_check_branch
        %139 = sbr.rel (%p137) target = $region28
      $region27: #{densenet_forward.21} parent=19 // pred_region
        %p140 = scmp.lt.s32.totalorder %s9, 1
        %s141 = scalar_select %p140, %s9, 1
        %s142 = smul.addr %s141, 2
        %s143 = scalar_lea.vmem %s1, %s142
      $region28: #{densenet_forward.21} parent=19 // pred_fallthru
        _
    $region20: #{densenet_forward.21} parent=5 // pred_fallthru
      _
    %p144 = scmp.le.s32.totalorder 1, %s9
    %p145 = scmp.lt.s32.totalorder %s9, 3
    %p146 = pnand %p144, %p145
    %p147 = pneg %p146
    // Predicated region
    $region29: #{densenet_forward.21} parent=5 // pred_check
      _
    $region30: #{densenet_forward.21} parent=5 // pred_check_branch
      %149 = sbr.rel (%p146) target = $region32
    $region31: #{densenet_forward.21} parent=5 // pred_region
      %s150 = ssub.s32 %s9, 1
      %p151 = scmp.lt.s32.totalorder %s14, 1
      %s152 = scalar_select %p151, %s14, 1
      %s153 = smul.addr %s152, 2
      %s154 = scalar_lea.vmem %s0, %s153
      %p155 = pneg %p35
      %p156 = pneg %p32
      %p157 = scmp.lt.s32.totalorder %s14, 1
      %s158 = scalar_select %p157, %s14, 1
      %s159 = smul.addr %s158, 2
      %s160 = scalar_lea.vmem %s1, %s159
      %p161 = pneg %p61
      %p162 = pneg %p58
      %p163 = pneg %p82
      %p164 = pneg %p79
      %p165 = pneg %p108
      %p166 = pneg %p105
      %p167 = scmp.lt.s32.totalorder %s14, 1
      %s168 = scalar_select %p167, %s14, 1
      %s169 = smul.addr %s168, 2
      %s170 = scalar_lea.vmem %s3, %s169
      %p171 = scmp.lt.s32.totalorder %s14, 1
      %s172 = scalar_select %p171, %s14, 1
      %s173 = smul.addr %s172, 2
      %s174 = scalar_lea.vmem %s0, %s173
      %p175 = scmp.lt.s32.totalorder %s14, 1
      %s176 = scalar_select %p175, %s14, 1
      %s177 = smul.addr %s176, 2
      %s178 = scalar_lea.vmem %s1, %s177
      %p179 = scmp.lt.s32.totalorder %s14, 1
      %s180 = scalar_select %p179, %s14, 1
      %s181 = smul.addr %s180, 2
      %s182 = scalar_lea.vmem %s3, %s181
      %184 = vst [vmem:[#allocation2] sm:$0xf] 0
      %185 = vst [vmem:[#allocation2 + $0x4] sm:$0xf] 0
      %186 = vst [vmem:[#allocation2 + $0x8] sm:$0x3] 0
      %v187 = vld [vmem:[%s174] sm:$0x1]
      %v190 = vunpack.c.l.s4 1935823168
      %v191 = vunpack.c.0.s8 %v190
      %v192 = vlaneseq
      %v193 = vshrl.u32 %v192, 7
      %v194 = vsub.s32 %v191, %v193
      %v195 = vrot.slane %v187, %v194
      %v197 = vunpack.c.l.s4 1935823168
      %v198 = vunpack.c.0.s8 %v197
      %v199 = vlaneseq
      %v200 = vshrl.u32 %v199, 7
      %v201 = vsub.s32 %v198, %v200
      %v202 = vrot.slane %v195, %v201
      %v204 = vshrl.u32 %v202, 16
      %v206 = vrot.slane %v204, 5
      %v207 = vshll.u32 %v202, 16
      %v209 = vrot.slane %v207, 6
      %v210 = vor.u32 %v206, %v209
      %vm212 = vcmask 1043458
      %vm213 = vsmask.f32 3338
      %vm214 = vmand %vm212, %vm213
      %v215 = vld [vmem:[#allocation2] sm:$0xc]
      %v216 = vsel %vm214, %v210, %v215
      %217 = vst [vmem:[#allocation2] sm:$0xc] %v216
      %s218 = scalar_lea.vmem %s174, 1
      %v219 = vld [vmem:[%s218] sm:$0x1]
      %v222 = vunpack.c.l.s4 1935823168
      %v223 = vunpack.c.0.s8 %v222
      %v224 = vlaneseq
      %v225 = vshrl.u32 %v224, 7
      %v226 = vsub.s32 %v223, %v225
      %v227 = vrot.slane %v219, %v226
      %v229 = vunpack.c.l.s4 1935823168
      %v230 = vunpack.c.0.s8 %v229
      %v231 = vlaneseq
      %v232 = vshrl.u32 %v231, 7
      %v233 = vsub.s32 %v230, %v232
      %v234 = vrot.slane %v227, %v233
      %v236 = vshrl.u32 %v234, 16
      %v238 = vrot.slane %v236, 7
      %v239 = vshll.u32 %v234, 16
      %v241 = vor.u32 %v238, %v239
      %vm243 = vcmask 1041408
      %vm244 = vsmask.f32 1282
      %vm245 = vmand %vm243, %vm244
      %v246 = vld [vmem:[#allocation2 + $0x4] sm:$0x3]
      %v247 = vsel %vm245, %v241, %v246
      %248 = vst [vmem:[#allocation2 + $0x4] sm:$0x3] %v247
      %vm249 = vcmask 261120
      %250 = vst.msk [vmem:[#allocation3] sm:$0xff] %vm249, 0.0
      %v251 = vld [vmem:[#allocation2] sm:$0xf]
      %v252 = vld [vmem:[#allocation3] sm:$0xff]
      %v253 = vld [vmem:[%s2] sm:$0xf]
      %v254 = vld [vmem:[%s2 + $0x4] sm:$0xf]
      %v255 = vld [vmem:[%s2 + $0x8] sm:$0xf]
      %v256 = vld [vmem:[%s2 + $0xc] sm:$0xf]
      %v257 = vld [vmem:[%s2 + $0x10] sm:$0xf]
      %v258 = vld [vmem:[%s2 + $0x14] sm:$0xf]
      %v259 = vld [vmem:[%s2 + $0x18] sm:$0xf]
      %v260 = vld [vmem:[%s2 + $0x1c] sm:$0xf]
      %v261 = vld [vmem:[%s2 + $0x20] sm:$0xf]
      %v262 = vld [vmem:[%s2 + $0x24] sm:$0xf]
      %v263 = vld [vmem:[%s2 + $0x28] sm:$0xf]
      %v264 = vld [vmem:[%s2 + $0x2c] sm:$0xf]
      %v265 = vld [vmem:[%s2 + $0x30] sm:$0xf]
      %v266 = vld [vmem:[%s2 + $0x34] sm:$0xf]
      %v267 = vld [vmem:[%s2 + $0x38] sm:$0xf]
      %v268 = vld [vmem:[%s2 + $0x3c] sm:$0xf]
      %v285 = vunpack.c.l.b16 %v253
      %v286 = vunpack.c.l.b16 %v254
      %v287 = vunpack.c.l.b16 %v255
      %v288 = vunpack.c.l.b16 %v256
      %v289 = vunpack.c.l.b16 %v257
      %v290 = vunpack.c.l.b16 %v258
      %v291 = vunpack.c.l.b16 %v259
      %v292 = vunpack.c.l.b16 %v260
      %v293 = vunpack.c.l.b16 %v261
      %v294 = vunpack.c.l.b16 %v262
      %v295 = vunpack.c.l.b16 %v263
      %v296 = vunpack.c.l.b16 %v264
      %v297 = vunpack.c.l.b16 %v265
      %v298 = vunpack.c.l.b16 %v266
      %v299 = vunpack.c.l.b16 %v267
      %v300 = vunpack.c.l.b16 %v268
      %v301 = vpack.c.b16 %v286, %v285
      %v302 = vpack.c.b16 %v288, %v287
      %v303 = vpack.c.b16 %v290, %v289
      %v304 = vpack.c.b16 %v292, %v291
      %v305 = vpack.c.b16 %v294, %v293
      %v306 = vpack.c.b16 %v296, %v295
      %v307 = vpack.c.b16 %v298, %v297
      %v308 = vpack.c.b16 %v300, %v299
      %317 = vmatprep.subr.bf16.mxu0 0
      %318 = vmatpush1.bf16.msra.mxu0 %v301
      %319 = vmatprep.subr.bf16.mxu0 0
      %320 = vmatpush1.bf16.msra.mxu0 %v302
      %321 = vmatprep.subr.bf16.mxu0 0
      %322 = vmatpush1.bf16.msra.mxu0 %v303
      %323 = vmatprep.subr.bf16.mxu0 0
      %324 = vmatpush1.bf16.msra.mxu0 %v304
      %325 = vmatprep.subr.bf16.mxu0 0
      %326 = vmatpush1.bf16.msra.mxu0 %v305
      %327 = vmatprep.subr.bf16.mxu0 0
      %328 = vmatpush1.bf16.msra.mxu0 %v306
      %329 = vmatprep.subr.bf16.mxu0 0
      %330 = vmatpush1.bf16.msra.mxu0 %v307
      %331 = vmatprep.subr.bf16.mxu0 0
      %332 = vmatpush1.bf16.msra.mxu0 %v308
      %333 = vmatprep.subr.bf16.mxu0 0
      %334 = vmatpush1.bf16.msra.mxu0 0
      %335 = vmatprep.subr.bf16.mxu0 0
      %336 = vmatpush1.bf16.msra.mxu0 0
      %337 = vmatprep.subr.bf16.mxu0 0
      %338 = vmatpush1.bf16.msra.mxu0 0
      %339 = vmatprep.subr.bf16.mxu0 0
      %340 = vmatpush1.bf16.msra.mxu0 0
      %341 = vmatprep.subr.bf16.mxu0 0
      %342 = vmatpush1.bf16.msra.mxu0 0
      %343 = vmatprep.subr.bf16.mxu0 0
      %344 = vmatpush1.bf16.msra.mxu0 0
      %345 = vmatprep.subr.bf16.mxu0 0
      %346 = vmatpush1.bf16.msra.mxu0 0
      %347 = vmatprep.subr.bf16.mxu0 0
      %348 = vmatpush1.bf16.msra.mxu0 0
      %349 = vmatprep.mubr.bf16.mxu0 0
      %350 = vmatmul.mubr.bf16.gmra.mrb[0].mxu0 %v251
      %v351 = vpop.f32.mrb[0].mxu0
      %v352 = vadd.f32 0.0, %v351
      %v353 = vpop.f32.mrb[0].mxu0
      %v354 = vpop.f32.mrb[0].mxu0
      %v355 = vpop.f32.mrb[0].mxu0
      %356 = vdwg.mxu0
      %v357 = vadd.f32 %v252, %v352
      %358 = vst.msk [vmem:[#allocation3] sm:$0xff] %vm249, %v357
      %v359 = vld [vmem:[#allocation2] sm:$0xf]
      %v360 = vld [vmem:[#allocation2 + $0x4] sm:$0x1]
      %v361 = vld [vmem:[#allocation3] sm:$0xff]
      %s362 = scalar_lea.vmem %s2, 64
      %v363 = vld [vmem:[%s362] sm:$0xf]
      %v364 = vld [vmem:[%s362 + $0x4] sm:$0xf]
      %v365 = vld [vmem:[%s362 + $0x8] sm:$0xf]
      %v366 = vld [vmem:[%s362 + $0xc] sm:$0xf]
      %v367 = vld [vmem:[%s362 + $0x10] sm:$0xf]
      %v368 = vld [vmem:[%s362 + $0x14] sm:$0xf]
      %v369 = vld [vmem:[%s362 + $0x18] sm:$0xf]
      %v370 = vld [vmem:[%s362 + $0x1c] sm:$0xf]
      %v371 = vld [vmem:[%s362 + $0x20] sm:$0xf]
      %v372 = vld [vmem:[%s362 + $0x24] sm:$0xf]
      %v373 = vld [vmem:[%s362 + $0x28] sm:$0xf]
      %v374 = vld [vmem:[%s362 + $0x2c] sm:$0xf]
      %v375 = vld [vmem:[%s362 + $0x30] sm:$0xf]
      %v376 = vld [vmem:[%s362 + $0x34] sm:$0xf]
      %v377 = vld [vmem:[%s362 + $0x38] sm:$0xf]
      %v378 = vld [vmem:[%s362 + $0x3c] sm:$0xf]
      %v381 = vunpack.c.l.b16 %v359
      %v382 = vunpack.c.l.b16 %v360
      %v383 = vpack.c.b16 %v382, %v381
      %v385 = vshrl.u32 %v383, 16
      %v387 = vshll.u32 %v383, 16
      %v389 = vrot.slane %v387, 1
      %v390 = vor.u32 %v385, %v389
      %v408 = vunpack.c.l.b16 %v363
      %v409 = vunpack.c.l.b16 %v364
      %v410 = vunpack.c.l.b16 %v365
      %v411 = vunpack.c.l.b16 %v366
      %v412 = vunpack.c.l.b16 %v367
      %v413 = vunpack.c.l.b16 %v368
      %v414 = vunpack.c.l.b16 %v369
      %v415 = vunpack.c.l.b16 %v370
      %v416 = vunpack.c.l.b16 %v371
      %v417 = vunpack.c.l.b16 %v372
      %v418 = vunpack.c.l.b16 %v373
      %v419 = vunpack.c.l.b16 %v374
      %v420 = vunpack.c.l.b16 %v375
      %v421 = vunpack.c.l.b16 %v376
      %v422 = vunpack.c.l.b16 %v377
      %v423 = vunpack.c.l.b16 %v378
      %v424 = vpack.c.b16 %v409, %v408
      %v425 = vpack.c.b16 %v411, %v410
      %v426 = vpack.c.b16 %v413, %v412
      %v427 = vpack.c.b16 %v415, %v414
      %v428 = vpack.c.b16 %v417, %v416
      %v429 = vpack.c.b16 %v419, %v418
      %v430 = vpack.c.b16 %v421, %v420
      %v431 = vpack.c.b16 %v423, %v422
      %440 = vmatprep.subr.bf16.mxu0 0
      %441 = vmatpush1.bf16.msra.mxu0 %v424
      %442 = vmatprep.subr.bf16.mxu0 0
      %443 = vmatpush1.bf16.msra.mxu0 %v425
      %444 = vmatprep.subr.bf16.mxu0 0
      %445 = vmatpush1.bf16.msra.mxu0 %v426
      %446 = vmatprep.subr.bf16.mxu0 0
      %447 = vmatpush1.bf16.msra.mxu0 %v427
      %448 = vmatprep.subr.bf16.mxu0 0
      %449 = vmatpush1.bf16.msra.mxu0 %v428
      %450 = vmatprep.subr.bf16.mxu0 0
      %451 = vmatpush1.bf16.msra.mxu0 %v429
      %452 = vmatprep.subr.bf16.mxu0 0
      %453 = vmatpush1.bf16.msra.mxu0 %v430
      %454 = vmatprep.subr.bf16.mxu0 0
      %455 = vmatpush1.bf16.msra.mxu0 %v431
      %456 = vmatprep.subr.bf16.mxu0 0
      %457 = vmatpush1.bf16.msra.mxu0 0
      %458 = vmatprep.subr.bf16.mxu0 0
      %459 = vmatpush1.bf16.msra.mxu0 0
      %460 = vmatprep.subr.bf16.mxu0 0
      %461 = vmatpush1.bf16.msra.mxu0 0
      %462 = vmatprep.subr.bf16.mxu0 0
      %463 = vmatpush1.bf16.msra.mxu0 0
      %464 = vmatprep.subr.bf16.mxu0 0
      %465 = vmatpush1.bf16.msra.mxu0 0
      %466 = vmatprep.subr.bf16.mxu0 0
      %467 = vmatpush1.bf16.msra.mxu0 0
      %468 = vmatprep.subr.bf16.mxu0 0
      %469 = vmatpush1.bf16.msra.mxu0 0
      %470 = vmatprep.subr.bf16.mxu0 0
      %471 = vmatpush1.bf16.msra.mxu0 0
      %472 = vmatprep.mubr.bf16.mxu0 0
      %473 = vmatmul.mubr.bf16.gmra.mrb[0].mxu0 %v390
      %v474 = vpop.f32.mrb[0].mxu0
      %v475 = vadd.f32 0.0, %v474
      %v476 = vpop.f32.mrb[0].mxu0
      %v477 = vpop.f32.mrb[0].mxu0
      %v478 = vpop.f32.mrb[0].mxu0
      %479 = vdwg.mxu0
      %v480 = vadd.f32 %v361, %v475
      %481 = vst.msk [vmem:[#allocation3] sm:$0xff] %vm249, %v480
      %v482 = vld [vmem:[#allocation2] sm:$0xe]
      %v483 = vld [vmem:[#allocation2 + $0x4] sm:$0x1]
      %v484 = vld [vmem:[#allocation3] sm:$0xff]
      %s485 = scalar_lea.vmem %s2, 128
      %v486 = vld [vmem:[%s485] sm:$0xf]
      %v487 = vld [vmem:[%s485 + $0x4] sm:$0xf]
      %v488 = vld [vmem:[%s485 + $0x8] sm:$0xf]
      %v489 = vld [vmem:[%s485 + $0xc] sm:$0xf]
      %v490 = vld [vmem:[%s485 + $0x10] sm:$0xf]
      %v491 = vld [vmem:[%s485 + $0x14] sm:$0xf]
      %v492 = vld [vmem:[%s485 + $0x18] sm:$0xf]
      %v493 = vld [vmem:[%s485 + $0x1c] sm:$0xf]
      %v494 = vld [vmem:[%s485 + $0x20] sm:$0xf]
      %v495 = vld [vmem:[%s485 + $0x24] sm:$0xf]
      %v496 = vld [vmem:[%s485 + $0x28] sm:$0xf]
      %v497 = vld [vmem:[%s485 + $0x2c] sm:$0xf]
      %v498 = vld [vmem:[%s485 + $0x30] sm:$0xf]
      %v499 = vld [vmem:[%s485 + $0x34] sm:$0xf]
      %v500 = vld [vmem:[%s485 + $0x38] sm:$0xf]
      %v501 = vld [vmem:[%s485 + $0x3c] sm:$0xf]
      %v504 = vunpack.c.l.b16 %v482
      %v505 = vunpack.c.l.b16 %v483
      %v506 = vpack.c.b16 %v505, %v504
      %v507 = vrot.slane %v506, 1
      %v525 = vunpack.c.l.b16 %v486
      %v526 = vunpack.c.l.b16 %v487
      %v527 = vunpack.c.l.b16 %v488
      %v528 = vunpack.c.l.b16 %v489
      %v529 = vunpack.c.l.b16 %v490
      %v530 = vunpack.c.l.b16 %v491
      %v531 = vunpack.c.l.b16 %v492
      %v532 = vunpack.c.l.b16 %v493
      %v533 = vunpack.c.l.b16 %v494
      %v534 = vunpack.c.l.b16 %v495
      %v535 = vunpack.c.l.b16 %v496
      %v536 = vunpack.c.l.b16 %v497
      %v537 = vunpack.c.l.b16 %v498
      %v538 = vunpack.c.l.b16 %v499
      %v539 = vunpack.c.l.b16 %v500
      %v540 = vunpack.c.l.b16 %v501
      %v541 = vpack.c.b16 %v526, %v525
      %v542 = vpack.c.b16 %v528, %v527
      %v543 = vpack.c.b16 %v530, %v529
      %v544 = vpack.c.b16 %v532, %v531
      %v545 = vpack.c.b16 %v534, %v533
      %v546 = vpack.c.b16 %v536, %v535
      %v547 = vpack.c.b16 %v538, %v537
      %v548 = vpack.c.b16 %v540, %v539
      %557 = vmatprep.subr.bf16.mxu0 0
      %558 = vmatpush1.bf16.msra.mxu0 %v541
      %559 = vmatprep.subr.bf16.mxu0 0
      %560 = vmatpush1.bf16.msra.mxu0 %v542
      %561 = vmatprep.subr.bf16.mxu0 0
      %562 = vmatpush1.bf16.msra.mxu0 %v543
      %563 = vmatprep.subr.bf16.mxu0 0
      %564 = vmatpush1.bf16.msra.mxu0 %v544
      %565 = vmatprep.subr.bf16.mxu0 0
      %566 = vmatpush1.bf16.msra.mxu0 %v545
      %567 = vmatprep.subr.bf16.mxu0 0
      %568 = vmatpush1.bf16.msra.mxu0 %v546
      %569 = vmatprep.subr.bf16.mxu0 0
      %570 = vmatpush1.bf16.msra.mxu0 %v547
      %571 = vmatprep.subr.bf16.mxu0 0
      %572 = vmatpush1.bf16.msra.mxu0 %v548
      %573 = vmatprep.subr.bf16.mxu0 0
      %574 = vmatpush1.bf16.msra.mxu0 0
      %575 = vmatprep.subr.bf16.mxu0 0
      %576 = vmatpush1.bf16.msra.mxu0 0
      %577 = vmatprep.subr.bf16.mxu0 0
      %578 = vmatpush1.bf16.msra.mxu0 0
      %579 = vmatprep.subr.bf16.mxu0 0
      %580 = vmatpush1.bf16.msra.mxu0 0
      %581 = vmatprep.subr.bf16.mxu0 0
      %582 = vmatpush1.bf16.msra.mxu0 0
      %583 = vmatprep.subr.bf16.mxu0 0
      %584 = vmatpush1.bf16.msra.mxu0 0
      %585 = vmatprep.subr.bf16.mxu0 0
      %586 = vmatpush1.bf16.msra.mxu0 0
      %587 = vmatprep.subr.bf16.mxu0 0
      %588 = vmatpush1.bf16.msra.mxu0 0
      %589 = vmatprep.mubr.bf16.mxu0 0
      %590 = vmatmul.mubr.bf16.gmra.mrb[0].mxu0 %v507
      %v591 = vpop.f32.mrb[0].mxu0
      %v592 = vadd.f32 0.0, %v591
      %v593 = vpop.f32.mrb[0].mxu0
      %v594 = vpop.f32.mrb[0].mxu0
      %v595 = vpop.f32.mrb[0].mxu0
      %596 = vdwg.mxu0
      %v597 = vadd.f32 %v484, %v592
      %598 = vst.msk [vmem:[#allocation3] sm:$0xff] %vm249, %v597
      %v599 = vld [vmem:[#allocation2] sm:$0xc]
      %v600 = vld [vmem:[#allocation2 + $0x4] sm:$0x3]
      %v601 = vld [vmem:[#allocation3] sm:$0xff]
      %s602 = scalar_lea.vmem %s2, 192
      %v603 = vld [vmem:[%s602] sm:$0xf]
      %v604 = vld [vmem:[%s602 + $0x4] sm:$0xf]
      %v605 = vld [vmem:[%s602 + $0x8] sm:$0xf]
      %v606 = vld [vmem:[%s602 + $0xc] sm:$0xf]
      %v607 = vld [vmem:[%s602 + $0x10] sm:$0xf]
      %v608 = vld [vmem:[%s602 + $0x14] sm:$0xf]
      %v609 = vld [vmem:[%s602 + $0x18] sm:$0xf]
      %v610 = vld [vmem:[%s602 + $0x1c] sm:$0xf]
      %v611 = vld [vmem:[%s602 + $0x20] sm:$0xf]
      %v612 = vld [vmem:[%s602 + $0x24] sm:$0xf]
      %v613 = vld [vmem:[%s602 + $0x28] sm:$0xf]
      %v614 = vld [vmem:[%s602 + $0x2c] sm:$0xf]
      %v615 = vld [vmem:[%s602 + $0x30] sm:$0xf]
      %v616 = vld [vmem:[%s602 + $0x34] sm:$0xf]
      %v617 = vld [vmem:[%s602 + $0x38] sm:$0xf]
      %v618 = vld [vmem:[%s602 + $0x3c] sm:$0xf]
      %v621 = vunpack.c.l.b16 %v599
      %v622 = vunpack.c.l.b16 %v600
      %v623 = vpack.c.b16 %v622, %v621
      %v624 = vrot.slane %v623, 2
      %v642 = vunpack.c.l.b16 %v603
      %v643 = vunpack.c.l.b16 %v604
      %v644 = vunpack.c.l.b16 %v605
      %v645 = vunpack.c.l.b16 %v606
      %v646 = vunpack.c.l.b16 %v607
      %v647 = vunpack.c.l.b16 %v608
      %v648 = vunpack.c.l.b16 %v609
      %v649 = vunpack.c.l.b16 %v610
      %v650 = vunpack.c.l.b16 %v611
      %v651 = vunpack.c.l.b16 %v612
      %v652 = vunpack.c.l.b16 %v613
      %v653 = vunpack.c.l.b16 %v614
      %v654 = vunpack.c.l.b16 %v615
      %v655 = vunpack.c.l.b16 %v616
      %v656 = vunpack.c.l.b16 %v617
      %v657 = vunpack.c.l.b16 %v618
      %v658 = vpack.c.b16 %v643, %v642
      %v659 = vpack.c.b16 %v645, %v644
      %v660 = vpack.c.b16 %v647, %v646
      %v661 = vpack.c.b16 %v649, %v648
      %v662 = vpack.c.b16 %v651, %v650
      %v663 = vpack.c.b16 %v653, %v652
      %v664 = vpack.c.b16 %v655, %v654
      %v665 = vpack.c.b16 %v657, %v656
      %674 = vmatprep.subr.bf16.mxu0 0
      %675 = vmatpush1.bf16.msra.mxu0 %v658
      %676 = vmatprep.subr.bf16.mxu0 0
      %677 = vmatpush1.bf16.msra.mxu0 %v659
      %678 = vmatprep.subr.bf16.mxu0 0
      %679 = vmatpush1.bf16.msra.mxu0 %v660
      %680 = vmatprep.subr.bf16.mxu0 0
      %681 = vmatpush1.bf16.msra.mxu0 %v661
      %682 = vmatprep.subr.bf16.mxu0 0
      %683 = vmatpush1.bf16.msra.mxu0 %v662
      %684 = vmatprep.subr.bf16.mxu0 0
      %685 = vmatpush1.bf16.msra.mxu0 %v663
      %686 = vmatprep.subr.bf16.mxu0 0
      %687 = vmatpush1.bf16.msra.mxu0 %v664
      %688 = vmatprep.subr.bf16.mxu0 0
      %689 = vmatpush1.bf16.msra.mxu0 %v665
      %690 = vmatprep.subr.bf16.mxu0 0
      %691 = vmatpush1.bf16.msra.mxu0 0
      %692 = vmatprep.subr.bf16.mxu0 0
      %693 = vmatpush1.bf16.msra.mxu0 0
      %694 = vmatprep.subr.bf16.mxu0 0
      %695 = vmatpush1.bf16.msra.mxu0 0
      %696 = vmatprep.subr.bf16.mxu0 0
      %697 = vmatpush1.bf16.msra.mxu0 0
      %698 = vmatprep.subr.bf16.mxu0 0
      %699 = vmatpush1.bf16.msra.mxu0 0
      %700 = vmatprep.subr.bf16.mxu0 0
      %701 = vmatpush1.bf16.msra.mxu0 0
      %702 = vmatprep.subr.bf16.mxu0 0
      %703 = vmatpush1.bf16.msra.mxu0 0
      %704 = vmatprep.subr.bf16.mxu0 0
      %705 = vmatpush1.bf16.msra.mxu0 0
      %706 = vmatprep.mubr.bf16.mxu0 0
      %707 = vmatmul.mubr.bf16.gmra.mrb[0].mxu0 %v624
      %v708 = vpop.f32.mrb[0].mxu0
      %v709 = vadd.f32 0.0, %v708
      %v710 = vpop.f32.mrb[0].mxu0
      %v711 = vpop.f32.mrb[0].mxu0
      %v712 = vpop.f32.mrb[0].mxu0
      %713 = vdwg.mxu0
      %v714 = vadd.f32 %v601, %v709
      %715 = vst.msk [vmem:[#allocation3] sm:$0xff] %vm249, %v714
      %v716 = vld [vmem:[#allocation2] sm:$0xc]
      %v717 = vld [vmem:[#allocation2 + $0x4] sm:$0x7]
      %v718 = vld [vmem:[#allocation3] sm:$0xff]
      %s719 = scalar_lea.vmem %s2, 256
      %v720 = vld [vmem:[%s719] sm:$0xf]
      %v721 = vld [vmem:[%s719 + $0x4] sm:$0xf]
      %v722 = vld [vmem:[%s719 + $0x8] sm:$0xf]
      %v723 = vld [vmem:[%s719 + $0xc] sm:$0xf]
      %v724 = vld [vmem:[%s719 + $0x10] sm:$0xf]
      %v725 = vld [vmem:[%s719 + $0x14] sm:$0xf]
      %v726 = vld [vmem:[%s719 + $0x18] sm:$0xf]
      %v727 = vld [vmem:[%s719 + $0x1c] sm:$0xf]
      %v728 = vld [vmem:[%s719 + $0x20] sm:$0xf]
      %v729 = vld [vmem:[%s719 + $0x24] sm:$0xf]
      %v730 = vld [vmem:[%s719 + $0x28] sm:$0xf]
      %v731 = vld [vmem:[%s719 + $0x2c] sm:$0xf]
      %v732 = vld [vmem:[%s719 + $0x30] sm:$0xf]
      %v733 = vld [vmem:[%s719 + $0x34] sm:$0xf]
      %v734 = vld [vmem:[%s719 + $0x38] sm:$0xf]
      %v735 = vld [vmem:[%s719 + $0x3c] sm:$0xf]
      %v738 = vunpack.c.l.b16 %v716
      %v739 = vunpack.c.l.b16 %v717
      %v740 = vpack.c.b16 %v739, %v738
      %v742 = vshrl.u32 %v740, 16
      %v744 = vrot.slane %v742, 2
      %v745 = vshll.u32 %v740, 16
      %v747 = vrot.slane %v745, 3
      %v748 = vor.u32 %v744, %v747
      %v766 = vunpack.c.l.b16 %v720
      %v767 = vunpack.c.l.b16 %v721
      %v768 = vunpack.c.l.b16 %v722
      %v769 = vunpack.c.l.b16 %v723
      %v770 = vunpack.c.l.b16 %v724
      %v771 = vunpack.c.l.b16 %v725
      %v772 = vunpack.c.l.b16 %v726
      %v773 = vunpack.c.l.b16 %v727
      %v774 = vunpack.c.l.b16 %v728
      %v775 = vunpack.c.l.b16 %v729
      %v776 = vunpack.c.l.b16 %v730
      %v777 = vunpack.c.l.b16 %v731
      %v778 = vunpack.c.l.b16 %v732
      %v779 = vunpack.c.l.b16 %v733
      %v780 = vunpack.c.l.b16 %v734
      %v781 = vunpack.c.l.b16 %v735
      %v782 = vpack.c.b16 %v767, %v766
      %v783 = vpack.c.b16 %v769, %v768
      %v784 = vpack.c.b16 %v771, %v770
      %v785 = vpack.c.b16 %v773, %v772
      %v786 = vpack.c.b16 %v775, %v774
      %v787 = vpack.c.b16 %v777, %v776
      %v788 = vpack.c.b16 %v779, %v778
      %v789 = vpack.c.b16 %v781, %v780
      %798 = vmatprep.subr.bf16.mxu0 0
      %799 = vmatpush1.bf16.msra.mxu0 %v782
      %800 = vmatprep.subr.bf16.mxu0 0
      %801 = vmatpush1.bf16.msra.mxu0 %v783
      %802 = vmatprep.subr.bf16.mxu0 0
      %803 = vmatpush1.bf16.msra.mxu0 %v784
      %804 = vmatprep.subr.bf16.mxu0 0
      %805 = vmatpush1.bf16.msra.mxu0 %v785
      %806 = vmatprep.subr.bf16.mxu0 0
      %807 = vmatpush1.bf16.msra.mxu0 %v786
      %808 = vmatprep.subr.bf16.mxu0 0
      %809 = vmatpush1.bf16.msra.mxu0 %v787
      %810 = vmatprep.subr.bf16.mxu0 0
      %811 = vmatpush1.bf16.msra.mxu0 %v788
      %812 = vmatprep.subr.bf16.mxu0 0
      %813 = vmatpush1.bf16.msra.mxu0 %v789
      %814 = vmatprep.subr.bf16.mxu0 0
      %815 = vmatpush1.bf16.msra.mxu0 0
      %816 = vmatprep.subr.bf16.mxu0 0
      %817 = vmatpush1.bf16.msra.mxu0 0
      %818 = vmatprep.subr.bf16.mxu0 0
      %819 = vmatpush1.bf16.msra.mxu0 0
      %820 = vmatprep.subr.bf16.mxu0 0
      %821 = vmatpush1.bf16.msra.mxu0 0
      %822 = vmatprep.subr.bf16.mxu0 0
      %823 = vmatpush1.bf16.msra.mxu0 0
      %824 = vmatprep.subr.bf16.mxu0 0
      %825 = vmatpush1.bf16.msra.mxu0 0
      %826 = vmatprep.subr.bf16.mxu0 0
      %827 = vmatpush1.bf16.msra.mxu0 0
      %828 = vmatprep.subr.bf16.mxu0 0
      %829 = vmatpush1.bf16.msra.mxu0 0
      %830 = vmatprep.mubr.bf16.mxu0 0
      %831 = vmatmul.mubr.bf16.gmra.mrb[0].mxu0 %v748
      %v832 = vpop.f32.mrb[0].mxu0
      %v833 = vadd.f32 0.0, %v832
      %v834 = vpop.f32.mrb[0].mxu0
      %v835 = vpop.f32.mrb[0].mxu0
      %v836 = vpop.f32.mrb[0].mxu0
      %837 = vdwg.mxu0
      %v838 = vadd.f32 %v718, %v833
      %839 = vst.msk [vmem:[#allocation3] sm:$0xff] %vm249, %v838
      %v840 = vld [vmem:[#allocation2] sm:$0x8]
      %v841 = vld [vmem:[#allocation2 + $0x4] sm:$0x7]
      %v842 = vld [vmem:[#allocation3] sm:$0xff]
      %s843 = scalar_lea.vmem %s2, 320
      %v844 = vld [vmem:[%s843] sm:$0xf]
      %v845 = vld [vmem:[%s843 + $0x4] sm:$0xf]
      %v846 = vld [vmem:[%s843 + $0x8] sm:$0xf]
      %v847 = vld [vmem:[%s843 + $0xc] sm:$0xf]
      %v848 = vld [vmem:[%s843 + $0x10] sm:$0xf]
      %v849 = vld [vmem:[%s843 + $0x14] sm:$0xf]
      %v850 = vld [vmem:[%s843 + $0x18] sm:$0xf]
      %v851 = vld [vmem:[%s843 + $0x1c] sm:$0xf]
      %v852 = vld [vmem:[%s843 + $0x20] sm:$0xf]
      %v853 = vld [vmem:[%s843 + $0x24] sm:$0xf]
      %v854 = vld [vmem:[%s843 + $0x28] sm:$0xf]
      %v855 = vld [vmem:[%s843 + $0x2c] sm:$0xf]
      %v856 = vld [vmem:[%s843 + $0x30] sm:$0xf]
      %v857 = vld [vmem:[%s843 + $0x34] sm:$0xf]
      %v858 = vld [vmem:[%s843 + $0x38] sm:$0xf]
      %v859 = vld [vmem:[%s843 + $0x3c] sm:$0xf]
      %v862 = vunpack.c.l.b16 %v840
      %v863 = vunpack.c.l.b16 %v841
      %v864 = vpack.c.b16 %v863, %v862
      %v865 = vrot.slane %v864, 3
      %v883 = vunpack.c.l.b16 %v844
      %v884 = vunpack.c.l.b16 %v845
      %v885 = vunpack.c.l.b16 %v846
      %v886 = vunpack.c.l.b16 %v847
      %v887 = vunpack.c.l.b16 %v848
      %v888 = vunpack.c.l.b16 %v849
      %v889 = vunpack.c.l.b16 %v850
      %v890 = vunpack.c.l.b16 %v851
      %v891 = vunpack.c.l.b16 %v852
      %v892 = vunpack.c.l.b16 %v853
      %v893 = vunpack.c.l.b16 %v854
      %v894 = vunpack.c.l.b16 %v855
      %v895 = vunpack.c.l.b16 %v856
      %v896 = vunpack.c.l.b16 %v857
      %v897 = vunpack.c.l.b16 %v858
      %v898 = vunpack.c.l.b16 %v859
      %v899 = vpack.c.b16 %v884, %v883
      %v900 = vpack.c.b16 %v886, %v885
      %v901 = vpack.c.b16 %v888, %v887
      %v902 = vpack.c.b16 %v890, %v889
      %v903 = vpack.c.b16 %v892, %v891
      %v904 = vpack.c.b16 %v894, %v893
      %v905 = vpack.c.b16 %v896, %v895
      %v906 = vpack.c.b16 %v898, %v897
      %915 = vmatprep.subr.bf16.mxu0 0
      %916 = vmatpush1.bf16.msra.mxu0 %v899
      %917 = vmatprep.subr.bf16.mxu0 0
      %918 = vmatpush1.bf16.msra.mxu0 %v900
      %919 = vmatprep.subr.bf16.mxu0 0
      %920 = vmatpush1.bf16.msra.mxu0 %v901
      %921 = vmatprep.subr.bf16.mxu0 0
      %922 = vmatpush1.bf16.msra.mxu0 %v902
      %923 = vmatprep.subr.bf16.mxu0 0
      %924 = vmatpush1.bf16.msra.mxu0 %v903
      %925 = vmatprep.subr.bf16.mxu0 0
      %926 = vmatpush1.bf16.msra.mxu0 %v904
      %927 = vmatprep.subr.bf16.mxu0 0
      %928 = vmatpush1.bf16.msra.mxu0 %v905
      %929 = vmatprep.subr.bf16.mxu0 0
      %930 = vmatpush1.bf16.msra.mxu0 %v906
      %931 = vmatprep.subr.bf16.mxu0 0
      %932 = vmatpush1.bf16.msra.mxu0 0
      %933 = vmatprep.subr.bf16.mxu0 0
      %934 = vmatpush1.bf16.msra.mxu0 0
      %935 = vmatprep.subr.bf16.mxu0 0
      %936 = vmatpush1.bf16.msra.mxu0 0
      %937 = vmatprep.subr.bf16.mxu0 0
      %938 = vmatpush1.bf16.msra.mxu0 0
      %939 = vmatprep.subr.bf16.mxu0 0
      %940 = vmatpush1.bf16.msra.mxu0 0
      %941 = vmatprep.subr.bf16.mxu0 0
      %942 = vmatpush1.bf16.msra.mxu0 0
      %943 = vmatprep.subr.bf16.mxu0 0
      %944 = vmatpush1.bf16.msra.mxu0 0
      %945 = vmatprep.subr.bf16.mxu0 0
      %946 = vmatpush1.bf16.msra.mxu0 0
      %947 = vmatprep.mubr.bf16.mxu0 0
      %948 = vmatmul.mubr.bf16.gmra.mrb[0].mxu0 %v865
      %v949 = vpop.f32.mrb[0].mxu0
      %v950 = vadd.f32 0.0, %v949
      %v951 = vpop.f32.mrb[0].mxu0
      %v952 = vpop.f32.mrb[0].mxu0
      %v953 = vpop.f32.mrb[0].mxu0
      %954 = vdwg.mxu0
      %v955 = vadd.f32 %v842, %v950
      %956 = vst.msk [vmem:[#allocation3] sm:$0xff] %vm249, %v955
      %v957 = vld [vmem:[#allocation2 + $0x4] sm:$0xf]
      %v958 = vld [vmem:[#allocation3] sm:$0xff]
      %s959 = scalar_lea.vmem %s2, 384
      %v960 = vld [vmem:[%s959] sm:$0xf]
      %v961 = vld [vmem:[%s959 + $0x4] sm:$0xf]
      %v962 = vld [vmem:[%s959 + $0x8] sm:$0xf]
      %v963 = vld [vmem:[%s959 + $0xc] sm:$0xf]
      %v964 = vld [vmem:[%s959 + $0x10] sm:$0xf]
      %v965 = vld [vmem:[%s959 + $0x14] sm:$0xf]
      %v966 = vld [vmem:[%s959 + $0x18] sm:$0xf]
      %v967 = vld [vmem:[%s959 + $0x1c] sm:$0xf]
      %v968 = vld [vmem:[%s959 + $0x20] sm:$0xf]
      %v969 = vld [vmem:[%s959 + $0x24] sm:$0xf]
      %v970 = vld [vmem:[%s959 + $0x28] sm:$0xf]
      %v971 = vld [vmem:[%s959 + $0x2c] sm:$0xf]
      %v972 = vld [vmem:[%s959 + $0x30] sm:$0xf]
      %v973 = vld [vmem:[%s959 + $0x34] sm:$0xf]
      %v974 = vld [vmem:[%s959 + $0x38] sm:$0xf]
      %v975 = vld [vmem:[%s959 + $0x3c] sm:$0xf]
      %v992 = vunpack.c.l.b16 %v960
      %v993 = vunpack.c.l.b16 %v961
      %v994 = vunpack.c.l.b16 %v962
      %v995 = vunpack.c.l.b16 %v963
      %v996 = vunpack.c.l.b16 %v964
      %v997 = vunpack.c.l.b16 %v965
      %v998 = vunpack.c.l.b16 %v966
      %v999 = vunpack.c.l.b16 %v967
      %v1000 = vunpack.c.l.b16 %v968
      %v1001 = vunpack.c.l.b16 %v969
      %v1002 = vunpack.c.l.b16 %v970
      %v1003 = vunpack.c.l.b16 %v971
      %v1004 = vunpack.c.l.b16 %v972
      %v1005 = vunpack.c.l.b16 %v973
      %v1006 = vunpack.c.l.b16 %v974
      %v1007 = vunpack.c.l.b16 %v975
      %v1008 = vpack.c.b16 %v993, %v992
      %v1009 = vpack.c.b16 %v995, %v994
      %v1010 = vpack.c.b16 %v997, %v996
      %v1011 = vpack.c.b16 %v999, %v998
      %v1012 = vpack.c.b16 %v1001, %v1000
      %v1013 = vpack.c.b16 %v1003, %v1002
      %v1014 = vpack.c.b16 %v1005, %v1004
      %v1015 = vpack.c.b16 %v1007, %v1006
      %1024 = vmatprep.subr.bf16.mxu0 0
      %1025 = vmatpush1.bf16.msra.mxu0 %v1008
      %1026 = vmatprep.subr.bf16.mxu0 0
      %1027 = vmatpush1.bf16.msra.mxu0 %v1009
      %1028 = vmatprep.subr.bf16.mxu0 0
      %1029 = vmatpush1.bf16.msra.mxu0 %v1010
      %1030 = vmatprep.subr.bf16.mxu0 0
      %1031 = vmatpush1.bf16.msra.mxu0 %v1011
      %1032 = vmatprep.subr.bf16.mxu0 0
      %1033 = vmatpush1.bf16.msra.mxu0 %v1012
      %1034 = vmatprep.subr.bf16.mxu0 0
      %1035 = vmatpush1.bf16.msra.mxu0 %v1013
      %1036 = vmatprep.subr.bf16.mxu0 0
      %1037 = vmatpush1.bf16.msra.mxu0 %v1014
      %1038 = vmatprep.subr.bf16.mxu0 0
      %1039 = vmatpush1.bf16.msra.mxu0 %v1015
      %1040 = vmatprep.subr.bf16.mxu0 0
      %1041 = vmatpush1.bf16.msra.mxu0 0
      %1042 = vmatprep.subr.bf16.mxu0 0
      %1043 = vmatpush1.bf16.msra.mxu0 0
      %1044 = vmatprep.subr.bf16.mxu0 0
      %1045 = vmatpush1.bf16.msra.mxu0 0
      %1046 = vmatprep.subr.bf16.mxu0 0
      %1047 = vmatpush1.bf16.msra.mxu0 0
      %1048 = vmatprep.subr.bf16.mxu0 0
      %1049 = vmatpush1.bf16.msra.mxu0 0
      %1050 = vmatprep.subr.bf16.mxu0 0
      %1051 = vmatpush1.bf16.msra.mxu0 0
      %1052 = vmatprep.subr.bf16.mxu0 0
      %1053 = vmatpush1.bf16.msra.mxu0 0
      %1054 = vmatprep.subr.bf16.mxu0 0
      %1055 = vmatpush1.bf16.msra.mxu0 0
      %1056 = vmatprep.mubr.bf16.mxu0 0
      %1057 = vmatmul.mubr.bf16.gmra.mrb[0].mxu0 %v957
      %v1058 = vpop.f32.mrb[0].mxu0
      %v1059 = vadd.f32 0.0, %v1058
      %v1060 = vpop.f32.mrb[0].mxu0
      %v1061 = vpop.f32.mrb[0].mxu0
      %v1062 = vpop.f32.mrb[0].mxu0
      %1063 = vdwg.mxu0
      %v1064 = vadd.f32 %v958, %v1059
      %1065 = vst.msk [vmem:[#allocation3] sm:$0xff] %vm249, %v1064
      %v1066 = vld [vmem:[#allocation2 + $0x4] sm:$0xf]
      %v1067 = vld [vmem:[#allocation2 + $0x8] sm:$0x1]
      %v1068 = vld [vmem:[#allocation3] sm:$0xff]
      %s1069 = scalar_lea.vmem %s2, 448
      %v1070 = vld [vmem:[%s1069] sm:$0xf]
      %v1071 = vld [vmem:[%s1069 + $0x4] sm:$0xf]
      %v1072 = vld [vmem:[%s1069 + $0x8] sm:$0xf]
      %v1073 = vld [vmem:[%s1069 + $0xc] sm:$0xf]
      %v1074 = vld [vmem:[%s1069 + $0x10] sm:$0xf]
      %v1075 = vld [vmem:[%s1069 + $0x14] sm:$0xf]
      %v1076 = vld [vmem:[%s1069 + $0x18] sm:$0xf]
      %v1077 = vld [vmem:[%s1069 + $0x1c] sm:$0xf]
      %v1078 = vld [vmem:[%s1069 + $0x20] sm:$0xf]
      %v1079 = vld [vmem:[%s1069 + $0x24] sm:$0xf]
      %v1080 = vld [vmem:[%s1069 + $0x28] sm:$0xf]
      %v1081 = vld [vmem:[%s1069 + $0x2c] sm:$0xf]
      %v1082 = vld [vmem:[%s1069 + $0x30] sm:$0xf]
      %v1083 = vld [vmem:[%s1069 + $0x34] sm:$0xf]
      %v1084 = vld [vmem:[%s1069 + $0x38] sm:$0xf]
      %v1085 = vld [vmem:[%s1069 + $0x3c] sm:$0xf]
      %v1088 = vunpack.c.l.b16 %v1066
      %v1089 = vunpack.c.l.b16 %v1067
      %v1090 = vpack.c.b16 %v1089, %v1088
      %v1092 = vshrl.u32 %v1090, 16
      %v1094 = vshll.u32 %v1090, 16
      %v1096 = vrot.slane %v1094, 1
      %v1097 = vor.u32 %v1092, %v1096
      %v1115 = vunpack.c.l.b16 %v1070
      %v1116 = vunpack.c.l.b16 %v1071
      %v1117 = vunpack.c.l.b16 %v1072
      %v1118 = vunpack.c.l.b16 %v1073
      %v1119 = vunpack.c.l.b16 %v1074
      %v1120 = vunpack.c.l.b16 %v1075
      %v1121 = vunpack.c.l.b16 %v1076
      %v1122 = vunpack.c.l.b16 %v1077
      %v1123 = vunpack.c.l.b16 %v1078
      %v1124 = vunpack.c.l.b16 %v1079
      %v1125 = vunpack.c.l.b16 %v1080
      %v1126 = vunpack.c.l.b16 %v1081
      %v1127 = vunpack.c.l.b16 %v1082
      %v1128 = vunpack.c.l.b16 %v1083
      %v1129 = vunpack.c.l.b16 %v1084
      %v1130 = vunpack.c.l.b16 %v1085
      %v1131 = vpack.c.b16 %v1116, %v1115
      %v1132 = vpack.c.b16 %v1118, %v1117
      %v1133 = vpack.c.b16 %v1120, %v1119
      %v1134 = vpack.c.b16 %v1122, %v1121
      %v1135 = vpack.c.b16 %v1124, %v1123
      %v1136 = vpack.c.b16 %v1126, %v1125
      %v1137 = vpack.c.b16 %v1128, %v1127
      %v1138 = vpack.c.b16 %v1130, %v1129
      %1147 = vmatprep.subr.bf16.mxu0 0
      %1148 = vmatpush1.bf16.msra.mxu0 %v1131
      %1149 = vmatprep.subr.bf16.mxu0 0
      %1150 = vmatpush1.bf16.msra.mxu0 %v1132
      %1151 = vmatprep.subr.bf16.mxu0 0
      %1152 = vmatpush1.bf16.msra.mxu0 %v1133
      %1153 = vmatprep.subr.bf16.mxu0 0
      %1154 = vmatpush1.bf16.msra.mxu0 %v1134
      %1155 = vmatprep.subr.bf16.mxu0 0
      %1156 = vmatpush1.bf16.msra.mxu0 %v1135
      %1157 = vmatprep.subr.bf16.mxu0 0
      %1158 = vmatpush1.bf16.msra.mxu0 %v1136
      %1159 = vmatprep.subr.bf16.mxu0 0
      %1160 = vmatpush1.bf16.msra.mxu0 %v1137
      %1161 = vmatprep.subr.bf16.mxu0 0
      %1162 = vmatpush1.bf16.msra.mxu0 %v1138
      %1163 = vmatprep.subr.bf16.mxu0 0
      %1164 = vmatpush1.bf16.msra.mxu0 0
      %1165 = vmatprep.subr.bf16.mxu0 0
      %1166 = vmatpush1.bf16.msra.mxu0 0
      %1167 = vmatprep.subr.bf16.mxu0 0
      %1168 = vmatpush1.bf16.msra.mxu0 0
      %1169 = vmatprep.subr.bf16.mxu0 0
      %1170 = vmatpush1.bf16.msra.mxu0 0
      %1171 = vmatprep.subr.bf16.mxu0 0
      %1172 = vmatpush1.bf16.msra.mxu0 0
      %1173 = vmatprep.subr.bf16.mxu0 0
      %1174 = vmatpush1.bf16.msra.mxu0 0
      %1175 = vmatprep.subr.bf16.mxu0 0
      %1176 = vmatpush1.bf16.msra.mxu0 0
      %1177 = vmatprep.subr.bf16.mxu0 0
      %1178 = vmatpush1.bf16.msra.mxu0 0
      %1179 = vmatprep.mubr.bf16.mxu0 0
      %1180 = vmatmul.mubr.bf16.gmra.mrb[0].mxu0 %v1097
      %v1181 = vpop.f32.mrb[0].mxu0
      %v1182 = vadd.f32 0.0, %v1181
      %v1183 = vpop.f32.mrb[0].mxu0
      %v1184 = vpop.f32.mrb[0].mxu0
      %v1185 = vpop.f32.mrb[0].mxu0
      %1186 = vdwg.mxu0
      %v1187 = vadd.f32 %v1068, %v1182
      %1188 = vst.msk [vmem:[#allocation3] sm:$0xff] %vm249, %v1187
      %v1189 = vld [vmem:[#allocation2 + $0x4] sm:$0xe]
      %v1190 = vld [vmem:[#allocation2 + $0x8] sm:$0x1]
      %v1191 = vld [vmem:[#allocation3] sm:$0xff]
      %s1192 = scalar_lea.vmem %s2, 512
      %v1193 = vld [vmem:[%s1192] sm:$0xf]
      %v1194 = vld [vmem:[%s1192 + $0x4] sm:$0xf]
      %v1195 = vld [vmem:[%s1192 + $0x8] sm:$0xf]
      %v1196 = vld [vmem:[%s1192 + $0xc] sm:$0xf]
      %v1197 = vld [vmem:[%s1192 + $0x10] sm:$0xf]
      %v1198 = vld [vmem:[%s1192 + $0x14] sm:$0xf]
      %v1199 = vld [vmem:[%s1192 + $0x18] sm:$0xf]
      %v1200 = vld [vmem:[%s1192 + $0x1c] sm:$0xf]
      %v1201 = vld [vmem:[%s1192 + $0x20] sm:$0xf]
      %v1202 = vld [vmem:[%s1192 + $0x24] sm:$0xf]
      %v1203 = vld [vmem:[%s1192 + $0x28] sm:$0xf]
      %v1204 = vld [vmem:[%s1192 + $0x2c] sm:$0xf]
      %v1205 = vld [vmem:[%s1192 + $0x30] sm:$0xf]
      %v1206 = vld [vmem:[%s1192 + $0x34] sm:$0xf]
      %v1207 = vld [vmem:[%s1192 + $0x38] sm:$0xf]
      %v1208 = vld [vmem:[%s1192 + $0x3c] sm:$0xf]
      %v1211 = vunpack.c.l.b16 %v1189
      %v1212 = vunpack.c.l.b16 %v1190
      %v1213 = vpack.c.b16 %v1212, %v1211
      %v1214 = vrot.slane %v1213, 1
      %v1232 = vunpack.c.l.b16 %v1193
      %v1233 = vunpack.c.l.b16 %v1194
      %v1234 = vunpack.c.l.b16 %v1195
      %v1235 = vunpack.c.l.b16 %v1196
      %v1236 = vunpack.c.l.b16 %v1197
      %v1237 = vunpack.c.l.b16 %v1198
      %v1238 = vunpack.c.l.b16 %v1199
      %v1239 = vunpack.c.l.b16 %v1200
      %v1240 = vunpack.c.l.b16 %v1201
      %v1241 = vunpack.c.l.b16 %v1202
      %v1242 = vunpack.c.l.b16 %v1203
      %v1243 = vunpack.c.l.b16 %v1204
      %v1244 = vunpack.c.l.b16 %v1205
      %v1245 = vunpack.c.l.b16 %v1206
      %v1246 = vunpack.c.l.b16 %v1207
      %v1247 = vunpack.c.l.b16 %v1208
      %v1248 = vpack.c.b16 %v1233, %v1232
      %v1249 = vpack.c.b16 %v1235, %v1234
      %v1250 = vpack.c.b16 %v1237, %v1236
      %v1251 = vpack.c.b16 %v1239, %v1238
      %v1252 = vpack.c.b16 %v1241, %v1240
      %v1253 = vpack.c.b16 %v1243, %v1242
      %v1254 = vpack.c.b16 %v1245, %v1244
      %v1255 = vpack.c.b16 %v1247, %v1246
      %1264 = vmatprep.subr.bf16.mxu0 0
      %1265 = vmatpush1.bf16.msra.mxu0 %v1248
      %1266 = vmatprep.subr.bf16.mxu0 0
      %1267 = vmatpush1.bf16.msra.mxu0 %v1249
      %1268 = vmatprep.subr.bf16.mxu0 0
      %1269 = vmatpush1.bf16.msra.mxu0 %v1250
      %1270 = vmatprep.subr.bf16.mxu0 0
      %1271 = vmatpush1.bf16.msra.mxu0 %v1251
      %1272 = vmatprep.subr.bf16.mxu0 0
      %1273 = vmatpush1.bf16.msra.mxu0 %v1252
      %1274 = vmatprep.subr.bf16.mxu0 0
      %1275 = vmatpush1.bf16.msra.mxu0 %v1253
      %1276 = vmatprep.subr.bf16.mxu0 0
      %1277 = vmatpush1.bf16.msra.mxu0 %v1254
      %1278 = vmatprep.subr.bf16.mxu0 0
      %1279 = vmatpush1.bf16.msra.mxu0 %v1255
      %1280 = vmatprep.subr.bf16.mxu0 0
      %1281 = vmatpush1.bf16.msra.mxu0 0
      %1282 = vmatprep.subr.bf16.mxu0 0
      %1283 = vmatpush1.bf16.msra.mxu0 0
      %1284 = vmatprep.subr.bf16.mxu0 0
      %1285 = vmatpush1.bf16.msra.mxu0 0
      %1286 = vmatprep.subr.bf16.mxu0 0
      %1287 = vmatpush1.bf16.msra.mxu0 0
      %1288 = vmatprep.subr.bf16.mxu0 0
      %1289 = vmatpush1.bf16.msra.mxu0 0
      %1290 = vmatprep.subr.bf16.mxu0 0
      %1291 = vmatpush1.bf16.msra.mxu0 0
      %1292 = vmatprep.subr.bf16.mxu0 0
      %1293 = vmatpush1.bf16.msra.mxu0 0
      %1294 = vmatprep.subr.bf16.mxu0 0
      %1295 = vmatpush1.bf16.msra.mxu0 0
      %1296 = vmatprep.mubr.bf16.mxu0 0
      %1297 = vmatmul.mubr.bf16.gmra.mrb[0].mxu0 %v1214
      %v1298 = vpop.f32.mrb[0].mxu0
      %v1299 = vadd.f32 0.0, %v1298
      %v1300 = vpop.f32.mrb[0].mxu0
      %v1301 = vpop.f32.mrb[0].mxu0
      %v1302 = vpop.f32.mrb[0].mxu0
      %1303 = vdwg.mxu0
      %v1304 = vadd.f32 %v1191, %v1299
      %1305 = vst.msk [vmem:[#allocation3] sm:$0xff] %vm249, %v1304
      %v1306 = vld [vmem:[%s178] sm:$0x1]
      %v1307 = vld [vmem:[%s178 + $0x1] sm:$0x1]
      %1308 = vst [vmem:[%s182] sm:$0x1] %v1306
      %1309 = vst [vmem:[%s182 + $0x1] sm:$0x1] %v1307
      %v1310 = vld [vmem:[#allocation3] sm:$0x3]
      %v1311 = vpack.c.bf16 %v1310, %v1310
      %v1314 = vunpack.c.l.s4 1966171168
      %v1315 = vunpack.c.0.s8 %v1314
      %v1316 = vlaneseq
      %v1317 = vshrl.u32 %v1316, 7
      %v1318 = vsub.s32 %v1315, %v1317
      %v1319 = vrot.slane %v1311, %v1318
      %v1321 = vunpack.c.l.s4 1966171168
      %v1322 = vunpack.c.0.s8 %v1321
      %v1323 = vlaneseq
      %v1324 = vshrl.u32 %v1323, 7
      %v1325 = vsub.s32 %v1322, %v1324
      %v1326 = vrot.slane %v1319, %v1325
      %1327 = vrot.lane.b32.xlu0 %v1326, 64
      %v1328 = vpop.permute.xlu0 %1327
      %vm1330 = vcmask 778752
      %1331 = vst.msk [vmem:[%s182] sm:$0x1] %vm1330, %v1328
      %v1332 = vld [vmem:[#allocation3 + $0x4] sm:$0x3]
      %v1333 = vpack.c.bf16 %v1332, %v1332
      %v1336 = vunpack.c.l.s4 1966171168
      %v1337 = vunpack.c.0.s8 %v1336
      %v1338 = vlaneseq
      %v1339 = vshrl.u32 %v1338, 7
      %v1340 = vsub.s32 %v1337, %v1339
      %v1341 = vrot.slane %v1333, %v1340
      %v1343 = vunpack.c.l.s4 1966171168
      %v1344 = vunpack.c.0.s8 %v1343
      %v1345 = vlaneseq
      %v1346 = vshrl.u32 %v1345, 7
      %v1347 = vsub.s32 %v1344, %v1346
      %v1348 = vrot.slane %v1341, %v1347
      %1349 = vrot.lane.b32.xlu0 %v1348, 64
      %v1350 = vpop.permute.xlu0 %1349
      %s1352 = scalar_lea.vmem %s182, 1
      %1353 = vst.msk [vmem:[%s1352] sm:$0x1] %vm1330, %v1350
      %p1354 = scmp.lt.s32.totalorder %s14, 1
      %s1355 = scalar_select %p1354, %s14, 1
      %s1356 = smul.addr %s1355, 2
      %s1357 = scalar_lea.vmem %s3, %s1356
      // Predicated region
      $region33: #{densenet_forward.21} parent=31 // pred_check
        %p1358 = pneg %p105
      $region34: #{densenet_forward.21} parent=31 // pred_check_branch
        %1360 = sbr.rel (%p1358) target = $region36
      $region35: #{densenet_forward.21} parent=31 // pred_region
        _
      $region36: #{densenet_forward.21} parent=31 // pred_fallthru
        _
    $region32: #{densenet_forward.21} parent=5 // pred_fallthru
      _
    %p1361 = scmp.le.s32.totalorder 2, %s9
    // Predicated region
    $region37: #{densenet_forward.21} parent=5 // pred_check
      %p1362 = pneg %p1361
    $region38: #{densenet_forward.21} parent=5 // pred_check_branch
      %1364 = sbr.rel (%p1362) target = $region40
    $region39: #{densenet_forward.21} parent=5 // pred_region
      %s1365 = ssub.s32 %s9, 2
      // Predicated region
      $region41: #{densenet_forward.21} parent=39 // pred_check
        %p1366 = pneg %p111
      $region42: #{densenet_forward.21} parent=39 // pred_check_branch
        %1368 = sbr.rel (%p1366) target = $region44
      $region43: #{densenet_forward.21} parent=39 // pred_region
        %p1369 = scmp.lt.s32.totalorder %s15, 1
        %s1370 = scalar_select %p1369, %s15, 1
        %s1371 = smul.addr %s1370, 2
        %s1372 = scalar_lea.vmem %s3, %s1371
      $region44: #{densenet_forward.21} parent=39 // pred_fallthru
        _
    $region40: #{densenet_forward.21} parent=5 // pred_fallthru
      _
  $region6: #{densenet_forward.21} parent=0 // loop_footer
    %s13 = sadd.s32 1, %s9
  $region7: #{densenet_forward.21} parent=0 // loop_footer_branch
    %8 = sbr.rel target = $region3
  $region8: #{densenet_forward.21} parent=0 // loop_exit
    _

// kernel: densenet_forward.23
$region0: #{densenet_forward.23}
  #allocation0 [shape = 'u32[]', space=smem, size = 0x4, offset = 0x4, fixed_abs, tag = 'smem constant byte address 0x4 - core index']
  #allocation1 [shape = 'u32[144,128]{1,0:T(1,128)}', space=vmem, size = 0x12000, scoped, tag = 'internal scratch']
  #allocation2 [shape = 'bf16[20,128]{1,0:T(8,128)(2,1)}', space=vmem, size = 0x1800, scoped, tag = 'scratch operand']
  #allocation3 [shape = 'f32[8,32]{1,0:T(8,128)}', space=vmem, size = 0x1000, scoped, tag = 'scratch operand']
  %s0 = inlined_call_operand.vmem [shape: bf16[2,2,2,128], index: 0, kind: input, shape index: {}]
  %s1 = inlined_call_operand.vmem [shape: bf16[2,2,2,128], index: 1, kind: input, shape index: {}]
  %s2 = inlined_call_operand.vmem [shape: bf16[9,128,32], index: 2, kind: input, shape index: {}]
  %s3 = inlined_call_operand.vmem [shape: bf16[2,2,2,128], index: 3, kind: output, shape index: {}]
  %s4 = sld [smem:[#allocation0]]
  $region45: #{densenet_forward.23} parent=0
    _
  %s6 = ssub.s32 1, %s4
  %s7 = scalar_select 0, %s6, %s4
  loop: start=0, step=1, limit=4
  $region2: #{densenet_forward.23} parent=0 // loop_pre_header
    _
  $region3: #{densenet_forward.23} parent=0 // loop_header
    %s9 = sphi 0, %s13
    %p10 = scmp.ge.s32.totalorder %s9, 4
    %s19 = sphi 0, %s21
    %s22 = sphi 0, %s19
    %s23 = sphi 0, %s22
    %s39 = sphi 0, %s23
    %s45 = sphi 0, %s47
    %s48 = sphi 0, %s45
    %s49 = sphi 0, %s48
    %s65 = sphi 0, %s49
    %s69 = sphi 0, %s69
    %s71 = sphi 0, %s69
    %s72 = sphi 0, %s71
    %s86 = sphi 0, %s72
    %s92 = sphi 0, %s94
    %s95 = sphi 0, %s92
    %s96 = sphi 0, %s95
    %s112 = sphi 0, %s96
  $region4: #{densenet_forward.23} parent=0 // loop_header_branch
    %12 = sbr.rel (%p10) target = $region8
  $region5: #{densenet_forward.23} parent=0 // loop_body
    %s14 = ssub.s32 %s9, 1
    %s15 = ssub.s32 %s9, 2
    %s16 = sadd.s32 %s9, 1
    %s17 = ssub.s32 %s9, %s16
    %p18 = scmp.eq.s32.totalorder %s17, 0
    %s20 = sadd.s32 %s19, 1
    %s21 = scalar_select %p18, %s19, %s20
    %p24 = pneg %p18
    %p25 = scmp.eq.s32.totalorder %s9, 1
    %p26 = por %p24, %p25
    %p27 = scmp.ne.s32.totalorder %s19, %s22
    %p28 = scmp.eq.s32.totalorder %s9, 0
    %p29 = por %p27, %p28
    %p30 = scmp.ne.s32.totalorder %s19, %s22
    %p31 = scmp.eq.s32.totalorder %s14, 1
    %p32 = por %p30, %p31
    %p33 = scmp.ne.s32.totalorder %s22, %s23
    %p34 = scmp.eq.s32.totalorder %s14, 0
    %p35 = por %p33, %p34
    %p36 = scmp.ne.s32.totalorder %s22, %s23
    %p37 = scmp.eq.s32.totalorder %s15, 1
    %p38 = por %p36, %p37
    %p40 = scmp.ne.s32.totalorder %s23, %s39
    %p41 = scmp.eq.s32.totalorder %s15, 0
    %p42 = por %p40, %p41
    %s43 = ssub.s32 %s9, %s16
    %p44 = scmp.eq.s32.totalorder %s43, 0
    %s46 = sadd.s32 %s45, 1
    %s47 = scalar_select %p44, %s45, %s46
    %p50 = pneg %p44
    %p51 = scmp.eq.s32.totalorder %s9, 1
    %p52 = por %p50, %p51
    %p53 = scmp.ne.s32.totalorder %s45, %s48
    %p54 = scmp.eq.s32.totalorder %s9, 0
    %p55 = por %p53, %p54
    %p56 = scmp.ne.s32.totalorder %s45, %s48
    %p57 = scmp.eq.s32.totalorder %s14, 1
    %p58 = por %p56, %p57
    %p59 = scmp.ne.s32.totalorder %s48, %s49
    %p60 = scmp.eq.s32.totalorder %s14, 0
    %p61 = por %p59, %p60
    %p62 = scmp.ne.s32.totalorder %s48, %s49
    %p63 = scmp.eq.s32.totalorder %s15, 1
    %p64 = por %p62, %p63
    %p66 = scmp.ne.s32.totalorder %s49, %s65
    %p67 = scmp.eq.s32.totalorder %s15, 0
    %p68 = por %p66, %p67
    %s70 = sadd.s32 %s69, 1
    %p73 = scmp.eq.s32.totalorder %s9, 1
    %p74 = scmp.ne.s32.totalorder %s69, %s71
    %p75 = scmp.eq.s32.totalorder %s9, 0
    %p76 = por %p74, %p75
    %p77 = scmp.ne.s32.totalorder %s69, %s71
    %p78 = scmp.eq.s32.totalorder %s14, 1
    %p79 = por %p77, %p78
    %p80 = scmp.ne.s32.totalorder %s71, %s72
    %p81 = scmp.eq.s32.totalorder %s14, 0
    %p82 = por %p80, %p81
    %p83 = scmp.ne.s32.totalorder %s71, %s72
    %p84 = scmp.eq.s32.totalorder %s15, 1
    %p85 = por %p83, %p84
    %p87 = scmp.ne.s32.totalorder %s72, %s86
    %p88 = scmp.eq.s32.totalorder %s15, 0
    %p89 = por %p87, %p88
    %s90 = ssub.s32 %s9, %s16
    %p91 = scmp.eq.s32.totalorder %s90, 0
    %s93 = sadd.s32 %s92, 1
    %s94 = scalar_select %p91, %s92, %s93
    %p97 = pneg %p91
    %p98 = scmp.eq.s32.totalorder %s9, 1
    %p99 = por %p97, %p98
    %p100 = scmp.ne.s32.totalorder %s92, %s95
    %p101 = scmp.eq.s32.totalorder %s9, 0
    %p102 = por %p100, %p101
    %p103 = scmp.ne.s32.totalorder %s92, %s95
    %p104 = scmp.eq.s32.totalorder %s14, 1
    %p105 = por %p103, %p104
    %p106 = scmp.ne.s32.totalorder %s95, %s96
    %p107 = scmp.eq.s32.totalorder %s14, 0
    %p108 = por %p106, %p107
    %p109 = scmp.ne.s32.totalorder %s95, %s96
    %p110 = scmp.eq.s32.totalorder %s15, 1
    %p111 = por %p109, %p110
    %p113 = scmp.ne.s32.totalorder %s96, %s112
    %p114 = scmp.eq.s32.totalorder %s15, 0
    %p115 = por %p113, %p114
    %p116 = scmp.le.s32.totalorder 1, %s9
    %p117 = scmp.lt.s32.totalorder %s9, 3
    %p118 = pnand %p116, %p117
    %p119 = pneg %p118
    // Predicated region
    $region9: #{densenet_forward.23} parent=5 // pred_check
      _
    $region10: #{densenet_forward.23} parent=5 // pred_check_branch
      %121 = sbr.rel (%p118) target = $region12
    $region11: #{densenet_forward.23} parent=5 // pred_region
      %s122 = ssub.s32 %s9, 1
      // Predicated region
      $region13: #{densenet_forward.23} parent=11 // pred_check
        %p123 = pneg %p82
      $region14: #{densenet_forward.23} parent=11 // pred_check_branch
        %125 = sbr.rel (%p123) target = $region16
      $region15: #{densenet_forward.23} parent=11 // pred_region
        _
      $region16: #{densenet_forward.23} parent=11 // pred_fallthru
        _
    $region12: #{densenet_forward.23} parent=5 // pred_fallthru
      _
    %p126 = scmp.lt.s32.totalorder %s9, 2
    // Predicated region
    $region17: #{densenet_forward.23} parent=5 // pred_check
      %p127 = pneg %p126
    $region18: #{densenet_forward.23} parent=5 // pred_check_branch
      %129 = sbr.rel (%p127) target = $region20
    $region19: #{densenet_forward.23} parent=5 // pred_region
      // Predicated region
      $region21: #{densenet_forward.23} parent=19 // pred_check
        %p130 = pneg %p29
      $region22: #{densenet_forward.23} parent=19 // pred_check_branch
        %132 = sbr.rel (%p130) target = $region24
      $region23: #{densenet_forward.23} parent=19 // pred_region
        %p133 = scmp.lt.s32.totalorder %s9, 1
        %s134 = scalar_select %p133, %s9, 1
        %s135 = smul.addr %s134, 2
        %s136 = scalar_lea.vmem %s0, %s135
      $region24: #{densenet_forward.23} parent=19 // pred_fallthru
        _
      // Predicated region
      $region25: #{densenet_forward.23} parent=19 // pred_check
        %p137 = pneg %p55
      $region26: #{densenet_forward.23} parent=19 // pred_check_branch
        %139 = sbr.rel (%p137) target = $region28
      $region27: #{densenet_forward.23} parent=19 // pred_region
        %p140 = scmp.lt.s32.totalorder %s9, 1
        %s141 = scalar_select %p140, %s9, 1
        %s142 = smul.addr %s141, 2
        %s143 = scalar_lea.vmem %s1, %s142
      $region28: #{densenet_forward.23} parent=19 // pred_fallthru
        _
    $region20: #{densenet_forward.23} parent=5 // pred_fallthru
      _
    %p144 = scmp.le.s32.totalorder 1, %s9
    %p145 = scmp.lt.s32.totalorder %s9, 3
    %p146 = pnand %p144, %p145
    %p147 = pneg %p146
    // Predicated region
    $region29: #{densenet_forward.23} parent=5 // pred_check
      _
    $region30: #{densenet_forward.23} parent=5 // pred_check_branch
      %149 = sbr.rel (%p146) target = $region32
    $region31: #{densenet_forward.23} parent=5 // pred_region
      %s150 = ssub.s32 %s9, 1
      %p151 = scmp.lt.s32.totalorder %s14, 1
      %s152 = scalar_select %p151, %s14, 1
      %s153 = smul.addr %s152, 2
      %s154 = scalar_lea.vmem %s0, %s153
      %p155 = pneg %p35
      %p156 = pneg %p32
      %p157 = scmp.lt.s32.totalorder %s14, 1
      %s158 = scalar_select %p157, %s14, 1
      %s159 = smul.addr %s158, 2
      %s160 = scalar_lea.vmem %s1, %s159
      %p161 = pneg %p61
      %p162 = pneg %p58
      %p163 = pneg %p82
      %p164 = pneg %p79
      %p165 = pneg %p108
      %p166 = pneg %p105
      %p167 = scmp.lt.s32.totalorder %s14, 1
      %s168 = scalar_select %p167, %s14, 1
      %s169 = smul.addr %s168, 2
      %s170 = scalar_lea.vmem %s3, %s169
      %p171 = scmp.lt.s32.totalorder %s14, 1
      %s172 = scalar_select %p171, %s14, 1
      %s173 = smul.addr %s172, 2
      %s174 = scalar_lea.vmem %s0, %s173
      %p175 = scmp.lt.s32.totalorder %s14, 1
      %s176 = scalar_select %p175, %s14, 1
      %s177 = smul.addr %s176, 2
      %s178 = scalar_lea.vmem %s1, %s177
      %p179 = scmp.lt.s32.totalorder %s14, 1
      %s180 = scalar_select %p179, %s14, 1
      %s181 = smul.addr %s180, 2
      %s182 = scalar_lea.vmem %s3, %s181
      %184 = vst [vmem:[#allocation2] sm:$0xf] 0
      %185 = vst [vmem:[#allocation2 + $0x4] sm:$0xf] 0
      %186 = vst [vmem:[#allocation2 + $0x8] sm:$0x3] 0
      %v187 = vld [vmem:[%s174] sm:$0x1]
      %v190 = vunpack.c.l.s4 1935823168
      %v191 = vunpack.c.0.s8 %v190
      %v192 = vlaneseq
      %v193 = vshrl.u32 %v192, 7
      %v194 = vsub.s32 %v191, %v193
      %v195 = vrot.slane %v187, %v194
      %v197 = vunpack.c.l.s4 1935823168
      %v198 = vunpack.c.0.s8 %v197
      %v199 = vlaneseq
      %v200 = vshrl.u32 %v199, 7
      %v201 = vsub.s32 %v198, %v200
      %v202 = vrot.slane %v195, %v201
      %v204 = vshrl.u32 %v202, 16
      %v206 = vrot.slane %v204, 5
      %v207 = vshll.u32 %v202, 16
      %v209 = vrot.slane %v207, 6
      %v210 = vor.u32 %v206, %v209
      %vm212 = vcmask 1043458
      %vm213 = vsmask.f32 3338
      %vm214 = vmand %vm212, %vm213
      %v215 = vld [vmem:[#allocation2] sm:$0xc]
      %v216 = vsel %vm214, %v210, %v215
      %217 = vst [vmem:[#allocation2] sm:$0xc] %v216
      %s218 = scalar_lea.vmem %s174, 1
      %v219 = vld [vmem:[%s218] sm:$0x1]
      %v222 = vunpack.c.l.s4 1935823168
      %v223 = vunpack.c.0.s8 %v222
      %v224 = vlaneseq
      %v225 = vshrl.u32 %v224, 7
      %v226 = vsub.s32 %v223, %v225
      %v227 = vrot.slane %v219, %v226
      %v229 = vunpack.c.l.s4 1935823168
      %v230 = vunpack.c.0.s8 %v229
      %v231 = vlaneseq
      %v232 = vshrl.u32 %v231, 7
      %v233 = vsub.s32 %v230, %v232
      %v234 = vrot.slane %v227, %v233
      %v236 = vshrl.u32 %v234, 16
      %v238 = vrot.slane %v236, 7
      %v239 = vshll.u32 %v234, 16
      %v241 = vor.u32 %v238, %v239
      %vm243 = vcmask 1041408
      %vm244 = vsmask.f32 1282
      %vm245 = vmand %vm243, %vm244
      %v246 = vld [vmem:[#allocation2 + $0x4] sm:$0x3]
      %v247 = vsel %vm245, %v241, %v246
      %248 = vst [vmem:[#allocation2 + $0x4] sm:$0x3] %v247
      %vm249 = vcmask 261120
      %250 = vst.msk [vmem:[#allocation3] sm:$0xff] %vm249, 0.0
      %v251 = vld [vmem:[#allocation2] sm:$0xf]
      %v252 = vld [vmem:[#allocation3] sm:$0xff]
      %v253 = vld [vmem:[%s2] sm:$0xf]
      %v254 = vld [vmem:[%s2 + $0x4] sm:$0xf]
      %v255 = vld [vmem:[%s2 + $0x8] sm:$0xf]
      %v256 = vld [vmem:[%s2 + $0xc] sm:$0xf]
      %v257 = vld [vmem:[%s2 + $0x10] sm:$0xf]
      %v258 = vld [vmem:[%s2 + $0x14] sm:$0xf]
      %v259 = vld [vmem:[%s2 + $0x18] sm:$0xf]
      %v260 = vld [vmem:[%s2 + $0x1c] sm:$0xf]
      %v261 = vld [vmem:[%s2 + $0x20] sm:$0xf]
      %v262 = vld [vmem:[%s2 + $0x24] sm:$0xf]
      %v263 = vld [vmem:[%s2 + $0x28] sm:$0xf]
      %v264 = vld [vmem:[%s2 + $0x2c] sm:$0xf]
      %v265 = vld [vmem:[%s2 + $0x30] sm:$0xf]
      %v266 = vld [vmem:[%s2 + $0x34] sm:$0xf]
      %v267 = vld [vmem:[%s2 + $0x38] sm:$0xf]
      %v268 = vld [vmem:[%s2 + $0x3c] sm:$0xf]
      %v285 = vunpack.c.l.b16 %v253
      %v286 = vunpack.c.l.b16 %v254
      %v287 = vunpack.c.l.b16 %v255
      %v288 = vunpack.c.l.b16 %v256
      %v289 = vunpack.c.l.b16 %v257
      %v290 = vunpack.c.l.b16 %v258
      %v291 = vunpack.c.l.b16 %v259
      %v292 = vunpack.c.l.b16 %v260
      %v293 = vunpack.c.l.b16 %v261
      %v294 = vunpack.c.l.b16 %v262
      %v295 = vunpack.c.l.b16 %v263
      %v296 = vunpack.c.l.b16 %v264
      %v297 = vunpack.c.l.b16 %v265
      %v298 = vunpack.c.l.b16 %v266
      %v299 = vunpack.c.l.b16 %v267
      %v300 = vunpack.c.l.b16 %v268
      %v301 = vpack.c.b16 %v286, %v285
      %v302 = vpack.c.b16 %v288, %v287
      %v303 = vpack.c.b16 %v290, %v289
      %v304 = vpack.c.b16 %v292, %v291
      %v305 = vpack.c.b16 %v294, %v293
      %v306 = vpack.c.b16 %v296, %v295
      %v307 = vpack.c.b16 %v298, %v297
      %v308 = vpack.c.b16 %v300, %v299
      %317 = vmatprep.subr.bf16.mxu0 0
      %318 = vmatpush1.bf16.msra.mxu0 %v301
      %319 = vmatprep.subr.bf16.mxu0 0
      %320 = vmatpush1.bf16.msra.mxu0 %v302
      %321 = vmatprep.subr.bf16.mxu0 0
      %322 = vmatpush1.bf16.msra.mxu0 %v303
      %323 = vmatprep.subr.bf16.mxu0 0
      %324 = vmatpush1.bf16.msra.mxu0 %v304
      %325 = vmatprep.subr.bf16.mxu0 0
      %326 = vmatpush1.bf16.msra.mxu0 %v305
      %327 = vmatprep.subr.bf16.mxu0 0
      %328 = vmatpush1.bf16.msra.mxu0 %v306
      %329 = vmatprep.subr.bf16.mxu0 0
      %330 = vmatpush1.bf16.msra.mxu0 %v307
      %331 = vmatprep.subr.bf16.mxu0 0
      %332 = vmatpush1.bf16.msra.mxu0 %v308
      %333 = vmatprep.subr.bf16.mxu0 0
      %334 = vmatpush1.bf16.msra.mxu0 0
      %335 = vmatprep.subr.bf16.mxu0 0
      %336 = vmatpush1.bf16.msra.mxu0 0
      %337 = vmatprep.subr.bf16.mxu0 0
      %338 = vmatpush1.bf16.msra.mxu0 0
      %339 = vmatprep.subr.bf16.mxu0 0
      %340 = vmatpush1.bf16.msra.mxu0 0
      %341 = vmatprep.subr.bf16.mxu0 0
      %342 = vmatpush1.bf16.msra.mxu0 0
      %343 = vmatprep.subr.bf16.mxu0 0
      %344 = vmatpush1.bf16.msra.mxu0 0
      %345 = vmatprep.subr.bf16.mxu0 0
      %346 = vmatpush1.bf16.msra.mxu0 0
      %347 = vmatprep.subr.bf16.mxu0 0
      %348 = vmatpush1.bf16.msra.mxu0 0
      %349 = vmatprep.mubr.bf16.mxu0 0
      %350 = vmatmul.mubr.bf16.gmra.mrb[0].mxu0 %v251
      %v351 = vpop.f32.mrb[0].mxu0
      %v352 = vadd.f32 0.0, %v351
      %v353 = vpop.f32.mrb[0].mxu0
      %v354 = vpop.f32.mrb[0].mxu0
      %v355 = vpop.f32.mrb[0].mxu0
      %356 = vdwg.mxu0
      %v357 = vadd.f32 %v252, %v352
      %358 = vst.msk [vmem:[#allocation3] sm:$0xff] %vm249, %v357
      %v359 = vld [vmem:[#allocation2] sm:$0xf]
      %v360 = vld [vmem:[#allocation2 + $0x4] sm:$0x1]
      %v361 = vld [vmem:[#allocation3] sm:$0xff]
      %s362 = scalar_lea.vmem %s2, 64
      %v363 = vld [vmem:[%s362] sm:$0xf]
      %v364 = vld [vmem:[%s362 + $0x4] sm:$0xf]
      %v365 = vld [vmem:[%s362 + $0x8] sm:$0xf]
      %v366 = vld [vmem:[%s362 + $0xc] sm:$0xf]
      %v367 = vld [vmem:[%s362 + $0x10] sm:$0xf]
      %v368 = vld [vmem:[%s362 + $0x14] sm:$0xf]
      %v369 = vld [vmem:[%s362 + $0x18] sm:$0xf]
      %v370 = vld [vmem:[%s362 + $0x1c] sm:$0xf]
      %v371 = vld [vmem:[%s362 + $0x20] sm:$0xf]
      %v372 = vld [vmem:[%s362 + $0x24] sm:$0xf]
      %v373 = vld [vmem:[%s362 + $0x28] sm:$0xf]
      %v374 = vld [vmem:[%s362 + $0x2c] sm:$0xf]
      %v375 = vld [vmem:[%s362 + $0x30] sm:$0xf]
      %v376 = vld [vmem:[%s362 + $0x34] sm:$0xf]
      %v377 = vld [vmem:[%s362 + $0x38] sm:$0xf]
      %v378 = vld [vmem:[%s362 + $0x3c] sm:$0xf]
      %v381 = vunpack.c.l.b16 %v359
      %v382 = vunpack.c.l.b16 %v360
      %v383 = vpack.c.b16 %v382, %v381
      %v385 = vshrl.u32 %v383, 16
      %v387 = vshll.u32 %v383, 16
      %v389 = vrot.slane %v387, 1
      %v390 = vor.u32 %v385, %v389
      %v408 = vunpack.c.l.b16 %v363
      %v409 = vunpack.c.l.b16 %v364
      %v410 = vunpack.c.l.b16 %v365
      %v411 = vunpack.c.l.b16 %v366
      %v412 = vunpack.c.l.b16 %v367
      %v413 = vunpack.c.l.b16 %v368
      %v414 = vunpack.c.l.b16 %v369
      %v415 = vunpack.c.l.b16 %v370
      %v416 = vunpack.c.l.b16 %v371
      %v417 = vunpack.c.l.b16 %v372
      %v418 = vunpack.c.l.b16 %v373
      %v419 = vunpack.c.l.b16 %v374
      %v420 = vunpack.c.l.b16 %v375
      %v421 = vunpack.c.l.b16 %v376
      %v422 = vunpack.c.l.b16 %v377
      %v423 = vunpack.c.l.b16 %v378
      %v424 = vpack.c.b16 %v409, %v408
      %v425 = vpack.c.b16 %v411, %v410
      %v426 = vpack.c.b16 %v413, %v412
      %v427 = vpack.c.b16 %v415, %v414
      %v428 = vpack.c.b16 %v417, %v416
      %v429 = vpack.c.b16 %v419, %v418
      %v430 = vpack.c.b16 %v421, %v420
      %v431 = vpack.c.b16 %v423, %v422
      %440 = vmatprep.subr.bf16.mxu0 0
      %441 = vmatpush1.bf16.msra.mxu0 %v424
      %442 = vmatprep.subr.bf16.mxu0 0
      %443 = vmatpush1.bf16.msra.mxu0 %v425
      %444 = vmatprep.subr.bf16.mxu0 0
      %445 = vmatpush1.bf16.msra.mxu0 %v426
      %446 = vmatprep.subr.bf16.mxu0 0
      %447 = vmatpush1.bf16.msra.mxu0 %v427
      %448 = vmatprep.subr.bf16.mxu0 0
      %449 = vmatpush1.bf16.msra.mxu0 %v428
      %450 = vmatprep.subr.bf16.mxu0 0
      %451 = vmatpush1.bf16.msra.mxu0 %v429
      %452 = vmatprep.subr.bf16.mxu0 0
      %453 = vmatpush1.bf16.msra.mxu0 %v430
      %454 = vmatprep.subr.bf16.mxu0 0
      %455 = vmatpush1.bf16.msra.mxu0 %v431
      %456 = vmatprep.subr.bf16.mxu0 0
      %457 = vmatpush1.bf16.msra.mxu0 0
      %458 = vmatprep.subr.bf16.mxu0 0
      %459 = vmatpush1.bf16.msra.mxu0 0
      %460 = vmatprep.subr.bf16.mxu0 0
      %461 = vmatpush1.bf16.msra.mxu0 0
      %462 = vmatprep.subr.bf16.mxu0 0
      %463 = vmatpush1.bf16.msra.mxu0 0
      %464 = vmatprep.subr.bf16.mxu0 0
      %465 = vmatpush1.bf16.msra.mxu0 0
      %466 = vmatprep.subr.bf16.mxu0 0
      %467 = vmatpush1.bf16.msra.mxu0 0
      %468 = vmatprep.subr.bf16.mxu0 0
      %469 = vmatpush1.bf16.msra.mxu0 0
      %470 = vmatprep.subr.bf16.mxu0 0
      %471 = vmatpush1.bf16.msra.mxu0 0
      %472 = vmatprep.mubr.bf16.mxu0 0
      %473 = vmatmul.mubr.bf16.gmra.mrb[0].mxu0 %v390
      %v474 = vpop.f32.mrb[0].mxu0
      %v475 = vadd.f32 0.0, %v474
      %v476 = vpop.f32.mrb[0].mxu0
      %v477 = vpop.f32.mrb[0].mxu0
      %v478 = vpop.f32.mrb[0].mxu0
      %479 = vdwg.mxu0
      %v480 = vadd.f32 %v361, %v475
      %481 = vst.msk [vmem:[#allocation3] sm:$0xff] %vm249, %v480
      %v482 = vld [vmem:[#allocation2] sm:$0xe]
      %v483 = vld [vmem:[#allocation2 + $0x4] sm:$0x1]
      %v484 = vld [vmem:[#allocation3] sm:$0xff]
      %s485 = scalar_lea.vmem %s2, 128
      %v486 = vld [vmem:[%s485] sm:$0xf]
      %v487 = vld [vmem:[%s485 + $0x4] sm:$0xf]
      %v488 = vld [vmem:[%s485 + $0x8] sm:$0xf]
      %v489 = vld [vmem:[%s485 + $0xc] sm:$0xf]
      %v490 = vld [vmem:[%s485 + $0x10] sm:$0xf]
      %v491 = vld [vmem:[%s485 + $0x14] sm:$0xf]
      %v492 = vld [vmem:[%s485 + $0x18] sm:$0xf]
      %v493 = vld [vmem:[%s485 + $0x1c] sm:$0xf]
      %v494 = vld [vmem:[%s485 + $0x20] sm:$0xf]
      %v495 = vld [vmem:[%s485 + $0x24] sm:$0xf]
      %v496 = vld [vmem:[%s485 + $0x28] sm:$0xf]
      %v497 = vld [vmem:[%s485 + $0x2c] sm:$0xf]
      %v498 = vld [vmem:[%s485 + $0x30] sm:$0xf]
      %v499 = vld [vmem:[%s485 + $0x34] sm:$0xf]
      %v500 = vld [vmem:[%s485 + $0x38] sm:$0xf]
      %v501 = vld [vmem:[%s485 + $0x3c] sm:$0xf]
      %v504 = vunpack.c.l.b16 %v482
      %v505 = vunpack.c.l.b16 %v483
      %v506 = vpack.c.b16 %v505, %v504
      %v507 = vrot.slane %v506, 1
      %v525 = vunpack.c.l.b16 %v486
      %v526 = vunpack.c.l.b16 %v487
      %v527 = vunpack.c.l.b16 %v488
      %v528 = vunpack.c.l.b16 %v489
      %v529 = vunpack.c.l.b16 %v490
      %v530 = vunpack.c.l.b16 %v491
      %v531 = vunpack.c.l.b16 %v492
      %v532 = vunpack.c.l.b16 %v493
      %v533 = vunpack.c.l.b16 %v494
      %v534 = vunpack.c.l.b16 %v495
      %v535 = vunpack.c.l.b16 %v496
      %v536 = vunpack.c.l.b16 %v497
      %v537 = vunpack.c.l.b16 %v498
      %v538 = vunpack.c.l.b16 %v499
      %v539 = vunpack.c.l.b16 %v500
      %v540 = vunpack.c.l.b16 %v501
      %v541 = vpack.c.b16 %v526, %v525
      %v542 = vpack.c.b16 %v528, %v527
      %v543 = vpack.c.b16 %v530, %v529
      %v544 = vpack.c.b16 %v532, %v531
      %v545 = vpack.c.b16 %v534, %v533
      %v546 = vpack.c.b16 %v536, %v535
      %v547 = vpack.c.b16 %v538, %v537
      %v548 = vpack.c.b16 %v540, %v539
      %557 = vmatprep.subr.bf16.mxu0 0
      %558 = vmatpush1.bf16.msra.mxu0 %v541
      %559 = vmatprep.subr.bf16.mxu0 0
      %560 = vmatpush1.bf16.msra.mxu0 %v542
      %561 = vmatprep.subr.bf16.mxu0 0
      %562 = vmatpush1.bf16.msra.mxu0 %v543
      %563 = vmatprep.subr.bf16.mxu0 0
      %564 = vmatpush1.bf16.msra.mxu0 %v544
      %565 = vmatprep.subr.bf16.mxu0 0
      %566 = vmatpush1.bf16.msra.mxu0 %v545
      %567 = vmatprep.subr.bf16.mxu0 0
      %568 = vmatpush1.bf16.msra.mxu0 %v546
      %569 = vmatprep.subr.bf16.mxu0 0
      %570 = vmatpush1.bf16.msra.mxu0 %v547
      %571 = vmatprep.subr.bf16.mxu0 0
      %572 = vmatpush1.bf16.msra.mxu0 %v548
      %573 = vmatprep.subr.bf16.mxu0 0
      %574 = vmatpush1.bf16.msra.mxu0 0
      %575 = vmatprep.subr.bf16.mxu0 0
      %576 = vmatpush1.bf16.msra.mxu0 0
      %577 = vmatprep.subr.bf16.mxu0 0
      %578 = vmatpush1.bf16.msra.mxu0 0
      %579 = vmatprep.subr.bf16.mxu0 0
      %580 = vmatpush1.bf16.msra.mxu0 0
      %581 = vmatprep.subr.bf16.mxu0 0
      %582 = vmatpush1.bf16.msra.mxu0 0
      %583 = vmatprep.subr.bf16.mxu0 0
      %584 = vmatpush1.bf16.msra.mxu0 0
      %585 = vmatprep.subr.bf16.mxu0 0
      %586 = vmatpush1.bf16.msra.mxu0 0
      %587 = vmatprep.subr.bf16.mxu0 0
      %588 = vmatpush1.bf16.msra.mxu0 0
      %589 = vmatprep.mubr.bf16.mxu0 0
      %590 = vmatmul.mubr.bf16.gmra.mrb[0].mxu0 %v507
      %v591 = vpop.f32.mrb[0].mxu0
      %v592 = vadd.f32 0.0, %v591
      %v593 = vpop.f32.mrb[0].mxu0
      %v594 = vpop.f32.mrb[0].mxu0
      %v595 = vpop.f32.mrb[0].mxu0
      %596 = vdwg.mxu0
      %v597 = vadd.f32 %v484, %v592
      %598 = vst.msk [vmem:[#allocation3] sm:$0xff] %vm249, %v597
      %v599 = vld [vmem:[#allocation2] sm:$0xc]
      %v600 = vld [vmem:[#allocation2 + $0x4] sm:$0x3]
      %v601 = vld [vmem:[#allocation3] sm:$0xff]
      %s602 = scalar_lea.vmem %s2, 192
      %v603 = vld [vmem:[%s602] sm:$0xf]
      %v604 = vld [vmem:[%s602 + $0x4] sm:$0xf]
      %v605 = vld [vmem:[%s602 + $0x8] sm:$0xf]
      %v606 = vld [vmem:[%s602 + $0xc] sm:$0xf]
      %v607 = vld [vmem:[%s602 + $0x10] sm:$0xf]
      %v608 = vld [vmem:[%s602 + $0x14] sm:$0xf]
      %v609 = vld [vmem:[%s602 + $0x18] sm:$0xf]
      %v610 = vld [vmem:[%s602 + $0x1c] sm:$0xf]
      %v611 = vld [vmem:[%s602 + $0x20] sm:$0xf]
      %v612 = vld [vmem:[%s602 + $0x24] sm:$0xf]
      %v613 = vld [vmem:[%s602 + $0x28] sm:$0xf]
      %v614 = vld [vmem:[%s602 + $0x2c] sm:$0xf]
      %v615 = vld [vmem:[%s602 + $0x30] sm:$0xf]
      %v616 = vld [vmem:[%s602 + $0x34] sm:$0xf]
      %v617 = vld [vmem:[%s602 + $0x38] sm:$0xf]
      %v618 = vld [vmem:[%s602 + $0x3c] sm:$0xf]
      %v621 = vunpack.c.l.b16 %v599
      %v622 = vunpack.c.l.b16 %v600
      %v623 = vpack.c.b16 %v622, %v621
      %v624 = vrot.slane %v623, 2
      %v642 = vunpack.c.l.b16 %v603
      %v643 = vunpack.c.l.b16 %v604
      %v644 = vunpack.c.l.b16 %v605
      %v645 = vunpack.c.l.b16 %v606
      %v646 = vunpack.c.l.b16 %v607
      %v647 = vunpack.c.l.b16 %v608
      %v648 = vunpack.c.l.b16 %v609
      %v649 = vunpack.c.l.b16 %v610
      %v650 = vunpack.c.l.b16 %v611
      %v651 = vunpack.c.l.b16 %v612
      %v652 = vunpack.c.l.b16 %v613
      %v653 = vunpack.c.l.b16 %v614
      %v654 = vunpack.c.l.b16 %v615
      %v655 = vunpack.c.l.b16 %v616
      %v656 = vunpack.c.l.b16 %v617
      %v657 = vunpack.c.l.b16 %v618
      %v658 = vpack.c.b16 %v643, %v642
      %v659 = vpack.c.b16 %v645, %v644
      %v660 = vpack.c.b16 %v647, %v646
      %v661 = vpack.c.b16 %v649, %v648
      %v662 = vpack.c.b16 %v651, %v650
      %v663 = vpack.c.b16 %v653, %v652
      %v664 = vpack.c.b16 %v655, %v654
      %v665 = vpack.c.b16 %v657, %v656
      %674 = vmatprep.subr.bf16.mxu0 0
      %675 = vmatpush1.bf16.msra.mxu0 %v658
      %676 = vmatprep.subr.bf16.mxu0 0
      %677 = vmatpush1.bf16.msra.mxu0 %v659
      %678 = vmatprep.subr.bf16.mxu0 0
      %679 = vmatpush1.bf16.msra.mxu0 %v660
      %680 = vmatprep.subr.bf16.mxu0 0
      %681 = vmatpush1.bf16.msra.mxu0 %v661
      %682 = vmatprep.subr.bf16.mxu0 0
      %683 = vmatpush1.bf16.msra.mxu0 %v662
      %684 = vmatprep.subr.bf16.mxu0 0
      %685 = vmatpush1.bf16.msra.mxu0 %v663
      %686 = vmatprep.subr.bf16.mxu0 0
      %687 = vmatpush1.bf16.msra.mxu0 %v664
      %688 = vmatprep.subr.bf16.mxu0 0
      %689 = vmatpush1.bf16.msra.mxu0 %v665
      %690 = vmatprep.subr.bf16.mxu0 0
      %691 = vmatpush1.bf16.msra.mxu0 0
      %692 = vmatprep.subr.bf16.mxu0 0
      %693 = vmatpush1.bf16.msra.mxu0 0
      %694 = vmatprep.subr.bf16.mxu0 0
      %695 = vmatpush1.bf16.msra.mxu0 0
      %696 = vmatprep.subr.bf16.mxu0 0
      %697 = vmatpush1.bf16.msra.mxu0 0
      %698 = vmatprep.subr.bf16.mxu0 0
      %699 = vmatpush1.bf16.msra.mxu0 0
      %700 = vmatprep.subr.bf16.mxu0 0
      %701 = vmatpush1.bf16.msra.mxu0 0
      %702 = vmatprep.subr.bf16.mxu0 0
      %703 = vmatpush1.bf16.msra.mxu0 0
      %704 = vmatprep.subr.bf16.mxu0 0
      %705 = vmatpush1.bf16.msra.mxu0 0
      %706 = vmatprep.mubr.bf16.mxu0 0
      %707 = vmatmul.mubr.bf16.gmra.mrb[0].mxu0 %v624
      %v708 = vpop.f32.mrb[0].mxu0
      %v709 = vadd.f32 0.0, %v708
      %v710 = vpop.f32.mrb[0].mxu0
      %v711 = vpop.f32.mrb[0].mxu0
      %v712 = vpop.f32.mrb[0].mxu0
      %713 = vdwg.mxu0
      %v714 = vadd.f32 %v601, %v709
      %715 = vst.msk [vmem:[#allocation3] sm:$0xff] %vm249, %v714
      %v716 = vld [vmem:[#allocation2] sm:$0xc]
      %v717 = vld [vmem:[#allocation2 + $0x4] sm:$0x7]
      %v718 = vld [vmem:[#allocation3] sm:$0xff]
      %s719 = scalar_lea.vmem %s2, 256
      %v720 = vld [vmem:[%s719] sm:$0xf]
      %v721 = vld [vmem:[%s719 + $0x4] sm:$0xf]
      %v722 = vld [vmem:[%s719 + $0x8] sm:$0xf]
      %v723 = vld [vmem:[%s719 + $0xc] sm:$0xf]
      %v724 = vld [vmem:[%s719 + $0x10] sm:$0xf]
      %v725 = vld [vmem:[%s719 + $0x14] sm:$0xf]
      %v726 = vld [vmem:[%s719 + $0x18] sm:$0xf]
      %v727 = vld [vmem:[%s719 + $0x1c] sm:$0xf]
      %v728 = vld [vmem:[%s719 + $0x20] sm:$0xf]
      %v729 = vld [vmem:[%s719 + $0x24] sm:$0xf]
      %v730 = vld [vmem:[%s719 + $0x28] sm:$0xf]
      %v731 = vld [vmem:[%s719 + $0x2c] sm:$0xf]
      %v732 = vld [vmem:[%s719 + $0x30] sm:$0xf]
      %v733 = vld [vmem:[%s719 + $0x34] sm:$0xf]
      %v734 = vld [vmem:[%s719 + $0x38] sm:$0xf]
      %v735 = vld [vmem:[%s719 + $0x3c] sm:$0xf]
      %v738 = vunpack.c.l.b16 %v716
      %v739 = vunpack.c.l.b16 %v717
      %v740 = vpack.c.b16 %v739, %v738
      %v742 = vshrl.u32 %v740, 16
      %v744 = vrot.slane %v742, 2
      %v745 = vshll.u32 %v740, 16
      %v747 = vrot.slane %v745, 3
      %v748 = vor.u32 %v744, %v747
      %v766 = vunpack.c.l.b16 %v720
      %v767 = vunpack.c.l.b16 %v721
      %v768 = vunpack.c.l.b16 %v722
      %v769 = vunpack.c.l.b16 %v723
      %v770 = vunpack.c.l.b16 %v724
      %v771 = vunpack.c.l.b16 %v725
      %v772 = vunpack.c.l.b16 %v726
      %v773 = vunpack.c.l.b16 %v727
      %v774 = vunpack.c.l.b16 %v728
      %v775 = vunpack.c.l.b16 %v729
      %v776 = vunpack.c.l.b16 %v730
      %v777 = vunpack.c.l.b16 %v731
      %v778 = vunpack.c.l.b16 %v732
      %v779 = vunpack.c.l.b16 %v733
      %v780 = vunpack.c.l.b16 %v734
      %v781 = vunpack.c.l.b16 %v735
      %v782 = vpack.c.b16 %v767, %v766
      %v783 = vpack.c.b16 %v769, %v768
      %v784 = vpack.c.b16 %v771, %v770
      %v785 = vpack.c.b16 %v773, %v772
      %v786 = vpack.c.b16 %v775, %v774
      %v787 = vpack.c.b16 %v777, %v776
      %v788 = vpack.c.b16 %v779, %v778
      %v789 = vpack.c.b16 %v781, %v780
      %798 = vmatprep.subr.bf16.mxu0 0
      %799 = vmatpush1.bf16.msra.mxu0 %v782
      %800 = vmatprep.subr.bf16.mxu0 0
      %801 = vmatpush1.bf16.msra.mxu0 %v783
      %802 = vmatprep.subr.bf16.mxu0 0
      %803 = vmatpush1.bf16.msra.mxu0 %v784
      %804 = vmatprep.subr.bf16.mxu0 0
      %805 = vmatpush1.bf16.msra.mxu0 %v785
      %806 = vmatprep.subr.bf16.mxu0 0
      %807 = vmatpush1.bf16.msra.mxu0 %v786
      %808 = vmatprep.subr.bf16.mxu0 0
      %809 = vmatpush1.bf16.msra.mxu0 %v787
      %810 = vmatprep.subr.bf16.mxu0 0
      %811 = vmatpush1.bf16.msra.mxu0 %v788
      %812 = vmatprep.subr.bf16.mxu0 0
      %813 = vmatpush1.bf16.msra.mxu0 %v789
      %814 = vmatprep.subr.bf16.mxu0 0
      %815 = vmatpush1.bf16.msra.mxu0 0
      %816 = vmatprep.subr.bf16.mxu0 0
      %817 = vmatpush1.bf16.msra.mxu0 0
      %818 = vmatprep.subr.bf16.mxu0 0
      %819 = vmatpush1.bf16.msra.mxu0 0
      %820 = vmatprep.subr.bf16.mxu0 0
      %821 = vmatpush1.bf16.msra.mxu0 0
      %822 = vmatprep.subr.bf16.mxu0 0
      %823 = vmatpush1.bf16.msra.mxu0 0
      %824 = vmatprep.subr.bf16.mxu0 0
      %825 = vmatpush1.bf16.msra.mxu0 0
      %826 = vmatprep.subr.bf16.mxu0 0
      %827 = vmatpush1.bf16.msra.mxu0 0
      %828 = vmatprep.subr.bf16.mxu0 0
      %829 = vmatpush1.bf16.msra.mxu0 0
      %830 = vmatprep.mubr.bf16.mxu0 0
      %831 = vmatmul.mubr.bf16.gmra.mrb[0].mxu0 %v748
      %v832 = vpop.f32.mrb[0].mxu0
      %v833 = vadd.f32 0.0, %v832
      %v834 = vpop.f32.mrb[0].mxu0
      %v835 = vpop.f32.mrb[0].mxu0
      %v836 = vpop.f32.mrb[0].mxu0
      %837 = vdwg.mxu0
      %v838 = vadd.f32 %v718, %v833
      %839 = vst.msk [vmem:[#allocation3] sm:$0xff] %vm249, %v838
      %v840 = vld [vmem:[#allocation2] sm:$0x8]
      %v841 = vld [vmem:[#allocation2 + $0x4] sm:$0x7]
      %v842 = vld [vmem:[#allocation3] sm:$0xff]
      %s843 = scalar_lea.vmem %s2, 320
      %v844 = vld [vmem:[%s843] sm:$0xf]
      %v845 = vld [vmem:[%s843 + $0x4] sm:$0xf]
      %v846 = vld [vmem:[%s843 + $0x8] sm:$0xf]
      %v847 = vld [vmem:[%s843 + $0xc] sm:$0xf]
      %v848 = vld [vmem:[%s843 + $0x10] sm:$0xf]
      %v849 = vld [vmem:[%s843 + $0x14] sm:$0xf]
      %v850 = vld [vmem:[%s843 + $0x18] sm:$0xf]
      %v851 = vld [vmem:[%s843 + $0x1c] sm:$0xf]
      %v852 = vld [vmem:[%s843 + $0x20] sm:$0xf]
      %v853 = vld [vmem:[%s843 + $0x24] sm:$0xf]
      %v854 = vld [vmem:[%s843 + $0x28] sm:$0xf]
      %v855 = vld [vmem:[%s843 + $0x2c] sm:$0xf]
      %v856 = vld [vmem:[%s843 + $0x30] sm:$0xf]
      %v857 = vld [vmem:[%s843 + $0x34] sm:$0xf]
      %v858 = vld [vmem:[%s843 + $0x38] sm:$0xf]
      %v859 = vld [vmem:[%s843 + $0x3c] sm:$0xf]
      %v862 = vunpack.c.l.b16 %v840
      %v863 = vunpack.c.l.b16 %v841
      %v864 = vpack.c.b16 %v863, %v862
      %v865 = vrot.slane %v864, 3
      %v883 = vunpack.c.l.b16 %v844
      %v884 = vunpack.c.l.b16 %v845
      %v885 = vunpack.c.l.b16 %v846
      %v886 = vunpack.c.l.b16 %v847
      %v887 = vunpack.c.l.b16 %v848
      %v888 = vunpack.c.l.b16 %v849
      %v889 = vunpack.c.l.b16 %v850
      %v890 = vunpack.c.l.b16 %v851
      %v891 = vunpack.c.l.b16 %v852
      %v892 = vunpack.c.l.b16 %v853
      %v893 = vunpack.c.l.b16 %v854
      %v894 = vunpack.c.l.b16 %v855
      %v895 = vunpack.c.l.b16 %v856
      %v896 = vunpack.c.l.b16 %v857
      %v897 = vunpack.c.l.b16 %v858
      %v898 = vunpack.c.l.b16 %v859
      %v899 = vpack.c.b16 %v884, %v883
      %v900 = vpack.c.b16 %v886, %v885
      %v901 = vpack.c.b16 %v888, %v887
      %v902 = vpack.c.b16 %v890, %v889
      %v903 = vpack.c.b16 %v892, %v891
      %v904 = vpack.c.b16 %v894, %v893
      %v905 = vpack.c.b16 %v896, %v895
      %v906 = vpack.c.b16 %v898, %v897
      %915 = vmatprep.subr.bf16.mxu0 0
      %916 = vmatpush1.bf16.msra.mxu0 %v899
      %917 = vmatprep.subr.bf16.mxu0 0
      %918 = vmatpush1.bf16.msra.mxu0 %v900
      %919 = vmatprep.subr.bf16.mxu0 0
      %920 = vmatpush1.bf16.msra.mxu0 %v901
      %921 = vmatprep.subr.bf16.mxu0 0
      %922 = vmatpush1.bf16.msra.mxu0 %v902
      %923 = vmatprep.subr.bf16.mxu0 0
      %924 = vmatpush1.bf16.msra.mxu0 %v903
      %925 = vmatprep.subr.bf16.mxu0 0
      %926 = vmatpush1.bf16.msra.mxu0 %v904
      %927 = vmatprep.subr.bf16.mxu0 0
      %928 = vmatpush1.bf16.msra.mxu0 %v905
      %929 = vmatprep.subr.bf16.mxu0 0
      %930 = vmatpush1.bf16.msra.mxu0 %v906
      %931 = vmatprep.subr.bf16.mxu0 0
      %932 = vmatpush1.bf16.msra.mxu0 0
      %933 = vmatprep.subr.bf16.mxu0 0
      %934 = vmatpush1.bf16.msra.mxu0 0
      %935 = vmatprep.subr.bf16.mxu0 0
      %936 = vmatpush1.bf16.msra.mxu0 0
      %937 = vmatprep.subr.bf16.mxu0 0
      %938 = vmatpush1.bf16.msra.mxu0 0
      %939 = vmatprep.subr.bf16.mxu0 0
      %940 = vmatpush1.bf16.msra.mxu0 0
      %941 = vmatprep.subr.bf16.mxu0 0
      %942 = vmatpush1.bf16.msra.mxu0 0
      %943 = vmatprep.subr.bf16.mxu0 0
      %944 = vmatpush1.bf16.msra.mxu0 0
      %945 = vmatprep.subr.bf16.mxu0 0
      %946 = vmatpush1.bf16.msra.mxu0 0
      %947 = vmatprep.mubr.bf16.mxu0 0
      %948 = vmatmul.mubr.bf16.gmra.mrb[0].mxu0 %v865
      %v949 = vpop.f32.mrb[0].mxu0
      %v950 = vadd.f32 0.0, %v949
      %v951 = vpop.f32.mrb[0].mxu0
      %v952 = vpop.f32.mrb[0].mxu0
      %v953 = vpop.f32.mrb[0].mxu0
      %954 = vdwg.mxu0
      %v955 = vadd.f32 %v842, %v950
      %956 = vst.msk [vmem:[#allocation3] sm:$0xff] %vm249, %v955
      %v957 = vld [vmem:[#allocation2 + $0x4] sm:$0xf]
      %v958 = vld [vmem:[#allocation3] sm:$0xff]
      %s959 = scalar_lea.vmem %s2, 384
      %v960 = vld [vmem:[%s959] sm:$0xf]
      %v961 = vld [vmem:[%s959 + $0x4] sm:$0xf]
      %v962 = vld [vmem:[%s959 + $0x8] sm:$0xf]
      %v963 = vld [vmem:[%s959 + $0xc] sm:$0xf]
      %v964 = vld [vmem:[%s959 + $0x10] sm:$0xf]
      %v965 = vld [vmem:[%s959 + $0x14] sm:$0xf]
      %v966 = vld [vmem:[%s959 + $0x18] sm:$0xf]
      %v967 = vld [vmem:[%s959 + $0x1c] sm:$0xf]
      %v968 = vld [vmem:[%s959 + $0x20] sm:$0xf]
      %v969 = vld [vmem:[%s959 + $0x24] sm:$0xf]
      %v970 = vld [vmem:[%s959 + $0x28] sm:$0xf]
      %v971 = vld [vmem:[%s959 + $0x2c] sm:$0xf]
      %v972 = vld [vmem:[%s959 + $0x30] sm:$0xf]
      %v973 = vld [vmem:[%s959 + $0x34] sm:$0xf]
      %v974 = vld [vmem:[%s959 + $0x38] sm:$0xf]
      %v975 = vld [vmem:[%s959 + $0x3c] sm:$0xf]
      %v992 = vunpack.c.l.b16 %v960
      %v993 = vunpack.c.l.b16 %v961
      %v994 = vunpack.c.l.b16 %v962
      %v995 = vunpack.c.l.b16 %v963
      %v996 = vunpack.c.l.b16 %v964
      %v997 = vunpack.c.l.b16 %v965
      %v998 = vunpack.c.l.b16 %v966
      %v999 = vunpack.c.l.b16 %v967
      %v1000 = vunpack.c.l.b16 %v968
      %v1001 = vunpack.c.l.b16 %v969
      %v1002 = vunpack.c.l.b16 %v970
      %v1003 = vunpack.c.l.b16 %v971
      %v1004 = vunpack.c.l.b16 %v972
      %v1005 = vunpack.c.l.b16 %v973
      %v1006 = vunpack.c.l.b16 %v974
      %v1007 = vunpack.c.l.b16 %v975
      %v1008 = vpack.c.b16 %v993, %v992
      %v1009 = vpack.c.b16 %v995, %v994
      %v1010 = vpack.c.b16 %v997, %v996
      %v1011 = vpack.c.b16 %v999, %v998
      %v1012 = vpack.c.b16 %v1001, %v1000
      %v1013 = vpack.c.b16 %v1003, %v1002
      %v1014 = vpack.c.b16 %v1005, %v1004
      %v1015 = vpack.c.b16 %v1007, %v1006
      %1024 = vmatprep.subr.bf16.mxu0 0
      %1025 = vmatpush1.bf16.msra.mxu0 %v1008
      %1026 = vmatprep.subr.bf16.mxu0 0
      %1027 = vmatpush1.bf16.msra.mxu0 %v1009
      %1028 = vmatprep.subr.bf16.mxu0 0
      %1029 = vmatpush1.bf16.msra.mxu0 %v1010
      %1030 = vmatprep.subr.bf16.mxu0 0
      %1031 = vmatpush1.bf16.msra.mxu0 %v1011
      %1032 = vmatprep.subr.bf16.mxu0 0
      %1033 = vmatpush1.bf16.msra.mxu0 %v1012
      %1034 = vmatprep.subr.bf16.mxu0 0
      %1035 = vmatpush1.bf16.msra.mxu0 %v1013
      %1036 = vmatprep.subr.bf16.mxu0 0
      %1037 = vmatpush1.bf16.msra.mxu0 %v1014
      %1038 = vmatprep.subr.bf16.mxu0 0
      %1039 = vmatpush1.bf16.msra.mxu0 %v1015
      %1040 = vmatprep.subr.bf16.mxu0 0
      %1041 = vmatpush1.bf16.msra.mxu0 0
      %1042 = vmatprep.subr.bf16.mxu0 0
      %1043 = vmatpush1.bf16.msra.mxu0 0
      %1044 = vmatprep.subr.bf16.mxu0 0
      %1045 = vmatpush1.bf16.msra.mxu0 0
      %1046 = vmatprep.subr.bf16.mxu0 0
      %1047 = vmatpush1.bf16.msra.mxu0 0
      %1048 = vmatprep.subr.bf16.mxu0 0
      %1049 = vmatpush1.bf16.msra.mxu0 0
      %1050 = vmatprep.subr.bf16.mxu0 0
      %1051 = vmatpush1.bf16.msra.mxu0 0
      %1052 = vmatprep.subr.bf16.mxu0 0
      %1053 = vmatpush1.bf16.msra.mxu0 0
      %1054 = vmatprep.subr.bf16.mxu0 0
      %1055 = vmatpush1.bf16.msra.mxu0 0
      %1056 = vmatprep.mubr.bf16.mxu0 0
      %1057 = vmatmul.mubr.bf16.gmra.mrb[0].mxu0 %v957
      %v1058 = vpop.f32.mrb[0].mxu0
      %v1059 = vadd.f32 0.0, %v1058
      %v1060 = vpop.f32.mrb[0].mxu0
      %v1061 = vpop.f32.mrb[0].mxu0
      %v1062 = vpop.f32.mrb[0].mxu0
      %1063 = vdwg.mxu0
      %v1064 = vadd.f32 %v958, %v1059
      %1065 = vst.msk [vmem:[#allocation3] sm:$0xff] %vm249, %v1064
      %v1066 = vld [vmem:[#allocation2 + $0x4] sm:$0xf]
      %v1067 = vld [vmem:[#allocation2 + $0x8] sm:$0x1]
      %v1068 = vld [vmem:[#allocation3] sm:$0xff]
      %s1069 = scalar_lea.vmem %s2, 448
      %v1070 = vld [vmem:[%s1069] sm:$0xf]
      %v1071 = vld [vmem:[%s1069 + $0x4] sm:$0xf]
      %v1072 = vld [vmem:[%s1069 + $0x8] sm:$0xf]
      %v1073 = vld [vmem:[%s1069 + $0xc] sm:$0xf]
      %v1074 = vld [vmem:[%s1069 + $0x10] sm:$0xf]
      %v1075 = vld [vmem:[%s1069 + $0x14] sm:$0xf]
      %v1076 = vld [vmem:[%s1069 + $0x18] sm:$0xf]
      %v1077 = vld [vmem:[%s1069 + $0x1c] sm:$0xf]
      %v1078 = vld [vmem:[%s1069 + $0x20] sm:$0xf]
      %v1079 = vld [vmem:[%s1069 + $0x24] sm:$0xf]
      %v1080 = vld [vmem:[%s1069 + $0x28] sm:$0xf]
      %v1081 = vld [vmem:[%s1069 + $0x2c] sm:$0xf]
      %v1082 = vld [vmem:[%s1069 + $0x30] sm:$0xf]
      %v1083 = vld [vmem:[%s1069 + $0x34] sm:$0xf]
      %v1084 = vld [vmem:[%s1069 + $0x38] sm:$0xf]
      %v1085 = vld [vmem:[%s1069 + $0x3c] sm:$0xf]
      %v1088 = vunpack.c.l.b16 %v1066
      %v1089 = vunpack.c.l.b16 %v1067
      %v1090 = vpack.c.b16 %v1089, %v1088
      %v1092 = vshrl.u32 %v1090, 16
      %v1094 = vshll.u32 %v1090, 16
      %v1096 = vrot.slane %v1094, 1
      %v1097 = vor.u32 %v1092, %v1096
      %v1115 = vunpack.c.l.b16 %v1070
      %v1116 = vunpack.c.l.b16 %v1071
      %v1117 = vunpack.c.l.b16 %v1072
      %v1118 = vunpack.c.l.b16 %v1073
      %v1119 = vunpack.c.l.b16 %v1074
      %v1120 = vunpack.c.l.b16 %v1075
      %v1121 = vunpack.c.l.b16 %v1076
      %v1122 = vunpack.c.l.b16 %v1077
      %v1123 = vunpack.c.l.b16 %v1078
      %v1124 = vunpack.c.l.b16 %v1079
      %v1125 = vunpack.c.l.b16 %v1080
      %v1126 = vunpack.c.l.b16 %v1081
      %v1127 = vunpack.c.l.b16 %v1082
      %v1128 = vunpack.c.l.b16 %v1083
      %v1129 = vunpack.c.l.b16 %v1084
      %v1130 = vunpack.c.l.b16 %v1085
      %v1131 = vpack.c.b16 %v1116, %v1115
      %v1132 = vpack.c.b16 %v1118, %v1117
      %v1133 = vpack.c.b16 %v1120, %v1119
      %v1134 = vpack.c.b16 %v1122, %v1121
      %v1135 = vpack.c.b16 %v1124, %v1123
      %v1136 = vpack.c.b16 %v1126, %v1125
      %v1137 = vpack.c.b16 %v1128, %v1127
      %v1138 = vpack.c.b16 %v1130, %v1129
      %1147 = vmatprep.subr.bf16.mxu0 0
      %1148 = vmatpush1.bf16.msra.mxu0 %v1131
      %1149 = vmatprep.subr.bf16.mxu0 0
      %1150 = vmatpush1.bf16.msra.mxu0 %v1132
      %1151 = vmatprep.subr.bf16.mxu0 0
      %1152 = vmatpush1.bf16.msra.mxu0 %v1133
      %1153 = vmatprep.subr.bf16.mxu0 0
      %1154 = vmatpush1.bf16.msra.mxu0 %v1134
      %1155 = vmatprep.subr.bf16.mxu0 0
      %1156 = vmatpush1.bf16.msra.mxu0 %v1135
      %1157 = vmatprep.subr.bf16.mxu0 0
      %1158 = vmatpush1.bf16.msra.mxu0 %v1136
      %1159 = vmatprep.subr.bf16.mxu0 0
      %1160 = vmatpush1.bf16.msra.mxu0 %v1137
      %1161 = vmatprep.subr.bf16.mxu0 0
      %1162 = vmatpush1.bf16.msra.mxu0 %v1138
      %1163 = vmatprep.subr.bf16.mxu0 0
      %1164 = vmatpush1.bf16.msra.mxu0 0
      %1165 = vmatprep.subr.bf16.mxu0 0
      %1166 = vmatpush1.bf16.msra.mxu0 0
      %1167 = vmatprep.subr.bf16.mxu0 0
      %1168 = vmatpush1.bf16.msra.mxu0 0
      %1169 = vmatprep.subr.bf16.mxu0 0
      %1170 = vmatpush1.bf16.msra.mxu0 0
      %1171 = vmatprep.subr.bf16.mxu0 0
      %1172 = vmatpush1.bf16.msra.mxu0 0
      %1173 = vmatprep.subr.bf16.mxu0 0
      %1174 = vmatpush1.bf16.msra.mxu0 0
      %1175 = vmatprep.subr.bf16.mxu0 0
      %1176 = vmatpush1.bf16.msra.mxu0 0
      %1177 = vmatprep.subr.bf16.mxu0 0
      %1178 = vmatpush1.bf16.msra.mxu0 0
      %1179 = vmatprep.mubr.bf16.mxu0 0
      %1180 = vmatmul.mubr.bf16.gmra.mrb[0].mxu0 %v1097
      %v1181 = vpop.f32.mrb[0].mxu0
      %v1182 = vadd.f32 0.0, %v1181
      %v1183 = vpop.f32.mrb[0].mxu0
      %v1184 = vpop.f32.mrb[0].mxu0
      %v1185 = vpop.f32.mrb[0].mxu0
      %1186 = vdwg.mxu0
      %v1187 = vadd.f32 %v1068, %v1182
      %1188 = vst.msk [vmem:[#allocation3] sm:$0xff] %vm249, %v1187
      %v1189 = vld [vmem:[#allocation2 + $0x4] sm:$0xe]
      %v1190 = vld [vmem:[#allocation2 + $0x8] sm:$0x1]
      %v1191 = vld [vmem:[#allocation3] sm:$0xff]
      %s1192 = scalar_lea.vmem %s2, 512
      %v1193 = vld [vmem:[%s1192] sm:$0xf]
      %v1194 = vld [vmem:[%s1192 + $0x4] sm:$0xf]
      %v1195 = vld [vmem:[%s1192 + $0x8] sm:$0xf]
      %v1196 = vld [vmem:[%s1192 + $0xc] sm:$0xf]
      %v1197 = vld [vmem:[%s1192 + $0x10] sm:$0xf]
      %v1198 = vld [vmem:[%s1192 + $0x14] sm:$0xf]
      %v1199 = vld [vmem:[%s1192 + $0x18] sm:$0xf]
      %v1200 = vld [vmem:[%s1192 + $0x1c] sm:$0xf]
      %v1201 = vld [vmem:[%s1192 + $0x20] sm:$0xf]
      %v1202 = vld [vmem:[%s1192 + $0x24] sm:$0xf]
      %v1203 = vld [vmem:[%s1192 + $0x28] sm:$0xf]
      %v1204 = vld [vmem:[%s1192 + $0x2c] sm:$0xf]
      %v1205 = vld [vmem:[%s1192 + $0x30] sm:$0xf]
      %v1206 = vld [vmem:[%s1192 + $0x34] sm:$0xf]
      %v1207 = vld [vmem:[%s1192 + $0x38] sm:$0xf]
      %v1208 = vld [vmem:[%s1192 + $0x3c] sm:$0xf]
      %v1211 = vunpack.c.l.b16 %v1189
      %v1212 = vunpack.c.l.b16 %v1190
      %v1213 = vpack.c.b16 %v1212, %v1211
      %v1214 = vrot.slane %v1213, 1
      %v1232 = vunpack.c.l.b16 %v1193
      %v1233 = vunpack.c.l.b16 %v1194
      %v1234 = vunpack.c.l.b16 %v1195
      %v1235 = vunpack.c.l.b16 %v1196
      %v1236 = vunpack.c.l.b16 %v1197
      %v1237 = vunpack.c.l.b16 %v1198
      %v1238 = vunpack.c.l.b16 %v1199
      %v1239 = vunpack.c.l.b16 %v1200
      %v1240 = vunpack.c.l.b16 %v1201
      %v1241 = vunpack.c.l.b16 %v1202
      %v1242 = vunpack.c.l.b16 %v1203
      %v1243 = vunpack.c.l.b16 %v1204
      %v1244 = vunpack.c.l.b16 %v1205
      %v1245 = vunpack.c.l.b16 %v1206
      %v1246 = vunpack.c.l.b16 %v1207
      %v1247 = vunpack.c.l.b16 %v1208
      %v1248 = vpack.c.b16 %v1233, %v1232
      %v1249 = vpack.c.b16 %v1235, %v1234
      %v1250 = vpack.c.b16 %v1237, %v1236
      %v1251 = vpack.c.b16 %v1239, %v1238
      %v1252 = vpack.c.b16 %v1241, %v1240
      %v1253 = vpack.c.b16 %v1243, %v1242
      %v1254 = vpack.c.b16 %v1245, %v1244
      %v1255 = vpack.c.b16 %v1247, %v1246
      %1264 = vmatprep.subr.bf16.mxu0 0
      %1265 = vmatpush1.bf16.msra.mxu0 %v1248
      %1266 = vmatprep.subr.bf16.mxu0 0
      %1267 = vmatpush1.bf16.msra.mxu0 %v1249
      %1268 = vmatprep.subr.bf16.mxu0 0
      %1269 = vmatpush1.bf16.msra.mxu0 %v1250
      %1270 = vmatprep.subr.bf16.mxu0 0
      %1271 = vmatpush1.bf16.msra.mxu0 %v1251
      %1272 = vmatprep.subr.bf16.mxu0 0
      %1273 = vmatpush1.bf16.msra.mxu0 %v1252
      %1274 = vmatprep.subr.bf16.mxu0 0
      %1275 = vmatpush1.bf16.msra.mxu0 %v1253
      %1276 = vmatprep.subr.bf16.mxu0 0
      %1277 = vmatpush1.bf16.msra.mxu0 %v1254
      %1278 = vmatprep.subr.bf16.mxu0 0
      %1279 = vmatpush1.bf16.msra.mxu0 %v1255
      %1280 = vmatprep.subr.bf16.mxu0 0
      %1281 = vmatpush1.bf16.msra.mxu0 0
      %1282 = vmatprep.subr.bf16.mxu0 0
      %1283 = vmatpush1.bf16.msra.mxu0 0
      %1284 = vmatprep.subr.bf16.mxu0 0
      %1285 = vmatpush1.bf16.msra.mxu0 0
      %1286 = vmatprep.subr.bf16.mxu0 0
      %1287 = vmatpush1.bf16.msra.mxu0 0
      %1288 = vmatprep.subr.bf16.mxu0 0
      %1289 = vmatpush1.bf16.msra.mxu0 0
      %1290 = vmatprep.subr.bf16.mxu0 0
      %1291 = vmatpush1.bf16.msra.mxu0 0
      %1292 = vmatprep.subr.bf16.mxu0 0
      %1293 = vmatpush1.bf16.msra.mxu0 0
      %1294 = vmatprep.subr.bf16.mxu0 0
      %1295 = vmatpush1.bf16.msra.mxu0 0
      %1296 = vmatprep.mubr.bf16.mxu0 0
      %1297 = vmatmul.mubr.bf16.gmra.mrb[0].mxu0 %v1214
      %v1298 = vpop.f32.mrb[0].mxu0
      %v1299 = vadd.f32 0.0, %v1298
      %v1300 = vpop.f32.mrb[0].mxu0
      %v1301 = vpop.f32.mrb[0].mxu0
      %v1302 = vpop.f32.mrb[0].mxu0
      %1303 = vdwg.mxu0
      %v1304 = vadd.f32 %v1191, %v1299
      %1305 = vst.msk [vmem:[#allocation3] sm:$0xff] %vm249, %v1304
      %v1306 = vld [vmem:[%s178] sm:$0x1]
      %v1307 = vld [vmem:[%s178 + $0x1] sm:$0x1]
      %1308 = vst [vmem:[%s182] sm:$0x1] %v1306
      %1309 = vst [vmem:[%s182 + $0x1] sm:$0x1] %v1307
      %v1310 = vld [vmem:[#allocation3] sm:$0x3]
      %v1311 = vpack.c.bf16 %v1310, %v1310
      %v1314 = vunpack.c.l.s4 1966171168
      %v1315 = vunpack.c.0.s8 %v1314
      %v1316 = vlaneseq
      %v1317 = vshrl.u32 %v1316, 7
      %v1318 = vsub.s32 %v1315, %v1317
      %v1319 = vrot.slane %v1311, %v1318
      %v1321 = vunpack.c.l.s4 1966171168
      %v1322 = vunpack.c.0.s8 %v1321
      %v1323 = vlaneseq
      %v1324 = vshrl.u32 %v1323, 7
      %v1325 = vsub.s32 %v1322, %v1324
      %v1326 = vrot.slane %v1319, %v1325
      %1327 = vrot.lane.b32.xlu0 %v1326, 96
      %v1328 = vpop.permute.xlu0 %1327
      %vm1330 = vcmask 1041152
      %1331 = vst.msk [vmem:[%s182] sm:$0x1] %vm1330, %v1328
      %v1332 = vld [vmem:[#allocation3 + $0x4] sm:$0x3]
      %v1333 = vpack.c.bf16 %v1332, %v1332
      %v1336 = vunpack.c.l.s4 1966171168
      %v1337 = vunpack.c.0.s8 %v1336
      %v1338 = vlaneseq
      %v1339 = vshrl.u32 %v1338, 7
      %v1340 = vsub.s32 %v1337, %v1339
      %v1341 = vrot.slane %v1333, %v1340
      %v1343 = vunpack.c.l.s4 1966171168
      %v1344 = vunpack.c.0.s8 %v1343
      %v1345 = vlaneseq
      %v1346 = vshrl.u32 %v1345, 7
      %v1347 = vsub.s32 %v1344, %v1346
      %v1348 = vrot.slane %v1341, %v1347
      %1349 = vrot.lane.b32.xlu0 %v1348, 96
      %v1350 = vpop.permute.xlu0 %1349
      %s1352 = scalar_lea.vmem %s182, 1
      %1353 = vst.msk [vmem:[%s1352] sm:$0x1] %vm1330, %v1350
      %p1354 = scmp.lt.s32.totalorder %s14, 1
      %s1355 = scalar_select %p1354, %s14, 1
      %s1356 = smul.addr %s1355, 2
      %s1357 = scalar_lea.vmem %s3, %s1356
      // Predicated region
      $region33: #{densenet_forward.23} parent=31 // pred_check
        %p1358 = pneg %p105
      $region34: #{densenet_forward.23} parent=31 // pred_check_branch
        %1360 = sbr.rel (%p1358) target = $region36
      $region35: #{densenet_forward.23} parent=31 // pred_region
        _
      $region36: #{densenet_forward.23} parent=31 // pred_fallthru
        _
    $region32: #{densenet_forward.23} parent=5 // pred_fallthru
      _
    %p1361 = scmp.le.s32.totalorder 2, %s9
    // Predicated region
    $region37: #{densenet_forward.23} parent=5 // pred_check
      %p1362 = pneg %p1361
    $region38: #{densenet_forward.23} parent=5 // pred_check_branch
      %1364 = sbr.rel (%p1362) target = $region40
    $region39: #{densenet_forward.23} parent=5 // pred_region
      %s1365 = ssub.s32 %s9, 2
      // Predicated region
      $region41: #{densenet_forward.23} parent=39 // pred_check
        %p1366 = pneg %p111
      $region42: #{densenet_forward.23} parent=39 // pred_check_branch
        %1368 = sbr.rel (%p1366) target = $region44
      $region43: #{densenet_forward.23} parent=39 // pred_region
        %p1369 = scmp.lt.s32.totalorder %s15, 1
        %s1370 = scalar_select %p1369, %s15, 1
        %s1371 = smul.addr %s1370, 2
        %s1372 = scalar_lea.vmem %s3, %s1371
      $region44: #{densenet_forward.23} parent=39 // pred_fallthru
        _
    $region40: #{densenet_forward.23} parent=5 // pred_fallthru
      _
  $region6: #{densenet_forward.23} parent=0 // loop_footer
    %s13 = sadd.s32 1, %s9
  $region7: #{densenet_forward.23} parent=0 // loop_footer_branch
    %8 = sbr.rel target = $region3
  $region8: #{densenet_forward.23} parent=0 // loop_exit
    _

</llo_original>
